<compile_context>
chip_gen: v7x
topology: tpu7x:2x2x1
jax: 0.10.0
libtpu: 0.0.40
codegen_flags: <defaults>
</compile_context>

<pallas_src>
import jax
import jax.numpy as jnp
from jax.experimental import pallas as pl
from jax.experimental.pallas import tpu as pltpu


def _elu(x):
    # ELU(alpha=1): x if x > 0 else exp(x) - 1.  Clamp the exp argument so the
    # unselected branch never overflows.
    return jnp.where(x > 0, x, jnp.exp(jnp.minimum(x, 0.0)) - 1.0)


def _resnet_block_kernel(xpad_ref, w1_ref, s1_ref, b1_ref,
                         w2_ref, s2_ref, b2_ref, o_ref, mid_ref):
    """One batch element of a fused ResNet basic block (stride=1).

    xpad_ref : (H+2, W+2, Cin)  zero-padded NHWC input slab (VMEM)
    w1_ref   : (3, 3, Cin, C)   conv1 weights, HWIO
    s1/b1    : (1, C)           folded BN1 scale / shift
    w2_ref   : (3, 3, C, C)     conv2 weights, HWIO
    s2/b2    : (1, C)           folded BN2 scale / shift
    o_ref    : (H, W, C)        output slab (VMEM)
    mid_ref  : (H+2, W+2, C)    VMEM scratch: zero-padded conv1 output
    """
    H, W, C = o_ref.shape
    Cin = xpad_ref.shape[-1]

    # ---- conv1: 3x3 pad=1 as 9 shifted-slice GEMMs on the MXU (f32 acc) ----
    acc = jnp.zeros((H * W, C), dtype=jnp.float32)
    for dh in range(3):
        for dw in range(3):
            patch = xpad_ref[pl.ds(dh, H), pl.ds(dw, W), :].reshape(H * W, Cin)
            acc = acc + jnp.dot(patch, w1_ref[dh, dw, :, :],
                                preferred_element_type=jnp.float32)
    # fused BN1 + ELU epilogue
    out1 = _elu(acc * s1_ref[...] + b1_ref[...])

    # stash conv1 result in a zero-padded VMEM scratch (halo for conv2)
    mid_ref[...] = jnp.zeros_like(mid_ref)
    mid_ref[pl.ds(1, H), pl.ds(1, W), :] = out1.reshape(H, W, C)

    # ---- conv2: 3x3 pad=1, same implicit GEMM ----
    acc2 = jnp.zeros((H * W, C), dtype=jnp.float32)
    for dh in range(3):
        for dw in range(3):
            patch = mid_ref[pl.ds(dh, H), pl.ds(dw, W), :].reshape(H * W, C)
            acc2 = acc2 + jnp.dot(patch, w2_ref[dh, dw, :, :],
                                  preferred_element_type=jnp.float32)

    # fused BN2 + residual add + final ELU epilogue
    residual = xpad_ref[pl.ds(1, H), pl.ds(1, W), :].reshape(H * W, C)
    out = _elu(acc2 * s2_ref[...] + b2_ref[...] + residual)
    o_ref[...] = out.reshape(H, W, C).astype(o_ref.dtype)


@jax.jit
def resnet_block_forward(x, w1, g1, b1, m1, v1, w2, g2, b2, m2, v2):
    """Forward of ResnetBuildingBlock (stride=1) with inference-mode BN.

    x  : (N, Cin, H, W)  NCHW float32
    w1 : (C, Cin, 3, 3)  OIHW (PyTorch layout);  w2 : (C, C, 3, 3)
    g/b/m/v : (C,) BatchNorm gamma / beta / running_mean / running_var
    """
    eps = 1e-5
    N, Cin, H, W = x.shape
    C = w1.shape[0]
    assert Cin == C, "identity residual requires inplanes == planes"
    # TODO(synk): stride != 1 path not implemented (the PyTorch block has no
    # downsample, so the residual add only type-checks for stride=1 anyway).
    # TODO(synk): training-mode BN (batch statistics) not implemented; BN is
    # folded as inference-mode per-channel scale/shift.

    # Fold BN (running stats) into per-channel scale & shift.
    s1 = g1 / jnp.sqrt(v1 + eps)
    t1 = b1 - m1 * s1
    s2 = g2 / jnp.sqrt(v2 + eps)
    t2 = b2 - m2 * s2

    # NCHW -> NHWC (channels on lanes) and zero-pad the 3x3 halo once, in HBM.
    x_nhwc = jnp.transpose(x, (0, 2, 3, 1)).astype(jnp.float32)
    x_pad = jnp.pad(x_nhwc, ((0, 0), (1, 1), (1, 1), (0, 0)))
    # OIHW -> HWIO so the per-offset weight slab is a (Cin, Cout) GEMM operand.
    w1_hwio = jnp.transpose(w1, (2, 3, 1, 0)).astype(jnp.float32)
    w2_hwio = jnp.transpose(w2, (2, 3, 1, 0)).astype(jnp.float32)

    out_nhwc = pl.pallas_call(
        _resnet_block_kernel,
        out_shape=jax.ShapeDtypeStruct((N, H, W, C), jnp.float32),
        grid_spec=pltpu.PrefetchScalarGridSpec(
            num_scalar_prefetch=0,
            grid=(N,),
            in_specs=[
                pl.BlockSpec((None, H + 2, W + 2, Cin), lambda n: (n, 0, 0, 0)),
                pl.BlockSpec((3, 3, Cin, C), lambda n: (0, 0, 0, 0)),
                pl.BlockSpec((1, C), lambda n: (0, 0)),
                pl.BlockSpec((1, C), lambda n: (0, 0)),
                pl.BlockSpec((3, 3, C, C), lambda n: (0, 0, 0, 0)),
                pl.BlockSpec((1, C), lambda n: (0, 0)),
                pl.BlockSpec((1, C), lambda n: (0, 0)),
            ],
            out_specs=pl.BlockSpec((None, H, W, C), lambda n: (n, 0, 0, 0)),
            scratch_shapes=[pltpu.VMEM((H + 2, W + 2, C), jnp.float32)],
        ),
        compiler_params=pltpu.CompilerParams(
            dimension_semantics=("parallel",),   # batch split across TCs (v7x)
            vmem_limit_bytes=32 << 20,           # safe on v5e/v6e/v7x
        ),
    )(x_pad, w1_hwio, s1.reshape(1, C), t1.reshape(1, C),
      w2_hwio, s2.reshape(1, C), t2.reshape(1, C))

    return jnp.transpose(out_nhwc, (0, 3, 1, 2))


def _reference_forward(x, w1, g1, b1, m1, v1, w2, g2, b2, m2, v2, eps=1e-5):
    """Pure-JAX (XLA) reference for correctness checking."""
    dn = jax.lax.conv_dimension_numbers(x.shape, w1.shape,
                                        ("NCHW", "OIHW", "NCHW"))

    def conv(a, w):
        return jax.lax.conv_general_dilated(
            a, w, window_strides=(1, 1), padding=((1, 1), (1, 1)),
            dimension_numbers=dn)

    def bn(a, g, b, m, v):
        s = g / jnp.sqrt(v + eps)
        return a * s[None, :, None, None] + (b - m * s)[None, :, None, None]

    out = _elu(bn(conv(x, w1), g1, b1, m1, v1))
    out = bn(conv(out, w2), g2, b2, m2, v2)
    return _elu(out + x)


if __name__ == "__main__":
    key = jax.random.PRNGKey(0)
    keys = jax.random.split(key, 11)

    N, C, H, W = 2, 4, 16, 16  # batch=2, inplanes=planes=4, 16x16 feature map
    x = jax.random.normal(keys[0], (N, C, H, W), dtype=jnp.float32)
    w1 = 0.2 * jax.random.normal(keys[1], (C, C, 3, 3), dtype=jnp.float32)
    w2 = 0.2 * jax.random.normal(keys[2], (C, C, 3, 3), dtype=jnp.float32)
    g1 = 1.0 + 0.1 * jax.random.normal(keys[3], (C,), dtype=jnp.float32)
    b1 = 0.1 * jax.random.normal(keys[4], (C,), dtype=jnp.float32)
    m1 = 0.1 * jax.random.normal(keys[5], (C,), dtype=jnp.float32)
    v1 = jnp.abs(jax.random.normal(keys[6], (C,), dtype=jnp.float32)) + 0.5
    g2 = 1.0 + 0.1 * jax.random.normal(keys[7], (C,), dtype=jnp.float32)
    b2 = 0.1 * jax.random.normal(keys[8], (C,), dtype=jnp.float32)
    m2 = 0.1 * jax.random.normal(keys[9], (C,), dtype=jnp.float32)
    v2 = jnp.abs(jax.random.normal(keys[10], (C,), dtype=jnp.float32)) + 0.5

    y = resnet_block_forward(x, w1, g1, b1, m1, v1, w2, g2, b2, m2, v2)
    y = jax.block_until_ready(y)

    y_ref = _reference_forward(x, w1, g1, b1, m1, v1, w2, g2, b2, m2, v2)
    y_ref = jax.block_until_ready(y_ref)

    assert y.shape == x.shape and y.dtype == x.dtype
    max_err = float(jnp.max(jnp.abs(y - y_ref)))
    assert max_err < 2e-4, f"max abs error too large: {max_err}"
    print("KERNEL_OK")
</pallas_src>

<mosaic_0001>
module attributes {stable_mosaic.version = 11 : i64} {
  func.func @_resnet_block_kernel(%arg0: i32, %arg1: memref<1x18x18x4xf32, #tpu.memory_space<vmem>>, %arg2: memref<3x3x4x4xf32, #tpu.memory_space<vmem>>, %arg3: memref<1x4xf32, #tpu.memory_space<vmem>>, %arg4: memref<1x4xf32, #tpu.memory_space<vmem>>, %arg5: memref<3x3x4x4xf32, #tpu.memory_space<vmem>>, %arg6: memref<1x4xf32, #tpu.memory_space<vmem>>, %arg7: memref<1x4xf32, #tpu.memory_space<vmem>>, %arg8: memref<1x16x16x4xf32, #tpu.memory_space<vmem>>, %arg9: memref<18x18x4xf32, #tpu.memory_space<vmem>>) attributes {dimension_semantics = [#tpu.dimension_semantics<parallel>], iteration_bounds = array<i64: 2>, scalar_prefetch = 0 : i64, scratch_operands = 1 : i64, tpu.core_type = #tpu.core_type<tc>, window_params = [{transform_indices = @transform_0, window_bounds = array<i64: 1, 18, 18, 4>}, {pipeline_mode = #tpu.pipeline_mode<synchronous>, transform_indices = @transform_1, window_bounds = array<i64: 3, 3, 4, 4>}, {pipeline_mode = #tpu.pipeline_mode<synchronous>, transform_indices = @transform_2, window_bounds = array<i64: 1, 4>}, {pipeline_mode = #tpu.pipeline_mode<synchronous>, transform_indices = @transform_3, window_bounds = array<i64: 1, 4>}, {pipeline_mode = #tpu.pipeline_mode<synchronous>, transform_indices = @transform_4, window_bounds = array<i64: 3, 3, 4, 4>}, {pipeline_mode = #tpu.pipeline_mode<synchronous>, transform_indices = @transform_5, window_bounds = array<i64: 1, 4>}, {pipeline_mode = #tpu.pipeline_mode<synchronous>, transform_indices = @transform_6, window_bounds = array<i64: 1, 4>}, {transform_indices = @transform_7, window_bounds = array<i64: 1, 16, 16, 4>}]} {
    %cst = arith.constant 0.000000e+00 : f32
    %0 = vector.broadcast %cst : f32 to vector<256x4xf32>
    %c0 = arith.constant 0 : index
    %c0_0 = arith.constant 0 : index
    %c0_1 = arith.constant 0 : index
    %c0_2 = arith.constant 0 : index
    %1 = vector.load %arg1[%c0, %c0_0, %c0_1, %c0_2] : memref<1x18x18x4xf32, #tpu.memory_space<vmem>>, vector<1x16x16x4xf32>
    %2 = vector.shape_cast %1 : vector<1x16x16x4xf32> to vector<16x16x4xf32>
    %3 = vector.shape_cast %2 : vector<16x16x4xf32> to vector<256x4xf32>
    %c0_3 = arith.constant 0 : index
    %c0_4 = arith.constant 0 : index
    %c0_5 = arith.constant 0 : index
    %c0_6 = arith.constant 0 : index
    %4 = vector.load %arg2[%c0_3, %c0_4, %c0_5, %c0_6] : memref<3x3x4x4xf32, #tpu.memory_space<vmem>>, vector<1x1x4x4xf32>
    %5 = vector.shape_cast %4 : vector<1x1x4x4xf32> to vector<4x4xf32>
    %cst_7 = arith.constant dense<0.000000e+00> : vector<256x4xf32>
    %6 = tpu.matmul %3, %5, %cst_7 {dimension_numbers = #tpu.dot_dimension_numbers<[1], [0], [0], [1], [0, 0, 1, 1], [], []>} : vector<256x4xf32>, vector<4x4xf32>, vector<256x4xf32> -> vector<256x4xf32>
    %7 = arith.addf %0, %6 : vector<256x4xf32>
    %c0_8 = arith.constant 0 : index
    %c0_9 = arith.constant 0 : index
    %c1 = arith.constant 1 : index
    %c0_10 = arith.constant 0 : index
    %8 = vector.load %arg1[%c0_8, %c0_9, %c1, %c0_10] : memref<1x18x18x4xf32, #tpu.memory_space<vmem>>, vector<1x16x16x4xf32>
    %9 = vector.shape_cast %8 : vector<1x16x16x4xf32> to vector<16x16x4xf32>
    %10 = vector.shape_cast %9 : vector<16x16x4xf32> to vector<256x4xf32>
    %c0_11 = arith.constant 0 : index
    %c1_12 = arith.constant 1 : index
    %c0_13 = arith.constant 0 : index
    %c0_14 = arith.constant 0 : index
    %11 = vector.load %arg2[%c0_11, %c1_12, %c0_13, %c0_14] : memref<3x3x4x4xf32, #tpu.memory_space<vmem>>, vector<1x1x4x4xf32>
    %12 = vector.shape_cast %11 : vector<1x1x4x4xf32> to vector<4x4xf32>
    %cst_15 = arith.constant dense<0.000000e+00> : vector<256x4xf32>
    %13 = tpu.matmul %10, %12, %cst_15 {dimension_numbers = #tpu.dot_dimension_numbers<[1], [0], [0], [1], [0, 0, 1, 1], [], []>} : vector<256x4xf32>, vector<4x4xf32>, vector<256x4xf32> -> vector<256x4xf32>
    %14 = arith.addf %7, %13 : vector<256x4xf32>
    %c0_16 = arith.constant 0 : index
    %c0_17 = arith.constant 0 : index
    %c2 = arith.constant 2 : index
    %c0_18 = arith.constant 0 : index
    %15 = vector.load %arg1[%c0_16, %c0_17, %c2, %c0_18] : memref<1x18x18x4xf32, #tpu.memory_space<vmem>>, vector<1x16x16x4xf32>
    %16 = vector.shape_cast %15 : vector<1x16x16x4xf32> to vector<16x16x4xf32>
    %17 = vector.shape_cast %16 : vector<16x16x4xf32> to vector<256x4xf32>
    %c0_19 = arith.constant 0 : index
    %c2_20 = arith.constant 2 : index
    %c0_21 = arith.constant 0 : index
    %c0_22 = arith.constant 0 : index
    %18 = vector.load %arg2[%c0_19, %c2_20, %c0_21, %c0_22] : memref<3x3x4x4xf32, #tpu.memory_space<vmem>>, vector<1x1x4x4xf32>
    %19 = vector.shape_cast %18 : vector<1x1x4x4xf32> to vector<4x4xf32>
    %cst_23 = arith.constant dense<0.000000e+00> : vector<256x4xf32>
    %20 = tpu.matmul %17, %19, %cst_23 {dimension_numbers = #tpu.dot_dimension_numbers<[1], [0], [0], [1], [0, 0, 1, 1], [], []>} : vector<256x4xf32>, vector<4x4xf32>, vector<256x4xf32> -> vector<256x4xf32>
    %21 = arith.addf %14, %20 : vector<256x4xf32>
    %c0_24 = arith.constant 0 : index
    %c1_25 = arith.constant 1 : index
    %c0_26 = arith.constant 0 : index
    %c0_27 = arith.constant 0 : index
    %22 = vector.load %arg1[%c0_24, %c1_25, %c0_26, %c0_27] : memref<1x18x18x4xf32, #tpu.memory_space<vmem>>, vector<1x16x16x4xf32>
    %23 = vector.shape_cast %22 : vector<1x16x16x4xf32> to vector<16x16x4xf32>
    %24 = vector.shape_cast %23 : vector<16x16x4xf32> to vector<256x4xf32>
    %c1_28 = arith.constant 1 : index
    %c0_29 = arith.constant 0 : index
    %c0_30 = arith.constant 0 : index
    %c0_31 = arith.constant 0 : index
    %25 = vector.load %arg2[%c1_28, %c0_29, %c0_30, %c0_31] : memref<3x3x4x4xf32, #tpu.memory_space<vmem>>, vector<1x1x4x4xf32>
    %26 = vector.shape_cast %25 : vector<1x1x4x4xf32> to vector<4x4xf32>
    %cst_32 = arith.constant dense<0.000000e+00> : vector<256x4xf32>
    %27 = tpu.matmul %24, %26, %cst_32 {dimension_numbers = #tpu.dot_dimension_numbers<[1], [0], [0], [1], [0, 0, 1, 1], [], []>} : vector<256x4xf32>, vector<4x4xf32>, vector<256x4xf32> -> vector<256x4xf32>
    %28 = arith.addf %21, %27 : vector<256x4xf32>
    %c0_33 = arith.constant 0 : index
    %c1_34 = arith.constant 1 : index
    %c1_35 = arith.constant 1 : index
    %c0_36 = arith.constant 0 : index
    %29 = vector.load %arg1[%c0_33, %c1_34, %c1_35, %c0_36] : memref<1x18x18x4xf32, #tpu.memory_space<vmem>>, vector<1x16x16x4xf32>
    %30 = vector.shape_cast %29 : vector<1x16x16x4xf32> to vector<16x16x4xf32>
    %31 = vector.shape_cast %30 : vector<16x16x4xf32> to vector<256x4xf32>
    %c1_37 = arith.constant 1 : index
    %c1_38 = arith.constant 1 : index
    %c0_39 = arith.constant 0 : index
    %c0_40 = arith.constant 0 : index
    %32 = vector.load %arg2[%c1_37, %c1_38, %c0_39, %c0_40] : memref<3x3x4x4xf32, #tpu.memory_space<vmem>>, vector<1x1x4x4xf32>
    %33 = vector.shape_cast %32 : vector<1x1x4x4xf32> to vector<4x4xf32>
    %cst_41 = arith.constant dense<0.000000e+00> : vector<256x4xf32>
    %34 = tpu.matmul %31, %33, %cst_41 {dimension_numbers = #tpu.dot_dimension_numbers<[1], [0], [0], [1], [0, 0, 1, 1], [], []>} : vector<256x4xf32>, vector<4x4xf32>, vector<256x4xf32> -> vector<256x4xf32>
    %35 = arith.addf %28, %34 : vector<256x4xf32>
    %c0_42 = arith.constant 0 : index
    %c1_43 = arith.constant 1 : index
    %c2_44 = arith.constant 2 : index
    %c0_45 = arith.constant 0 : index
    %36 = vector.load %arg1[%c0_42, %c1_43, %c2_44, %c0_45] : memref<1x18x18x4xf32, #tpu.memory_space<vmem>>, vector<1x16x16x4xf32>
    %37 = vector.shape_cast %36 : vector<1x16x16x4xf32> to vector<16x16x4xf32>
    %38 = vector.shape_cast %37 : vector<16x16x4xf32> to vector<256x4xf32>
    %c1_46 = arith.constant 1 : index
    %c2_47 = arith.constant 2 : index
    %c0_48 = arith.constant 0 : index
    %c0_49 = arith.constant 0 : index
    %39 = vector.load %arg2[%c1_46, %c2_47, %c0_48, %c0_49] : memref<3x3x4x4xf32, #tpu.memory_space<vmem>>, vector<1x1x4x4xf32>
    %40 = vector.shape_cast %39 : vector<1x1x4x4xf32> to vector<4x4xf32>
    %cst_50 = arith.constant dense<0.000000e+00> : vector<256x4xf32>
    %41 = tpu.matmul %38, %40, %cst_50 {dimension_numbers = #tpu.dot_dimension_numbers<[1], [0], [0], [1], [0, 0, 1, 1], [], []>} : vector<256x4xf32>, vector<4x4xf32>, vector<256x4xf32> -> vector<256x4xf32>
    %42 = arith.addf %35, %41 : vector<256x4xf32>
    %c0_51 = arith.constant 0 : index
    %c2_52 = arith.constant 2 : index
    %c0_53 = arith.constant 0 : index
    %c0_54 = arith.constant 0 : index
    %43 = vector.load %arg1[%c0_51, %c2_52, %c0_53, %c0_54] : memref<1x18x18x4xf32, #tpu.memory_space<vmem>>, vector<1x16x16x4xf32>
    %44 = vector.shape_cast %43 : vector<1x16x16x4xf32> to vector<16x16x4xf32>
    %45 = vector.shape_cast %44 : vector<16x16x4xf32> to vector<256x4xf32>
    %c2_55 = arith.constant 2 : index
    %c0_56 = arith.constant 0 : index
    %c0_57 = arith.constant 0 : index
    %c0_58 = arith.constant 0 : index
    %46 = vector.load %arg2[%c2_55, %c0_56, %c0_57, %c0_58] : memref<3x3x4x4xf32, #tpu.memory_space<vmem>>, vector<1x1x4x4xf32>
    %47 = vector.shape_cast %46 : vector<1x1x4x4xf32> to vector<4x4xf32>
    %cst_59 = arith.constant dense<0.000000e+00> : vector<256x4xf32>
    %48 = tpu.matmul %45, %47, %cst_59 {dimension_numbers = #tpu.dot_dimension_numbers<[1], [0], [0], [1], [0, 0, 1, 1], [], []>} : vector<256x4xf32>, vector<4x4xf32>, vector<256x4xf32> -> vector<256x4xf32>
    %49 = arith.addf %42, %48 : vector<256x4xf32>
    %c0_60 = arith.constant 0 : index
    %c2_61 = arith.constant 2 : index
    %c1_62 = arith.constant 1 : index
    %c0_63 = arith.constant 0 : index
    %50 = vector.load %arg1[%c0_60, %c2_61, %c1_62, %c0_63] : memref<1x18x18x4xf32, #tpu.memory_space<vmem>>, vector<1x16x16x4xf32>
    %51 = vector.shape_cast %50 : vector<1x16x16x4xf32> to vector<16x16x4xf32>
    %52 = vector.shape_cast %51 : vector<16x16x4xf32> to vector<256x4xf32>
    %c2_64 = arith.constant 2 : index
    %c1_65 = arith.constant 1 : index
    %c0_66 = arith.constant 0 : index
    %c0_67 = arith.constant 0 : index
    %53 = vector.load %arg2[%c2_64, %c1_65, %c0_66, %c0_67] : memref<3x3x4x4xf32, #tpu.memory_space<vmem>>, vector<1x1x4x4xf32>
    %54 = vector.shape_cast %53 : vector<1x1x4x4xf32> to vector<4x4xf32>
    %cst_68 = arith.constant dense<0.000000e+00> : vector<256x4xf32>
    %55 = tpu.matmul %52, %54, %cst_68 {dimension_numbers = #tpu.dot_dimension_numbers<[1], [0], [0], [1], [0, 0, 1, 1], [], []>} : vector<256x4xf32>, vector<4x4xf32>, vector<256x4xf32> -> vector<256x4xf32>
    %56 = arith.addf %49, %55 : vector<256x4xf32>
    %c0_69 = arith.constant 0 : index
    %c2_70 = arith.constant 2 : index
    %c2_71 = arith.constant 2 : index
    %c0_72 = arith.constant 0 : index
    %57 = vector.load %arg1[%c0_69, %c2_70, %c2_71, %c0_72] : memref<1x18x18x4xf32, #tpu.memory_space<vmem>>, vector<1x16x16x4xf32>
    %58 = vector.shape_cast %57 : vector<1x16x16x4xf32> to vector<16x16x4xf32>
    %59 = vector.shape_cast %58 : vector<16x16x4xf32> to vector<256x4xf32>
    %c2_73 = arith.constant 2 : index
    %c2_74 = arith.constant 2 : index
    %c0_75 = arith.constant 0 : index
    %c0_76 = arith.constant 0 : index
    %60 = vector.load %arg2[%c2_73, %c2_74, %c0_75, %c0_76] : memref<3x3x4x4xf32, #tpu.memory_space<vmem>>, vector<1x1x4x4xf32>
    %61 = vector.shape_cast %60 : vector<1x1x4x4xf32> to vector<4x4xf32>
    %cst_77 = arith.constant dense<0.000000e+00> : vector<256x4xf32>
    %62 = tpu.matmul %59, %61, %cst_77 {dimension_numbers = #tpu.dot_dimension_numbers<[1], [0], [0], [1], [0, 0, 1, 1], [], []>} : vector<256x4xf32>, vector<4x4xf32>, vector<256x4xf32> -> vector<256x4xf32>
    %63 = arith.addf %56, %62 : vector<256x4xf32>
    %c0_78 = arith.constant 0 : index
    %c0_79 = arith.constant 0 : index
    %64 = vector.load %arg3[%c0_78, %c0_79] : memref<1x4xf32, #tpu.memory_space<vmem>>, vector<1x4xf32>
    %65 = vector.broadcast %64 : vector<1x4xf32> to vector<256x4xf32>
    %66 = arith.mulf %63, %65 : vector<256x4xf32>
    %c0_80 = arith.constant 0 : index
    %c0_81 = arith.constant 0 : index
    %67 = vector.load %arg4[%c0_80, %c0_81] : memref<1x4xf32, #tpu.memory_space<vmem>>, vector<1x4xf32>
    %68 = vector.broadcast %67 : vector<1x4xf32> to vector<256x4xf32>
    %69 = arith.addf %66, %68 : vector<256x4xf32>
    %cst_82 = arith.constant 0.000000e+00 : f32
    %70 = vector.broadcast %cst_82 : f32 to vector<256x4xf32>
    %71 = arith.cmpf ogt, %69, %70 : vector<256x4xf32>
    %cst_83 = arith.constant 0.000000e+00 : f32
    %72 = vector.broadcast %cst_83 : f32 to vector<256x4xf32>
    %73 = arith.minimumf %69, %72 : vector<256x4xf32>
    %74 = math.exp %73 : vector<256x4xf32>
    %cst_84 = arith.constant 1.000000e+00 : f32
    %75 = vector.broadcast %cst_84 : f32 to vector<256x4xf32>
    %76 = arith.subf %74, %75 : vector<256x4xf32>
    %77 = arith.select %71, %69, %76 : vector<256x4xi1>, vector<256x4xf32>
    %cst_85 = arith.constant 0.000000e+00 : f32
    %78 = vector.broadcast %cst_85 : f32 to vector<18x18x4xf32>
    %c0_86 = arith.constant 0 : index
    %c0_87 = arith.constant 0 : index
    %c0_88 = arith.constant 0 : index
    %79 = vector.load %arg9[%c0_86, %c0_87, %c0_88] : memref<18x18x4xf32, #tpu.memory_space<vmem>>, vector<18x18x4xf32>
    tpu.vector_store %arg9[%c0_86, %c0_87, %c0_88], %78 {strides = array<i32>} : memref<18x18x4xf32, #tpu.memory_space<vmem>>, vector<18x18x4xf32>,
    %80 = vector.shape_cast %77 : vector<256x4xf32> to vector<16x16x4xf32>
    %c1_89 = arith.constant 1 : index
    %c1_90 = arith.constant 1 : index
    %c0_91 = arith.constant 0 : index
    %81 = vector.load %arg9[%c1_89, %c1_90, %c0_91] : memref<18x18x4xf32, #tpu.memory_space<vmem>>, vector<16x16x4xf32>
    tpu.vector_store %arg9[%c1_89, %c1_90, %c0_91], %80 {strides = array<i32>} : memref<18x18x4xf32, #tpu.memory_space<vmem>>, vector<16x16x4xf32>,
    %cst_92 = arith.constant 0.000000e+00 : f32
    %82 = vector.broadcast %cst_92 : f32 to vector<256x4xf32>
    %c0_93 = arith.constant 0 : index
    %c0_94 = arith.constant 0 : index
    %c0_95 = arith.constant 0 : index
    %83 = vector.load %arg9[%c0_93, %c0_94, %c0_95] : memref<18x18x4xf32, #tpu.memory_space<vmem>>, vector<16x16x4xf32>
    %84 = vector.shape_cast %83 : vector<16x16x4xf32> to vector<256x4xf32>
    %c0_96 = arith.constant 0 : index
    %c0_97 = arith.constant 0 : index
    %c0_98 = arith.constant 0 : index
    %c0_99 = arith.constant 0 : index
    %85 = vector.load %arg5[%c0_96, %c0_97, %c0_98, %c0_99] : memref<3x3x4x4xf32, #tpu.memory_space<vmem>>, vector<1x1x4x4xf32>
    %86 = vector.shape_cast %85 : vector<1x1x4x4xf32> to vector<4x4xf32>
    %cst_100 = arith.constant dense<0.000000e+00> : vector<256x4xf32>
    %87 = tpu.matmul %84, %86, %cst_100 {dimension_numbers = #tpu.dot_dimension_numbers<[1], [0], [0], [1], [0, 0, 1, 1], [], []>} : vector<256x4xf32>, vector<4x4xf32>, vector<256x4xf32> -> vector<256x4xf32>
    %88 = arith.addf %82, %87 : vector<256x4xf32>
    %c0_101 = arith.constant 0 : index
    %c1_102 = arith.constant 1 : index
    %c0_103 = arith.constant 0 : index
    %89 = vector.load %arg9[%c0_101, %c1_102, %c0_103] : memref<18x18x4xf32, #tpu.memory_space<vmem>>, vector<16x16x4xf32>
    %90 = vector.shape_cast %89 : vector<16x16x4xf32> to vector<256x4xf32>
    %c0_104 = arith.constant 0 : index
    %c1_105 = arith.constant 1 : index
    %c0_106 = arith.constant 0 : index
    %c0_107 = arith.constant 0 : index
    %91 = vector.load %arg5[%c0_104, %c1_105, %c0_106, %c0_107] : memref<3x3x4x4xf32, #tpu.memory_space<vmem>>, vector<1x1x4x4xf32>
    %92 = vector.shape_cast %91 : vector<1x1x4x4xf32> to vector<4x4xf32>
    %cst_108 = arith.constant dense<0.000000e+00> : vector<256x4xf32>
    %93 = tpu.matmul %90, %92, %cst_108 {dimension_numbers = #tpu.dot_dimension_numbers<[1], [0], [0], [1], [0, 0, 1, 1], [], []>} : vector<256x4xf32>, vector<4x4xf32>, vector<256x4xf32> -> vector<256x4xf32>
    %94 = arith.addf %88, %93 : vector<256x4xf32>
    %c0_109 = arith.constant 0 : index
    %c2_110 = arith.constant 2 : index
    %c0_111 = arith.constant 0 : index
    %95 = vector.load %arg9[%c0_109, %c2_110, %c0_111] : memref<18x18x4xf32, #tpu.memory_space<vmem>>, vector<16x16x4xf32>
    %96 = vector.shape_cast %95 : vector<16x16x4xf32> to vector<256x4xf32>
    %c0_112 = arith.constant 0 : index
    %c2_113 = arith.constant 2 : index
    %c0_114 = arith.constant 0 : index
    %c0_115 = arith.constant 0 : index
    %97 = vector.load %arg5[%c0_112, %c2_113, %c0_114, %c0_115] : memref<3x3x4x4xf32, #tpu.memory_space<vmem>>, vector<1x1x4x4xf32>
    %98 = vector.shape_cast %97 : vector<1x1x4x4xf32> to vector<4x4xf32>
    %cst_116 = arith.constant dense<0.000000e+00> : vector<256x4xf32>
    %99 = tpu.matmul %96, %98, %cst_116 {dimension_numbers = #tpu.dot_dimension_numbers<[1], [0], [0], [1], [0, 0, 1, 1], [], []>} : vector<256x4xf32>, vector<4x4xf32>, vector<256x4xf32> -> vector<256x4xf32>
    %100 = arith.addf %94, %99 : vector<256x4xf32>
    %c1_117 = arith.constant 1 : index
    %c0_118 = arith.constant 0 : index
    %c0_119 = arith.constant 0 : index
    %101 = vector.load %arg9[%c1_117, %c0_118, %c0_119] : memref<18x18x4xf32, #tpu.memory_space<vmem>>, vector<16x16x4xf32>
    %102 = vector.shape_cast %101 : vector<16x16x4xf32> to vector<256x4xf32>
    %c1_120 = arith.constant 1 : index
    %c0_121 = arith.constant 0 : index
    %c0_122 = arith.constant 0 : index
    %c0_123 = arith.constant 0 : index
    %103 = vector.load %arg5[%c1_120, %c0_121, %c0_122, %c0_123] : memref<3x3x4x4xf32, #tpu.memory_space<vmem>>, vector<1x1x4x4xf32>
    %104 = vector.shape_cast %103 : vector<1x1x4x4xf32> to vector<4x4xf32>
    %cst_124 = arith.constant dense<0.000000e+00> : vector<256x4xf32>
    %105 = tpu.matmul %102, %104, %cst_124 {dimension_numbers = #tpu.dot_dimension_numbers<[1], [0], [0], [1], [0, 0, 1, 1], [], []>} : vector<256x4xf32>, vector<4x4xf32>, vector<256x4xf32> -> vector<256x4xf32>
    %106 = arith.addf %100, %105 : vector<256x4xf32>
    %c1_125 = arith.constant 1 : index
    %c1_126 = arith.constant 1 : index
    %c0_127 = arith.constant 0 : index
    %107 = vector.load %arg9[%c1_125, %c1_126, %c0_127] : memref<18x18x4xf32, #tpu.memory_space<vmem>>, vector<16x16x4xf32>
    %108 = vector.shape_cast %107 : vector<16x16x4xf32> to vector<256x4xf32>
    %c1_128 = arith.constant 1 : index
    %c1_129 = arith.constant 1 : index
    %c0_130 = arith.constant 0 : index
    %c0_131 = arith.constant 0 : index
    %109 = vector.load %arg5[%c1_128, %c1_129, %c0_130, %c0_131] : memref<3x3x4x4xf32, #tpu.memory_space<vmem>>, vector<1x1x4x4xf32>
    %110 = vector.shape_cast %109 : vector<1x1x4x4xf32> to vector<4x4xf32>
    %cst_132 = arith.constant dense<0.000000e+00> : vector<256x4xf32>
    %111 = tpu.matmul %108, %110, %cst_132 {dimension_numbers = #tpu.dot_dimension_numbers<[1], [0], [0], [1], [0, 0, 1, 1], [], []>} : vector<256x4xf32>, vector<4x4xf32>, vector<256x4xf32> -> vector<256x4xf32>
    %112 = arith.addf %106, %111 : vector<256x4xf32>
    %c1_133 = arith.constant 1 : index
    %c2_134 = arith.constant 2 : index
    %c0_135 = arith.constant 0 : index
    %113 = vector.load %arg9[%c1_133, %c2_134, %c0_135] : memref<18x18x4xf32, #tpu.memory_space<vmem>>, vector<16x16x4xf32>
    %114 = vector.shape_cast %113 : vector<16x16x4xf32> to vector<256x4xf32>
    %c1_136 = arith.constant 1 : index
    %c2_137 = arith.constant 2 : index
    %c0_138 = arith.constant 0 : index
    %c0_139 = arith.constant 0 : index
    %115 = vector.load %arg5[%c1_136, %c2_137, %c0_138, %c0_139] : memref<3x3x4x4xf32, #tpu.memory_space<vmem>>, vector<1x1x4x4xf32>
    %116 = vector.shape_cast %115 : vector<1x1x4x4xf32> to vector<4x4xf32>
    %cst_140 = arith.constant dense<0.000000e+00> : vector<256x4xf32>
    %117 = tpu.matmul %114, %116, %cst_140 {dimension_numbers = #tpu.dot_dimension_numbers<[1], [0], [0], [1], [0, 0, 1, 1], [], []>} : vector<256x4xf32>, vector<4x4xf32>, vector<256x4xf32> -> vector<256x4xf32>
    %118 = arith.addf %112, %117 : vector<256x4xf32>
    %c2_141 = arith.constant 2 : index
    %c0_142 = arith.constant 0 : index
    %c0_143 = arith.constant 0 : index
    %119 = vector.load %arg9[%c2_141, %c0_142, %c0_143] : memref<18x18x4xf32, #tpu.memory_space<vmem>>, vector<16x16x4xf32>
    %120 = vector.shape_cast %119 : vector<16x16x4xf32> to vector<256x4xf32>
    %c2_144 = arith.constant 2 : index
    %c0_145 = arith.constant 0 : index
    %c0_146 = arith.constant 0 : index
    %c0_147 = arith.constant 0 : index
    %121 = vector.load %arg5[%c2_144, %c0_145, %c0_146, %c0_147] : memref<3x3x4x4xf32, #tpu.memory_space<vmem>>, vector<1x1x4x4xf32>
    %122 = vector.shape_cast %121 : vector<1x1x4x4xf32> to vector<4x4xf32>
    %cst_148 = arith.constant dense<0.000000e+00> : vector<256x4xf32>
    %123 = tpu.matmul %120, %122, %cst_148 {dimension_numbers = #tpu.dot_dimension_numbers<[1], [0], [0], [1], [0, 0, 1, 1], [], []>} : vector<256x4xf32>, vector<4x4xf32>, vector<256x4xf32> -> vector<256x4xf32>
    %124 = arith.addf %118, %123 : vector<256x4xf32>
    %c2_149 = arith.constant 2 : index
    %c1_150 = arith.constant 1 : index
    %c0_151 = arith.constant 0 : index
    %125 = vector.load %arg9[%c2_149, %c1_150, %c0_151] : memref<18x18x4xf32, #tpu.memory_space<vmem>>, vector<16x16x4xf32>
    %126 = vector.shape_cast %125 : vector<16x16x4xf32> to vector<256x4xf32>
    %c2_152 = arith.constant 2 : index
    %c1_153 = arith.constant 1 : index
    %c0_154 = arith.constant 0 : index
    %c0_155 = arith.constant 0 : index
    %127 = vector.load %arg5[%c2_152, %c1_153, %c0_154, %c0_155] : memref<3x3x4x4xf32, #tpu.memory_space<vmem>>, vector<1x1x4x4xf32>
    %128 = vector.shape_cast %127 : vector<1x1x4x4xf32> to vector<4x4xf32>
    %cst_156 = arith.constant dense<0.000000e+00> : vector<256x4xf32>
    %129 = tpu.matmul %126, %128, %cst_156 {dimension_numbers = #tpu.dot_dimension_numbers<[1], [0], [0], [1], [0, 0, 1, 1], [], []>} : vector<256x4xf32>, vector<4x4xf32>, vector<256x4xf32> -> vector<256x4xf32>
    %130 = arith.addf %124, %129 : vector<256x4xf32>
    %c2_157 = arith.constant 2 : index
    %c2_158 = arith.constant 2 : index
    %c0_159 = arith.constant 0 : index
    %131 = vector.load %arg9[%c2_157, %c2_158, %c0_159] : memref<18x18x4xf32, #tpu.memory_space<vmem>>, vector<16x16x4xf32>
    %132 = vector.shape_cast %131 : vector<16x16x4xf32> to vector<256x4xf32>
    %c2_160 = arith.constant 2 : index
    %c2_161 = arith.constant 2 : index
    %c0_162 = arith.constant 0 : index
    %c0_163 = arith.constant 0 : index
    %133 = vector.load %arg5[%c2_160, %c2_161, %c0_162, %c0_163] : memref<3x3x4x4xf32, #tpu.memory_space<vmem>>, vector<1x1x4x4xf32>
    %134 = vector.shape_cast %133 : vector<1x1x4x4xf32> to vector<4x4xf32>
    %cst_164 = arith.constant dense<0.000000e+00> : vector<256x4xf32>
    %135 = tpu.matmul %132, %134, %cst_164 {dimension_numbers = #tpu.dot_dimension_numbers<[1], [0], [0], [1], [0, 0, 1, 1], [], []>} : vector<256x4xf32>, vector<4x4xf32>, vector<256x4xf32> -> vector<256x4xf32>
    %136 = arith.addf %130, %135 : vector<256x4xf32>
    %c0_165 = arith.constant 0 : index
    %c1_166 = arith.constant 1 : index
    %c1_167 = arith.constant 1 : index
    %c0_168 = arith.constant 0 : index
    %137 = vector.load %arg1[%c0_165, %c1_166, %c1_167, %c0_168] : memref<1x18x18x4xf32, #tpu.memory_space<vmem>>, vector<1x16x16x4xf32>
    %138 = vector.shape_cast %137 : vector<1x16x16x4xf32> to vector<16x16x4xf32>
    %139 = vector.shape_cast %138 : vector<16x16x4xf32> to vector<256x4xf32>
    %c0_169 = arith.constant 0 : index
    %c0_170 = arith.constant 0 : index
    %140 = vector.load %arg6[%c0_169, %c0_170] : memref<1x4xf32, #tpu.memory_space<vmem>>, vector<1x4xf32>
    %141 = vector.broadcast %140 : vector<1x4xf32> to vector<256x4xf32>
    %142 = arith.mulf %136, %141 : vector<256x4xf32>
    %c0_171 = arith.constant 0 : index
    %c0_172 = arith.constant 0 : index
    %143 = vector.load %arg7[%c0_171, %c0_172] : memref<1x4xf32, #tpu.memory_space<vmem>>, vector<1x4xf32>
    %144 = vector.broadcast %143 : vector<1x4xf32> to vector<256x4xf32>
    %145 = arith.addf %142, %144 : vector<256x4xf32>
    %146 = arith.addf %145, %139 : vector<256x4xf32>
    %cst_173 = arith.constant 0.000000e+00 : f32
    %147 = vector.broadcast %cst_173 : f32 to vector<256x4xf32>
    %148 = arith.cmpf ogt, %146, %147 : vector<256x4xf32>
    %cst_174 = arith.constant 0.000000e+00 : f32
    %149 = vector.broadcast %cst_174 : f32 to vector<256x4xf32>
    %150 = arith.minimumf %146, %149 : vector<256x4xf32>
    %151 = math.exp %150 : vector<256x4xf32>
    %cst_175 = arith.constant 1.000000e+00 : f32
    %152 = vector.broadcast %cst_175 : f32 to vector<256x4xf32>
    %153 = arith.subf %151, %152 : vector<256x4xf32>
    %154 = arith.select %148, %146, %153 : vector<256x4xi1>, vector<256x4xf32>
    %155 = vector.shape_cast %154 : vector<256x4xf32> to vector<16x16x4xf32>
    %c0_176 = arith.constant 0 : index
    %c0_177 = arith.constant 0 : index
    %c0_178 = arith.constant 0 : index
    %c0_179 = arith.constant 0 : index
    %156 = vector.load %arg8[%c0_176, %c0_177, %c0_178, %c0_179] : memref<1x16x16x4xf32, #tpu.memory_space<vmem>>, vector<1x16x16x4xf32>
    %157 = vector.shape_cast %156 : vector<1x16x16x4xf32> to vector<16x16x4xf32>
    %158 = vector.shape_cast %155 : vector<16x16x4xf32> to vector<1x16x16x4xf32>
    tpu.vector_store %arg8[%c0_176, %c0_177, %c0_178, %c0_179], %158 {strides = array<i32>} : memref<1x16x16x4xf32, #tpu.memory_space<vmem>>, vector<1x16x16x4xf32>,
    return
  }
  func.func @transform_0(%arg0: i32) -> (i32, i32, i32, i32) {
    %c0_i32 = arith.constant 0 : i32
    %c0_i32_0 = arith.constant 0 : i32
    %c0_i32_1 = arith.constant 0 : i32
    %c0_i32_2 = arith.constant 0 : i32
    return %arg0, %c0_i32, %c0_i32_0, %c0_i32_1 : i32, i32, i32, i32
  }
  func.func @transform_1(%arg0: i32) -> (i32, i32, i32, i32) {
    %c0_i32 = arith.constant 0 : i32
    %c0_i32_0 = arith.constant 0 : i32
    %c0_i32_1 = arith.constant 0 : i32
    %c0_i32_2 = arith.constant 0 : i32
    %c0_i32_3 = arith.constant 0 : i32
    return %c0_i32, %c0_i32_0, %c0_i32_1, %c0_i32_2 : i32, i32, i32, i32
  }
  func.func @transform_2(%arg0: i32) -> (i32, i32) {
    %c0_i32 = arith.constant 0 : i32
    %c0_i32_0 = arith.constant 0 : i32
    %c0_i32_1 = arith.constant 0 : i32
    return %c0_i32, %c0_i32_0 : i32, i32
  }
  func.func @transform_3(%arg0: i32) -> (i32, i32) {
    %c0_i32 = arith.constant 0 : i32
    %c0_i32_0 = arith.constant 0 : i32
    %c0_i32_1 = arith.constant 0 : i32
    return %c0_i32, %c0_i32_0 : i32, i32
  }
  func.func @transform_4(%arg0: i32) -> (i32, i32, i32, i32) {
    %c0_i32 = arith.constant 0 : i32
    %c0_i32_0 = arith.constant 0 : i32
    %c0_i32_1 = arith.constant 0 : i32
    %c0_i32_2 = arith.constant 0 : i32
    %c0_i32_3 = arith.constant 0 : i32
    return %c0_i32, %c0_i32_0, %c0_i32_1, %c0_i32_2 : i32, i32, i32, i32
  }
  func.func @transform_5(%arg0: i32) -> (i32, i32) {
    %c0_i32 = arith.constant 0 : i32
    %c0_i32_0 = arith.constant 0 : i32
    %c0_i32_1 = arith.constant 0 : i32
    return %c0_i32, %c0_i32_0 : i32, i32
  }
  func.func @transform_6(%arg0: i32) -> (i32, i32) {
    %c0_i32 = arith.constant 0 : i32
    %c0_i32_0 = arith.constant 0 : i32
    %c0_i32_1 = arith.constant 0 : i32
    return %c0_i32, %c0_i32_0 : i32, i32
  }
  func.func @transform_7(%arg0: i32) -> (i32, i32, i32, i32) {
    %c0_i32 = arith.constant 0 : i32
    %c0_i32_0 = arith.constant 0 : i32
    %c0_i32_1 = arith.constant 0 : i32
    %c0_i32_2 = arith.constant 0 : i32
    return %arg0, %c0_i32, %c0_i32_0, %c0_i32_1 : i32, i32, i32, i32
  }
}

</mosaic_0001>

<llo_original>
// kernel: resnet_block_forward.1
$region0: #{resnet_block_forward.1}
  #allocation0 [shape = 'u32[]', space=smem, size = 0x4, offset = 0x4, fixed_abs, tag = 'smem constant byte address 0x4 - core index']
  #allocation1 [shape = 'u32[144,128]{1,0:T(1,128)}', space=vmem, size = 0x12000, scoped, tag = 'internal scratch']
  #allocation2 [shape = 'f32[18,18,4]{2,1,0:T(8,128)}', space=vmem, size = 0x36000, scoped, tag = 'scratch operand']
  %s0 = inlined_call_operand.vmem [shape: f32[2,18,18,4], index: 0, kind: input, shape index: {}]
  %s1 = inlined_call_operand.vmem [shape: f32[3,3,4,4], index: 1, kind: input, shape index: {}]
  %s2 = inlined_call_operand.vmem [shape: f32[1,4], index: 2, kind: input, shape index: {}]
  %s3 = inlined_call_operand.vmem [shape: f32[1,4], index: 3, kind: input, shape index: {}]
  %s4 = inlined_call_operand.vmem [shape: f32[3,3,4,4], index: 4, kind: input, shape index: {}]
  %s5 = inlined_call_operand.vmem [shape: f32[1,4], index: 5, kind: input, shape index: {}]
  %s6 = inlined_call_operand.vmem [shape: f32[1,4], index: 6, kind: input, shape index: {}]
  %s7 = inlined_call_operand.vmem [shape: f32[2,16,16,4], index: 7, kind: output, shape index: {}]
  %s8 = sld [smem:[#allocation0]]
  $region61: #{resnet_block_forward.1} parent=0
    _
  %s10 = ssub.s32 1, %s8
  %s11 = scalar_select 0, %s10, %s8
  loop: start=0, step=1, limit=4
  $region2: #{resnet_block_forward.1} parent=0 // loop_pre_header
    _
  $region3: #{resnet_block_forward.1} parent=0 // loop_header
    %s13 = sphi 0, %s17
    %p14 = scmp.ge.s32.totalorder %s13, 4
    %s23 = sphi 0, %s25
    %s26 = sphi 0, %s23
    %s27 = sphi 0, %s26
    %s43 = sphi 0, %s27
    %s47 = sphi 0, %s47
    %s49 = sphi 0, %s47
    %s50 = sphi 0, %s49
    %s64 = sphi 0, %s50
    %s68 = sphi 0, %s68
    %s70 = sphi 0, %s68
    %s71 = sphi 0, %s70
    %s85 = sphi 0, %s71
    %s89 = sphi 0, %s89
    %s91 = sphi 0, %s89
    %s92 = sphi 0, %s91
    %s106 = sphi 0, %s92
    %s110 = sphi 0, %s110
    %s112 = sphi 0, %s110
    %s113 = sphi 0, %s112
    %s127 = sphi 0, %s113
    %s131 = sphi 0, %s131
    %s133 = sphi 0, %s131
    %s134 = sphi 0, %s133
    %s148 = sphi 0, %s134
    %s152 = sphi 0, %s152
    %s154 = sphi 0, %s152
    %s155 = sphi 0, %s154
    %s169 = sphi 0, %s155
    %s175 = sphi 0, %s177
    %s178 = sphi 0, %s175
    %s179 = sphi 0, %s178
    %s195 = sphi 0, %s179
  $region4: #{resnet_block_forward.1} parent=0 // loop_header_branch
    %16 = sbr.rel (%p14) target = $region8
  $region5: #{resnet_block_forward.1} parent=0 // loop_body
    %s18 = ssub.s32 %s13, 1
    %s19 = ssub.s32 %s13, 2
    %s20 = sadd.s32 %s13, 1
    %s21 = ssub.s32 %s13, %s20
    %p22 = scmp.eq.s32.totalorder %s21, 0
    %s24 = sadd.s32 %s23, 1
    %s25 = scalar_select %p22, %s23, %s24
    %p28 = pneg %p22
    %p29 = scmp.eq.s32.totalorder %s13, 1
    %p30 = por %p28, %p29
    %p31 = scmp.ne.s32.totalorder %s23, %s26
    %p32 = scmp.eq.s32.totalorder %s13, 0
    %p33 = por %p31, %p32
    %p34 = scmp.ne.s32.totalorder %s23, %s26
    %p35 = scmp.eq.s32.totalorder %s18, 1
    %p36 = por %p34, %p35
    %p37 = scmp.ne.s32.totalorder %s26, %s27
    %p38 = scmp.eq.s32.totalorder %s18, 0
    %p39 = por %p37, %p38
    %p40 = scmp.ne.s32.totalorder %s26, %s27
    %p41 = scmp.eq.s32.totalorder %s19, 1
    %p42 = por %p40, %p41
    %p44 = scmp.ne.s32.totalorder %s27, %s43
    %p45 = scmp.eq.s32.totalorder %s19, 0
    %p46 = por %p44, %p45
    %s48 = sadd.s32 %s47, 1
    %p51 = scmp.eq.s32.totalorder %s13, 1
    %p52 = scmp.ne.s32.totalorder %s47, %s49
    %p53 = scmp.eq.s32.totalorder %s13, 0
    %p54 = por %p52, %p53
    %p55 = scmp.ne.s32.totalorder %s47, %s49
    %p56 = scmp.eq.s32.totalorder %s18, 1
    %p57 = por %p55, %p56
    %p58 = scmp.ne.s32.totalorder %s49, %s50
    %p59 = scmp.eq.s32.totalorder %s18, 0
    %p60 = por %p58, %p59
    %p61 = scmp.ne.s32.totalorder %s49, %s50
    %p62 = scmp.eq.s32.totalorder %s19, 1
    %p63 = por %p61, %p62
    %p65 = scmp.ne.s32.totalorder %s50, %s64
    %p66 = scmp.eq.s32.totalorder %s19, 0
    %p67 = por %p65, %p66
    %s69 = sadd.s32 %s68, 1
    %p72 = scmp.eq.s32.totalorder %s13, 1
    %p73 = scmp.ne.s32.totalorder %s68, %s70
    %p74 = scmp.eq.s32.totalorder %s13, 0
    %p75 = por %p73, %p74
    %p76 = scmp.ne.s32.totalorder %s68, %s70
    %p77 = scmp.eq.s32.totalorder %s18, 1
    %p78 = por %p76, %p77
    %p79 = scmp.ne.s32.totalorder %s70, %s71
    %p80 = scmp.eq.s32.totalorder %s18, 0
    %p81 = por %p79, %p80
    %p82 = scmp.ne.s32.totalorder %s70, %s71
    %p83 = scmp.eq.s32.totalorder %s19, 1
    %p84 = por %p82, %p83
    %p86 = scmp.ne.s32.totalorder %s71, %s85
    %p87 = scmp.eq.s32.totalorder %s19, 0
    %p88 = por %p86, %p87
    %s90 = sadd.s32 %s89, 1
    %p93 = scmp.eq.s32.totalorder %s13, 1
    %p94 = scmp.ne.s32.totalorder %s89, %s91
    %p95 = scmp.eq.s32.totalorder %s13, 0
    %p96 = por %p94, %p95
    %p97 = scmp.ne.s32.totalorder %s89, %s91
    %p98 = scmp.eq.s32.totalorder %s18, 1
    %p99 = por %p97, %p98
    %p100 = scmp.ne.s32.totalorder %s91, %s92
    %p101 = scmp.eq.s32.totalorder %s18, 0
    %p102 = por %p100, %p101
    %p103 = scmp.ne.s32.totalorder %s91, %s92
    %p104 = scmp.eq.s32.totalorder %s19, 1
    %p105 = por %p103, %p104
    %p107 = scmp.ne.s32.totalorder %s92, %s106
    %p108 = scmp.eq.s32.totalorder %s19, 0
    %p109 = por %p107, %p108
    %s111 = sadd.s32 %s110, 1
    %p114 = scmp.eq.s32.totalorder %s13, 1
    %p115 = scmp.ne.s32.totalorder %s110, %s112
    %p116 = scmp.eq.s32.totalorder %s13, 0
    %p117 = por %p115, %p116
    %p118 = scmp.ne.s32.totalorder %s110, %s112
    %p119 = scmp.eq.s32.totalorder %s18, 1
    %p120 = por %p118, %p119
    %p121 = scmp.ne.s32.totalorder %s112, %s113
    %p122 = scmp.eq.s32.totalorder %s18, 0
    %p123 = por %p121, %p122
    %p124 = scmp.ne.s32.totalorder %s112, %s113
    %p125 = scmp.eq.s32.totalorder %s19, 1
    %p126 = por %p124, %p125
    %p128 = scmp.ne.s32.totalorder %s113, %s127
    %p129 = scmp.eq.s32.totalorder %s19, 0
    %p130 = por %p128, %p129
    %s132 = sadd.s32 %s131, 1
    %p135 = scmp.eq.s32.totalorder %s13, 1
    %p136 = scmp.ne.s32.totalorder %s131, %s133
    %p137 = scmp.eq.s32.totalorder %s13, 0
    %p138 = por %p136, %p137
    %p139 = scmp.ne.s32.totalorder %s131, %s133
    %p140 = scmp.eq.s32.totalorder %s18, 1
    %p141 = por %p139, %p140
    %p142 = scmp.ne.s32.totalorder %s133, %s134
    %p143 = scmp.eq.s32.totalorder %s18, 0
    %p144 = por %p142, %p143
    %p145 = scmp.ne.s32.totalorder %s133, %s134
    %p146 = scmp.eq.s32.totalorder %s19, 1
    %p147 = por %p145, %p146
    %p149 = scmp.ne.s32.totalorder %s134, %s148
    %p150 = scmp.eq.s32.totalorder %s19, 0
    %p151 = por %p149, %p150
    %s153 = sadd.s32 %s152, 1
    %p156 = scmp.eq.s32.totalorder %s13, 1
    %p157 = scmp.ne.s32.totalorder %s152, %s154
    %p158 = scmp.eq.s32.totalorder %s13, 0
    %p159 = por %p157, %p158
    %p160 = scmp.ne.s32.totalorder %s152, %s154
    %p161 = scmp.eq.s32.totalorder %s18, 1
    %p162 = por %p160, %p161
    %p163 = scmp.ne.s32.totalorder %s154, %s155
    %p164 = scmp.eq.s32.totalorder %s18, 0
    %p165 = por %p163, %p164
    %p166 = scmp.ne.s32.totalorder %s154, %s155
    %p167 = scmp.eq.s32.totalorder %s19, 1
    %p168 = por %p166, %p167
    %p170 = scmp.ne.s32.totalorder %s155, %s169
    %p171 = scmp.eq.s32.totalorder %s19, 0
    %p172 = por %p170, %p171
    %s173 = ssub.s32 %s13, %s20
    %p174 = scmp.eq.s32.totalorder %s173, 0
    %s176 = sadd.s32 %s175, 1
    %s177 = scalar_select %p174, %s175, %s176
    %p180 = pneg %p174
    %p181 = scmp.eq.s32.totalorder %s13, 1
    %p182 = por %p180, %p181
    %p183 = scmp.ne.s32.totalorder %s175, %s178
    %p184 = scmp.eq.s32.totalorder %s13, 0
    %p185 = por %p183, %p184
    %p186 = scmp.ne.s32.totalorder %s175, %s178
    %p187 = scmp.eq.s32.totalorder %s18, 1
    %p188 = por %p186, %p187
    %p189 = scmp.ne.s32.totalorder %s178, %s179
    %p190 = scmp.eq.s32.totalorder %s18, 0
    %p191 = por %p189, %p190
    %p192 = scmp.ne.s32.totalorder %s178, %s179
    %p193 = scmp.eq.s32.totalorder %s19, 1
    %p194 = por %p192, %p193
    %p196 = scmp.ne.s32.totalorder %s179, %s195
    %p197 = scmp.eq.s32.totalorder %s19, 0
    %p198 = por %p196, %p197
    %p199 = scmp.le.s32.totalorder 1, %s13
    %p200 = scmp.lt.s32.totalorder %s13, 3
    %p201 = pnand %p199, %p200
    %p202 = pneg %p201
    // Predicated region
    $region9: #{resnet_block_forward.1} parent=5 // pred_check
      _
    $region10: #{resnet_block_forward.1} parent=5 // pred_check_branch
      %204 = sbr.rel (%p201) target = $region12
    $region11: #{resnet_block_forward.1} parent=5 // pred_region
      %s205 = ssub.s32 %s13, 1
      // Predicated region
      $region13: #{resnet_block_forward.1} parent=11 // pred_check
        %p206 = pneg %p60
      $region14: #{resnet_block_forward.1} parent=11 // pred_check_branch
        %208 = sbr.rel (%p206) target = $region16
      $region15: #{resnet_block_forward.1} parent=11 // pred_region
        _
      $region16: #{resnet_block_forward.1} parent=11 // pred_fallthru
        _
      // Predicated region
      $region17: #{resnet_block_forward.1} parent=11 // pred_check
        %p209 = pneg %p81
      $region18: #{resnet_block_forward.1} parent=11 // pred_check_branch
        %211 = sbr.rel (%p209) target = $region20
      $region19: #{resnet_block_forward.1} parent=11 // pred_region
        _
      $region20: #{resnet_block_forward.1} parent=11 // pred_fallthru
        _
      // Predicated region
      $region21: #{resnet_block_forward.1} parent=11 // pred_check
        %p212 = pneg %p102
      $region22: #{resnet_block_forward.1} parent=11 // pred_check_branch
        %214 = sbr.rel (%p212) target = $region24
      $region23: #{resnet_block_forward.1} parent=11 // pred_region
        _
      $region24: #{resnet_block_forward.1} parent=11 // pred_fallthru
        _
      // Predicated region
      $region25: #{resnet_block_forward.1} parent=11 // pred_check
        %p215 = pneg %p123
      $region26: #{resnet_block_forward.1} parent=11 // pred_check_branch
        %217 = sbr.rel (%p215) target = $region28
      $region27: #{resnet_block_forward.1} parent=11 // pred_region
        _
      $region28: #{resnet_block_forward.1} parent=11 // pred_fallthru
        _
      // Predicated region
      $region29: #{resnet_block_forward.1} parent=11 // pred_check
        %p218 = pneg %p144
      $region30: #{resnet_block_forward.1} parent=11 // pred_check_branch
        %220 = sbr.rel (%p218) target = $region32
      $region31: #{resnet_block_forward.1} parent=11 // pred_region
        _
      $region32: #{resnet_block_forward.1} parent=11 // pred_fallthru
        _
      // Predicated region
      $region33: #{resnet_block_forward.1} parent=11 // pred_check
        %p221 = pneg %p165
      $region34: #{resnet_block_forward.1} parent=11 // pred_check_branch
        %223 = sbr.rel (%p221) target = $region36
      $region35: #{resnet_block_forward.1} parent=11 // pred_region
        _
      $region36: #{resnet_block_forward.1} parent=11 // pred_fallthru
        _
    $region12: #{resnet_block_forward.1} parent=5 // pred_fallthru
      _
    %p224 = scmp.lt.s32.totalorder %s13, 2
    // Predicated region
    $region37: #{resnet_block_forward.1} parent=5 // pred_check
      %p225 = pneg %p224
    $region38: #{resnet_block_forward.1} parent=5 // pred_check_branch
      %227 = sbr.rel (%p225) target = $region40
    $region39: #{resnet_block_forward.1} parent=5 // pred_region
      // Predicated region
      $region41: #{resnet_block_forward.1} parent=39 // pred_check
        %p228 = pneg %p33
      $region42: #{resnet_block_forward.1} parent=39 // pred_check_branch
        %230 = sbr.rel (%p228) target = $region44
      $region43: #{resnet_block_forward.1} parent=39 // pred_region
        %p231 = scmp.lt.s32.totalorder %s13, 1
        %s232 = scalar_select %p231, %s13, 1
        %s233 = smul.addr %s232, 54
        %s234 = smul.addr %s233, 8
        %s235 = scalar_lea.vmem %s0, %s234
      $region44: #{resnet_block_forward.1} parent=39 // pred_fallthru
        _
    $region40: #{resnet_block_forward.1} parent=5 // pred_fallthru
      _
    %p236 = scmp.le.s32.totalorder 1, %s13
    %p237 = scmp.lt.s32.totalorder %s13, 3
    %p238 = pnand %p236, %p237
    %p239 = pneg %p238
    // Predicated region
    $region45: #{resnet_block_forward.1} parent=5 // pred_check
      _
    $region46: #{resnet_block_forward.1} parent=5 // pred_check_branch
      %241 = sbr.rel (%p238) target = $region48
    $region47: #{resnet_block_forward.1} parent=5 // pred_region
      %s242 = ssub.s32 %s13, 1
      %p243 = scmp.lt.s32.totalorder %s18, 1
      %s244 = scalar_select %p243, %s18, 1
      %s245 = smul.addr %s244, 54
      %s246 = smul.addr %s245, 8
      %s247 = scalar_lea.vmem %s0, %s246
      %p248 = pneg %p39
      %p249 = pneg %p36
      %p250 = pneg %p60
      %p251 = pneg %p57
      %p252 = pneg %p81
      %p253 = pneg %p78
      %p254 = pneg %p102
      %p255 = pneg %p99
      %p256 = pneg %p123
      %p257 = pneg %p120
      %p258 = pneg %p144
      %p259 = pneg %p141
      %p260 = pneg %p165
      %p261 = pneg %p162
      %p262 = pneg %p191
      %p263 = pneg %p188
      %p264 = scmp.lt.s32.totalorder %s18, 1
      %s265 = scalar_select %p264, %s18, 1
      %s266 = smul.addr %s265, 32
      %s267 = smul.addr %s266, 8
      %s268 = scalar_lea.vmem %s7, %s267
      %p269 = scmp.lt.s32.totalorder %s18, 1
      %s270 = scalar_select %p269, %s18, 1
      %s271 = smul.addr %s270, 54
      %s272 = smul.addr %s271, 8
      %s273 = scalar_lea.vmem %s0, %s272
      %p274 = scmp.lt.s32.totalorder %s18, 1
      %s275 = scalar_select %p274, %s18, 1
      %s276 = smul.addr %s275, 32
      %s277 = smul.addr %s276, 8
      %s278 = scalar_lea.vmem %s7, %s277
      %v279 = vld [vmem:[%s273] sm:$0xff]
      %v280 = vld [vmem:[%s273 + $0x8] sm:$0xff]
      %v281 = vld [vmem:[%s273 + $0x18] sm:$0xff]
      %v282 = vld [vmem:[%s273 + $0x20] sm:$0xff]
      %v283 = vld [vmem:[%s273 + $0x30] sm:$0xff]
      %v284 = vld [vmem:[%s273 + $0x38] sm:$0xff]
      %v285 = vld [vmem:[%s273 + $0x48] sm:$0xff]
      %v286 = vld [vmem:[%s273 + $0x50] sm:$0xff]
      %v287 = vld [vmem:[%s273 + $0x60] sm:$0xff]
      %v288 = vld [vmem:[%s273 + $0x68] sm:$0xff]
      %v289 = vld [vmem:[%s273 + $0x78] sm:$0xff]
      %v290 = vld [vmem:[%s273 + $0x80] sm:$0xff]
      %v291 = vld [vmem:[%s273 + $0x90] sm:$0xff]
      %v292 = vld [vmem:[%s273 + $0x98] sm:$0xff]
      %v293 = vld [vmem:[%s273 + $0xa8] sm:$0xff]
      %v294 = vld [vmem:[%s273 + $0xb0] sm:$0xff]
      %v295 = vld [vmem:[%s273 + $0xc0] sm:$0xff]
      %v296 = vld [vmem:[%s273 + $0xc8] sm:$0xff]
      %v297 = vld [vmem:[%s273 + $0xd8] sm:$0xff]
      %v298 = vld [vmem:[%s273 + $0xe0] sm:$0xff]
      %v299 = vld [vmem:[%s273 + $0xf0] sm:$0xff]
      %v300 = vld [vmem:[%s273 + $0xf8] sm:$0xff]
      %v301 = vld [vmem:[%s273 + $0x108] sm:$0xff]
      %v302 = vld [vmem:[%s273 + $0x110] sm:$0xff]
      %v303 = vld [vmem:[%s273 + $0x120] sm:$0xff]
      %v304 = vld [vmem:[%s273 + $0x128] sm:$0xff]
      %v305 = vld [vmem:[%s273 + $0x138] sm:$0xff]
      %v306 = vld [vmem:[%s273 + $0x140] sm:$0xff]
      %v307 = vld [vmem:[%s273 + $0x150] sm:$0xff]
      %v308 = vld [vmem:[%s273 + $0x158] sm:$0xff]
      %v309 = vld [vmem:[%s273 + $0x168] sm:$0xff]
      %v310 = vld [vmem:[%s273 + $0x170] sm:$0xff]
      %v311 = vld [vmem:[%s1] sm:$0xf]
      %v312 = vld [vmem:[%s273 + $0x1] sm:$0xff]
      %v313 = vld [vmem:[%s273 + $0x9] sm:$0xff]
      %v314 = vld [vmem:[%s273 + $0x19] sm:$0xff]
      %v315 = vld [vmem:[%s273 + $0x21] sm:$0xff]
      %v316 = vld [vmem:[%s273 + $0x31] sm:$0xff]
      %v317 = vld [vmem:[%s273 + $0x39] sm:$0xff]
      %v318 = vld [vmem:[%s273 + $0x49] sm:$0xff]
      %v319 = vld [vmem:[%s273 + $0x51] sm:$0xff]
      %v320 = vld [vmem:[%s273 + $0x61] sm:$0xff]
      %v321 = vld [vmem:[%s273 + $0x69] sm:$0xff]
      %v322 = vld [vmem:[%s273 + $0x79] sm:$0xff]
      %v323 = vld [vmem:[%s273 + $0x81] sm:$0xff]
      %v324 = vld [vmem:[%s273 + $0x91] sm:$0xff]
      %v325 = vld [vmem:[%s273 + $0x99] sm:$0xff]
      %v326 = vld [vmem:[%s273 + $0xa9] sm:$0xff]
      %v327 = vld [vmem:[%s273 + $0xb1] sm:$0xff]
      %v328 = vld [vmem:[%s273 + $0xc1] sm:$0xff]
      %v329 = vld [vmem:[%s273 + $0xc9] sm:$0xff]
      %v330 = vld [vmem:[%s273 + $0xd9] sm:$0xff]
      %v331 = vld [vmem:[%s273 + $0xe1] sm:$0xff]
      %v332 = vld [vmem:[%s273 + $0xf1] sm:$0xff]
      %v333 = vld [vmem:[%s273 + $0xf9] sm:$0xff]
      %v334 = vld [vmem:[%s273 + $0x109] sm:$0xff]
      %v335 = vld [vmem:[%s273 + $0x111] sm:$0xff]
      %v336 = vld [vmem:[%s273 + $0x121] sm:$0xff]
      %v337 = vld [vmem:[%s273 + $0x129] sm:$0xff]
      %v338 = vld [vmem:[%s273 + $0x139] sm:$0xff]
      %v339 = vld [vmem:[%s273 + $0x141] sm:$0xff]
      %v340 = vld [vmem:[%s273 + $0x151] sm:$0xff]
      %v341 = vld [vmem:[%s273 + $0x159] sm:$0xff]
      %v342 = vld [vmem:[%s273 + $0x169] sm:$0xff]
      %v343 = vld [vmem:[%s273 + $0x171] sm:$0xff]
      %s344 = scalar_lea.vmem %s1, 4
      %v345 = vld [vmem:[%s344] sm:$0xf]
      %vm346 = vcmask 31744
      %v348 = vsel %vm346, %v312, 0
      %v351 = vsel %vm346, %v313, 0
      %v354 = vsel %vm346, %v314, 0
      %v357 = vsel %vm346, %v315, 0
      %v360 = vsel %vm346, %v316, 0
      %v363 = vsel %vm346, %v317, 0
      %v366 = vsel %vm346, %v318, 0
      %v369 = vsel %vm346, %v319, 0
      %v372 = vsel %vm346, %v320, 0
      %v375 = vsel %vm346, %v321, 0
      %v378 = vsel %vm346, %v322, 0
      %v381 = vsel %vm346, %v323, 0
      %v384 = vsel %vm346, %v324, 0
      %v387 = vsel %vm346, %v325, 0
      %v390 = vsel %vm346, %v326, 0
      %v393 = vsel %vm346, %v327, 0
      %v396 = vsel %vm346, %v328, 0
      %v399 = vsel %vm346, %v329, 0
      %v402 = vsel %vm346, %v330, 0
      %v405 = vsel %vm346, %v331, 0
      %v408 = vsel %vm346, %v332, 0
      %v411 = vsel %vm346, %v333, 0
      %v414 = vsel %vm346, %v334, 0
      %v417 = vsel %vm346, %v335, 0
      %v420 = vsel %vm346, %v336, 0
      %v423 = vsel %vm346, %v337, 0
      %v426 = vsel %vm346, %v338, 0
      %v429 = vsel %vm346, %v339, 0
      %v432 = vsel %vm346, %v340, 0
      %v435 = vsel %vm346, %v341, 0
      %v438 = vsel %vm346, %v342, 0
      %v441 = vsel %vm346, %v343, 0
      %vm443 = vcmask 1043456
      %v445 = vsel %vm443, %v345, 0
      %447 = vmatprep.subr.mxu0 0.0
      %448 = vmatpush1.msra.mxu0 %v445
      %449 = vmatprep.subr.mxu0 0.0
      %450 = vmatpush1.msra.mxu0 0.0
      %451 = vmatprep.subr.mxu0 0.0
      %452 = vmatpush1.msra.mxu0 0.0
      %453 = vmatprep.subr.mxu0 0.0
      %454 = vmatpush1.msra.mxu0 0.0
      %455 = vmatprep.subr.mxu0 0.0
      %456 = vmatpush1.msra.mxu0 0.0
      %457 = vmatprep.subr.mxu0 0.0
      %458 = vmatpush1.msra.mxu0 0.0
      %459 = vmatprep.subr.mxu0 0.0
      %460 = vmatpush1.msra.mxu0 0.0
      %461 = vmatprep.subr.mxu0 0.0
      %462 = vmatpush1.msra.mxu0 0.0
      %463 = vmatprep.subr.mxu0 0.0
      %464 = vmatpush1.msra.mxu0 0.0
      %465 = vmatprep.subr.mxu0 0.0
      %466 = vmatpush1.msra.mxu0 0.0
      %467 = vmatprep.subr.mxu0 0.0
      %468 = vmatpush1.msra.mxu0 0.0
      %469 = vmatprep.subr.mxu0 0.0
      %470 = vmatpush1.msra.mxu0 0.0
      %471 = vmatprep.subr.mxu0 0.0
      %472 = vmatpush1.msra.mxu0 0.0
      %473 = vmatprep.subr.mxu0 0.0
      %474 = vmatpush1.msra.mxu0 0.0
      %475 = vmatprep.subr.mxu0 0.0
      %476 = vmatpush1.msra.mxu0 0.0
      %477 = vmatprep.subr.mxu0 0.0
      %478 = vmatpush1.msra.mxu0 0.0
      %479 = vmatprep.subr.mxu0 0.0
      %480 = vmatpush1.msra.mxu0 0.0
      %481 = vmatprep.subr.mxu0 0.0
      %482 = vmatpush1.msra.mxu0 0.0
      %483 = vmatprep.subr.mxu0 0.0
      %484 = vmatpush1.msra.mxu0 0.0
      %485 = vmatprep.subr.mxu0 0.0
      %486 = vmatpush1.msra.mxu0 0.0
      %487 = vmatprep.subr.mxu0 0.0
      %488 = vmatpush1.msra.mxu0 0.0
      %489 = vmatprep.subr.mxu0 0.0
      %490 = vmatpush1.msra.mxu0 0.0
      %491 = vmatprep.subr.mxu0 0.0
      %492 = vmatpush1.msra.mxu0 0.0
      %493 = vmatprep.subr.mxu0 0.0
      %494 = vmatpush1.msra.mxu0 0.0
      %495 = vmatprep.subr.mxu0 0.0
      %496 = vmatpush1.msra.mxu0 0.0
      %497 = vmatprep.subr.mxu0 0.0
      %498 = vmatpush1.msra.mxu0 0.0
      %499 = vmatprep.subr.mxu0 0.0
      %500 = vmatpush1.msra.mxu0 0.0
      %501 = vmatprep.subr.mxu0 0.0
      %502 = vmatpush1.msra.mxu0 0.0
      %503 = vmatprep.subr.mxu0 0.0
      %504 = vmatpush1.msra.mxu0 0.0
      %505 = vmatprep.subr.mxu0 0.0
      %506 = vmatpush1.msra.mxu0 0.0
      %507 = vmatprep.subr.mxu0 0.0
      %508 = vmatpush1.msra.mxu0 0.0
      %509 = vmatprep.subr.mxu0 0.0
      %510 = vmatpush1.msra.mxu0 0.0
      %511 = vmatprep.mubr.f32.mxu0 0.0
      %512 = vmatmul.mubr.f32.gmra.mrb[0].mxu0 %v348
      %v513 = vpop.f32.mrb[0].mxu0
      %v514 = vadd.f32 0.0, %v513
      %v515 = vpop.f32.mrb[0].mxu0
      %516 = vmatprep.mubr.f32.mxu0 0.0
      %517 = vmatmul.mubr.f32.gmra.mrb[0].mxu0 %v351
      %v518 = vpop.f32.mrb[0].mxu0
      %v519 = vadd.f32 0.0, %v518
      %v520 = vpop.f32.mrb[0].mxu0
      %521 = vmatprep.mubr.f32.mxu0 0.0
      %522 = vmatmul.mubr.f32.gmra.mrb[0].mxu0 %v354
      %v523 = vpop.f32.mrb[0].mxu0
      %v524 = vadd.f32 0.0, %v523
      %v525 = vpop.f32.mrb[0].mxu0
      %526 = vmatprep.mubr.f32.mxu0 0.0
      %527 = vmatmul.mubr.f32.gmra.mrb[0].mxu0 %v357
      %v528 = vpop.f32.mrb[0].mxu0
      %v529 = vadd.f32 0.0, %v528
      %v530 = vpop.f32.mrb[0].mxu0
      %531 = vmatprep.mubr.f32.mxu0 0.0
      %532 = vmatmul.mubr.f32.gmra.mrb[0].mxu0 %v360
      %v533 = vpop.f32.mrb[0].mxu0
      %v534 = vadd.f32 0.0, %v533
      %v535 = vpop.f32.mrb[0].mxu0
      %536 = vmatprep.mubr.f32.mxu0 0.0
      %537 = vmatmul.mubr.f32.gmra.mrb[0].mxu0 %v363
      %v538 = vpop.f32.mrb[0].mxu0
      %v539 = vadd.f32 0.0, %v538
      %v540 = vpop.f32.mrb[0].mxu0
      %541 = vmatprep.mubr.f32.mxu0 0.0
      %542 = vmatmul.mubr.f32.gmra.mrb[0].mxu0 %v366
      %v543 = vpop.f32.mrb[0].mxu0
      %v544 = vadd.f32 0.0, %v543
      %v545 = vpop.f32.mrb[0].mxu0
      %546 = vmatprep.mubr.f32.mxu0 0.0
      %547 = vmatmul.mubr.f32.gmra.mrb[0].mxu0 %v369
      %v548 = vpop.f32.mrb[0].mxu0
      %v549 = vadd.f32 0.0, %v548
      %v550 = vpop.f32.mrb[0].mxu0
      %551 = vmatprep.mubr.f32.mxu0 0.0
      %552 = vmatmul.mubr.f32.gmra.mrb[0].mxu0 %v372
      %v553 = vpop.f32.mrb[0].mxu0
      %v554 = vadd.f32 0.0, %v553
      %v555 = vpop.f32.mrb[0].mxu0
      %556 = vmatprep.mubr.f32.mxu0 0.0
      %557 = vmatmul.mubr.f32.gmra.mrb[0].mxu0 %v375
      %v558 = vpop.f32.mrb[0].mxu0
      %v559 = vadd.f32 0.0, %v558
      %v560 = vpop.f32.mrb[0].mxu0
      %561 = vmatprep.mubr.f32.mxu0 0.0
      %562 = vmatmul.mubr.f32.gmra.mrb[0].mxu0 %v378
      %v563 = vpop.f32.mrb[0].mxu0
      %v564 = vadd.f32 0.0, %v563
      %v565 = vpop.f32.mrb[0].mxu0
      %566 = vmatprep.mubr.f32.mxu0 0.0
      %567 = vmatmul.mubr.f32.gmra.mrb[0].mxu0 %v381
      %v568 = vpop.f32.mrb[0].mxu0
      %v569 = vadd.f32 0.0, %v568
      %v570 = vpop.f32.mrb[0].mxu0
      %571 = vmatprep.mubr.f32.mxu0 0.0
      %572 = vmatmul.mubr.f32.gmra.mrb[0].mxu0 %v384
      %v573 = vpop.f32.mrb[0].mxu0
      %v574 = vadd.f32 0.0, %v573
      %v575 = vpop.f32.mrb[0].mxu0
      %576 = vmatprep.mubr.f32.mxu0 0.0
      %577 = vmatmul.mubr.f32.gmra.mrb[0].mxu0 %v387
      %v578 = vpop.f32.mrb[0].mxu0
      %v579 = vadd.f32 0.0, %v578
      %v580 = vpop.f32.mrb[0].mxu0
      %581 = vmatprep.mubr.f32.mxu0 0.0
      %582 = vmatmul.mubr.f32.gmra.mrb[0].mxu0 %v390
      %v583 = vpop.f32.mrb[0].mxu0
      %v584 = vadd.f32 0.0, %v583
      %v585 = vpop.f32.mrb[0].mxu0
      %586 = vmatprep.mubr.f32.mxu0 0.0
      %587 = vmatmul.mubr.f32.gmra.mrb[0].mxu0 %v393
      %v588 = vpop.f32.mrb[0].mxu0
      %v589 = vadd.f32 0.0, %v588
      %v590 = vpop.f32.mrb[0].mxu0
      %591 = vmatprep.mubr.f32.mxu0 0.0
      %592 = vmatmul.mubr.f32.gmra.mrb[0].mxu0 %v396
      %v593 = vpop.f32.mrb[0].mxu0
      %v594 = vadd.f32 0.0, %v593
      %v595 = vpop.f32.mrb[0].mxu0
      %596 = vmatprep.mubr.f32.mxu0 0.0
      %597 = vmatmul.mubr.f32.gmra.mrb[0].mxu0 %v399
      %v598 = vpop.f32.mrb[0].mxu0
      %v599 = vadd.f32 0.0, %v598
      %v600 = vpop.f32.mrb[0].mxu0
      %601 = vmatprep.mubr.f32.mxu0 0.0
      %602 = vmatmul.mubr.f32.gmra.mrb[0].mxu0 %v402
      %v603 = vpop.f32.mrb[0].mxu0
      %v604 = vadd.f32 0.0, %v603
      %v605 = vpop.f32.mrb[0].mxu0
      %606 = vmatprep.mubr.f32.mxu0 0.0
      %607 = vmatmul.mubr.f32.gmra.mrb[0].mxu0 %v405
      %v608 = vpop.f32.mrb[0].mxu0
      %v609 = vadd.f32 0.0, %v608
      %v610 = vpop.f32.mrb[0].mxu0
      %611 = vmatprep.mubr.f32.mxu0 0.0
      %612 = vmatmul.mubr.f32.gmra.mrb[0].mxu0 %v408
      %v613 = vpop.f32.mrb[0].mxu0
      %v614 = vadd.f32 0.0, %v613
      %v615 = vpop.f32.mrb[0].mxu0
      %616 = vmatprep.mubr.f32.mxu0 0.0
      %617 = vmatmul.mubr.f32.gmra.mrb[0].mxu0 %v411
      %v618 = vpop.f32.mrb[0].mxu0
      %v619 = vadd.f32 0.0, %v618
      %v620 = vpop.f32.mrb[0].mxu0
      %621 = vmatprep.mubr.f32.mxu0 0.0
      %622 = vmatmul.mubr.f32.gmra.mrb[0].mxu0 %v414
      %v623 = vpop.f32.mrb[0].mxu0
      %v624 = vadd.f32 0.0, %v623
      %v625 = vpop.f32.mrb[0].mxu0
      %626 = vmatprep.mubr.f32.mxu0 0.0
      %627 = vmatmul.mubr.f32.gmra.mrb[0].mxu0 %v417
      %v628 = vpop.f32.mrb[0].mxu0
      %v629 = vadd.f32 0.0, %v628
      %v630 = vpop.f32.mrb[0].mxu0
      %631 = vmatprep.mubr.f32.mxu0 0.0
      %632 = vmatmul.mubr.f32.gmra.mrb[0].mxu0 %v420
      %v633 = vpop.f32.mrb[0].mxu0
      %v634 = vadd.f32 0.0, %v633
      %v635 = vpop.f32.mrb[0].mxu0
      %636 = vmatprep.mubr.f32.mxu0 0.0
      %637 = vmatmul.mubr.f32.gmra.mrb[0].mxu0 %v423
      %v638 = vpop.f32.mrb[0].mxu0
      %v639 = vadd.f32 0.0, %v638
      %v640 = vpop.f32.mrb[0].mxu0
      %641 = vmatprep.mubr.f32.mxu0 0.0
      %642 = vmatmul.mubr.f32.gmra.mrb[0].mxu0 %v426
      %v643 = vpop.f32.mrb[0].mxu0
      %v644 = vadd.f32 0.0, %v643
      %v645 = vpop.f32.mrb[0].mxu0
      %646 = vmatprep.mubr.f32.mxu0 0.0
      %647 = vmatmul.mubr.f32.gmra.mrb[0].mxu0 %v429
      %v648 = vpop.f32.mrb[0].mxu0
      %v649 = vadd.f32 0.0, %v648
      %v650 = vpop.f32.mrb[0].mxu0
      %651 = vmatprep.mubr.f32.mxu0 0.0
      %652 = vmatmul.mubr.f32.gmra.mrb[0].mxu0 %v432
      %v653 = vpop.f32.mrb[0].mxu0
      %v654 = vadd.f32 0.0, %v653
      %v655 = vpop.f32.mrb[0].mxu0
      %656 = vmatprep.mubr.f32.mxu0 0.0
      %657 = vmatmul.mubr.f32.gmra.mrb[0].mxu0 %v435
      %v658 = vpop.f32.mrb[0].mxu0
      %v659 = vadd.f32 0.0, %v658
      %v660 = vpop.f32.mrb[0].mxu0
      %661 = vmatprep.mubr.f32.mxu0 0.0
      %662 = vmatmul.mubr.f32.gmra.mrb[0].mxu0 %v438
      %v663 = vpop.f32.mrb[0].mxu0
      %v664 = vadd.f32 0.0, %v663
      %v665 = vpop.f32.mrb[0].mxu0
      %666 = vmatprep.mubr.f32.mxu0 0.0
      %667 = vmatmul.mubr.f32.gmra.mrb[0].mxu0 %v441
      %v668 = vpop.f32.mrb[0].mxu0
      %v669 = vadd.f32 0.0, %v668
      %v670 = vpop.f32.mrb[0].mxu0
      %671 = vdwg.mxu0
      %v673 = vsel %vm346, %v279, 0
      %v676 = vsel %vm346, %v280, 0
      %v679 = vsel %vm346, %v281, 0
      %v682 = vsel %vm346, %v282, 0
      %v685 = vsel %vm346, %v283, 0
      %v688 = vsel %vm346, %v284, 0
      %v691 = vsel %vm346, %v285, 0
      %v694 = vsel %vm346, %v286, 0
      %v697 = vsel %vm346, %v287, 0
      %v700 = vsel %vm346, %v288, 0
      %v703 = vsel %vm346, %v289, 0
      %v706 = vsel %vm346, %v290, 0
      %v709 = vsel %vm346, %v291, 0
      %v712 = vsel %vm346, %v292, 0
      %v715 = vsel %vm346, %v293, 0
      %v718 = vsel %vm346, %v294, 0
      %v721 = vsel %vm346, %v295, 0
      %v724 = vsel %vm346, %v296, 0
      %v727 = vsel %vm346, %v297, 0
      %v730 = vsel %vm346, %v298, 0
      %v733 = vsel %vm346, %v299, 0
      %v736 = vsel %vm346, %v300, 0
      %v739 = vsel %vm346, %v301, 0
      %v742 = vsel %vm346, %v302, 0
      %v745 = vsel %vm346, %v303, 0
      %v748 = vsel %vm346, %v304, 0
      %v751 = vsel %vm346, %v305, 0
      %v754 = vsel %vm346, %v306, 0
      %v757 = vsel %vm346, %v307, 0
      %v760 = vsel %vm346, %v308, 0
      %v763 = vsel %vm346, %v309, 0
      %v766 = vsel %vm346, %v310, 0
      %v769 = vsel %vm443, %v311, 0
      %771 = vmatprep.subr.mxu0 0.0
      %772 = vmatpush1.msra.mxu0 %v769
      %773 = vmatprep.subr.mxu0 0.0
      %774 = vmatpush1.msra.mxu0 0.0
      %775 = vmatprep.subr.mxu0 0.0
      %776 = vmatpush1.msra.mxu0 0.0
      %777 = vmatprep.subr.mxu0 0.0
      %778 = vmatpush1.msra.mxu0 0.0
      %779 = vmatprep.subr.mxu0 0.0
      %780 = vmatpush1.msra.mxu0 0.0
      %781 = vmatprep.subr.mxu0 0.0
      %782 = vmatpush1.msra.mxu0 0.0
      %783 = vmatprep.subr.mxu0 0.0
      %784 = vmatpush1.msra.mxu0 0.0
      %785 = vmatprep.subr.mxu0 0.0
      %786 = vmatpush1.msra.mxu0 0.0
      %787 = vmatprep.subr.mxu0 0.0
      %788 = vmatpush1.msra.mxu0 0.0
      %789 = vmatprep.subr.mxu0 0.0
      %790 = vmatpush1.msra.mxu0 0.0
      %791 = vmatprep.subr.mxu0 0.0
      %792 = vmatpush1.msra.mxu0 0.0
      %793 = vmatprep.subr.mxu0 0.0
      %794 = vmatpush1.msra.mxu0 0.0
      %795 = vmatprep.subr.mxu0 0.0
      %796 = vmatpush1.msra.mxu0 0.0
      %797 = vmatprep.subr.mxu0 0.0
      %798 = vmatpush1.msra.mxu0 0.0
      %799 = vmatprep.subr.mxu0 0.0
      %800 = vmatpush1.msra.mxu0 0.0
      %801 = vmatprep.subr.mxu0 0.0
      %802 = vmatpush1.msra.mxu0 0.0
      %803 = vmatprep.subr.mxu0 0.0
      %804 = vmatpush1.msra.mxu0 0.0
      %805 = vmatprep.subr.mxu0 0.0
      %806 = vmatpush1.msra.mxu0 0.0
      %807 = vmatprep.subr.mxu0 0.0
      %808 = vmatpush1.msra.mxu0 0.0
      %809 = vmatprep.subr.mxu0 0.0
      %810 = vmatpush1.msra.mxu0 0.0
      %811 = vmatprep.subr.mxu0 0.0
      %812 = vmatpush1.msra.mxu0 0.0
      %813 = vmatprep.subr.mxu0 0.0
      %814 = vmatpush1.msra.mxu0 0.0
      %815 = vmatprep.subr.mxu0 0.0
      %816 = vmatpush1.msra.mxu0 0.0
      %817 = vmatprep.subr.mxu0 0.0
      %818 = vmatpush1.msra.mxu0 0.0
      %819 = vmatprep.subr.mxu0 0.0
      %820 = vmatpush1.msra.mxu0 0.0
      %821 = vmatprep.subr.mxu0 0.0
      %822 = vmatpush1.msra.mxu0 0.0
      %823 = vmatprep.subr.mxu0 0.0
      %824 = vmatpush1.msra.mxu0 0.0
      %825 = vmatprep.subr.mxu0 0.0
      %826 = vmatpush1.msra.mxu0 0.0
      %827 = vmatprep.subr.mxu0 0.0
      %828 = vmatpush1.msra.mxu0 0.0
      %829 = vmatprep.subr.mxu0 0.0
      %830 = vmatpush1.msra.mxu0 0.0
      %831 = vmatprep.subr.mxu0 0.0
      %832 = vmatpush1.msra.mxu0 0.0
      %833 = vmatprep.subr.mxu0 0.0
      %834 = vmatpush1.msra.mxu0 0.0
      %835 = vmatprep.mubr.f32.mxu0 0.0
      %836 = vmatmul.mubr.f32.gmra.mrb[0].mxu0 %v673
      %v837 = vpop.f32.mrb[0].mxu0
      %v838 = vadd.f32 %v514, %v837
      %v839 = vpop.f32.mrb[0].mxu0
      %840 = vmatprep.mubr.f32.mxu0 0.0
      %841 = vmatmul.mubr.f32.gmra.mrb[0].mxu0 %v676
      %v842 = vpop.f32.mrb[0].mxu0
      %v843 = vadd.f32 %v519, %v842
      %v844 = vpop.f32.mrb[0].mxu0
      %845 = vmatprep.mubr.f32.mxu0 0.0
      %846 = vmatmul.mubr.f32.gmra.mrb[0].mxu0 %v679
      %v847 = vpop.f32.mrb[0].mxu0
      %v848 = vadd.f32 %v524, %v847
      %v849 = vpop.f32.mrb[0].mxu0
      %850 = vmatprep.mubr.f32.mxu0 0.0
      %851 = vmatmul.mubr.f32.gmra.mrb[0].mxu0 %v682
      %v852 = vpop.f32.mrb[0].mxu0
      %v853 = vadd.f32 %v529, %v852
      %v854 = vpop.f32.mrb[0].mxu0
      %855 = vmatprep.mubr.f32.mxu0 0.0
      %856 = vmatmul.mubr.f32.gmra.mrb[0].mxu0 %v685
      %v857 = vpop.f32.mrb[0].mxu0
      %v858 = vadd.f32 %v534, %v857
      %v859 = vpop.f32.mrb[0].mxu0
      %860 = vmatprep.mubr.f32.mxu0 0.0
      %861 = vmatmul.mubr.f32.gmra.mrb[0].mxu0 %v688
      %v862 = vpop.f32.mrb[0].mxu0
      %v863 = vadd.f32 %v539, %v862
      %v864 = vpop.f32.mrb[0].mxu0
      %865 = vmatprep.mubr.f32.mxu0 0.0
      %866 = vmatmul.mubr.f32.gmra.mrb[0].mxu0 %v691
      %v867 = vpop.f32.mrb[0].mxu0
      %v868 = vadd.f32 %v544, %v867
      %v869 = vpop.f32.mrb[0].mxu0
      %870 = vmatprep.mubr.f32.mxu0 0.0
      %871 = vmatmul.mubr.f32.gmra.mrb[0].mxu0 %v694
      %v872 = vpop.f32.mrb[0].mxu0
      %v873 = vadd.f32 %v549, %v872
      %v874 = vpop.f32.mrb[0].mxu0
      %875 = vmatprep.mubr.f32.mxu0 0.0
      %876 = vmatmul.mubr.f32.gmra.mrb[0].mxu0 %v697
      %v877 = vpop.f32.mrb[0].mxu0
      %v878 = vadd.f32 %v554, %v877
      %v879 = vpop.f32.mrb[0].mxu0
      %880 = vmatprep.mubr.f32.mxu0 0.0
      %881 = vmatmul.mubr.f32.gmra.mrb[0].mxu0 %v700
      %v882 = vpop.f32.mrb[0].mxu0
      %v883 = vadd.f32 %v559, %v882
      %v884 = vpop.f32.mrb[0].mxu0
      %885 = vmatprep.mubr.f32.mxu0 0.0
      %886 = vmatmul.mubr.f32.gmra.mrb[0].mxu0 %v703
      %v887 = vpop.f32.mrb[0].mxu0
      %v888 = vadd.f32 %v564, %v887
      %v889 = vpop.f32.mrb[0].mxu0
      %890 = vmatprep.mubr.f32.mxu0 0.0
      %891 = vmatmul.mubr.f32.gmra.mrb[0].mxu0 %v706
      %v892 = vpop.f32.mrb[0].mxu0
      %v893 = vadd.f32 %v569, %v892
      %v894 = vpop.f32.mrb[0].mxu0
      %895 = vmatprep.mubr.f32.mxu0 0.0
      %896 = vmatmul.mubr.f32.gmra.mrb[0].mxu0 %v709
      %v897 = vpop.f32.mrb[0].mxu0
      %v898 = vadd.f32 %v574, %v897
      %v899 = vpop.f32.mrb[0].mxu0
      %900 = vmatprep.mubr.f32.mxu0 0.0
      %901 = vmatmul.mubr.f32.gmra.mrb[0].mxu0 %v712
      %v902 = vpop.f32.mrb[0].mxu0
      %v903 = vadd.f32 %v579, %v902
      %v904 = vpop.f32.mrb[0].mxu0
      %905 = vmatprep.mubr.f32.mxu0 0.0
      %906 = vmatmul.mubr.f32.gmra.mrb[0].mxu0 %v715
      %v907 = vpop.f32.mrb[0].mxu0
      %v908 = vadd.f32 %v584, %v907
      %v909 = vpop.f32.mrb[0].mxu0
      %910 = vmatprep.mubr.f32.mxu0 0.0
      %911 = vmatmul.mubr.f32.gmra.mrb[0].mxu0 %v718
      %v912 = vpop.f32.mrb[0].mxu0
      %v913 = vadd.f32 %v589, %v912
      %v914 = vpop.f32.mrb[0].mxu0
      %915 = vmatprep.mubr.f32.mxu0 0.0
      %916 = vmatmul.mubr.f32.gmra.mrb[0].mxu0 %v721
      %v917 = vpop.f32.mrb[0].mxu0
      %v918 = vadd.f32 %v594, %v917
      %v919 = vpop.f32.mrb[0].mxu0
      %920 = vmatprep.mubr.f32.mxu0 0.0
      %921 = vmatmul.mubr.f32.gmra.mrb[0].mxu0 %v724
      %v922 = vpop.f32.mrb[0].mxu0
      %v923 = vadd.f32 %v599, %v922
      %v924 = vpop.f32.mrb[0].mxu0
      %925 = vmatprep.mubr.f32.mxu0 0.0
      %926 = vmatmul.mubr.f32.gmra.mrb[0].mxu0 %v727
      %v927 = vpop.f32.mrb[0].mxu0
      %v928 = vadd.f32 %v604, %v927
      %v929 = vpop.f32.mrb[0].mxu0
      %930 = vmatprep.mubr.f32.mxu0 0.0
      %931 = vmatmul.mubr.f32.gmra.mrb[0].mxu0 %v730
      %v932 = vpop.f32.mrb[0].mxu0
      %v933 = vadd.f32 %v609, %v932
      %v934 = vpop.f32.mrb[0].mxu0
      %935 = vmatprep.mubr.f32.mxu0 0.0
      %936 = vmatmul.mubr.f32.gmra.mrb[0].mxu0 %v733
      %v937 = vpop.f32.mrb[0].mxu0
      %v938 = vadd.f32 %v614, %v937
      %v939 = vpop.f32.mrb[0].mxu0
      %940 = vmatprep.mubr.f32.mxu0 0.0
      %941 = vmatmul.mubr.f32.gmra.mrb[0].mxu0 %v736
      %v942 = vpop.f32.mrb[0].mxu0
      %v943 = vadd.f32 %v619, %v942
      %v944 = vpop.f32.mrb[0].mxu0
      %945 = vmatprep.mubr.f32.mxu0 0.0
      %946 = vmatmul.mubr.f32.gmra.mrb[0].mxu0 %v739
      %v947 = vpop.f32.mrb[0].mxu0
      %v948 = vadd.f32 %v624, %v947
      %v949 = vpop.f32.mrb[0].mxu0
      %950 = vmatprep.mubr.f32.mxu0 0.0
      %951 = vmatmul.mubr.f32.gmra.mrb[0].mxu0 %v742
      %v952 = vpop.f32.mrb[0].mxu0
      %v953 = vadd.f32 %v629, %v952
      %v954 = vpop.f32.mrb[0].mxu0
      %955 = vmatprep.mubr.f32.mxu0 0.0
      %956 = vmatmul.mubr.f32.gmra.mrb[0].mxu0 %v745
      %v957 = vpop.f32.mrb[0].mxu0
      %v958 = vadd.f32 %v634, %v957
      %v959 = vpop.f32.mrb[0].mxu0
      %960 = vmatprep.mubr.f32.mxu0 0.0
      %961 = vmatmul.mubr.f32.gmra.mrb[0].mxu0 %v748
      %v962 = vpop.f32.mrb[0].mxu0
      %v963 = vadd.f32 %v639, %v962
      %v964 = vpop.f32.mrb[0].mxu0
      %965 = vmatprep.mubr.f32.mxu0 0.0
      %966 = vmatmul.mubr.f32.gmra.mrb[0].mxu0 %v751
      %v967 = vpop.f32.mrb[0].mxu0
      %v968 = vadd.f32 %v644, %v967
      %v969 = vpop.f32.mrb[0].mxu0
      %970 = vmatprep.mubr.f32.mxu0 0.0
      %971 = vmatmul.mubr.f32.gmra.mrb[0].mxu0 %v754
      %v972 = vpop.f32.mrb[0].mxu0
      %v973 = vadd.f32 %v649, %v972
      %v974 = vpop.f32.mrb[0].mxu0
      %975 = vmatprep.mubr.f32.mxu0 0.0
      %976 = vmatmul.mubr.f32.gmra.mrb[0].mxu0 %v757
      %v977 = vpop.f32.mrb[0].mxu0
      %v978 = vadd.f32 %v654, %v977
      %v979 = vpop.f32.mrb[0].mxu0
      %980 = vmatprep.mubr.f32.mxu0 0.0
      %981 = vmatmul.mubr.f32.gmra.mrb[0].mxu0 %v760
      %v982 = vpop.f32.mrb[0].mxu0
      %v983 = vadd.f32 %v659, %v982
      %v984 = vpop.f32.mrb[0].mxu0
      %985 = vmatprep.mubr.f32.mxu0 0.0
      %986 = vmatmul.mubr.f32.gmra.mrb[0].mxu0 %v763
      %v987 = vpop.f32.mrb[0].mxu0
      %v988 = vadd.f32 %v664, %v987
      %v989 = vpop.f32.mrb[0].mxu0
      %990 = vmatprep.mubr.f32.mxu0 0.0
      %991 = vmatmul.mubr.f32.gmra.mrb[0].mxu0 %v766
      %v992 = vpop.f32.mrb[0].mxu0
      %v993 = vadd.f32 %v669, %v992
      %v994 = vpop.f32.mrb[0].mxu0
      %995 = vdwg.mxu0
      %v996 = vld [vmem:[%s273 + $0x2] sm:$0xff]
      %v997 = vld [vmem:[%s273 + $0xa] sm:$0xff]
      %v998 = vld [vmem:[%s273 + $0x1a] sm:$0xff]
      %v999 = vld [vmem:[%s273 + $0x22] sm:$0xff]
      %v1000 = vld [vmem:[%s273 + $0x32] sm:$0xff]
      %v1001 = vld [vmem:[%s273 + $0x3a] sm:$0xff]
      %v1002 = vld [vmem:[%s273 + $0x4a] sm:$0xff]
      %v1003 = vld [vmem:[%s273 + $0x52] sm:$0xff]
      %v1004 = vld [vmem:[%s273 + $0x62] sm:$0xff]
      %v1005 = vld [vmem:[%s273 + $0x6a] sm:$0xff]
      %v1006 = vld [vmem:[%s273 + $0x7a] sm:$0xff]
      %v1007 = vld [vmem:[%s273 + $0x82] sm:$0xff]
      %v1008 = vld [vmem:[%s273 + $0x92] sm:$0xff]
      %v1009 = vld [vmem:[%s273 + $0x9a] sm:$0xff]
      %v1010 = vld [vmem:[%s273 + $0xaa] sm:$0xff]
      %v1011 = vld [vmem:[%s273 + $0xb2] sm:$0xff]
      %v1012 = vld [vmem:[%s273 + $0xc2] sm:$0xff]
      %v1013 = vld [vmem:[%s273 + $0xca] sm:$0xff]
      %v1014 = vld [vmem:[%s273 + $0xda] sm:$0xff]
      %v1015 = vld [vmem:[%s273 + $0xe2] sm:$0xff]
      %v1016 = vld [vmem:[%s273 + $0xf2] sm:$0xff]
      %v1017 = vld [vmem:[%s273 + $0xfa] sm:$0xff]
      %v1018 = vld [vmem:[%s273 + $0x10a] sm:$0xff]
      %v1019 = vld [vmem:[%s273 + $0x112] sm:$0xff]
      %v1020 = vld [vmem:[%s273 + $0x122] sm:$0xff]
      %v1021 = vld [vmem:[%s273 + $0x12a] sm:$0xff]
      %v1022 = vld [vmem:[%s273 + $0x13a] sm:$0xff]
      %v1023 = vld [vmem:[%s273 + $0x142] sm:$0xff]
      %v1024 = vld [vmem:[%s273 + $0x152] sm:$0xff]
      %v1025 = vld [vmem:[%s273 + $0x15a] sm:$0xff]
      %v1026 = vld [vmem:[%s273 + $0x16a] sm:$0xff]
      %v1027 = vld [vmem:[%s273 + $0x172] sm:$0xff]
      %s1028 = scalar_lea.vmem %s1, 8
      %v1029 = vld [vmem:[%s1028] sm:$0xf]
      %v1031 = vsel %vm346, %v996, 0
      %v1034 = vsel %vm346, %v997, 0
      %v1037 = vsel %vm346, %v998, 0
      %v1040 = vsel %vm346, %v999, 0
      %v1043 = vsel %vm346, %v1000, 0
      %v1046 = vsel %vm346, %v1001, 0
      %v1049 = vsel %vm346, %v1002, 0
      %v1052 = vsel %vm346, %v1003, 0
      %v1055 = vsel %vm346, %v1004, 0
      %v1058 = vsel %vm346, %v1005, 0
      %v1061 = vsel %vm346, %v1006, 0
      %v1064 = vsel %vm346, %v1007, 0
      %v1067 = vsel %vm346, %v1008, 0
      %v1070 = vsel %vm346, %v1009, 0
      %v1073 = vsel %vm346, %v1010, 0
      %v1076 = vsel %vm346, %v1011, 0
      %v1079 = vsel %vm346, %v1012, 0
      %v1082 = vsel %vm346, %v1013, 0
      %v1085 = vsel %vm346, %v1014, 0
      %v1088 = vsel %vm346, %v1015, 0
      %v1091 = vsel %vm346, %v1016, 0
      %v1094 = vsel %vm346, %v1017, 0
      %v1097 = vsel %vm346, %v1018, 0
      %v1100 = vsel %vm346, %v1019, 0
      %v1103 = vsel %vm346, %v1020, 0
      %v1106 = vsel %vm346, %v1021, 0
      %v1109 = vsel %vm346, %v1022, 0
      %v1112 = vsel %vm346, %v1023, 0
      %v1115 = vsel %vm346, %v1024, 0
      %v1118 = vsel %vm346, %v1025, 0
      %v1121 = vsel %vm346, %v1026, 0
      %v1124 = vsel %vm346, %v1027, 0
      %v1127 = vsel %vm443, %v1029, 0
      %1129 = vmatprep.subr.mxu0 0.0
      %1130 = vmatpush1.msra.mxu0 %v1127
      %1131 = vmatprep.subr.mxu0 0.0
      %1132 = vmatpush1.msra.mxu0 0.0
      %1133 = vmatprep.subr.mxu0 0.0
      %1134 = vmatpush1.msra.mxu0 0.0
      %1135 = vmatprep.subr.mxu0 0.0
      %1136 = vmatpush1.msra.mxu0 0.0
      %1137 = vmatprep.subr.mxu0 0.0
      %1138 = vmatpush1.msra.mxu0 0.0
      %1139 = vmatprep.subr.mxu0 0.0
      %1140 = vmatpush1.msra.mxu0 0.0
      %1141 = vmatprep.subr.mxu0 0.0
      %1142 = vmatpush1.msra.mxu0 0.0
      %1143 = vmatprep.subr.mxu0 0.0
      %1144 = vmatpush1.msra.mxu0 0.0
      %1145 = vmatprep.subr.mxu0 0.0
      %1146 = vmatpush1.msra.mxu0 0.0
      %1147 = vmatprep.subr.mxu0 0.0
      %1148 = vmatpush1.msra.mxu0 0.0
      %1149 = vmatprep.subr.mxu0 0.0
      %1150 = vmatpush1.msra.mxu0 0.0
      %1151 = vmatprep.subr.mxu0 0.0
      %1152 = vmatpush1.msra.mxu0 0.0
      %1153 = vmatprep.subr.mxu0 0.0
      %1154 = vmatpush1.msra.mxu0 0.0
      %1155 = vmatprep.subr.mxu0 0.0
      %1156 = vmatpush1.msra.mxu0 0.0
      %1157 = vmatprep.subr.mxu0 0.0
      %1158 = vmatpush1.msra.mxu0 0.0
      %1159 = vmatprep.subr.mxu0 0.0
      %1160 = vmatpush1.msra.mxu0 0.0
      %1161 = vmatprep.subr.mxu0 0.0
      %1162 = vmatpush1.msra.mxu0 0.0
      %1163 = vmatprep.subr.mxu0 0.0
      %1164 = vmatpush1.msra.mxu0 0.0
      %1165 = vmatprep.subr.mxu0 0.0
      %1166 = vmatpush1.msra.mxu0 0.0
      %1167 = vmatprep.subr.mxu0 0.0
      %1168 = vmatpush1.msra.mxu0 0.0
      %1169 = vmatprep.subr.mxu0 0.0
      %1170 = vmatpush1.msra.mxu0 0.0
      %1171 = vmatprep.subr.mxu0 0.0
      %1172 = vmatpush1.msra.mxu0 0.0
      %1173 = vmatprep.subr.mxu0 0.0
      %1174 = vmatpush1.msra.mxu0 0.0
      %1175 = vmatprep.subr.mxu0 0.0
      %1176 = vmatpush1.msra.mxu0 0.0
      %1177 = vmatprep.subr.mxu0 0.0
      %1178 = vmatpush1.msra.mxu0 0.0
      %1179 = vmatprep.subr.mxu0 0.0
      %1180 = vmatpush1.msra.mxu0 0.0
      %1181 = vmatprep.subr.mxu0 0.0
      %1182 = vmatpush1.msra.mxu0 0.0
      %1183 = vmatprep.subr.mxu0 0.0
      %1184 = vmatpush1.msra.mxu0 0.0
      %1185 = vmatprep.subr.mxu0 0.0
      %1186 = vmatpush1.msra.mxu0 0.0
      %1187 = vmatprep.subr.mxu0 0.0
      %1188 = vmatpush1.msra.mxu0 0.0
      %1189 = vmatprep.subr.mxu0 0.0
      %1190 = vmatpush1.msra.mxu0 0.0
      %1191 = vmatprep.subr.mxu0 0.0
      %1192 = vmatpush1.msra.mxu0 0.0
      %1193 = vmatprep.mubr.f32.mxu0 0.0
      %1194 = vmatmul.mubr.f32.gmra.mrb[0].mxu0 %v1031
      %v1195 = vpop.f32.mrb[0].mxu0
      %v1196 = vadd.f32 0.0, %v1195
      %v1197 = vpop.f32.mrb[0].mxu0
      %1198 = vmatprep.mubr.f32.mxu0 0.0
      %1199 = vmatmul.mubr.f32.gmra.mrb[0].mxu0 %v1034
      %v1200 = vpop.f32.mrb[0].mxu0
      %v1201 = vadd.f32 0.0, %v1200
      %v1202 = vpop.f32.mrb[0].mxu0
      %1203 = vmatprep.mubr.f32.mxu0 0.0
      %1204 = vmatmul.mubr.f32.gmra.mrb[0].mxu0 %v1037
      %v1205 = vpop.f32.mrb[0].mxu0
      %v1206 = vadd.f32 0.0, %v1205
      %v1207 = vpop.f32.mrb[0].mxu0
      %1208 = vmatprep.mubr.f32.mxu0 0.0
      %1209 = vmatmul.mubr.f32.gmra.mrb[0].mxu0 %v1040
      %v1210 = vpop.f32.mrb[0].mxu0
      %v1211 = vadd.f32 0.0, %v1210
      %v1212 = vpop.f32.mrb[0].mxu0
      %1213 = vmatprep.mubr.f32.mxu0 0.0
      %1214 = vmatmul.mubr.f32.gmra.mrb[0].mxu0 %v1043
      %v1215 = vpop.f32.mrb[0].mxu0
      %v1216 = vadd.f32 0.0, %v1215
      %v1217 = vpop.f32.mrb[0].mxu0
      %1218 = vmatprep.mubr.f32.mxu0 0.0
      %1219 = vmatmul.mubr.f32.gmra.mrb[0].mxu0 %v1046
      %v1220 = vpop.f32.mrb[0].mxu0
      %v1221 = vadd.f32 0.0, %v1220
      %v1222 = vpop.f32.mrb[0].mxu0
      %1223 = vmatprep.mubr.f32.mxu0 0.0
      %1224 = vmatmul.mubr.f32.gmra.mrb[0].mxu0 %v1049
      %v1225 = vpop.f32.mrb[0].mxu0
      %v1226 = vadd.f32 0.0, %v1225
      %v1227 = vpop.f32.mrb[0].mxu0
      %1228 = vmatprep.mubr.f32.mxu0 0.0
      %1229 = vmatmul.mubr.f32.gmra.mrb[0].mxu0 %v1052
      %v1230 = vpop.f32.mrb[0].mxu0
      %v1231 = vadd.f32 0.0, %v1230
      %v1232 = vpop.f32.mrb[0].mxu0
      %1233 = vmatprep.mubr.f32.mxu0 0.0
      %1234 = vmatmul.mubr.f32.gmra.mrb[0].mxu0 %v1055
      %v1235 = vpop.f32.mrb[0].mxu0
      %v1236 = vadd.f32 0.0, %v1235
      %v1237 = vpop.f32.mrb[0].mxu0
      %1238 = vmatprep.mubr.f32.mxu0 0.0
      %1239 = vmatmul.mubr.f32.gmra.mrb[0].mxu0 %v1058
      %v1240 = vpop.f32.mrb[0].mxu0
      %v1241 = vadd.f32 0.0, %v1240
      %v1242 = vpop.f32.mrb[0].mxu0
      %1243 = vmatprep.mubr.f32.mxu0 0.0
      %1244 = vmatmul.mubr.f32.gmra.mrb[0].mxu0 %v1061
      %v1245 = vpop.f32.mrb[0].mxu0
      %v1246 = vadd.f32 0.0, %v1245
      %v1247 = vpop.f32.mrb[0].mxu0
      %1248 = vmatprep.mubr.f32.mxu0 0.0
      %1249 = vmatmul.mubr.f32.gmra.mrb[0].mxu0 %v1064
      %v1250 = vpop.f32.mrb[0].mxu0
      %v1251 = vadd.f32 0.0, %v1250
      %v1252 = vpop.f32.mrb[0].mxu0
      %1253 = vmatprep.mubr.f32.mxu0 0.0
      %1254 = vmatmul.mubr.f32.gmra.mrb[0].mxu0 %v1067
      %v1255 = vpop.f32.mrb[0].mxu0
      %v1256 = vadd.f32 0.0, %v1255
      %v1257 = vpop.f32.mrb[0].mxu0
      %1258 = vmatprep.mubr.f32.mxu0 0.0
      %1259 = vmatmul.mubr.f32.gmra.mrb[0].mxu0 %v1070
      %v1260 = vpop.f32.mrb[0].mxu0
      %v1261 = vadd.f32 0.0, %v1260
      %v1262 = vpop.f32.mrb[0].mxu0
      %1263 = vmatprep.mubr.f32.mxu0 0.0
      %1264 = vmatmul.mubr.f32.gmra.mrb[0].mxu0 %v1073
      %v1265 = vpop.f32.mrb[0].mxu0
      %v1266 = vadd.f32 0.0, %v1265
      %v1267 = vpop.f32.mrb[0].mxu0
      %1268 = vmatprep.mubr.f32.mxu0 0.0
      %1269 = vmatmul.mubr.f32.gmra.mrb[0].mxu0 %v1076
      %v1270 = vpop.f32.mrb[0].mxu0
      %v1271 = vadd.f32 0.0, %v1270
      %v1272 = vpop.f32.mrb[0].mxu0
      %1273 = vmatprep.mubr.f32.mxu0 0.0
      %1274 = vmatmul.mubr.f32.gmra.mrb[0].mxu0 %v1079
      %v1275 = vpop.f32.mrb[0].mxu0
      %v1276 = vadd.f32 0.0, %v1275
      %v1277 = vpop.f32.mrb[0].mxu0
      %1278 = vmatprep.mubr.f32.mxu0 0.0
      %1279 = vmatmul.mubr.f32.gmra.mrb[0].mxu0 %v1082
      %v1280 = vpop.f32.mrb[0].mxu0
      %v1281 = vadd.f32 0.0, %v1280
      %v1282 = vpop.f32.mrb[0].mxu0
      %1283 = vmatprep.mubr.f32.mxu0 0.0
      %1284 = vmatmul.mubr.f32.gmra.mrb[0].mxu0 %v1085
      %v1285 = vpop.f32.mrb[0].mxu0
      %v1286 = vadd.f32 0.0, %v1285
      %v1287 = vpop.f32.mrb[0].mxu0
      %1288 = vmatprep.mubr.f32.mxu0 0.0
      %1289 = vmatmul.mubr.f32.gmra.mrb[0].mxu0 %v1088
      %v1290 = vpop.f32.mrb[0].mxu0
      %v1291 = vadd.f32 0.0, %v1290
      %v1292 = vpop.f32.mrb[0].mxu0
      %1293 = vmatprep.mubr.f32.mxu0 0.0
      %1294 = vmatmul.mubr.f32.gmra.mrb[0].mxu0 %v1091
      %v1295 = vpop.f32.mrb[0].mxu0
      %v1296 = vadd.f32 0.0, %v1295
      %v1297 = vpop.f32.mrb[0].mxu0
      %1298 = vmatprep.mubr.f32.mxu0 0.0
      %1299 = vmatmul.mubr.f32.gmra.mrb[0].mxu0 %v1094
      %v1300 = vpop.f32.mrb[0].mxu0
      %v1301 = vadd.f32 0.0, %v1300
      %v1302 = vpop.f32.mrb[0].mxu0
      %1303 = vmatprep.mubr.f32.mxu0 0.0
      %1304 = vmatmul.mubr.f32.gmra.mrb[0].mxu0 %v1097
      %v1305 = vpop.f32.mrb[0].mxu0
      %v1306 = vadd.f32 0.0, %v1305
      %v1307 = vpop.f32.mrb[0].mxu0
      %1308 = vmatprep.mubr.f32.mxu0 0.0
      %1309 = vmatmul.mubr.f32.gmra.mrb[0].mxu0 %v1100
      %v1310 = vpop.f32.mrb[0].mxu0
      %v1311 = vadd.f32 0.0, %v1310
      %v1312 = vpop.f32.mrb[0].mxu0
      %1313 = vmatprep.mubr.f32.mxu0 0.0
      %1314 = vmatmul.mubr.f32.gmra.mrb[0].mxu0 %v1103
      %v1315 = vpop.f32.mrb[0].mxu0
      %v1316 = vadd.f32 0.0, %v1315
      %v1317 = vpop.f32.mrb[0].mxu0
      %1318 = vmatprep.mubr.f32.mxu0 0.0
      %1319 = vmatmul.mubr.f32.gmra.mrb[0].mxu0 %v1106
      %v1320 = vpop.f32.mrb[0].mxu0
      %v1321 = vadd.f32 0.0, %v1320
      %v1322 = vpop.f32.mrb[0].mxu0
      %1323 = vmatprep.mubr.f32.mxu0 0.0
      %1324 = vmatmul.mubr.f32.gmra.mrb[0].mxu0 %v1109
      %v1325 = vpop.f32.mrb[0].mxu0
      %v1326 = vadd.f32 0.0, %v1325
      %v1327 = vpop.f32.mrb[0].mxu0
      %1328 = vmatprep.mubr.f32.mxu0 0.0
      %1329 = vmatmul.mubr.f32.gmra.mrb[0].mxu0 %v1112
      %v1330 = vpop.f32.mrb[0].mxu0
      %v1331 = vadd.f32 0.0, %v1330
      %v1332 = vpop.f32.mrb[0].mxu0
      %1333 = vmatprep.mubr.f32.mxu0 0.0
      %1334 = vmatmul.mubr.f32.gmra.mrb[0].mxu0 %v1115
      %v1335 = vpop.f32.mrb[0].mxu0
      %v1336 = vadd.f32 0.0, %v1335
      %v1337 = vpop.f32.mrb[0].mxu0
      %1338 = vmatprep.mubr.f32.mxu0 0.0
      %1339 = vmatmul.mubr.f32.gmra.mrb[0].mxu0 %v1118
      %v1340 = vpop.f32.mrb[0].mxu0
      %v1341 = vadd.f32 0.0, %v1340
      %v1342 = vpop.f32.mrb[0].mxu0
      %1343 = vmatprep.mubr.f32.mxu0 0.0
      %1344 = vmatmul.mubr.f32.gmra.mrb[0].mxu0 %v1121
      %v1345 = vpop.f32.mrb[0].mxu0
      %v1346 = vadd.f32 0.0, %v1345
      %v1347 = vpop.f32.mrb[0].mxu0
      %1348 = vmatprep.mubr.f32.mxu0 0.0
      %1349 = vmatmul.mubr.f32.gmra.mrb[0].mxu0 %v1124
      %v1350 = vpop.f32.mrb[0].mxu0
      %v1351 = vadd.f32 0.0, %v1350
      %v1352 = vpop.f32.mrb[0].mxu0
      %1353 = vdwg.mxu0
      %v1354 = vadd.f32 %v838, %v1196
      %v1355 = vadd.f32 %v843, %v1201
      %v1356 = vadd.f32 %v848, %v1206
      %v1357 = vadd.f32 %v853, %v1211
      %v1358 = vadd.f32 %v858, %v1216
      %v1359 = vadd.f32 %v863, %v1221
      %v1360 = vadd.f32 %v868, %v1226
      %v1361 = vadd.f32 %v873, %v1231
      %v1362 = vadd.f32 %v878, %v1236
      %v1363 = vadd.f32 %v883, %v1241
      %v1364 = vadd.f32 %v888, %v1246
      %v1365 = vadd.f32 %v893, %v1251
      %v1366 = vadd.f32 %v898, %v1256
      %v1367 = vadd.f32 %v903, %v1261
      %v1368 = vadd.f32 %v908, %v1266
      %v1369 = vadd.f32 %v913, %v1271
      %v1370 = vadd.f32 %v918, %v1276
      %v1371 = vadd.f32 %v923, %v1281
      %v1372 = vadd.f32 %v928, %v1286
      %v1373 = vadd.f32 %v933, %v1291
      %v1374 = vadd.f32 %v938, %v1296
      %v1375 = vadd.f32 %v943, %v1301
      %v1376 = vadd.f32 %v948, %v1306
      %v1377 = vadd.f32 %v953, %v1311
      %v1378 = vadd.f32 %v958, %v1316
      %v1379 = vadd.f32 %v963, %v1321
      %v1380 = vadd.f32 %v968, %v1326
      %v1381 = vadd.f32 %v973, %v1331
      %v1382 = vadd.f32 %v978, %v1336
      %v1383 = vadd.f32 %v983, %v1341
      %v1384 = vadd.f32 %v988, %v1346
      %v1385 = vadd.f32 %v993, %v1351
      %s1386 = scalar_lea.vmem %s273, 24
      %v1387 = vld [vmem:[%s1386] sm:$0xff]
      %v1388 = vld [vmem:[%s1386 + $0x8] sm:$0xff]
      %v1389 = vld [vmem:[%s1386 + $0x18] sm:$0xff]
      %v1390 = vld [vmem:[%s1386 + $0x20] sm:$0xff]
      %v1391 = vld [vmem:[%s1386 + $0x30] sm:$0xff]
      %v1392 = vld [vmem:[%s1386 + $0x38] sm:$0xff]
      %v1393 = vld [vmem:[%s1386 + $0x48] sm:$0xff]
      %v1394 = vld [vmem:[%s1386 + $0x50] sm:$0xff]
      %v1395 = vld [vmem:[%s1386 + $0x60] sm:$0xff]
      %v1396 = vld [vmem:[%s1386 + $0x68] sm:$0xff]
      %v1397 = vld [vmem:[%s1386 + $0x78] sm:$0xff]
      %v1398 = vld [vmem:[%s1386 + $0x80] sm:$0xff]
      %v1399 = vld [vmem:[%s1386 + $0x90] sm:$0xff]
      %v1400 = vld [vmem:[%s1386 + $0x98] sm:$0xff]
      %v1401 = vld [vmem:[%s1386 + $0xa8] sm:$0xff]
      %v1402 = vld [vmem:[%s1386 + $0xb0] sm:$0xff]
      %v1403 = vld [vmem:[%s1386 + $0xc0] sm:$0xff]
      %v1404 = vld [vmem:[%s1386 + $0xc8] sm:$0xff]
      %v1405 = vld [vmem:[%s1386 + $0xd8] sm:$0xff]
      %v1406 = vld [vmem:[%s1386 + $0xe0] sm:$0xff]
      %v1407 = vld [vmem:[%s1386 + $0xf0] sm:$0xff]
      %v1408 = vld [vmem:[%s1386 + $0xf8] sm:$0xff]
      %v1409 = vld [vmem:[%s1386 + $0x108] sm:$0xff]
      %v1410 = vld [vmem:[%s1386 + $0x110] sm:$0xff]
      %v1411 = vld [vmem:[%s1386 + $0x120] sm:$0xff]
      %v1412 = vld [vmem:[%s1386 + $0x128] sm:$0xff]
      %v1413 = vld [vmem:[%s1386 + $0x138] sm:$0xff]
      %v1414 = vld [vmem:[%s1386 + $0x140] sm:$0xff]
      %v1415 = vld [vmem:[%s1386 + $0x150] sm:$0xff]
      %v1416 = vld [vmem:[%s1386 + $0x158] sm:$0xff]
      %v1417 = vld [vmem:[%s1386 + $0x168] sm:$0xff]
      %v1418 = vld [vmem:[%s1386 + $0x170] sm:$0xff]
      %s1419 = scalar_lea.vmem %s1, 12
      %v1420 = vld [vmem:[%s1419] sm:$0xf]
      %v1422 = vsel %vm346, %v1387, 0
      %v1425 = vsel %vm346, %v1388, 0
      %v1428 = vsel %vm346, %v1389, 0
      %v1431 = vsel %vm346, %v1390, 0
      %v1434 = vsel %vm346, %v1391, 0
      %v1437 = vsel %vm346, %v1392, 0
      %v1440 = vsel %vm346, %v1393, 0
      %v1443 = vsel %vm346, %v1394, 0
      %v1446 = vsel %vm346, %v1395, 0
      %v1449 = vsel %vm346, %v1396, 0
      %v1452 = vsel %vm346, %v1397, 0
      %v1455 = vsel %vm346, %v1398, 0
      %v1458 = vsel %vm346, %v1399, 0
      %v1461 = vsel %vm346, %v1400, 0
      %v1464 = vsel %vm346, %v1401, 0
      %v1467 = vsel %vm346, %v1402, 0
      %v1470 = vsel %vm346, %v1403, 0
      %v1473 = vsel %vm346, %v1404, 0
      %v1476 = vsel %vm346, %v1405, 0
      %v1479 = vsel %vm346, %v1406, 0
      %v1482 = vsel %vm346, %v1407, 0
      %v1485 = vsel %vm346, %v1408, 0
      %v1488 = vsel %vm346, %v1409, 0
      %v1491 = vsel %vm346, %v1410, 0
      %v1494 = vsel %vm346, %v1411, 0
      %v1497 = vsel %vm346, %v1412, 0
      %v1500 = vsel %vm346, %v1413, 0
      %v1503 = vsel %vm346, %v1414, 0
      %v1506 = vsel %vm346, %v1415, 0
      %v1509 = vsel %vm346, %v1416, 0
      %v1512 = vsel %vm346, %v1417, 0
      %v1515 = vsel %vm346, %v1418, 0
      %v1518 = vsel %vm443, %v1420, 0
      %1520 = vmatprep.subr.mxu0 0.0
      %1521 = vmatpush1.msra.mxu0 %v1518
      %1522 = vmatprep.subr.mxu0 0.0
      %1523 = vmatpush1.msra.mxu0 0.0
      %1524 = vmatprep.subr.mxu0 0.0
      %1525 = vmatpush1.msra.mxu0 0.0
      %1526 = vmatprep.subr.mxu0 0.0
      %1527 = vmatpush1.msra.mxu0 0.0
      %1528 = vmatprep.subr.mxu0 0.0
      %1529 = vmatpush1.msra.mxu0 0.0
      %1530 = vmatprep.subr.mxu0 0.0
      %1531 = vmatpush1.msra.mxu0 0.0
      %1532 = vmatprep.subr.mxu0 0.0
      %1533 = vmatpush1.msra.mxu0 0.0
      %1534 = vmatprep.subr.mxu0 0.0
      %1535 = vmatpush1.msra.mxu0 0.0
      %1536 = vmatprep.subr.mxu0 0.0
      %1537 = vmatpush1.msra.mxu0 0.0
      %1538 = vmatprep.subr.mxu0 0.0
      %1539 = vmatpush1.msra.mxu0 0.0
      %1540 = vmatprep.subr.mxu0 0.0
      %1541 = vmatpush1.msra.mxu0 0.0
      %1542 = vmatprep.subr.mxu0 0.0
      %1543 = vmatpush1.msra.mxu0 0.0
      %1544 = vmatprep.subr.mxu0 0.0
      %1545 = vmatpush1.msra.mxu0 0.0
      %1546 = vmatprep.subr.mxu0 0.0
      %1547 = vmatpush1.msra.mxu0 0.0
      %1548 = vmatprep.subr.mxu0 0.0
      %1549 = vmatpush1.msra.mxu0 0.0
      %1550 = vmatprep.subr.mxu0 0.0
      %1551 = vmatpush1.msra.mxu0 0.0
      %1552 = vmatprep.subr.mxu0 0.0
      %1553 = vmatpush1.msra.mxu0 0.0
      %1554 = vmatprep.subr.mxu0 0.0
      %1555 = vmatpush1.msra.mxu0 0.0
      %1556 = vmatprep.subr.mxu0 0.0
      %1557 = vmatpush1.msra.mxu0 0.0
      %1558 = vmatprep.subr.mxu0 0.0
      %1559 = vmatpush1.msra.mxu0 0.0
      %1560 = vmatprep.subr.mxu0 0.0
      %1561 = vmatpush1.msra.mxu0 0.0
      %1562 = vmatprep.subr.mxu0 0.0
      %1563 = vmatpush1.msra.mxu0 0.0
      %1564 = vmatprep.subr.mxu0 0.0
      %1565 = vmatpush1.msra.mxu0 0.0
      %1566 = vmatprep.subr.mxu0 0.0
      %1567 = vmatpush1.msra.mxu0 0.0
      %1568 = vmatprep.subr.mxu0 0.0
      %1569 = vmatpush1.msra.mxu0 0.0
      %1570 = vmatprep.subr.mxu0 0.0
      %1571 = vmatpush1.msra.mxu0 0.0
      %1572 = vmatprep.subr.mxu0 0.0
      %1573 = vmatpush1.msra.mxu0 0.0
      %1574 = vmatprep.subr.mxu0 0.0
      %1575 = vmatpush1.msra.mxu0 0.0
      %1576 = vmatprep.subr.mxu0 0.0
      %1577 = vmatpush1.msra.mxu0 0.0
      %1578 = vmatprep.subr.mxu0 0.0
      %1579 = vmatpush1.msra.mxu0 0.0
      %1580 = vmatprep.subr.mxu0 0.0
      %1581 = vmatpush1.msra.mxu0 0.0
      %1582 = vmatprep.subr.mxu0 0.0
      %1583 = vmatpush1.msra.mxu0 0.0
      %1584 = vmatprep.mubr.f32.mxu0 0.0
      %1585 = vmatmul.mubr.f32.gmra.mrb[0].mxu0 %v1422
      %v1586 = vpop.f32.mrb[0].mxu0
      %v1587 = vadd.f32 0.0, %v1586
      %v1588 = vpop.f32.mrb[0].mxu0
      %1589 = vmatprep.mubr.f32.mxu0 0.0
      %1590 = vmatmul.mubr.f32.gmra.mrb[0].mxu0 %v1425
      %v1591 = vpop.f32.mrb[0].mxu0
      %v1592 = vadd.f32 0.0, %v1591
      %v1593 = vpop.f32.mrb[0].mxu0
      %1594 = vmatprep.mubr.f32.mxu0 0.0
      %1595 = vmatmul.mubr.f32.gmra.mrb[0].mxu0 %v1428
      %v1596 = vpop.f32.mrb[0].mxu0
      %v1597 = vadd.f32 0.0, %v1596
      %v1598 = vpop.f32.mrb[0].mxu0
      %1599 = vmatprep.mubr.f32.mxu0 0.0
      %1600 = vmatmul.mubr.f32.gmra.mrb[0].mxu0 %v1431
      %v1601 = vpop.f32.mrb[0].mxu0
      %v1602 = vadd.f32 0.0, %v1601
      %v1603 = vpop.f32.mrb[0].mxu0
      %1604 = vmatprep.mubr.f32.mxu0 0.0
      %1605 = vmatmul.mubr.f32.gmra.mrb[0].mxu0 %v1434
      %v1606 = vpop.f32.mrb[0].mxu0
      %v1607 = vadd.f32 0.0, %v1606
      %v1608 = vpop.f32.mrb[0].mxu0
      %1609 = vmatprep.mubr.f32.mxu0 0.0
      %1610 = vmatmul.mubr.f32.gmra.mrb[0].mxu0 %v1437
      %v1611 = vpop.f32.mrb[0].mxu0
      %v1612 = vadd.f32 0.0, %v1611
      %v1613 = vpop.f32.mrb[0].mxu0
      %1614 = vmatprep.mubr.f32.mxu0 0.0
      %1615 = vmatmul.mubr.f32.gmra.mrb[0].mxu0 %v1440
      %v1616 = vpop.f32.mrb[0].mxu0
      %v1617 = vadd.f32 0.0, %v1616
      %v1618 = vpop.f32.mrb[0].mxu0
      %1619 = vmatprep.mubr.f32.mxu0 0.0
      %1620 = vmatmul.mubr.f32.gmra.mrb[0].mxu0 %v1443
      %v1621 = vpop.f32.mrb[0].mxu0
      %v1622 = vadd.f32 0.0, %v1621
      %v1623 = vpop.f32.mrb[0].mxu0
      %1624 = vmatprep.mubr.f32.mxu0 0.0
      %1625 = vmatmul.mubr.f32.gmra.mrb[0].mxu0 %v1446
      %v1626 = vpop.f32.mrb[0].mxu0
      %v1627 = vadd.f32 0.0, %v1626
      %v1628 = vpop.f32.mrb[0].mxu0
      %1629 = vmatprep.mubr.f32.mxu0 0.0
      %1630 = vmatmul.mubr.f32.gmra.mrb[0].mxu0 %v1449
      %v1631 = vpop.f32.mrb[0].mxu0
      %v1632 = vadd.f32 0.0, %v1631
      %v1633 = vpop.f32.mrb[0].mxu0
      %1634 = vmatprep.mubr.f32.mxu0 0.0
      %1635 = vmatmul.mubr.f32.gmra.mrb[0].mxu0 %v1452
      %v1636 = vpop.f32.mrb[0].mxu0
      %v1637 = vadd.f32 0.0, %v1636
      %v1638 = vpop.f32.mrb[0].mxu0
      %1639 = vmatprep.mubr.f32.mxu0 0.0
      %1640 = vmatmul.mubr.f32.gmra.mrb[0].mxu0 %v1455
      %v1641 = vpop.f32.mrb[0].mxu0
      %v1642 = vadd.f32 0.0, %v1641
      %v1643 = vpop.f32.mrb[0].mxu0
      %1644 = vmatprep.mubr.f32.mxu0 0.0
      %1645 = vmatmul.mubr.f32.gmra.mrb[0].mxu0 %v1458
      %v1646 = vpop.f32.mrb[0].mxu0
      %v1647 = vadd.f32 0.0, %v1646
      %v1648 = vpop.f32.mrb[0].mxu0
      %1649 = vmatprep.mubr.f32.mxu0 0.0
      %1650 = vmatmul.mubr.f32.gmra.mrb[0].mxu0 %v1461
      %v1651 = vpop.f32.mrb[0].mxu0
      %v1652 = vadd.f32 0.0, %v1651
      %v1653 = vpop.f32.mrb[0].mxu0
      %1654 = vmatprep.mubr.f32.mxu0 0.0
      %1655 = vmatmul.mubr.f32.gmra.mrb[0].mxu0 %v1464
      %v1656 = vpop.f32.mrb[0].mxu0
      %v1657 = vadd.f32 0.0, %v1656
      %v1658 = vpop.f32.mrb[0].mxu0
      %1659 = vmatprep.mubr.f32.mxu0 0.0
      %1660 = vmatmul.mubr.f32.gmra.mrb[0].mxu0 %v1467
      %v1661 = vpop.f32.mrb[0].mxu0
      %v1662 = vadd.f32 0.0, %v1661
      %v1663 = vpop.f32.mrb[0].mxu0
      %1664 = vmatprep.mubr.f32.mxu0 0.0
      %1665 = vmatmul.mubr.f32.gmra.mrb[0].mxu0 %v1470
      %v1666 = vpop.f32.mrb[0].mxu0
      %v1667 = vadd.f32 0.0, %v1666
      %v1668 = vpop.f32.mrb[0].mxu0
      %1669 = vmatprep.mubr.f32.mxu0 0.0
      %1670 = vmatmul.mubr.f32.gmra.mrb[0].mxu0 %v1473
      %v1671 = vpop.f32.mrb[0].mxu0
      %v1672 = vadd.f32 0.0, %v1671
      %v1673 = vpop.f32.mrb[0].mxu0
      %1674 = vmatprep.mubr.f32.mxu0 0.0
      %1675 = vmatmul.mubr.f32.gmra.mrb[0].mxu0 %v1476
      %v1676 = vpop.f32.mrb[0].mxu0
      %v1677 = vadd.f32 0.0, %v1676
      %v1678 = vpop.f32.mrb[0].mxu0
      %1679 = vmatprep.mubr.f32.mxu0 0.0
      %1680 = vmatmul.mubr.f32.gmra.mrb[0].mxu0 %v1479
      %v1681 = vpop.f32.mrb[0].mxu0
      %v1682 = vadd.f32 0.0, %v1681
      %v1683 = vpop.f32.mrb[0].mxu0
      %1684 = vmatprep.mubr.f32.mxu0 0.0
      %1685 = vmatmul.mubr.f32.gmra.mrb[0].mxu0 %v1482
      %v1686 = vpop.f32.mrb[0].mxu0
      %v1687 = vadd.f32 0.0, %v1686
      %v1688 = vpop.f32.mrb[0].mxu0
      %1689 = vmatprep.mubr.f32.mxu0 0.0
      %1690 = vmatmul.mubr.f32.gmra.mrb[0].mxu0 %v1485
      %v1691 = vpop.f32.mrb[0].mxu0
      %v1692 = vadd.f32 0.0, %v1691
      %v1693 = vpop.f32.mrb[0].mxu0
      %1694 = vmatprep.mubr.f32.mxu0 0.0
      %1695 = vmatmul.mubr.f32.gmra.mrb[0].mxu0 %v1488
      %v1696 = vpop.f32.mrb[0].mxu0
      %v1697 = vadd.f32 0.0, %v1696
      %v1698 = vpop.f32.mrb[0].mxu0
      %1699 = vmatprep.mubr.f32.mxu0 0.0
      %1700 = vmatmul.mubr.f32.gmra.mrb[0].mxu0 %v1491
      %v1701 = vpop.f32.mrb[0].mxu0
      %v1702 = vadd.f32 0.0, %v1701
      %v1703 = vpop.f32.mrb[0].mxu0
      %1704 = vmatprep.mubr.f32.mxu0 0.0
      %1705 = vmatmul.mubr.f32.gmra.mrb[0].mxu0 %v1494
      %v1706 = vpop.f32.mrb[0].mxu0
      %v1707 = vadd.f32 0.0, %v1706
      %v1708 = vpop.f32.mrb[0].mxu0
      %1709 = vmatprep.mubr.f32.mxu0 0.0
      %1710 = vmatmul.mubr.f32.gmra.mrb[0].mxu0 %v1497
      %v1711 = vpop.f32.mrb[0].mxu0
      %v1712 = vadd.f32 0.0, %v1711
      %v1713 = vpop.f32.mrb[0].mxu0
      %1714 = vmatprep.mubr.f32.mxu0 0.0
      %1715 = vmatmul.mubr.f32.gmra.mrb[0].mxu0 %v1500
      %v1716 = vpop.f32.mrb[0].mxu0
      %v1717 = vadd.f32 0.0, %v1716
      %v1718 = vpop.f32.mrb[0].mxu0
      %1719 = vmatprep.mubr.f32.mxu0 0.0
      %1720 = vmatmul.mubr.f32.gmra.mrb[0].mxu0 %v1503
      %v1721 = vpop.f32.mrb[0].mxu0
      %v1722 = vadd.f32 0.0, %v1721
      %v1723 = vpop.f32.mrb[0].mxu0
      %1724 = vmatprep.mubr.f32.mxu0 0.0
      %1725 = vmatmul.mubr.f32.gmra.mrb[0].mxu0 %v1506
      %v1726 = vpop.f32.mrb[0].mxu0
      %v1727 = vadd.f32 0.0, %v1726
      %v1728 = vpop.f32.mrb[0].mxu0
      %1729 = vmatprep.mubr.f32.mxu0 0.0
      %1730 = vmatmul.mubr.f32.gmra.mrb[0].mxu0 %v1509
      %v1731 = vpop.f32.mrb[0].mxu0
      %v1732 = vadd.f32 0.0, %v1731
      %v1733 = vpop.f32.mrb[0].mxu0
      %1734 = vmatprep.mubr.f32.mxu0 0.0
      %1735 = vmatmul.mubr.f32.gmra.mrb[0].mxu0 %v1512
      %v1736 = vpop.f32.mrb[0].mxu0
      %v1737 = vadd.f32 0.0, %v1736
      %v1738 = vpop.f32.mrb[0].mxu0
      %1739 = vmatprep.mubr.f32.mxu0 0.0
      %1740 = vmatmul.mubr.f32.gmra.mrb[0].mxu0 %v1515
      %v1741 = vpop.f32.mrb[0].mxu0
      %v1742 = vadd.f32 0.0, %v1741
      %v1743 = vpop.f32.mrb[0].mxu0
      %1744 = vdwg.mxu0
      %v1745 = vadd.f32 %v1354, %v1587
      %v1746 = vadd.f32 %v1355, %v1592
      %v1747 = vadd.f32 %v1356, %v1597
      %v1748 = vadd.f32 %v1357, %v1602
      %v1749 = vadd.f32 %v1358, %v1607
      %v1750 = vadd.f32 %v1359, %v1612
      %v1751 = vadd.f32 %v1360, %v1617
      %v1752 = vadd.f32 %v1361, %v1622
      %v1753 = vadd.f32 %v1362, %v1627
      %v1754 = vadd.f32 %v1363, %v1632
      %v1755 = vadd.f32 %v1364, %v1637
      %v1756 = vadd.f32 %v1365, %v1642
      %v1757 = vadd.f32 %v1366, %v1647
      %v1758 = vadd.f32 %v1367, %v1652
      %v1759 = vadd.f32 %v1368, %v1657
      %v1760 = vadd.f32 %v1369, %v1662
      %v1761 = vadd.f32 %v1370, %v1667
      %v1762 = vadd.f32 %v1371, %v1672
      %v1763 = vadd.f32 %v1372, %v1677
      %v1764 = vadd.f32 %v1373, %v1682
      %v1765 = vadd.f32 %v1374, %v1687
      %v1766 = vadd.f32 %v1375, %v1692
      %v1767 = vadd.f32 %v1376, %v1697
      %v1768 = vadd.f32 %v1377, %v1702
      %v1769 = vadd.f32 %v1378, %v1707
      %v1770 = vadd.f32 %v1379, %v1712
      %v1771 = vadd.f32 %v1380, %v1717
      %v1772 = vadd.f32 %v1381, %v1722
      %v1773 = vadd.f32 %v1382, %v1727
      %v1774 = vadd.f32 %v1383, %v1732
      %v1775 = vadd.f32 %v1384, %v1737
      %v1776 = vadd.f32 %v1385, %v1742
      %v1777 = vld [vmem:[%s1386 + $0x1] sm:$0xff]
      %v1778 = vld [vmem:[%s1386 + $0x9] sm:$0xff]
      %v1779 = vld [vmem:[%s1386 + $0x19] sm:$0xff]
      %v1780 = vld [vmem:[%s1386 + $0x21] sm:$0xff]
      %v1781 = vld [vmem:[%s1386 + $0x31] sm:$0xff]
      %v1782 = vld [vmem:[%s1386 + $0x39] sm:$0xff]
      %v1783 = vld [vmem:[%s1386 + $0x49] sm:$0xff]
      %v1784 = vld [vmem:[%s1386 + $0x51] sm:$0xff]
      %v1785 = vld [vmem:[%s1386 + $0x61] sm:$0xff]
      %v1786 = vld [vmem:[%s1386 + $0x69] sm:$0xff]
      %v1787 = vld [vmem:[%s1386 + $0x79] sm:$0xff]
      %v1788 = vld [vmem:[%s1386 + $0x81] sm:$0xff]
      %v1789 = vld [vmem:[%s1386 + $0x91] sm:$0xff]
      %v1790 = vld [vmem:[%s1386 + $0x99] sm:$0xff]
      %v1791 = vld [vmem:[%s1386 + $0xa9] sm:$0xff]
      %v1792 = vld [vmem:[%s1386 + $0xb1] sm:$0xff]
      %v1793 = vld [vmem:[%s1386 + $0xc1] sm:$0xff]
      %v1794 = vld [vmem:[%s1386 + $0xc9] sm:$0xff]
      %v1795 = vld [vmem:[%s1386 + $0xd9] sm:$0xff]
      %v1796 = vld [vmem:[%s1386 + $0xe1] sm:$0xff]
      %v1797 = vld [vmem:[%s1386 + $0xf1] sm:$0xff]
      %v1798 = vld [vmem:[%s1386 + $0xf9] sm:$0xff]
      %v1799 = vld [vmem:[%s1386 + $0x109] sm:$0xff]
      %v1800 = vld [vmem:[%s1386 + $0x111] sm:$0xff]
      %v1801 = vld [vmem:[%s1386 + $0x121] sm:$0xff]
      %v1802 = vld [vmem:[%s1386 + $0x129] sm:$0xff]
      %v1803 = vld [vmem:[%s1386 + $0x139] sm:$0xff]
      %v1804 = vld [vmem:[%s1386 + $0x141] sm:$0xff]
      %v1805 = vld [vmem:[%s1386 + $0x151] sm:$0xff]
      %v1806 = vld [vmem:[%s1386 + $0x159] sm:$0xff]
      %v1807 = vld [vmem:[%s1386 + $0x169] sm:$0xff]
      %v1808 = vld [vmem:[%s1386 + $0x171] sm:$0xff]
      %s1809 = scalar_lea.vmem %s1, 16
      %v1810 = vld [vmem:[%s1809] sm:$0xf]
      %v1812 = vsel %vm346, %v1777, 0
      %v1815 = vsel %vm346, %v1778, 0
      %v1818 = vsel %vm346, %v1779, 0
      %v1821 = vsel %vm346, %v1780, 0
      %v1824 = vsel %vm346, %v1781, 0
      %v1827 = vsel %vm346, %v1782, 0
      %v1830 = vsel %vm346, %v1783, 0
      %v1833 = vsel %vm346, %v1784, 0
      %v1836 = vsel %vm346, %v1785, 0
      %v1839 = vsel %vm346, %v1786, 0
      %v1842 = vsel %vm346, %v1787, 0
      %v1845 = vsel %vm346, %v1788, 0
      %v1848 = vsel %vm346, %v1789, 0
      %v1851 = vsel %vm346, %v1790, 0
      %v1854 = vsel %vm346, %v1791, 0
      %v1857 = vsel %vm346, %v1792, 0
      %v1860 = vsel %vm346, %v1793, 0
      %v1863 = vsel %vm346, %v1794, 0
      %v1866 = vsel %vm346, %v1795, 0
      %v1869 = vsel %vm346, %v1796, 0
      %v1872 = vsel %vm346, %v1797, 0
      %v1875 = vsel %vm346, %v1798, 0
      %v1878 = vsel %vm346, %v1799, 0
      %v1881 = vsel %vm346, %v1800, 0
      %v1884 = vsel %vm346, %v1801, 0
      %v1887 = vsel %vm346, %v1802, 0
      %v1890 = vsel %vm346, %v1803, 0
      %v1893 = vsel %vm346, %v1804, 0
      %v1896 = vsel %vm346, %v1805, 0
      %v1899 = vsel %vm346, %v1806, 0
      %v1902 = vsel %vm346, %v1807, 0
      %v1905 = vsel %vm346, %v1808, 0
      %v1908 = vsel %vm443, %v1810, 0
      %1910 = vmatprep.subr.mxu0 0.0
      %1911 = vmatpush1.msra.mxu0 %v1908
      %1912 = vmatprep.subr.mxu0 0.0
      %1913 = vmatpush1.msra.mxu0 0.0
      %1914 = vmatprep.subr.mxu0 0.0
      %1915 = vmatpush1.msra.mxu0 0.0
      %1916 = vmatprep.subr.mxu0 0.0
      %1917 = vmatpush1.msra.mxu0 0.0
      %1918 = vmatprep.subr.mxu0 0.0
      %1919 = vmatpush1.msra.mxu0 0.0
      %1920 = vmatprep.subr.mxu0 0.0
      %1921 = vmatpush1.msra.mxu0 0.0
      %1922 = vmatprep.subr.mxu0 0.0
      %1923 = vmatpush1.msra.mxu0 0.0
      %1924 = vmatprep.subr.mxu0 0.0
      %1925 = vmatpush1.msra.mxu0 0.0
      %1926 = vmatprep.subr.mxu0 0.0
      %1927 = vmatpush1.msra.mxu0 0.0
      %1928 = vmatprep.subr.mxu0 0.0
      %1929 = vmatpush1.msra.mxu0 0.0
      %1930 = vmatprep.subr.mxu0 0.0
      %1931 = vmatpush1.msra.mxu0 0.0
      %1932 = vmatprep.subr.mxu0 0.0
      %1933 = vmatpush1.msra.mxu0 0.0
      %1934 = vmatprep.subr.mxu0 0.0
      %1935 = vmatpush1.msra.mxu0 0.0
      %1936 = vmatprep.subr.mxu0 0.0
      %1937 = vmatpush1.msra.mxu0 0.0
      %1938 = vmatprep.subr.mxu0 0.0
      %1939 = vmatpush1.msra.mxu0 0.0
      %1940 = vmatprep.subr.mxu0 0.0
      %1941 = vmatpush1.msra.mxu0 0.0
      %1942 = vmatprep.subr.mxu0 0.0
      %1943 = vmatpush1.msra.mxu0 0.0
      %1944 = vmatprep.subr.mxu0 0.0
      %1945 = vmatpush1.msra.mxu0 0.0
      %1946 = vmatprep.subr.mxu0 0.0
      %1947 = vmatpush1.msra.mxu0 0.0
      %1948 = vmatprep.subr.mxu0 0.0
      %1949 = vmatpush1.msra.mxu0 0.0
      %1950 = vmatprep.subr.mxu0 0.0
      %1951 = vmatpush1.msra.mxu0 0.0
      %1952 = vmatprep.subr.mxu0 0.0
      %1953 = vmatpush1.msra.mxu0 0.0
      %1954 = vmatprep.subr.mxu0 0.0
      %1955 = vmatpush1.msra.mxu0 0.0
      %1956 = vmatprep.subr.mxu0 0.0
      %1957 = vmatpush1.msra.mxu0 0.0
      %1958 = vmatprep.subr.mxu0 0.0
      %1959 = vmatpush1.msra.mxu0 0.0
      %1960 = vmatprep.subr.mxu0 0.0
      %1961 = vmatpush1.msra.mxu0 0.0
      %1962 = vmatprep.subr.mxu0 0.0
      %1963 = vmatpush1.msra.mxu0 0.0
      %1964 = vmatprep.subr.mxu0 0.0
      %1965 = vmatpush1.msra.mxu0 0.0
      %1966 = vmatprep.subr.mxu0 0.0
      %1967 = vmatpush1.msra.mxu0 0.0
      %1968 = vmatprep.subr.mxu0 0.0
      %1969 = vmatpush1.msra.mxu0 0.0
      %1970 = vmatprep.subr.mxu0 0.0
      %1971 = vmatpush1.msra.mxu0 0.0
      %1972 = vmatprep.subr.mxu0 0.0
      %1973 = vmatpush1.msra.mxu0 0.0
      %1974 = vmatprep.mubr.f32.mxu0 0.0
      %1975 = vmatmul.mubr.f32.gmra.mrb[0].mxu0 %v1812
      %v1976 = vpop.f32.mrb[0].mxu0
      %v1977 = vadd.f32 0.0, %v1976
      %v1978 = vpop.f32.mrb[0].mxu0
      %1979 = vmatprep.mubr.f32.mxu0 0.0
      %1980 = vmatmul.mubr.f32.gmra.mrb[0].mxu0 %v1815
      %v1981 = vpop.f32.mrb[0].mxu0
      %v1982 = vadd.f32 0.0, %v1981
      %v1983 = vpop.f32.mrb[0].mxu0
      %1984 = vmatprep.mubr.f32.mxu0 0.0
      %1985 = vmatmul.mubr.f32.gmra.mrb[0].mxu0 %v1818
      %v1986 = vpop.f32.mrb[0].mxu0
      %v1987 = vadd.f32 0.0, %v1986
      %v1988 = vpop.f32.mrb[0].mxu0
      %1989 = vmatprep.mubr.f32.mxu0 0.0
      %1990 = vmatmul.mubr.f32.gmra.mrb[0].mxu0 %v1821
      %v1991 = vpop.f32.mrb[0].mxu0
      %v1992 = vadd.f32 0.0, %v1991
      %v1993 = vpop.f32.mrb[0].mxu0
      %1994 = vmatprep.mubr.f32.mxu0 0.0
      %1995 = vmatmul.mubr.f32.gmra.mrb[0].mxu0 %v1824
      %v1996 = vpop.f32.mrb[0].mxu0
      %v1997 = vadd.f32 0.0, %v1996
      %v1998 = vpop.f32.mrb[0].mxu0
      %1999 = vmatprep.mubr.f32.mxu0 0.0
      %2000 = vmatmul.mubr.f32.gmra.mrb[0].mxu0 %v1827
      %v2001 = vpop.f32.mrb[0].mxu0
      %v2002 = vadd.f32 0.0, %v2001
      %v2003 = vpop.f32.mrb[0].mxu0
      %2004 = vmatprep.mubr.f32.mxu0 0.0
      %2005 = vmatmul.mubr.f32.gmra.mrb[0].mxu0 %v1830
      %v2006 = vpop.f32.mrb[0].mxu0
      %v2007 = vadd.f32 0.0, %v2006
      %v2008 = vpop.f32.mrb[0].mxu0
      %2009 = vmatprep.mubr.f32.mxu0 0.0
      %2010 = vmatmul.mubr.f32.gmra.mrb[0].mxu0 %v1833
      %v2011 = vpop.f32.mrb[0].mxu0
      %v2012 = vadd.f32 0.0, %v2011
      %v2013 = vpop.f32.mrb[0].mxu0
      %2014 = vmatprep.mubr.f32.mxu0 0.0
      %2015 = vmatmul.mubr.f32.gmra.mrb[0].mxu0 %v1836
      %v2016 = vpop.f32.mrb[0].mxu0
      %v2017 = vadd.f32 0.0, %v2016
      %v2018 = vpop.f32.mrb[0].mxu0
      %2019 = vmatprep.mubr.f32.mxu0 0.0
      %2020 = vmatmul.mubr.f32.gmra.mrb[0].mxu0 %v1839
      %v2021 = vpop.f32.mrb[0].mxu0
      %v2022 = vadd.f32 0.0, %v2021
      %v2023 = vpop.f32.mrb[0].mxu0
      %2024 = vmatprep.mubr.f32.mxu0 0.0
      %2025 = vmatmul.mubr.f32.gmra.mrb[0].mxu0 %v1842
      %v2026 = vpop.f32.mrb[0].mxu0
      %v2027 = vadd.f32 0.0, %v2026
      %v2028 = vpop.f32.mrb[0].mxu0
      %2029 = vmatprep.mubr.f32.mxu0 0.0
      %2030 = vmatmul.mubr.f32.gmra.mrb[0].mxu0 %v1845
      %v2031 = vpop.f32.mrb[0].mxu0
      %v2032 = vadd.f32 0.0, %v2031
      %v2033 = vpop.f32.mrb[0].mxu0
      %2034 = vmatprep.mubr.f32.mxu0 0.0
      %2035 = vmatmul.mubr.f32.gmra.mrb[0].mxu0 %v1848
      %v2036 = vpop.f32.mrb[0].mxu0
      %v2037 = vadd.f32 0.0, %v2036
      %v2038 = vpop.f32.mrb[0].mxu0
      %2039 = vmatprep.mubr.f32.mxu0 0.0
      %2040 = vmatmul.mubr.f32.gmra.mrb[0].mxu0 %v1851
      %v2041 = vpop.f32.mrb[0].mxu0
      %v2042 = vadd.f32 0.0, %v2041
      %v2043 = vpop.f32.mrb[0].mxu0
      %2044 = vmatprep.mubr.f32.mxu0 0.0
      %2045 = vmatmul.mubr.f32.gmra.mrb[0].mxu0 %v1854
      %v2046 = vpop.f32.mrb[0].mxu0
      %v2047 = vadd.f32 0.0, %v2046
      %v2048 = vpop.f32.mrb[0].mxu0
      %2049 = vmatprep.mubr.f32.mxu0 0.0
      %2050 = vmatmul.mubr.f32.gmra.mrb[0].mxu0 %v1857
      %v2051 = vpop.f32.mrb[0].mxu0
      %v2052 = vadd.f32 0.0, %v2051
      %v2053 = vpop.f32.mrb[0].mxu0
      %2054 = vmatprep.mubr.f32.mxu0 0.0
      %2055 = vmatmul.mubr.f32.gmra.mrb[0].mxu0 %v1860
      %v2056 = vpop.f32.mrb[0].mxu0
      %v2057 = vadd.f32 0.0, %v2056
      %v2058 = vpop.f32.mrb[0].mxu0
      %2059 = vmatprep.mubr.f32.mxu0 0.0
      %2060 = vmatmul.mubr.f32.gmra.mrb[0].mxu0 %v1863
      %v2061 = vpop.f32.mrb[0].mxu0
      %v2062 = vadd.f32 0.0, %v2061
      %v2063 = vpop.f32.mrb[0].mxu0
      %2064 = vmatprep.mubr.f32.mxu0 0.0
      %2065 = vmatmul.mubr.f32.gmra.mrb[0].mxu0 %v1866
      %v2066 = vpop.f32.mrb[0].mxu0
      %v2067 = vadd.f32 0.0, %v2066
      %v2068 = vpop.f32.mrb[0].mxu0
      %2069 = vmatprep.mubr.f32.mxu0 0.0
      %2070 = vmatmul.mubr.f32.gmra.mrb[0].mxu0 %v1869
      %v2071 = vpop.f32.mrb[0].mxu0
      %v2072 = vadd.f32 0.0, %v2071
      %v2073 = vpop.f32.mrb[0].mxu0
      %2074 = vmatprep.mubr.f32.mxu0 0.0
      %2075 = vmatmul.mubr.f32.gmra.mrb[0].mxu0 %v1872
      %v2076 = vpop.f32.mrb[0].mxu0
      %v2077 = vadd.f32 0.0, %v2076
      %v2078 = vpop.f32.mrb[0].mxu0
      %2079 = vmatprep.mubr.f32.mxu0 0.0
      %2080 = vmatmul.mubr.f32.gmra.mrb[0].mxu0 %v1875
      %v2081 = vpop.f32.mrb[0].mxu0
      %v2082 = vadd.f32 0.0, %v2081
      %v2083 = vpop.f32.mrb[0].mxu0
      %2084 = vmatprep.mubr.f32.mxu0 0.0
      %2085 = vmatmul.mubr.f32.gmra.mrb[0].mxu0 %v1878
      %v2086 = vpop.f32.mrb[0].mxu0
      %v2087 = vadd.f32 0.0, %v2086
      %v2088 = vpop.f32.mrb[0].mxu0
      %2089 = vmatprep.mubr.f32.mxu0 0.0
      %2090 = vmatmul.mubr.f32.gmra.mrb[0].mxu0 %v1881
      %v2091 = vpop.f32.mrb[0].mxu0
      %v2092 = vadd.f32 0.0, %v2091
      %v2093 = vpop.f32.mrb[0].mxu0
      %2094 = vmatprep.mubr.f32.mxu0 0.0
      %2095 = vmatmul.mubr.f32.gmra.mrb[0].mxu0 %v1884
      %v2096 = vpop.f32.mrb[0].mxu0
      %v2097 = vadd.f32 0.0, %v2096
      %v2098 = vpop.f32.mrb[0].mxu0
      %2099 = vmatprep.mubr.f32.mxu0 0.0
      %2100 = vmatmul.mubr.f32.gmra.mrb[0].mxu0 %v1887
      %v2101 = vpop.f32.mrb[0].mxu0
      %v2102 = vadd.f32 0.0, %v2101
      %v2103 = vpop.f32.mrb[0].mxu0
      %2104 = vmatprep.mubr.f32.mxu0 0.0
      %2105 = vmatmul.mubr.f32.gmra.mrb[0].mxu0 %v1890
      %v2106 = vpop.f32.mrb[0].mxu0
      %v2107 = vadd.f32 0.0, %v2106
      %v2108 = vpop.f32.mrb[0].mxu0
      %2109 = vmatprep.mubr.f32.mxu0 0.0
      %2110 = vmatmul.mubr.f32.gmra.mrb[0].mxu0 %v1893
      %v2111 = vpop.f32.mrb[0].mxu0
      %v2112 = vadd.f32 0.0, %v2111
      %v2113 = vpop.f32.mrb[0].mxu0
      %2114 = vmatprep.mubr.f32.mxu0 0.0
      %2115 = vmatmul.mubr.f32.gmra.mrb[0].mxu0 %v1896
      %v2116 = vpop.f32.mrb[0].mxu0
      %v2117 = vadd.f32 0.0, %v2116
      %v2118 = vpop.f32.mrb[0].mxu0
      %2119 = vmatprep.mubr.f32.mxu0 0.0
      %2120 = vmatmul.mubr.f32.gmra.mrb[0].mxu0 %v1899
      %v2121 = vpop.f32.mrb[0].mxu0
      %v2122 = vadd.f32 0.0, %v2121
      %v2123 = vpop.f32.mrb[0].mxu0
      %2124 = vmatprep.mubr.f32.mxu0 0.0
      %2125 = vmatmul.mubr.f32.gmra.mrb[0].mxu0 %v1902
      %v2126 = vpop.f32.mrb[0].mxu0
      %v2127 = vadd.f32 0.0, %v2126
      %v2128 = vpop.f32.mrb[0].mxu0
      %2129 = vmatprep.mubr.f32.mxu0 0.0
      %2130 = vmatmul.mubr.f32.gmra.mrb[0].mxu0 %v1905
      %v2131 = vpop.f32.mrb[0].mxu0
      %v2132 = vadd.f32 0.0, %v2131
      %v2133 = vpop.f32.mrb[0].mxu0
      %2134 = vdwg.mxu0
      %v2135 = vadd.f32 %v1745, %v1977
      %v2136 = vadd.f32 %v1746, %v1982
      %v2137 = vadd.f32 %v1747, %v1987
      %v2138 = vadd.f32 %v1748, %v1992
      %v2139 = vadd.f32 %v1749, %v1997
      %v2140 = vadd.f32 %v1750, %v2002
      %v2141 = vadd.f32 %v1751, %v2007
      %v2142 = vadd.f32 %v1752, %v2012
      %v2143 = vadd.f32 %v1753, %v2017
      %v2144 = vadd.f32 %v1754, %v2022
      %v2145 = vadd.f32 %v1755, %v2027
      %v2146 = vadd.f32 %v1756, %v2032
      %v2147 = vadd.f32 %v1757, %v2037
      %v2148 = vadd.f32 %v1758, %v2042
      %v2149 = vadd.f32 %v1759, %v2047
      %v2150 = vadd.f32 %v1760, %v2052
      %v2151 = vadd.f32 %v1761, %v2057
      %v2152 = vadd.f32 %v1762, %v2062
      %v2153 = vadd.f32 %v1763, %v2067
      %v2154 = vadd.f32 %v1764, %v2072
      %v2155 = vadd.f32 %v1765, %v2077
      %v2156 = vadd.f32 %v1766, %v2082
      %v2157 = vadd.f32 %v1767, %v2087
      %v2158 = vadd.f32 %v1768, %v2092
      %v2159 = vadd.f32 %v1769, %v2097
      %v2160 = vadd.f32 %v1770, %v2102
      %v2161 = vadd.f32 %v1771, %v2107
      %v2162 = vadd.f32 %v1772, %v2112
      %v2163 = vadd.f32 %v1773, %v2117
      %v2164 = vadd.f32 %v1774, %v2122
      %v2165 = vadd.f32 %v1775, %v2127
      %v2166 = vadd.f32 %v1776, %v2132
      %v2167 = vld [vmem:[%s1386 + $0x2] sm:$0xff]
      %v2168 = vld [vmem:[%s1386 + $0xa] sm:$0xff]
      %v2169 = vld [vmem:[%s1386 + $0x1a] sm:$0xff]
      %v2170 = vld [vmem:[%s1386 + $0x22] sm:$0xff]
      %v2171 = vld [vmem:[%s1386 + $0x32] sm:$0xff]
      %v2172 = vld [vmem:[%s1386 + $0x3a] sm:$0xff]
      %v2173 = vld [vmem:[%s1386 + $0x4a] sm:$0xff]
      %v2174 = vld [vmem:[%s1386 + $0x52] sm:$0xff]
      %v2175 = vld [vmem:[%s1386 + $0x62] sm:$0xff]
      %v2176 = vld [vmem:[%s1386 + $0x6a] sm:$0xff]
      %v2177 = vld [vmem:[%s1386 + $0x7a] sm:$0xff]
      %v2178 = vld [vmem:[%s1386 + $0x82] sm:$0xff]
      %v2179 = vld [vmem:[%s1386 + $0x92] sm:$0xff]
      %v2180 = vld [vmem:[%s1386 + $0x9a] sm:$0xff]
      %v2181 = vld [vmem:[%s1386 + $0xaa] sm:$0xff]
      %v2182 = vld [vmem:[%s1386 + $0xb2] sm:$0xff]
      %v2183 = vld [vmem:[%s1386 + $0xc2] sm:$0xff]
      %v2184 = vld [vmem:[%s1386 + $0xca] sm:$0xff]
      %v2185 = vld [vmem:[%s1386 + $0xda] sm:$0xff]
      %v2186 = vld [vmem:[%s1386 + $0xe2] sm:$0xff]
      %v2187 = vld [vmem:[%s1386 + $0xf2] sm:$0xff]
      %v2188 = vld [vmem:[%s1386 + $0xfa] sm:$0xff]
      %v2189 = vld [vmem:[%s1386 + $0x10a] sm:$0xff]
      %v2190 = vld [vmem:[%s1386 + $0x112] sm:$0xff]
      %v2191 = vld [vmem:[%s1386 + $0x122] sm:$0xff]
      %v2192 = vld [vmem:[%s1386 + $0x12a] sm:$0xff]
      %v2193 = vld [vmem:[%s1386 + $0x13a] sm:$0xff]
      %v2194 = vld [vmem:[%s1386 + $0x142] sm:$0xff]
      %v2195 = vld [vmem:[%s1386 + $0x152] sm:$0xff]
      %v2196 = vld [vmem:[%s1386 + $0x15a] sm:$0xff]
      %v2197 = vld [vmem:[%s1386 + $0x16a] sm:$0xff]
      %v2198 = vld [vmem:[%s1386 + $0x172] sm:$0xff]
      %s2199 = scalar_lea.vmem %s1, 20
      %v2200 = vld [vmem:[%s2199] sm:$0xf]
      %v2202 = vsel %vm346, %v2167, 0
      %v2205 = vsel %vm346, %v2168, 0
      %v2208 = vsel %vm346, %v2169, 0
      %v2211 = vsel %vm346, %v2170, 0
      %v2214 = vsel %vm346, %v2171, 0
      %v2217 = vsel %vm346, %v2172, 0
      %v2220 = vsel %vm346, %v2173, 0
      %v2223 = vsel %vm346, %v2174, 0
      %v2226 = vsel %vm346, %v2175, 0
      %v2229 = vsel %vm346, %v2176, 0
      %v2232 = vsel %vm346, %v2177, 0
      %v2235 = vsel %vm346, %v2178, 0
      %v2238 = vsel %vm346, %v2179, 0
      %v2241 = vsel %vm346, %v2180, 0
      %v2244 = vsel %vm346, %v2181, 0
      %v2247 = vsel %vm346, %v2182, 0
      %v2250 = vsel %vm346, %v2183, 0
      %v2253 = vsel %vm346, %v2184, 0
      %v2256 = vsel %vm346, %v2185, 0
      %v2259 = vsel %vm346, %v2186, 0
      %v2262 = vsel %vm346, %v2187, 0
      %v2265 = vsel %vm346, %v2188, 0
      %v2268 = vsel %vm346, %v2189, 0
      %v2271 = vsel %vm346, %v2190, 0
      %v2274 = vsel %vm346, %v2191, 0
      %v2277 = vsel %vm346, %v2192, 0
      %v2280 = vsel %vm346, %v2193, 0
      %v2283 = vsel %vm346, %v2194, 0
      %v2286 = vsel %vm346, %v2195, 0
      %v2289 = vsel %vm346, %v2196, 0
      %v2292 = vsel %vm346, %v2197, 0
      %v2295 = vsel %vm346, %v2198, 0
      %v2298 = vsel %vm443, %v2200, 0
      %2300 = vmatprep.subr.mxu0 0.0
      %2301 = vmatpush1.msra.mxu0 %v2298
      %2302 = vmatprep.subr.mxu0 0.0
      %2303 = vmatpush1.msra.mxu0 0.0
      %2304 = vmatprep.subr.mxu0 0.0
      %2305 = vmatpush1.msra.mxu0 0.0
      %2306 = vmatprep.subr.mxu0 0.0
      %2307 = vmatpush1.msra.mxu0 0.0
      %2308 = vmatprep.subr.mxu0 0.0
      %2309 = vmatpush1.msra.mxu0 0.0
      %2310 = vmatprep.subr.mxu0 0.0
      %2311 = vmatpush1.msra.mxu0 0.0
      %2312 = vmatprep.subr.mxu0 0.0
      %2313 = vmatpush1.msra.mxu0 0.0
      %2314 = vmatprep.subr.mxu0 0.0
      %2315 = vmatpush1.msra.mxu0 0.0
      %2316 = vmatprep.subr.mxu0 0.0
      %2317 = vmatpush1.msra.mxu0 0.0
      %2318 = vmatprep.subr.mxu0 0.0
      %2319 = vmatpush1.msra.mxu0 0.0
      %2320 = vmatprep.subr.mxu0 0.0
      %2321 = vmatpush1.msra.mxu0 0.0
      %2322 = vmatprep.subr.mxu0 0.0
      %2323 = vmatpush1.msra.mxu0 0.0
      %2324 = vmatprep.subr.mxu0 0.0
      %2325 = vmatpush1.msra.mxu0 0.0
      %2326 = vmatprep.subr.mxu0 0.0
      %2327 = vmatpush1.msra.mxu0 0.0
      %2328 = vmatprep.subr.mxu0 0.0
      %2329 = vmatpush1.msra.mxu0 0.0
      %2330 = vmatprep.subr.mxu0 0.0
      %2331 = vmatpush1.msra.mxu0 0.0
      %2332 = vmatprep.subr.mxu0 0.0
      %2333 = vmatpush1.msra.mxu0 0.0
      %2334 = vmatprep.subr.mxu0 0.0
      %2335 = vmatpush1.msra.mxu0 0.0
      %2336 = vmatprep.subr.mxu0 0.0
      %2337 = vmatpush1.msra.mxu0 0.0
      %2338 = vmatprep.subr.mxu0 0.0
      %2339 = vmatpush1.msra.mxu0 0.0
      %2340 = vmatprep.subr.mxu0 0.0
      %2341 = vmatpush1.msra.mxu0 0.0
      %2342 = vmatprep.subr.mxu0 0.0
      %2343 = vmatpush1.msra.mxu0 0.0
      %2344 = vmatprep.subr.mxu0 0.0
      %2345 = vmatpush1.msra.mxu0 0.0
      %2346 = vmatprep.subr.mxu0 0.0
      %2347 = vmatpush1.msra.mxu0 0.0
      %2348 = vmatprep.subr.mxu0 0.0
      %2349 = vmatpush1.msra.mxu0 0.0
      %2350 = vmatprep.subr.mxu0 0.0
      %2351 = vmatpush1.msra.mxu0 0.0
      %2352 = vmatprep.subr.mxu0 0.0
      %2353 = vmatpush1.msra.mxu0 0.0
      %2354 = vmatprep.subr.mxu0 0.0
      %2355 = vmatpush1.msra.mxu0 0.0
      %2356 = vmatprep.subr.mxu0 0.0
      %2357 = vmatpush1.msra.mxu0 0.0
      %2358 = vmatprep.subr.mxu0 0.0
      %2359 = vmatpush1.msra.mxu0 0.0
      %2360 = vmatprep.subr.mxu0 0.0
      %2361 = vmatpush1.msra.mxu0 0.0
      %2362 = vmatprep.subr.mxu0 0.0
      %2363 = vmatpush1.msra.mxu0 0.0
      %2364 = vmatprep.mubr.f32.mxu0 0.0
      %2365 = vmatmul.mubr.f32.gmra.mrb[0].mxu0 %v2202
      %v2366 = vpop.f32.mrb[0].mxu0
      %v2367 = vadd.f32 0.0, %v2366
      %v2368 = vpop.f32.mrb[0].mxu0
      %2369 = vmatprep.mubr.f32.mxu0 0.0
      %2370 = vmatmul.mubr.f32.gmra.mrb[0].mxu0 %v2205
      %v2371 = vpop.f32.mrb[0].mxu0
      %v2372 = vadd.f32 0.0, %v2371
      %v2373 = vpop.f32.mrb[0].mxu0
      %2374 = vmatprep.mubr.f32.mxu0 0.0
      %2375 = vmatmul.mubr.f32.gmra.mrb[0].mxu0 %v2208
      %v2376 = vpop.f32.mrb[0].mxu0
      %v2377 = vadd.f32 0.0, %v2376
      %v2378 = vpop.f32.mrb[0].mxu0
      %2379 = vmatprep.mubr.f32.mxu0 0.0
      %2380 = vmatmul.mubr.f32.gmra.mrb[0].mxu0 %v2211
      %v2381 = vpop.f32.mrb[0].mxu0
      %v2382 = vadd.f32 0.0, %v2381
      %v2383 = vpop.f32.mrb[0].mxu0
      %2384 = vmatprep.mubr.f32.mxu0 0.0
      %2385 = vmatmul.mubr.f32.gmra.mrb[0].mxu0 %v2214
      %v2386 = vpop.f32.mrb[0].mxu0
      %v2387 = vadd.f32 0.0, %v2386
      %v2388 = vpop.f32.mrb[0].mxu0
      %2389 = vmatprep.mubr.f32.mxu0 0.0
      %2390 = vmatmul.mubr.f32.gmra.mrb[0].mxu0 %v2217
      %v2391 = vpop.f32.mrb[0].mxu0
      %v2392 = vadd.f32 0.0, %v2391
      %v2393 = vpop.f32.mrb[0].mxu0
      %2394 = vmatprep.mubr.f32.mxu0 0.0
      %2395 = vmatmul.mubr.f32.gmra.mrb[0].mxu0 %v2220
      %v2396 = vpop.f32.mrb[0].mxu0
      %v2397 = vadd.f32 0.0, %v2396
      %v2398 = vpop.f32.mrb[0].mxu0
      %2399 = vmatprep.mubr.f32.mxu0 0.0
      %2400 = vmatmul.mubr.f32.gmra.mrb[0].mxu0 %v2223
      %v2401 = vpop.f32.mrb[0].mxu0
      %v2402 = vadd.f32 0.0, %v2401
      %v2403 = vpop.f32.mrb[0].mxu0
      %2404 = vmatprep.mubr.f32.mxu0 0.0
      %2405 = vmatmul.mubr.f32.gmra.mrb[0].mxu0 %v2226
      %v2406 = vpop.f32.mrb[0].mxu0
      %v2407 = vadd.f32 0.0, %v2406
      %v2408 = vpop.f32.mrb[0].mxu0
      %2409 = vmatprep.mubr.f32.mxu0 0.0
      %2410 = vmatmul.mubr.f32.gmra.mrb[0].mxu0 %v2229
      %v2411 = vpop.f32.mrb[0].mxu0
      %v2412 = vadd.f32 0.0, %v2411
      %v2413 = vpop.f32.mrb[0].mxu0
      %2414 = vmatprep.mubr.f32.mxu0 0.0
      %2415 = vmatmul.mubr.f32.gmra.mrb[0].mxu0 %v2232
      %v2416 = vpop.f32.mrb[0].mxu0
      %v2417 = vadd.f32 0.0, %v2416
      %v2418 = vpop.f32.mrb[0].mxu0
      %2419 = vmatprep.mubr.f32.mxu0 0.0
      %2420 = vmatmul.mubr.f32.gmra.mrb[0].mxu0 %v2235
      %v2421 = vpop.f32.mrb[0].mxu0
      %v2422 = vadd.f32 0.0, %v2421
      %v2423 = vpop.f32.mrb[0].mxu0
      %2424 = vmatprep.mubr.f32.mxu0 0.0
      %2425 = vmatmul.mubr.f32.gmra.mrb[0].mxu0 %v2238
      %v2426 = vpop.f32.mrb[0].mxu0
      %v2427 = vadd.f32 0.0, %v2426
      %v2428 = vpop.f32.mrb[0].mxu0
      %2429 = vmatprep.mubr.f32.mxu0 0.0
      %2430 = vmatmul.mubr.f32.gmra.mrb[0].mxu0 %v2241
      %v2431 = vpop.f32.mrb[0].mxu0
      %v2432 = vadd.f32 0.0, %v2431
      %v2433 = vpop.f32.mrb[0].mxu0
      %2434 = vmatprep.mubr.f32.mxu0 0.0
      %2435 = vmatmul.mubr.f32.gmra.mrb[0].mxu0 %v2244
      %v2436 = vpop.f32.mrb[0].mxu0
      %v2437 = vadd.f32 0.0, %v2436
      %v2438 = vpop.f32.mrb[0].mxu0
      %2439 = vmatprep.mubr.f32.mxu0 0.0
      %2440 = vmatmul.mubr.f32.gmra.mrb[0].mxu0 %v2247
      %v2441 = vpop.f32.mrb[0].mxu0
      %v2442 = vadd.f32 0.0, %v2441
      %v2443 = vpop.f32.mrb[0].mxu0
      %2444 = vmatprep.mubr.f32.mxu0 0.0
      %2445 = vmatmul.mubr.f32.gmra.mrb[0].mxu0 %v2250
      %v2446 = vpop.f32.mrb[0].mxu0
      %v2447 = vadd.f32 0.0, %v2446
      %v2448 = vpop.f32.mrb[0].mxu0
      %2449 = vmatprep.mubr.f32.mxu0 0.0
      %2450 = vmatmul.mubr.f32.gmra.mrb[0].mxu0 %v2253
      %v2451 = vpop.f32.mrb[0].mxu0
      %v2452 = vadd.f32 0.0, %v2451
      %v2453 = vpop.f32.mrb[0].mxu0
      %2454 = vmatprep.mubr.f32.mxu0 0.0
      %2455 = vmatmul.mubr.f32.gmra.mrb[0].mxu0 %v2256
      %v2456 = vpop.f32.mrb[0].mxu0
      %v2457 = vadd.f32 0.0, %v2456
      %v2458 = vpop.f32.mrb[0].mxu0
      %2459 = vmatprep.mubr.f32.mxu0 0.0
      %2460 = vmatmul.mubr.f32.gmra.mrb[0].mxu0 %v2259
      %v2461 = vpop.f32.mrb[0].mxu0
      %v2462 = vadd.f32 0.0, %v2461
      %v2463 = vpop.f32.mrb[0].mxu0
      %2464 = vmatprep.mubr.f32.mxu0 0.0
      %2465 = vmatmul.mubr.f32.gmra.mrb[0].mxu0 %v2262
      %v2466 = vpop.f32.mrb[0].mxu0
      %v2467 = vadd.f32 0.0, %v2466
      %v2468 = vpop.f32.mrb[0].mxu0
      %2469 = vmatprep.mubr.f32.mxu0 0.0
      %2470 = vmatmul.mubr.f32.gmra.mrb[0].mxu0 %v2265
      %v2471 = vpop.f32.mrb[0].mxu0
      %v2472 = vadd.f32 0.0, %v2471
      %v2473 = vpop.f32.mrb[0].mxu0
      %2474 = vmatprep.mubr.f32.mxu0 0.0
      %2475 = vmatmul.mubr.f32.gmra.mrb[0].mxu0 %v2268
      %v2476 = vpop.f32.mrb[0].mxu0
      %v2477 = vadd.f32 0.0, %v2476
      %v2478 = vpop.f32.mrb[0].mxu0
      %2479 = vmatprep.mubr.f32.mxu0 0.0
      %2480 = vmatmul.mubr.f32.gmra.mrb[0].mxu0 %v2271
      %v2481 = vpop.f32.mrb[0].mxu0
      %v2482 = vadd.f32 0.0, %v2481
      %v2483 = vpop.f32.mrb[0].mxu0
      %2484 = vmatprep.mubr.f32.mxu0 0.0
      %2485 = vmatmul.mubr.f32.gmra.mrb[0].mxu0 %v2274
      %v2486 = vpop.f32.mrb[0].mxu0
      %v2487 = vadd.f32 0.0, %v2486
      %v2488 = vpop.f32.mrb[0].mxu0
      %2489 = vmatprep.mubr.f32.mxu0 0.0
      %2490 = vmatmul.mubr.f32.gmra.mrb[0].mxu0 %v2277
      %v2491 = vpop.f32.mrb[0].mxu0
      %v2492 = vadd.f32 0.0, %v2491
      %v2493 = vpop.f32.mrb[0].mxu0
      %2494 = vmatprep.mubr.f32.mxu0 0.0
      %2495 = vmatmul.mubr.f32.gmra.mrb[0].mxu0 %v2280
      %v2496 = vpop.f32.mrb[0].mxu0
      %v2497 = vadd.f32 0.0, %v2496
      %v2498 = vpop.f32.mrb[0].mxu0
      %2499 = vmatprep.mubr.f32.mxu0 0.0
      %2500 = vmatmul.mubr.f32.gmra.mrb[0].mxu0 %v2283
      %v2501 = vpop.f32.mrb[0].mxu0
      %v2502 = vadd.f32 0.0, %v2501
      %v2503 = vpop.f32.mrb[0].mxu0
      %2504 = vmatprep.mubr.f32.mxu0 0.0
      %2505 = vmatmul.mubr.f32.gmra.mrb[0].mxu0 %v2286
      %v2506 = vpop.f32.mrb[0].mxu0
      %v2507 = vadd.f32 0.0, %v2506
      %v2508 = vpop.f32.mrb[0].mxu0
      %2509 = vmatprep.mubr.f32.mxu0 0.0
      %2510 = vmatmul.mubr.f32.gmra.mrb[0].mxu0 %v2289
      %v2511 = vpop.f32.mrb[0].mxu0
      %v2512 = vadd.f32 0.0, %v2511
      %v2513 = vpop.f32.mrb[0].mxu0
      %2514 = vmatprep.mubr.f32.mxu0 0.0
      %2515 = vmatmul.mubr.f32.gmra.mrb[0].mxu0 %v2292
      %v2516 = vpop.f32.mrb[0].mxu0
      %v2517 = vadd.f32 0.0, %v2516
      %v2518 = vpop.f32.mrb[0].mxu0
      %2519 = vmatprep.mubr.f32.mxu0 0.0
      %2520 = vmatmul.mubr.f32.gmra.mrb[0].mxu0 %v2295
      %v2521 = vpop.f32.mrb[0].mxu0
      %v2522 = vadd.f32 0.0, %v2521
      %v2523 = vpop.f32.mrb[0].mxu0
      %2524 = vdwg.mxu0
      %v2525 = vadd.f32 %v2135, %v2367
      %v2526 = vadd.f32 %v2136, %v2372
      %v2527 = vadd.f32 %v2137, %v2377
      %v2528 = vadd.f32 %v2138, %v2382
      %v2529 = vadd.f32 %v2139, %v2387
      %v2530 = vadd.f32 %v2140, %v2392
      %v2531 = vadd.f32 %v2141, %v2397
      %v2532 = vadd.f32 %v2142, %v2402
      %v2533 = vadd.f32 %v2143, %v2407
      %v2534 = vadd.f32 %v2144, %v2412
      %v2535 = vadd.f32 %v2145, %v2417
      %v2536 = vadd.f32 %v2146, %v2422
      %v2537 = vadd.f32 %v2147, %v2427
      %v2538 = vadd.f32 %v2148, %v2432
      %v2539 = vadd.f32 %v2149, %v2437
      %v2540 = vadd.f32 %v2150, %v2442
      %v2541 = vadd.f32 %v2151, %v2447
      %v2542 = vadd.f32 %v2152, %v2452
      %v2543 = vadd.f32 %v2153, %v2457
      %v2544 = vadd.f32 %v2154, %v2462
      %v2545 = vadd.f32 %v2155, %v2467
      %v2546 = vadd.f32 %v2156, %v2472
      %v2547 = vadd.f32 %v2157, %v2477
      %v2548 = vadd.f32 %v2158, %v2482
      %v2549 = vadd.f32 %v2159, %v2487
      %v2550 = vadd.f32 %v2160, %v2492
      %v2551 = vadd.f32 %v2161, %v2497
      %v2552 = vadd.f32 %v2162, %v2502
      %v2553 = vadd.f32 %v2163, %v2507
      %v2554 = vadd.f32 %v2164, %v2512
      %v2555 = vadd.f32 %v2165, %v2517
      %v2556 = vadd.f32 %v2166, %v2522
      %s2557 = scalar_lea.vmem %s273, 48
      %v2558 = vld [vmem:[%s2557] sm:$0xff]
      %v2559 = vld [vmem:[%s2557 + $0x8] sm:$0xff]
      %v2560 = vld [vmem:[%s2557 + $0x18] sm:$0xff]
      %v2561 = vld [vmem:[%s2557 + $0x20] sm:$0xff]
      %v2562 = vld [vmem:[%s2557 + $0x30] sm:$0xff]
      %v2563 = vld [vmem:[%s2557 + $0x38] sm:$0xff]
      %v2564 = vld [vmem:[%s2557 + $0x48] sm:$0xff]
      %v2565 = vld [vmem:[%s2557 + $0x50] sm:$0xff]
      %v2566 = vld [vmem:[%s2557 + $0x60] sm:$0xff]
      %v2567 = vld [vmem:[%s2557 + $0x68] sm:$0xff]
      %v2568 = vld [vmem:[%s2557 + $0x78] sm:$0xff]
      %v2569 = vld [vmem:[%s2557 + $0x80] sm:$0xff]
      %v2570 = vld [vmem:[%s2557 + $0x90] sm:$0xff]
      %v2571 = vld [vmem:[%s2557 + $0x98] sm:$0xff]
      %v2572 = vld [vmem:[%s2557 + $0xa8] sm:$0xff]
      %v2573 = vld [vmem:[%s2557 + $0xb0] sm:$0xff]
      %v2574 = vld [vmem:[%s2557 + $0xc0] sm:$0xff]
      %v2575 = vld [vmem:[%s2557 + $0xc8] sm:$0xff]
      %v2576 = vld [vmem:[%s2557 + $0xd8] sm:$0xff]
      %v2577 = vld [vmem:[%s2557 + $0xe0] sm:$0xff]
      %v2578 = vld [vmem:[%s2557 + $0xf0] sm:$0xff]
      %v2579 = vld [vmem:[%s2557 + $0xf8] sm:$0xff]
      %v2580 = vld [vmem:[%s2557 + $0x108] sm:$0xff]
      %v2581 = vld [vmem:[%s2557 + $0x110] sm:$0xff]
      %v2582 = vld [vmem:[%s2557 + $0x120] sm:$0xff]
      %v2583 = vld [vmem:[%s2557 + $0x128] sm:$0xff]
      %v2584 = vld [vmem:[%s2557 + $0x138] sm:$0xff]
      %v2585 = vld [vmem:[%s2557 + $0x140] sm:$0xff]
      %v2586 = vld [vmem:[%s2557 + $0x150] sm:$0xff]
      %v2587 = vld [vmem:[%s2557 + $0x158] sm:$0xff]
      %v2588 = vld [vmem:[%s2557 + $0x168] sm:$0xff]
      %v2589 = vld [vmem:[%s2557 + $0x170] sm:$0xff]
      %s2590 = scalar_lea.vmem %s1, 24
      %v2591 = vld [vmem:[%s2590] sm:$0xf]
      %v2593 = vsel %vm346, %v2558, 0
      %v2596 = vsel %vm346, %v2559, 0
      %v2599 = vsel %vm346, %v2560, 0
      %v2602 = vsel %vm346, %v2561, 0
      %v2605 = vsel %vm346, %v2562, 0
      %v2608 = vsel %vm346, %v2563, 0
      %v2611 = vsel %vm346, %v2564, 0
      %v2614 = vsel %vm346, %v2565, 0
      %v2617 = vsel %vm346, %v2566, 0
      %v2620 = vsel %vm346, %v2567, 0
      %v2623 = vsel %vm346, %v2568, 0
      %v2626 = vsel %vm346, %v2569, 0
      %v2629 = vsel %vm346, %v2570, 0
      %v2632 = vsel %vm346, %v2571, 0
      %v2635 = vsel %vm346, %v2572, 0
      %v2638 = vsel %vm346, %v2573, 0
      %v2641 = vsel %vm346, %v2574, 0
      %v2644 = vsel %vm346, %v2575, 0
      %v2647 = vsel %vm346, %v2576, 0
      %v2650 = vsel %vm346, %v2577, 0
      %v2653 = vsel %vm346, %v2578, 0
      %v2656 = vsel %vm346, %v2579, 0
      %v2659 = vsel %vm346, %v2580, 0
      %v2662 = vsel %vm346, %v2581, 0
      %v2665 = vsel %vm346, %v2582, 0
      %v2668 = vsel %vm346, %v2583, 0
      %v2671 = vsel %vm346, %v2584, 0
      %v2674 = vsel %vm346, %v2585, 0
      %v2677 = vsel %vm346, %v2586, 0
      %v2680 = vsel %vm346, %v2587, 0
      %v2683 = vsel %vm346, %v2588, 0
      %v2686 = vsel %vm346, %v2589, 0
      %v2689 = vsel %vm443, %v2591, 0
      %2691 = vmatprep.subr.mxu0 0.0
      %2692 = vmatpush1.msra.mxu0 %v2689
      %2693 = vmatprep.subr.mxu0 0.0
      %2694 = vmatpush1.msra.mxu0 0.0
      %2695 = vmatprep.subr.mxu0 0.0
      %2696 = vmatpush1.msra.mxu0 0.0
      %2697 = vmatprep.subr.mxu0 0.0
      %2698 = vmatpush1.msra.mxu0 0.0
      %2699 = vmatprep.subr.mxu0 0.0
      %2700 = vmatpush1.msra.mxu0 0.0
      %2701 = vmatprep.subr.mxu0 0.0
      %2702 = vmatpush1.msra.mxu0 0.0
      %2703 = vmatprep.subr.mxu0 0.0
      %2704 = vmatpush1.msra.mxu0 0.0
      %2705 = vmatprep.subr.mxu0 0.0
      %2706 = vmatpush1.msra.mxu0 0.0
      %2707 = vmatprep.subr.mxu0 0.0
      %2708 = vmatpush1.msra.mxu0 0.0
      %2709 = vmatprep.subr.mxu0 0.0
      %2710 = vmatpush1.msra.mxu0 0.0
      %2711 = vmatprep.subr.mxu0 0.0
      %2712 = vmatpush1.msra.mxu0 0.0
      %2713 = vmatprep.subr.mxu0 0.0
      %2714 = vmatpush1.msra.mxu0 0.0
      %2715 = vmatprep.subr.mxu0 0.0
      %2716 = vmatpush1.msra.mxu0 0.0
      %2717 = vmatprep.subr.mxu0 0.0
      %2718 = vmatpush1.msra.mxu0 0.0
      %2719 = vmatprep.subr.mxu0 0.0
      %2720 = vmatpush1.msra.mxu0 0.0
      %2721 = vmatprep.subr.mxu0 0.0
      %2722 = vmatpush1.msra.mxu0 0.0
      %2723 = vmatprep.subr.mxu0 0.0
      %2724 = vmatpush1.msra.mxu0 0.0
      %2725 = vmatprep.subr.mxu0 0.0
      %2726 = vmatpush1.msra.mxu0 0.0
      %2727 = vmatprep.subr.mxu0 0.0
      %2728 = vmatpush1.msra.mxu0 0.0
      %2729 = vmatprep.subr.mxu0 0.0
      %2730 = vmatpush1.msra.mxu0 0.0
      %2731 = vmatprep.subr.mxu0 0.0
      %2732 = vmatpush1.msra.mxu0 0.0
      %2733 = vmatprep.subr.mxu0 0.0
      %2734 = vmatpush1.msra.mxu0 0.0
      %2735 = vmatprep.subr.mxu0 0.0
      %2736 = vmatpush1.msra.mxu0 0.0
      %2737 = vmatprep.subr.mxu0 0.0
      %2738 = vmatpush1.msra.mxu0 0.0
      %2739 = vmatprep.subr.mxu0 0.0
      %2740 = vmatpush1.msra.mxu0 0.0
      %2741 = vmatprep.subr.mxu0 0.0
      %2742 = vmatpush1.msra.mxu0 0.0
      %2743 = vmatprep.subr.mxu0 0.0
      %2744 = vmatpush1.msra.mxu0 0.0
      %2745 = vmatprep.subr.mxu0 0.0
      %2746 = vmatpush1.msra.mxu0 0.0
      %2747 = vmatprep.subr.mxu0 0.0
      %2748 = vmatpush1.msra.mxu0 0.0
      %2749 = vmatprep.subr.mxu0 0.0
      %2750 = vmatpush1.msra.mxu0 0.0
      %2751 = vmatprep.subr.mxu0 0.0
      %2752 = vmatpush1.msra.mxu0 0.0
      %2753 = vmatprep.subr.mxu0 0.0
      %2754 = vmatpush1.msra.mxu0 0.0
      %2755 = vmatprep.mubr.f32.mxu0 0.0
      %2756 = vmatmul.mubr.f32.gmra.mrb[0].mxu0 %v2593
      %v2757 = vpop.f32.mrb[0].mxu0
      %v2758 = vadd.f32 0.0, %v2757
      %v2759 = vpop.f32.mrb[0].mxu0
      %2760 = vmatprep.mubr.f32.mxu0 0.0
      %2761 = vmatmul.mubr.f32.gmra.mrb[0].mxu0 %v2596
      %v2762 = vpop.f32.mrb[0].mxu0
      %v2763 = vadd.f32 0.0, %v2762
      %v2764 = vpop.f32.mrb[0].mxu0
      %2765 = vmatprep.mubr.f32.mxu0 0.0
      %2766 = vmatmul.mubr.f32.gmra.mrb[0].mxu0 %v2599
      %v2767 = vpop.f32.mrb[0].mxu0
      %v2768 = vadd.f32 0.0, %v2767
      %v2769 = vpop.f32.mrb[0].mxu0
      %2770 = vmatprep.mubr.f32.mxu0 0.0
      %2771 = vmatmul.mubr.f32.gmra.mrb[0].mxu0 %v2602
      %v2772 = vpop.f32.mrb[0].mxu0
      %v2773 = vadd.f32 0.0, %v2772
      %v2774 = vpop.f32.mrb[0].mxu0
      %2775 = vmatprep.mubr.f32.mxu0 0.0
      %2776 = vmatmul.mubr.f32.gmra.mrb[0].mxu0 %v2605
      %v2777 = vpop.f32.mrb[0].mxu0
      %v2778 = vadd.f32 0.0, %v2777
      %v2779 = vpop.f32.mrb[0].mxu0
      %2780 = vmatprep.mubr.f32.mxu0 0.0
      %2781 = vmatmul.mubr.f32.gmra.mrb[0].mxu0 %v2608
      %v2782 = vpop.f32.mrb[0].mxu0
      %v2783 = vadd.f32 0.0, %v2782
      %v2784 = vpop.f32.mrb[0].mxu0
      %2785 = vmatprep.mubr.f32.mxu0 0.0
      %2786 = vmatmul.mubr.f32.gmra.mrb[0].mxu0 %v2611
      %v2787 = vpop.f32.mrb[0].mxu0
      %v2788 = vadd.f32 0.0, %v2787
      %v2789 = vpop.f32.mrb[0].mxu0
      %2790 = vmatprep.mubr.f32.mxu0 0.0
      %2791 = vmatmul.mubr.f32.gmra.mrb[0].mxu0 %v2614
      %v2792 = vpop.f32.mrb[0].mxu0
      %v2793 = vadd.f32 0.0, %v2792
      %v2794 = vpop.f32.mrb[0].mxu0
      %2795 = vmatprep.mubr.f32.mxu0 0.0
      %2796 = vmatmul.mubr.f32.gmra.mrb[0].mxu0 %v2617
      %v2797 = vpop.f32.mrb[0].mxu0
      %v2798 = vadd.f32 0.0, %v2797
      %v2799 = vpop.f32.mrb[0].mxu0
      %2800 = vmatprep.mubr.f32.mxu0 0.0
      %2801 = vmatmul.mubr.f32.gmra.mrb[0].mxu0 %v2620
      %v2802 = vpop.f32.mrb[0].mxu0
      %v2803 = vadd.f32 0.0, %v2802
      %v2804 = vpop.f32.mrb[0].mxu0
      %2805 = vmatprep.mubr.f32.mxu0 0.0
      %2806 = vmatmul.mubr.f32.gmra.mrb[0].mxu0 %v2623
      %v2807 = vpop.f32.mrb[0].mxu0
      %v2808 = vadd.f32 0.0, %v2807
      %v2809 = vpop.f32.mrb[0].mxu0
      %2810 = vmatprep.mubr.f32.mxu0 0.0
      %2811 = vmatmul.mubr.f32.gmra.mrb[0].mxu0 %v2626
      %v2812 = vpop.f32.mrb[0].mxu0
      %v2813 = vadd.f32 0.0, %v2812
      %v2814 = vpop.f32.mrb[0].mxu0
      %2815 = vmatprep.mubr.f32.mxu0 0.0
      %2816 = vmatmul.mubr.f32.gmra.mrb[0].mxu0 %v2629
      %v2817 = vpop.f32.mrb[0].mxu0
      %v2818 = vadd.f32 0.0, %v2817
      %v2819 = vpop.f32.mrb[0].mxu0
      %2820 = vmatprep.mubr.f32.mxu0 0.0
      %2821 = vmatmul.mubr.f32.gmra.mrb[0].mxu0 %v2632
      %v2822 = vpop.f32.mrb[0].mxu0
      %v2823 = vadd.f32 0.0, %v2822
      %v2824 = vpop.f32.mrb[0].mxu0
      %2825 = vmatprep.mubr.f32.mxu0 0.0
      %2826 = vmatmul.mubr.f32.gmra.mrb[0].mxu0 %v2635
      %v2827 = vpop.f32.mrb[0].mxu0
      %v2828 = vadd.f32 0.0, %v2827
      %v2829 = vpop.f32.mrb[0].mxu0
      %2830 = vmatprep.mubr.f32.mxu0 0.0
      %2831 = vmatmul.mubr.f32.gmra.mrb[0].mxu0 %v2638
      %v2832 = vpop.f32.mrb[0].mxu0
      %v2833 = vadd.f32 0.0, %v2832
      %v2834 = vpop.f32.mrb[0].mxu0
      %2835 = vmatprep.mubr.f32.mxu0 0.0
      %2836 = vmatmul.mubr.f32.gmra.mrb[0].mxu0 %v2641
      %v2837 = vpop.f32.mrb[0].mxu0
      %v2838 = vadd.f32 0.0, %v2837
      %v2839 = vpop.f32.mrb[0].mxu0
      %2840 = vmatprep.mubr.f32.mxu0 0.0
      %2841 = vmatmul.mubr.f32.gmra.mrb[0].mxu0 %v2644
      %v2842 = vpop.f32.mrb[0].mxu0
      %v2843 = vadd.f32 0.0, %v2842
      %v2844 = vpop.f32.mrb[0].mxu0
      %2845 = vmatprep.mubr.f32.mxu0 0.0
      %2846 = vmatmul.mubr.f32.gmra.mrb[0].mxu0 %v2647
      %v2847 = vpop.f32.mrb[0].mxu0
      %v2848 = vadd.f32 0.0, %v2847
      %v2849 = vpop.f32.mrb[0].mxu0
      %2850 = vmatprep.mubr.f32.mxu0 0.0
      %2851 = vmatmul.mubr.f32.gmra.mrb[0].mxu0 %v2650
      %v2852 = vpop.f32.mrb[0].mxu0
      %v2853 = vadd.f32 0.0, %v2852
      %v2854 = vpop.f32.mrb[0].mxu0
      %2855 = vmatprep.mubr.f32.mxu0 0.0
      %2856 = vmatmul.mubr.f32.gmra.mrb[0].mxu0 %v2653
      %v2857 = vpop.f32.mrb[0].mxu0
      %v2858 = vadd.f32 0.0, %v2857
      %v2859 = vpop.f32.mrb[0].mxu0
      %2860 = vmatprep.mubr.f32.mxu0 0.0
      %2861 = vmatmul.mubr.f32.gmra.mrb[0].mxu0 %v2656
      %v2862 = vpop.f32.mrb[0].mxu0
      %v2863 = vadd.f32 0.0, %v2862
      %v2864 = vpop.f32.mrb[0].mxu0
      %2865 = vmatprep.mubr.f32.mxu0 0.0
      %2866 = vmatmul.mubr.f32.gmra.mrb[0].mxu0 %v2659
      %v2867 = vpop.f32.mrb[0].mxu0
      %v2868 = vadd.f32 0.0, %v2867
      %v2869 = vpop.f32.mrb[0].mxu0
      %2870 = vmatprep.mubr.f32.mxu0 0.0
      %2871 = vmatmul.mubr.f32.gmra.mrb[0].mxu0 %v2662
      %v2872 = vpop.f32.mrb[0].mxu0
      %v2873 = vadd.f32 0.0, %v2872
      %v2874 = vpop.f32.mrb[0].mxu0
      %2875 = vmatprep.mubr.f32.mxu0 0.0
      %2876 = vmatmul.mubr.f32.gmra.mrb[0].mxu0 %v2665
      %v2877 = vpop.f32.mrb[0].mxu0
      %v2878 = vadd.f32 0.0, %v2877
      %v2879 = vpop.f32.mrb[0].mxu0
      %2880 = vmatprep.mubr.f32.mxu0 0.0
      %2881 = vmatmul.mubr.f32.gmra.mrb[0].mxu0 %v2668
      %v2882 = vpop.f32.mrb[0].mxu0
      %v2883 = vadd.f32 0.0, %v2882
      %v2884 = vpop.f32.mrb[0].mxu0
      %2885 = vmatprep.mubr.f32.mxu0 0.0
      %2886 = vmatmul.mubr.f32.gmra.mrb[0].mxu0 %v2671
      %v2887 = vpop.f32.mrb[0].mxu0
      %v2888 = vadd.f32 0.0, %v2887
      %v2889 = vpop.f32.mrb[0].mxu0
      %2890 = vmatprep.mubr.f32.mxu0 0.0
      %2891 = vmatmul.mubr.f32.gmra.mrb[0].mxu0 %v2674
      %v2892 = vpop.f32.mrb[0].mxu0
      %v2893 = vadd.f32 0.0, %v2892
      %v2894 = vpop.f32.mrb[0].mxu0
      %2895 = vmatprep.mubr.f32.mxu0 0.0
      %2896 = vmatmul.mubr.f32.gmra.mrb[0].mxu0 %v2677
      %v2897 = vpop.f32.mrb[0].mxu0
      %v2898 = vadd.f32 0.0, %v2897
      %v2899 = vpop.f32.mrb[0].mxu0
      %2900 = vmatprep.mubr.f32.mxu0 0.0
      %2901 = vmatmul.mubr.f32.gmra.mrb[0].mxu0 %v2680
      %v2902 = vpop.f32.mrb[0].mxu0
      %v2903 = vadd.f32 0.0, %v2902
      %v2904 = vpop.f32.mrb[0].mxu0
      %2905 = vmatprep.mubr.f32.mxu0 0.0
      %2906 = vmatmul.mubr.f32.gmra.mrb[0].mxu0 %v2683
      %v2907 = vpop.f32.mrb[0].mxu0
      %v2908 = vadd.f32 0.0, %v2907
      %v2909 = vpop.f32.mrb[0].mxu0
      %2910 = vmatprep.mubr.f32.mxu0 0.0
      %2911 = vmatmul.mubr.f32.gmra.mrb[0].mxu0 %v2686
      %v2912 = vpop.f32.mrb[0].mxu0
      %v2913 = vadd.f32 0.0, %v2912
      %v2914 = vpop.f32.mrb[0].mxu0
      %2915 = vdwg.mxu0
      %v2916 = vadd.f32 %v2525, %v2758
      %v2917 = vadd.f32 %v2526, %v2763
      %v2918 = vadd.f32 %v2527, %v2768
      %v2919 = vadd.f32 %v2528, %v2773
      %v2920 = vadd.f32 %v2529, %v2778
      %v2921 = vadd.f32 %v2530, %v2783
      %v2922 = vadd.f32 %v2531, %v2788
      %v2923 = vadd.f32 %v2532, %v2793
      %v2924 = vadd.f32 %v2533, %v2798
      %v2925 = vadd.f32 %v2534, %v2803
      %v2926 = vadd.f32 %v2535, %v2808
      %v2927 = vadd.f32 %v2536, %v2813
      %v2928 = vadd.f32 %v2537, %v2818
      %v2929 = vadd.f32 %v2538, %v2823
      %v2930 = vadd.f32 %v2539, %v2828
      %v2931 = vadd.f32 %v2540, %v2833
      %v2932 = vadd.f32 %v2541, %v2838
      %v2933 = vadd.f32 %v2542, %v2843
      %v2934 = vadd.f32 %v2543, %v2848
      %v2935 = vadd.f32 %v2544, %v2853
      %v2936 = vadd.f32 %v2545, %v2858
      %v2937 = vadd.f32 %v2546, %v2863
      %v2938 = vadd.f32 %v2547, %v2868
      %v2939 = vadd.f32 %v2548, %v2873
      %v2940 = vadd.f32 %v2549, %v2878
      %v2941 = vadd.f32 %v2550, %v2883
      %v2942 = vadd.f32 %v2551, %v2888
      %v2943 = vadd.f32 %v2552, %v2893
      %v2944 = vadd.f32 %v2553, %v2898
      %v2945 = vadd.f32 %v2554, %v2903
      %v2946 = vadd.f32 %v2555, %v2908
      %v2947 = vadd.f32 %v2556, %v2913
      %v2948 = vld [vmem:[%s2557 + $0x1] sm:$0xff]
      %v2949 = vld [vmem:[%s2557 + $0x9] sm:$0xff]
      %v2950 = vld [vmem:[%s2557 + $0x19] sm:$0xff]
      %v2951 = vld [vmem:[%s2557 + $0x21] sm:$0xff]
      %v2952 = vld [vmem:[%s2557 + $0x31] sm:$0xff]
      %v2953 = vld [vmem:[%s2557 + $0x39] sm:$0xff]
      %v2954 = vld [vmem:[%s2557 + $0x49] sm:$0xff]
      %v2955 = vld [vmem:[%s2557 + $0x51] sm:$0xff]
      %v2956 = vld [vmem:[%s2557 + $0x61] sm:$0xff]
      %v2957 = vld [vmem:[%s2557 + $0x69] sm:$0xff]
      %v2958 = vld [vmem:[%s2557 + $0x79] sm:$0xff]
      %v2959 = vld [vmem:[%s2557 + $0x81] sm:$0xff]
      %v2960 = vld [vmem:[%s2557 + $0x91] sm:$0xff]
      %v2961 = vld [vmem:[%s2557 + $0x99] sm:$0xff]
      %v2962 = vld [vmem:[%s2557 + $0xa9] sm:$0xff]
      %v2963 = vld [vmem:[%s2557 + $0xb1] sm:$0xff]
      %v2964 = vld [vmem:[%s2557 + $0xc1] sm:$0xff]
      %v2965 = vld [vmem:[%s2557 + $0xc9] sm:$0xff]
      %v2966 = vld [vmem:[%s2557 + $0xd9] sm:$0xff]
      %v2967 = vld [vmem:[%s2557 + $0xe1] sm:$0xff]
      %v2968 = vld [vmem:[%s2557 + $0xf1] sm:$0xff]
      %v2969 = vld [vmem:[%s2557 + $0xf9] sm:$0xff]
      %v2970 = vld [vmem:[%s2557 + $0x109] sm:$0xff]
      %v2971 = vld [vmem:[%s2557 + $0x111] sm:$0xff]
      %v2972 = vld [vmem:[%s2557 + $0x121] sm:$0xff]
      %v2973 = vld [vmem:[%s2557 + $0x129] sm:$0xff]
      %v2974 = vld [vmem:[%s2557 + $0x139] sm:$0xff]
      %v2975 = vld [vmem:[%s2557 + $0x141] sm:$0xff]
      %v2976 = vld [vmem:[%s2557 + $0x151] sm:$0xff]
      %v2977 = vld [vmem:[%s2557 + $0x159] sm:$0xff]
      %v2978 = vld [vmem:[%s2557 + $0x169] sm:$0xff]
      %v2979 = vld [vmem:[%s2557 + $0x171] sm:$0xff]
      %s2980 = scalar_lea.vmem %s1, 28
      %v2981 = vld [vmem:[%s2980] sm:$0xf]
      %v2983 = vsel %vm346, %v2948, 0
      %v2986 = vsel %vm346, %v2949, 0
      %v2989 = vsel %vm346, %v2950, 0
      %v2992 = vsel %vm346, %v2951, 0
      %v2995 = vsel %vm346, %v2952, 0
      %v2998 = vsel %vm346, %v2953, 0
      %v3001 = vsel %vm346, %v2954, 0
      %v3004 = vsel %vm346, %v2955, 0
      %v3007 = vsel %vm346, %v2956, 0
      %v3010 = vsel %vm346, %v2957, 0
      %v3013 = vsel %vm346, %v2958, 0
      %v3016 = vsel %vm346, %v2959, 0
      %v3019 = vsel %vm346, %v2960, 0
      %v3022 = vsel %vm346, %v2961, 0
      %v3025 = vsel %vm346, %v2962, 0
      %v3028 = vsel %vm346, %v2963, 0
      %v3031 = vsel %vm346, %v2964, 0
      %v3034 = vsel %vm346, %v2965, 0
      %v3037 = vsel %vm346, %v2966, 0
      %v3040 = vsel %vm346, %v2967, 0
      %v3043 = vsel %vm346, %v2968, 0
      %v3046 = vsel %vm346, %v2969, 0
      %v3049 = vsel %vm346, %v2970, 0
      %v3052 = vsel %vm346, %v2971, 0
      %v3055 = vsel %vm346, %v2972, 0
      %v3058 = vsel %vm346, %v2973, 0
      %v3061 = vsel %vm346, %v2974, 0
      %v3064 = vsel %vm346, %v2975, 0
      %v3067 = vsel %vm346, %v2976, 0
      %v3070 = vsel %vm346, %v2977, 0
      %v3073 = vsel %vm346, %v2978, 0
      %v3076 = vsel %vm346, %v2979, 0
      %v3079 = vsel %vm443, %v2981, 0
      %3081 = vmatprep.subr.mxu0 0.0
      %3082 = vmatpush1.msra.mxu0 %v3079
      %3083 = vmatprep.subr.mxu0 0.0
      %3084 = vmatpush1.msra.mxu0 0.0
      %3085 = vmatprep.subr.mxu0 0.0
      %3086 = vmatpush1.msra.mxu0 0.0
      %3087 = vmatprep.subr.mxu0 0.0
      %3088 = vmatpush1.msra.mxu0 0.0
      %3089 = vmatprep.subr.mxu0 0.0
      %3090 = vmatpush1.msra.mxu0 0.0
      %3091 = vmatprep.subr.mxu0 0.0
      %3092 = vmatpush1.msra.mxu0 0.0
      %3093 = vmatprep.subr.mxu0 0.0
      %3094 = vmatpush1.msra.mxu0 0.0
      %3095 = vmatprep.subr.mxu0 0.0
      %3096 = vmatpush1.msra.mxu0 0.0
      %3097 = vmatprep.subr.mxu0 0.0
      %3098 = vmatpush1.msra.mxu0 0.0
      %3099 = vmatprep.subr.mxu0 0.0
      %3100 = vmatpush1.msra.mxu0 0.0
      %3101 = vmatprep.subr.mxu0 0.0
      %3102 = vmatpush1.msra.mxu0 0.0
      %3103 = vmatprep.subr.mxu0 0.0
      %3104 = vmatpush1.msra.mxu0 0.0
      %3105 = vmatprep.subr.mxu0 0.0
      %3106 = vmatpush1.msra.mxu0 0.0
      %3107 = vmatprep.subr.mxu0 0.0
      %3108 = vmatpush1.msra.mxu0 0.0
      %3109 = vmatprep.subr.mxu0 0.0
      %3110 = vmatpush1.msra.mxu0 0.0
      %3111 = vmatprep.subr.mxu0 0.0
      %3112 = vmatpush1.msra.mxu0 0.0
      %3113 = vmatprep.subr.mxu0 0.0
      %3114 = vmatpush1.msra.mxu0 0.0
      %3115 = vmatprep.subr.mxu0 0.0
      %3116 = vmatpush1.msra.mxu0 0.0
      %3117 = vmatprep.subr.mxu0 0.0
      %3118 = vmatpush1.msra.mxu0 0.0
      %3119 = vmatprep.subr.mxu0 0.0
      %3120 = vmatpush1.msra.mxu0 0.0
      %3121 = vmatprep.subr.mxu0 0.0
      %3122 = vmatpush1.msra.mxu0 0.0
      %3123 = vmatprep.subr.mxu0 0.0
      %3124 = vmatpush1.msra.mxu0 0.0
      %3125 = vmatprep.subr.mxu0 0.0
      %3126 = vmatpush1.msra.mxu0 0.0
      %3127 = vmatprep.subr.mxu0 0.0
      %3128 = vmatpush1.msra.mxu0 0.0
      %3129 = vmatprep.subr.mxu0 0.0
      %3130 = vmatpush1.msra.mxu0 0.0
      %3131 = vmatprep.subr.mxu0 0.0
      %3132 = vmatpush1.msra.mxu0 0.0
      %3133 = vmatprep.subr.mxu0 0.0
      %3134 = vmatpush1.msra.mxu0 0.0
      %3135 = vmatprep.subr.mxu0 0.0
      %3136 = vmatpush1.msra.mxu0 0.0
      %3137 = vmatprep.subr.mxu0 0.0
      %3138 = vmatpush1.msra.mxu0 0.0
      %3139 = vmatprep.subr.mxu0 0.0
      %3140 = vmatpush1.msra.mxu0 0.0
      %3141 = vmatprep.subr.mxu0 0.0
      %3142 = vmatpush1.msra.mxu0 0.0
      %3143 = vmatprep.subr.mxu0 0.0
      %3144 = vmatpush1.msra.mxu0 0.0
      %3145 = vmatprep.mubr.f32.mxu0 0.0
      %3146 = vmatmul.mubr.f32.gmra.mrb[0].mxu0 %v2983
      %v3147 = vpop.f32.mrb[0].mxu0
      %v3148 = vadd.f32 0.0, %v3147
      %v3149 = vpop.f32.mrb[0].mxu0
      %3150 = vmatprep.mubr.f32.mxu0 0.0
      %3151 = vmatmul.mubr.f32.gmra.mrb[0].mxu0 %v2986
      %v3152 = vpop.f32.mrb[0].mxu0
      %v3153 = vadd.f32 0.0, %v3152
      %v3154 = vpop.f32.mrb[0].mxu0
      %3155 = vmatprep.mubr.f32.mxu0 0.0
      %3156 = vmatmul.mubr.f32.gmra.mrb[0].mxu0 %v2989
      %v3157 = vpop.f32.mrb[0].mxu0
      %v3158 = vadd.f32 0.0, %v3157
      %v3159 = vpop.f32.mrb[0].mxu0
      %3160 = vmatprep.mubr.f32.mxu0 0.0
      %3161 = vmatmul.mubr.f32.gmra.mrb[0].mxu0 %v2992
      %v3162 = vpop.f32.mrb[0].mxu0
      %v3163 = vadd.f32 0.0, %v3162
      %v3164 = vpop.f32.mrb[0].mxu0
      %3165 = vmatprep.mubr.f32.mxu0 0.0
      %3166 = vmatmul.mubr.f32.gmra.mrb[0].mxu0 %v2995
      %v3167 = vpop.f32.mrb[0].mxu0
      %v3168 = vadd.f32 0.0, %v3167
      %v3169 = vpop.f32.mrb[0].mxu0
      %3170 = vmatprep.mubr.f32.mxu0 0.0
      %3171 = vmatmul.mubr.f32.gmra.mrb[0].mxu0 %v2998
      %v3172 = vpop.f32.mrb[0].mxu0
      %v3173 = vadd.f32 0.0, %v3172
      %v3174 = vpop.f32.mrb[0].mxu0
      %3175 = vmatprep.mubr.f32.mxu0 0.0
      %3176 = vmatmul.mubr.f32.gmra.mrb[0].mxu0 %v3001
      %v3177 = vpop.f32.mrb[0].mxu0
      %v3178 = vadd.f32 0.0, %v3177
      %v3179 = vpop.f32.mrb[0].mxu0
      %3180 = vmatprep.mubr.f32.mxu0 0.0
      %3181 = vmatmul.mubr.f32.gmra.mrb[0].mxu0 %v3004
      %v3182 = vpop.f32.mrb[0].mxu0
      %v3183 = vadd.f32 0.0, %v3182
      %v3184 = vpop.f32.mrb[0].mxu0
      %3185 = vmatprep.mubr.f32.mxu0 0.0
      %3186 = vmatmul.mubr.f32.gmra.mrb[0].mxu0 %v3007
      %v3187 = vpop.f32.mrb[0].mxu0
      %v3188 = vadd.f32 0.0, %v3187
      %v3189 = vpop.f32.mrb[0].mxu0
      %3190 = vmatprep.mubr.f32.mxu0 0.0
      %3191 = vmatmul.mubr.f32.gmra.mrb[0].mxu0 %v3010
      %v3192 = vpop.f32.mrb[0].mxu0
      %v3193 = vadd.f32 0.0, %v3192
      %v3194 = vpop.f32.mrb[0].mxu0
      %3195 = vmatprep.mubr.f32.mxu0 0.0
      %3196 = vmatmul.mubr.f32.gmra.mrb[0].mxu0 %v3013
      %v3197 = vpop.f32.mrb[0].mxu0
      %v3198 = vadd.f32 0.0, %v3197
      %v3199 = vpop.f32.mrb[0].mxu0
      %3200 = vmatprep.mubr.f32.mxu0 0.0
      %3201 = vmatmul.mubr.f32.gmra.mrb[0].mxu0 %v3016
      %v3202 = vpop.f32.mrb[0].mxu0
      %v3203 = vadd.f32 0.0, %v3202
      %v3204 = vpop.f32.mrb[0].mxu0
      %3205 = vmatprep.mubr.f32.mxu0 0.0
      %3206 = vmatmul.mubr.f32.gmra.mrb[0].mxu0 %v3019
      %v3207 = vpop.f32.mrb[0].mxu0
      %v3208 = vadd.f32 0.0, %v3207
      %v3209 = vpop.f32.mrb[0].mxu0
      %3210 = vmatprep.mubr.f32.mxu0 0.0
      %3211 = vmatmul.mubr.f32.gmra.mrb[0].mxu0 %v3022
      %v3212 = vpop.f32.mrb[0].mxu0
      %v3213 = vadd.f32 0.0, %v3212
      %v3214 = vpop.f32.mrb[0].mxu0
      %3215 = vmatprep.mubr.f32.mxu0 0.0
      %3216 = vmatmul.mubr.f32.gmra.mrb[0].mxu0 %v3025
      %v3217 = vpop.f32.mrb[0].mxu0
      %v3218 = vadd.f32 0.0, %v3217
      %v3219 = vpop.f32.mrb[0].mxu0
      %3220 = vmatprep.mubr.f32.mxu0 0.0
      %3221 = vmatmul.mubr.f32.gmra.mrb[0].mxu0 %v3028
      %v3222 = vpop.f32.mrb[0].mxu0
      %v3223 = vadd.f32 0.0, %v3222
      %v3224 = vpop.f32.mrb[0].mxu0
      %3225 = vmatprep.mubr.f32.mxu0 0.0
      %3226 = vmatmul.mubr.f32.gmra.mrb[0].mxu0 %v3031
      %v3227 = vpop.f32.mrb[0].mxu0
      %v3228 = vadd.f32 0.0, %v3227
      %v3229 = vpop.f32.mrb[0].mxu0
      %3230 = vmatprep.mubr.f32.mxu0 0.0
      %3231 = vmatmul.mubr.f32.gmra.mrb[0].mxu0 %v3034
      %v3232 = vpop.f32.mrb[0].mxu0
      %v3233 = vadd.f32 0.0, %v3232
      %v3234 = vpop.f32.mrb[0].mxu0
      %3235 = vmatprep.mubr.f32.mxu0 0.0
      %3236 = vmatmul.mubr.f32.gmra.mrb[0].mxu0 %v3037
      %v3237 = vpop.f32.mrb[0].mxu0
      %v3238 = vadd.f32 0.0, %v3237
      %v3239 = vpop.f32.mrb[0].mxu0
      %3240 = vmatprep.mubr.f32.mxu0 0.0
      %3241 = vmatmul.mubr.f32.gmra.mrb[0].mxu0 %v3040
      %v3242 = vpop.f32.mrb[0].mxu0
      %v3243 = vadd.f32 0.0, %v3242
      %v3244 = vpop.f32.mrb[0].mxu0
      %3245 = vmatprep.mubr.f32.mxu0 0.0
      %3246 = vmatmul.mubr.f32.gmra.mrb[0].mxu0 %v3043
      %v3247 = vpop.f32.mrb[0].mxu0
      %v3248 = vadd.f32 0.0, %v3247
      %v3249 = vpop.f32.mrb[0].mxu0
      %3250 = vmatprep.mubr.f32.mxu0 0.0
      %3251 = vmatmul.mubr.f32.gmra.mrb[0].mxu0 %v3046
      %v3252 = vpop.f32.mrb[0].mxu0
      %v3253 = vadd.f32 0.0, %v3252
      %v3254 = vpop.f32.mrb[0].mxu0
      %3255 = vmatprep.mubr.f32.mxu0 0.0
      %3256 = vmatmul.mubr.f32.gmra.mrb[0].mxu0 %v3049
      %v3257 = vpop.f32.mrb[0].mxu0
      %v3258 = vadd.f32 0.0, %v3257
      %v3259 = vpop.f32.mrb[0].mxu0
      %3260 = vmatprep.mubr.f32.mxu0 0.0
      %3261 = vmatmul.mubr.f32.gmra.mrb[0].mxu0 %v3052
      %v3262 = vpop.f32.mrb[0].mxu0
      %v3263 = vadd.f32 0.0, %v3262
      %v3264 = vpop.f32.mrb[0].mxu0
      %3265 = vmatprep.mubr.f32.mxu0 0.0
      %3266 = vmatmul.mubr.f32.gmra.mrb[0].mxu0 %v3055
      %v3267 = vpop.f32.mrb[0].mxu0
      %v3268 = vadd.f32 0.0, %v3267
      %v3269 = vpop.f32.mrb[0].mxu0
      %3270 = vmatprep.mubr.f32.mxu0 0.0
      %3271 = vmatmul.mubr.f32.gmra.mrb[0].mxu0 %v3058
      %v3272 = vpop.f32.mrb[0].mxu0
      %v3273 = vadd.f32 0.0, %v3272
      %v3274 = vpop.f32.mrb[0].mxu0
      %3275 = vmatprep.mubr.f32.mxu0 0.0
      %3276 = vmatmul.mubr.f32.gmra.mrb[0].mxu0 %v3061
      %v3277 = vpop.f32.mrb[0].mxu0
      %v3278 = vadd.f32 0.0, %v3277
      %v3279 = vpop.f32.mrb[0].mxu0
      %3280 = vmatprep.mubr.f32.mxu0 0.0
      %3281 = vmatmul.mubr.f32.gmra.mrb[0].mxu0 %v3064
      %v3282 = vpop.f32.mrb[0].mxu0
      %v3283 = vadd.f32 0.0, %v3282
      %v3284 = vpop.f32.mrb[0].mxu0
      %3285 = vmatprep.mubr.f32.mxu0 0.0
      %3286 = vmatmul.mubr.f32.gmra.mrb[0].mxu0 %v3067
      %v3287 = vpop.f32.mrb[0].mxu0
      %v3288 = vadd.f32 0.0, %v3287
      %v3289 = vpop.f32.mrb[0].mxu0
      %3290 = vmatprep.mubr.f32.mxu0 0.0
      %3291 = vmatmul.mubr.f32.gmra.mrb[0].mxu0 %v3070
      %v3292 = vpop.f32.mrb[0].mxu0
      %v3293 = vadd.f32 0.0, %v3292
      %v3294 = vpop.f32.mrb[0].mxu0
      %3295 = vmatprep.mubr.f32.mxu0 0.0
      %3296 = vmatmul.mubr.f32.gmra.mrb[0].mxu0 %v3073
      %v3297 = vpop.f32.mrb[0].mxu0
      %v3298 = vadd.f32 0.0, %v3297
      %v3299 = vpop.f32.mrb[0].mxu0
      %3300 = vmatprep.mubr.f32.mxu0 0.0
      %3301 = vmatmul.mubr.f32.gmra.mrb[0].mxu0 %v3076
      %v3302 = vpop.f32.mrb[0].mxu0
      %v3303 = vadd.f32 0.0, %v3302
      %v3304 = vpop.f32.mrb[0].mxu0
      %3305 = vdwg.mxu0
      %v3306 = vadd.f32 %v2916, %v3148
      %v3307 = vadd.f32 %v2917, %v3153
      %v3308 = vadd.f32 %v2918, %v3158
      %v3309 = vadd.f32 %v2919, %v3163
      %v3310 = vadd.f32 %v2920, %v3168
      %v3311 = vadd.f32 %v2921, %v3173
      %v3312 = vadd.f32 %v2922, %v3178
      %v3313 = vadd.f32 %v2923, %v3183
      %v3314 = vadd.f32 %v2924, %v3188
      %v3315 = vadd.f32 %v2925, %v3193
      %v3316 = vadd.f32 %v2926, %v3198
      %v3317 = vadd.f32 %v2927, %v3203
      %v3318 = vadd.f32 %v2928, %v3208
      %v3319 = vadd.f32 %v2929, %v3213
      %v3320 = vadd.f32 %v2930, %v3218
      %v3321 = vadd.f32 %v2931, %v3223
      %v3322 = vadd.f32 %v2932, %v3228
      %v3323 = vadd.f32 %v2933, %v3233
      %v3324 = vadd.f32 %v2934, %v3238
      %v3325 = vadd.f32 %v2935, %v3243
      %v3326 = vadd.f32 %v2936, %v3248
      %v3327 = vadd.f32 %v2937, %v3253
      %v3328 = vadd.f32 %v2938, %v3258
      %v3329 = vadd.f32 %v2939, %v3263
      %v3330 = vadd.f32 %v2940, %v3268
      %v3331 = vadd.f32 %v2941, %v3273
      %v3332 = vadd.f32 %v2942, %v3278
      %v3333 = vadd.f32 %v2943, %v3283
      %v3334 = vadd.f32 %v2944, %v3288
      %v3335 = vadd.f32 %v2945, %v3293
      %v3336 = vadd.f32 %v2946, %v3298
      %v3337 = vadd.f32 %v2947, %v3303
      %v3338 = vld [vmem:[%s2557 + $0x2] sm:$0xff]
      %v3339 = vld [vmem:[%s2557 + $0xa] sm:$0xff]
      %v3340 = vld [vmem:[%s2557 + $0x1a] sm:$0xff]
      %v3341 = vld [vmem:[%s2557 + $0x22] sm:$0xff]
      %v3342 = vld [vmem:[%s2557 + $0x32] sm:$0xff]
      %v3343 = vld [vmem:[%s2557 + $0x3a] sm:$0xff]
      %v3344 = vld [vmem:[%s2557 + $0x4a] sm:$0xff]
      %v3345 = vld [vmem:[%s2557 + $0x52] sm:$0xff]
      %v3346 = vld [vmem:[%s2557 + $0x62] sm:$0xff]
      %v3347 = vld [vmem:[%s2557 + $0x6a] sm:$0xff]
      %v3348 = vld [vmem:[%s2557 + $0x7a] sm:$0xff]
      %v3349 = vld [vmem:[%s2557 + $0x82] sm:$0xff]
      %v3350 = vld [vmem:[%s2557 + $0x92] sm:$0xff]
      %v3351 = vld [vmem:[%s2557 + $0x9a] sm:$0xff]
      %v3352 = vld [vmem:[%s2557 + $0xaa] sm:$0xff]
      %v3353 = vld [vmem:[%s2557 + $0xb2] sm:$0xff]
      %v3354 = vld [vmem:[%s2557 + $0xc2] sm:$0xff]
      %v3355 = vld [vmem:[%s2557 + $0xca] sm:$0xff]
      %v3356 = vld [vmem:[%s2557 + $0xda] sm:$0xff]
      %v3357 = vld [vmem:[%s2557 + $0xe2] sm:$0xff]
      %v3358 = vld [vmem:[%s2557 + $0xf2] sm:$0xff]
      %v3359 = vld [vmem:[%s2557 + $0xfa] sm:$0xff]
      %v3360 = vld [vmem:[%s2557 + $0x10a] sm:$0xff]
      %v3361 = vld [vmem:[%s2557 + $0x112] sm:$0xff]
      %v3362 = vld [vmem:[%s2557 + $0x122] sm:$0xff]
      %v3363 = vld [vmem:[%s2557 + $0x12a] sm:$0xff]
      %v3364 = vld [vmem:[%s2557 + $0x13a] sm:$0xff]
      %v3365 = vld [vmem:[%s2557 + $0x142] sm:$0xff]
      %v3366 = vld [vmem:[%s2557 + $0x152] sm:$0xff]
      %v3367 = vld [vmem:[%s2557 + $0x15a] sm:$0xff]
      %v3368 = vld [vmem:[%s2557 + $0x16a] sm:$0xff]
      %v3369 = vld [vmem:[%s2557 + $0x172] sm:$0xff]
      %s3370 = scalar_lea.vmem %s1, 32
      %v3371 = vld [vmem:[%s3370] sm:$0xf]
      %v3373 = vsel %vm346, %v3338, 0
      %v3376 = vsel %vm346, %v3339, 0
      %v3379 = vsel %vm346, %v3340, 0
      %v3382 = vsel %vm346, %v3341, 0
      %v3385 = vsel %vm346, %v3342, 0
      %v3388 = vsel %vm346, %v3343, 0
      %v3391 = vsel %vm346, %v3344, 0
      %v3394 = vsel %vm346, %v3345, 0
      %v3397 = vsel %vm346, %v3346, 0
      %v3400 = vsel %vm346, %v3347, 0
      %v3403 = vsel %vm346, %v3348, 0
      %v3406 = vsel %vm346, %v3349, 0
      %v3409 = vsel %vm346, %v3350, 0
      %v3412 = vsel %vm346, %v3351, 0
      %v3415 = vsel %vm346, %v3352, 0
      %v3418 = vsel %vm346, %v3353, 0
      %v3421 = vsel %vm346, %v3354, 0
      %v3424 = vsel %vm346, %v3355, 0
      %v3427 = vsel %vm346, %v3356, 0
      %v3430 = vsel %vm346, %v3357, 0
      %v3433 = vsel %vm346, %v3358, 0
      %v3436 = vsel %vm346, %v3359, 0
      %v3439 = vsel %vm346, %v3360, 0
      %v3442 = vsel %vm346, %v3361, 0
      %v3445 = vsel %vm346, %v3362, 0
      %v3448 = vsel %vm346, %v3363, 0
      %v3451 = vsel %vm346, %v3364, 0
      %v3454 = vsel %vm346, %v3365, 0
      %v3457 = vsel %vm346, %v3366, 0
      %v3460 = vsel %vm346, %v3367, 0
      %v3463 = vsel %vm346, %v3368, 0
      %v3466 = vsel %vm346, %v3369, 0
      %v3469 = vsel %vm443, %v3371, 0
      %3471 = vmatprep.subr.mxu0 0.0
      %3472 = vmatpush1.msra.mxu0 %v3469
      %3473 = vmatprep.subr.mxu0 0.0
      %3474 = vmatpush1.msra.mxu0 0.0
      %3475 = vmatprep.subr.mxu0 0.0
      %3476 = vmatpush1.msra.mxu0 0.0
      %3477 = vmatprep.subr.mxu0 0.0
      %3478 = vmatpush1.msra.mxu0 0.0
      %3479 = vmatprep.subr.mxu0 0.0
      %3480 = vmatpush1.msra.mxu0 0.0
      %3481 = vmatprep.subr.mxu0 0.0
      %3482 = vmatpush1.msra.mxu0 0.0
      %3483 = vmatprep.subr.mxu0 0.0
      %3484 = vmatpush1.msra.mxu0 0.0
      %3485 = vmatprep.subr.mxu0 0.0
      %3486 = vmatpush1.msra.mxu0 0.0
      %3487 = vmatprep.subr.mxu0 0.0
      %3488 = vmatpush1.msra.mxu0 0.0
      %3489 = vmatprep.subr.mxu0 0.0
      %3490 = vmatpush1.msra.mxu0 0.0
      %3491 = vmatprep.subr.mxu0 0.0
      %3492 = vmatpush1.msra.mxu0 0.0
      %3493 = vmatprep.subr.mxu0 0.0
      %3494 = vmatpush1.msra.mxu0 0.0
      %3495 = vmatprep.subr.mxu0 0.0
      %3496 = vmatpush1.msra.mxu0 0.0
      %3497 = vmatprep.subr.mxu0 0.0
      %3498 = vmatpush1.msra.mxu0 0.0
      %3499 = vmatprep.subr.mxu0 0.0
      %3500 = vmatpush1.msra.mxu0 0.0
      %3501 = vmatprep.subr.mxu0 0.0
      %3502 = vmatpush1.msra.mxu0 0.0
      %3503 = vmatprep.subr.mxu0 0.0
      %3504 = vmatpush1.msra.mxu0 0.0
      %3505 = vmatprep.subr.mxu0 0.0
      %3506 = vmatpush1.msra.mxu0 0.0
      %3507 = vmatprep.subr.mxu0 0.0
      %3508 = vmatpush1.msra.mxu0 0.0
      %3509 = vmatprep.subr.mxu0 0.0
      %3510 = vmatpush1.msra.mxu0 0.0
      %3511 = vmatprep.subr.mxu0 0.0
      %3512 = vmatpush1.msra.mxu0 0.0
      %3513 = vmatprep.subr.mxu0 0.0
      %3514 = vmatpush1.msra.mxu0 0.0
      %3515 = vmatprep.subr.mxu0 0.0
      %3516 = vmatpush1.msra.mxu0 0.0
      %3517 = vmatprep.subr.mxu0 0.0
      %3518 = vmatpush1.msra.mxu0 0.0
      %3519 = vmatprep.subr.mxu0 0.0
      %3520 = vmatpush1.msra.mxu0 0.0
      %3521 = vmatprep.subr.mxu0 0.0
      %3522 = vmatpush1.msra.mxu0 0.0
      %3523 = vmatprep.subr.mxu0 0.0
      %3524 = vmatpush1.msra.mxu0 0.0
      %3525 = vmatprep.subr.mxu0 0.0
      %3526 = vmatpush1.msra.mxu0 0.0
      %3527 = vmatprep.subr.mxu0 0.0
      %3528 = vmatpush1.msra.mxu0 0.0
      %3529 = vmatprep.subr.mxu0 0.0
      %3530 = vmatpush1.msra.mxu0 0.0
      %3531 = vmatprep.subr.mxu0 0.0
      %3532 = vmatpush1.msra.mxu0 0.0
      %3533 = vmatprep.subr.mxu0 0.0
      %3534 = vmatpush1.msra.mxu0 0.0
      %3535 = vmatprep.mubr.f32.mxu0 0.0
      %3536 = vmatmul.mubr.f32.gmra.mrb[0].mxu0 %v3373
      %v3537 = vpop.f32.mrb[0].mxu0
      %v3538 = vadd.f32 0.0, %v3537
      %v3539 = vpop.f32.mrb[0].mxu0
      %3540 = vmatprep.mubr.f32.mxu0 0.0
      %3541 = vmatmul.mubr.f32.gmra.mrb[0].mxu0 %v3376
      %v3542 = vpop.f32.mrb[0].mxu0
      %v3543 = vadd.f32 0.0, %v3542
      %v3544 = vpop.f32.mrb[0].mxu0
      %3545 = vmatprep.mubr.f32.mxu0 0.0
      %3546 = vmatmul.mubr.f32.gmra.mrb[0].mxu0 %v3379
      %v3547 = vpop.f32.mrb[0].mxu0
      %v3548 = vadd.f32 0.0, %v3547
      %v3549 = vpop.f32.mrb[0].mxu0
      %3550 = vmatprep.mubr.f32.mxu0 0.0
      %3551 = vmatmul.mubr.f32.gmra.mrb[0].mxu0 %v3382
      %v3552 = vpop.f32.mrb[0].mxu0
      %v3553 = vadd.f32 0.0, %v3552
      %v3554 = vpop.f32.mrb[0].mxu0
      %3555 = vmatprep.mubr.f32.mxu0 0.0
      %3556 = vmatmul.mubr.f32.gmra.mrb[0].mxu0 %v3385
      %v3557 = vpop.f32.mrb[0].mxu0
      %v3558 = vadd.f32 0.0, %v3557
      %v3559 = vpop.f32.mrb[0].mxu0
      %3560 = vmatprep.mubr.f32.mxu0 0.0
      %3561 = vmatmul.mubr.f32.gmra.mrb[0].mxu0 %v3388
      %v3562 = vpop.f32.mrb[0].mxu0
      %v3563 = vadd.f32 0.0, %v3562
      %v3564 = vpop.f32.mrb[0].mxu0
      %3565 = vmatprep.mubr.f32.mxu0 0.0
      %3566 = vmatmul.mubr.f32.gmra.mrb[0].mxu0 %v3391
      %v3567 = vpop.f32.mrb[0].mxu0
      %v3568 = vadd.f32 0.0, %v3567
      %v3569 = vpop.f32.mrb[0].mxu0
      %3570 = vmatprep.mubr.f32.mxu0 0.0
      %3571 = vmatmul.mubr.f32.gmra.mrb[0].mxu0 %v3394
      %v3572 = vpop.f32.mrb[0].mxu0
      %v3573 = vadd.f32 0.0, %v3572
      %v3574 = vpop.f32.mrb[0].mxu0
      %3575 = vmatprep.mubr.f32.mxu0 0.0
      %3576 = vmatmul.mubr.f32.gmra.mrb[0].mxu0 %v3397
      %v3577 = vpop.f32.mrb[0].mxu0
      %v3578 = vadd.f32 0.0, %v3577
      %v3579 = vpop.f32.mrb[0].mxu0
      %3580 = vmatprep.mubr.f32.mxu0 0.0
      %3581 = vmatmul.mubr.f32.gmra.mrb[0].mxu0 %v3400
      %v3582 = vpop.f32.mrb[0].mxu0
      %v3583 = vadd.f32 0.0, %v3582
      %v3584 = vpop.f32.mrb[0].mxu0
      %3585 = vmatprep.mubr.f32.mxu0 0.0
      %3586 = vmatmul.mubr.f32.gmra.mrb[0].mxu0 %v3403
      %v3587 = vpop.f32.mrb[0].mxu0
      %v3588 = vadd.f32 0.0, %v3587
      %v3589 = vpop.f32.mrb[0].mxu0
      %3590 = vmatprep.mubr.f32.mxu0 0.0
      %3591 = vmatmul.mubr.f32.gmra.mrb[0].mxu0 %v3406
      %v3592 = vpop.f32.mrb[0].mxu0
      %v3593 = vadd.f32 0.0, %v3592
      %v3594 = vpop.f32.mrb[0].mxu0
      %3595 = vmatprep.mubr.f32.mxu0 0.0
      %3596 = vmatmul.mubr.f32.gmra.mrb[0].mxu0 %v3409
      %v3597 = vpop.f32.mrb[0].mxu0
      %v3598 = vadd.f32 0.0, %v3597
      %v3599 = vpop.f32.mrb[0].mxu0
      %3600 = vmatprep.mubr.f32.mxu0 0.0
      %3601 = vmatmul.mubr.f32.gmra.mrb[0].mxu0 %v3412
      %v3602 = vpop.f32.mrb[0].mxu0
      %v3603 = vadd.f32 0.0, %v3602
      %v3604 = vpop.f32.mrb[0].mxu0
      %3605 = vmatprep.mubr.f32.mxu0 0.0
      %3606 = vmatmul.mubr.f32.gmra.mrb[0].mxu0 %v3415
      %v3607 = vpop.f32.mrb[0].mxu0
      %v3608 = vadd.f32 0.0, %v3607
      %v3609 = vpop.f32.mrb[0].mxu0
      %3610 = vmatprep.mubr.f32.mxu0 0.0
      %3611 = vmatmul.mubr.f32.gmra.mrb[0].mxu0 %v3418
      %v3612 = vpop.f32.mrb[0].mxu0
      %v3613 = vadd.f32 0.0, %v3612
      %v3614 = vpop.f32.mrb[0].mxu0
      %3615 = vmatprep.mubr.f32.mxu0 0.0
      %3616 = vmatmul.mubr.f32.gmra.mrb[0].mxu0 %v3421
      %v3617 = vpop.f32.mrb[0].mxu0
      %v3618 = vadd.f32 0.0, %v3617
      %v3619 = vpop.f32.mrb[0].mxu0
      %3620 = vmatprep.mubr.f32.mxu0 0.0
      %3621 = vmatmul.mubr.f32.gmra.mrb[0].mxu0 %v3424
      %v3622 = vpop.f32.mrb[0].mxu0
      %v3623 = vadd.f32 0.0, %v3622
      %v3624 = vpop.f32.mrb[0].mxu0
      %3625 = vmatprep.mubr.f32.mxu0 0.0
      %3626 = vmatmul.mubr.f32.gmra.mrb[0].mxu0 %v3427
      %v3627 = vpop.f32.mrb[0].mxu0
      %v3628 = vadd.f32 0.0, %v3627
      %v3629 = vpop.f32.mrb[0].mxu0
      %3630 = vmatprep.mubr.f32.mxu0 0.0
      %3631 = vmatmul.mubr.f32.gmra.mrb[0].mxu0 %v3430
      %v3632 = vpop.f32.mrb[0].mxu0
      %v3633 = vadd.f32 0.0, %v3632
      %v3634 = vpop.f32.mrb[0].mxu0
      %3635 = vmatprep.mubr.f32.mxu0 0.0
      %3636 = vmatmul.mubr.f32.gmra.mrb[0].mxu0 %v3433
      %v3637 = vpop.f32.mrb[0].mxu0
      %v3638 = vadd.f32 0.0, %v3637
      %v3639 = vpop.f32.mrb[0].mxu0
      %3640 = vmatprep.mubr.f32.mxu0 0.0
      %3641 = vmatmul.mubr.f32.gmra.mrb[0].mxu0 %v3436
      %v3642 = vpop.f32.mrb[0].mxu0
      %v3643 = vadd.f32 0.0, %v3642
      %v3644 = vpop.f32.mrb[0].mxu0
      %3645 = vmatprep.mubr.f32.mxu0 0.0
      %3646 = vmatmul.mubr.f32.gmra.mrb[0].mxu0 %v3439
      %v3647 = vpop.f32.mrb[0].mxu0
      %v3648 = vadd.f32 0.0, %v3647
      %v3649 = vpop.f32.mrb[0].mxu0
      %3650 = vmatprep.mubr.f32.mxu0 0.0
      %3651 = vmatmul.mubr.f32.gmra.mrb[0].mxu0 %v3442
      %v3652 = vpop.f32.mrb[0].mxu0
      %v3653 = vadd.f32 0.0, %v3652
      %v3654 = vpop.f32.mrb[0].mxu0
      %3655 = vmatprep.mubr.f32.mxu0 0.0
      %3656 = vmatmul.mubr.f32.gmra.mrb[0].mxu0 %v3445
      %v3657 = vpop.f32.mrb[0].mxu0
      %v3658 = vadd.f32 0.0, %v3657
      %v3659 = vpop.f32.mrb[0].mxu0
      %3660 = vmatprep.mubr.f32.mxu0 0.0
      %3661 = vmatmul.mubr.f32.gmra.mrb[0].mxu0 %v3448
      %v3662 = vpop.f32.mrb[0].mxu0
      %v3663 = vadd.f32 0.0, %v3662
      %v3664 = vpop.f32.mrb[0].mxu0
      %3665 = vmatprep.mubr.f32.mxu0 0.0
      %3666 = vmatmul.mubr.f32.gmra.mrb[0].mxu0 %v3451
      %v3667 = vpop.f32.mrb[0].mxu0
      %v3668 = vadd.f32 0.0, %v3667
      %v3669 = vpop.f32.mrb[0].mxu0
      %3670 = vmatprep.mubr.f32.mxu0 0.0
      %3671 = vmatmul.mubr.f32.gmra.mrb[0].mxu0 %v3454
      %v3672 = vpop.f32.mrb[0].mxu0
      %v3673 = vadd.f32 0.0, %v3672
      %v3674 = vpop.f32.mrb[0].mxu0
      %3675 = vmatprep.mubr.f32.mxu0 0.0
      %3676 = vmatmul.mubr.f32.gmra.mrb[0].mxu0 %v3457
      %v3677 = vpop.f32.mrb[0].mxu0
      %v3678 = vadd.f32 0.0, %v3677
      %v3679 = vpop.f32.mrb[0].mxu0
      %3680 = vmatprep.mubr.f32.mxu0 0.0
      %3681 = vmatmul.mubr.f32.gmra.mrb[0].mxu0 %v3460
      %v3682 = vpop.f32.mrb[0].mxu0
      %v3683 = vadd.f32 0.0, %v3682
      %v3684 = vpop.f32.mrb[0].mxu0
      %3685 = vmatprep.mubr.f32.mxu0 0.0
      %3686 = vmatmul.mubr.f32.gmra.mrb[0].mxu0 %v3463
      %v3687 = vpop.f32.mrb[0].mxu0
      %v3688 = vadd.f32 0.0, %v3687
      %v3689 = vpop.f32.mrb[0].mxu0
      %3690 = vmatprep.mubr.f32.mxu0 0.0
      %3691 = vmatmul.mubr.f32.gmra.mrb[0].mxu0 %v3466
      %v3692 = vpop.f32.mrb[0].mxu0
      %v3693 = vadd.f32 0.0, %v3692
      %v3694 = vpop.f32.mrb[0].mxu0
      %3695 = vdwg.mxu0
      %v3696 = vadd.f32 %v3306, %v3538
      %v3697 = vadd.f32 %v3307, %v3543
      %v3698 = vadd.f32 %v3308, %v3548
      %v3699 = vadd.f32 %v3309, %v3553
      %v3700 = vadd.f32 %v3310, %v3558
      %v3701 = vadd.f32 %v3311, %v3563
      %v3702 = vadd.f32 %v3312, %v3568
      %v3703 = vadd.f32 %v3313, %v3573
      %v3704 = vadd.f32 %v3314, %v3578
      %v3705 = vadd.f32 %v3315, %v3583
      %v3706 = vadd.f32 %v3316, %v3588
      %v3707 = vadd.f32 %v3317, %v3593
      %v3708 = vadd.f32 %v3318, %v3598
      %v3709 = vadd.f32 %v3319, %v3603
      %v3710 = vadd.f32 %v3320, %v3608
      %v3711 = vadd.f32 %v3321, %v3613
      %v3712 = vadd.f32 %v3322, %v3618
      %v3713 = vadd.f32 %v3323, %v3623
      %v3714 = vadd.f32 %v3324, %v3628
      %v3715 = vadd.f32 %v3325, %v3633
      %v3716 = vadd.f32 %v3326, %v3638
      %v3717 = vadd.f32 %v3327, %v3643
      %v3718 = vadd.f32 %v3328, %v3648
      %v3719 = vadd.f32 %v3329, %v3653
      %v3720 = vadd.f32 %v3330, %v3658
      %v3721 = vadd.f32 %v3331, %v3663
      %v3722 = vadd.f32 %v3332, %v3668
      %v3723 = vadd.f32 %v3333, %v3673
      %v3724 = vadd.f32 %v3334, %v3678
      %v3725 = vadd.f32 %v3335, %v3683
      %v3726 = vadd.f32 %v3336, %v3688
      %v3727 = vadd.f32 %v3337, %v3693
      %v3728 = vld [vmem:[%s2] sm:$0x1]
      %v3730 = vlaneseq
      %v3731 = vshrl.u32 %v3730, 7
      %v3732 = vsub.s32 0, %v3731
      %v3733 = vrot.slane %v3728, %v3732
      %v3735 = vmul.f32 %v3696, %v3733
      %v3736 = vmul.f32 %v3697, %v3733
      %v3737 = vmul.f32 %v3698, %v3733
      %v3738 = vmul.f32 %v3699, %v3733
      %v3739 = vmul.f32 %v3700, %v3733
      %v3740 = vmul.f32 %v3701, %v3733
      %v3741 = vmul.f32 %v3702, %v3733
      %v3742 = vmul.f32 %v3703, %v3733
      %v3743 = vmul.f32 %v3704, %v3733
      %v3744 = vmul.f32 %v3705, %v3733
      %v3745 = vmul.f32 %v3706, %v3733
      %v3746 = vmul.f32 %v3707, %v3733
      %v3747 = vmul.f32 %v3708, %v3733
      %v3748 = vmul.f32 %v3709, %v3733
      %v3749 = vmul.f32 %v3710, %v3733
      %v3750 = vmul.f32 %v3711, %v3733
      %v3751 = vmul.f32 %v3712, %v3733
      %v3752 = vmul.f32 %v3713, %v3733
      %v3753 = vmul.f32 %v3714, %v3733
      %v3754 = vmul.f32 %v3715, %v3733
      %v3755 = vmul.f32 %v3716, %v3733
      %v3756 = vmul.f32 %v3717, %v3733
      %v3757 = vmul.f32 %v3718, %v3733
      %v3758 = vmul.f32 %v3719, %v3733
      %v3759 = vmul.f32 %v3720, %v3733
      %v3760 = vmul.f32 %v3721, %v3733
      %v3761 = vmul.f32 %v3722, %v3733
      %v3762 = vmul.f32 %v3723, %v3733
      %v3763 = vmul.f32 %v3724, %v3733
      %v3764 = vmul.f32 %v3725, %v3733
      %v3765 = vmul.f32 %v3726, %v3733
      %v3766 = vmul.f32 %v3727, %v3733
      %v3767 = vld [vmem:[%s3] sm:$0x1]
      %v3769 = vlaneseq
      %v3770 = vshrl.u32 %v3769, 7
      %v3771 = vsub.s32 0, %v3770
      %v3772 = vrot.slane %v3767, %v3771
      %v3774 = vadd.f32 %v3735, %v3772
      %v3775 = vadd.f32 %v3736, %v3772
      %v3776 = vadd.f32 %v3737, %v3772
      %v3777 = vadd.f32 %v3738, %v3772
      %v3778 = vadd.f32 %v3739, %v3772
      %v3779 = vadd.f32 %v3740, %v3772
      %v3780 = vadd.f32 %v3741, %v3772
      %v3781 = vadd.f32 %v3742, %v3772
      %v3782 = vadd.f32 %v3743, %v3772
      %v3783 = vadd.f32 %v3744, %v3772
      %v3784 = vadd.f32 %v3745, %v3772
      %v3785 = vadd.f32 %v3746, %v3772
      %v3786 = vadd.f32 %v3747, %v3772
      %v3787 = vadd.f32 %v3748, %v3772
      %v3788 = vadd.f32 %v3749, %v3772
      %v3789 = vadd.f32 %v3750, %v3772
      %v3790 = vadd.f32 %v3751, %v3772
      %v3791 = vadd.f32 %v3752, %v3772
      %v3792 = vadd.f32 %v3753, %v3772
      %v3793 = vadd.f32 %v3754, %v3772
      %v3794 = vadd.f32 %v3755, %v3772
      %v3795 = vadd.f32 %v3756, %v3772
      %v3796 = vadd.f32 %v3757, %v3772
      %v3797 = vadd.f32 %v3758, %v3772
      %v3798 = vadd.f32 %v3759, %v3772
      %v3799 = vadd.f32 %v3760, %v3772
      %v3800 = vadd.f32 %v3761, %v3772
      %v3801 = vadd.f32 %v3762, %v3772
      %v3802 = vadd.f32 %v3763, %v3772
      %v3803 = vadd.f32 %v3764, %v3772
      %v3804 = vadd.f32 %v3765, %v3772
      %v3805 = vadd.f32 %v3766, %v3772
      %vm3806 = vcmp.gt.f32.partialorder %v3774, 0.0
      %vm3807 = vcmp.gt.f32.partialorder %v3775, 0.0
      %vm3808 = vcmp.gt.f32.partialorder %v3776, 0.0
      %vm3809 = vcmp.gt.f32.partialorder %v3777, 0.0
      %vm3810 = vcmp.gt.f32.partialorder %v3778, 0.0
      %vm3811 = vcmp.gt.f32.partialorder %v3779, 0.0
      %vm3812 = vcmp.gt.f32.partialorder %v3780, 0.0
      %vm3813 = vcmp.gt.f32.partialorder %v3781, 0.0
      %vm3814 = vcmp.gt.f32.partialorder %v3782, 0.0
      %vm3815 = vcmp.gt.f32.partialorder %v3783, 0.0
      %vm3816 = vcmp.gt.f32.partialorder %v3784, 0.0
      %vm3817 = vcmp.gt.f32.partialorder %v3785, 0.0
      %vm3818 = vcmp.gt.f32.partialorder %v3786, 0.0
      %vm3819 = vcmp.gt.f32.partialorder %v3787, 0.0
      %vm3820 = vcmp.gt.f32.partialorder %v3788, 0.0
      %vm3821 = vcmp.gt.f32.partialorder %v3789, 0.0
      %vm3822 = vcmp.gt.f32.partialorder %v3790, 0.0
      %vm3823 = vcmp.gt.f32.partialorder %v3791, 0.0
      %vm3824 = vcmp.gt.f32.partialorder %v3792, 0.0
      %vm3825 = vcmp.gt.f32.partialorder %v3793, 0.0
      %vm3826 = vcmp.gt.f32.partialorder %v3794, 0.0
      %vm3827 = vcmp.gt.f32.partialorder %v3795, 0.0
      %vm3828 = vcmp.gt.f32.partialorder %v3796, 0.0
      %vm3829 = vcmp.gt.f32.partialorder %v3797, 0.0
      %vm3830 = vcmp.gt.f32.partialorder %v3798, 0.0
      %vm3831 = vcmp.gt.f32.partialorder %v3799, 0.0
      %vm3832 = vcmp.gt.f32.partialorder %v3800, 0.0
      %vm3833 = vcmp.gt.f32.partialorder %v3801, 0.0
      %vm3834 = vcmp.gt.f32.partialorder %v3802, 0.0
      %vm3835 = vcmp.gt.f32.partialorder %v3803, 0.0
      %vm3836 = vcmp.gt.f32.partialorder %v3804, 0.0
      %vm3837 = vcmp.gt.f32.partialorder %v3805, 0.0
      %v3838 = vmin.f32 %v3774, 0.0
      %v3839 = vmin.f32 %v3775, 0.0
      %v3840 = vmin.f32 %v3776, 0.0
      %v3841 = vmin.f32 %v3777, 0.0
      %v3842 = vmin.f32 %v3778, 0.0
      %v3843 = vmin.f32 %v3779, 0.0
      %v3844 = vmin.f32 %v3780, 0.0
      %v3845 = vmin.f32 %v3781, 0.0
      %v3846 = vmin.f32 %v3782, 0.0
      %v3847 = vmin.f32 %v3783, 0.0
      %v3848 = vmin.f32 %v3784, 0.0
      %v3849 = vmin.f32 %v3785, 0.0
      %v3850 = vmin.f32 %v3786, 0.0
      %v3851 = vmin.f32 %v3787, 0.0
      %v3852 = vmin.f32 %v3788, 0.0
      %v3853 = vmin.f32 %v3789, 0.0
      %v3854 = vmin.f32 %v3790, 0.0
      %v3855 = vmin.f32 %v3791, 0.0
      %v3856 = vmin.f32 %v3792, 0.0
      %v3857 = vmin.f32 %v3793, 0.0
      %v3858 = vmin.f32 %v3794, 0.0
      %v3859 = vmin.f32 %v3795, 0.0
      %v3860 = vmin.f32 %v3796, 0.0
      %v3861 = vmin.f32 %v3797, 0.0
      %v3862 = vmin.f32 %v3798, 0.0
      %v3863 = vmin.f32 %v3799, 0.0
      %v3864 = vmin.f32 %v3800, 0.0
      %v3865 = vmin.f32 %v3801, 0.0
      %v3866 = vmin.f32 %v3802, 0.0
      %v3867 = vmin.f32 %v3803, 0.0
      %v3868 = vmin.f32 %v3804, 0.0
      %v3869 = vmin.f32 %v3805, 0.0
      %v3870 = vmul.f32 %v3838, 1.442695
      %v3871 = vpow.pop %v3870
      %v3872 = vmul.f32 %v3839, 1.442695
      %v3873 = vpow.pop %v3872
      %v3874 = vmul.f32 %v3840, 1.442695
      %v3875 = vpow.pop %v3874
      %v3876 = vmul.f32 %v3841, 1.442695
      %v3877 = vpow.pop %v3876
      %v3878 = vmul.f32 %v3842, 1.442695
      %v3879 = vpow.pop %v3878
      %v3880 = vmul.f32 %v3843, 1.442695
      %v3881 = vpow.pop %v3880
      %v3882 = vmul.f32 %v3844, 1.442695
      %v3883 = vpow.pop %v3882
      %v3884 = vmul.f32 %v3845, 1.442695
      %v3885 = vpow.pop %v3884
      %v3886 = vmul.f32 %v3846, 1.442695
      %v3887 = vpow.pop %v3886
      %v3888 = vmul.f32 %v3847, 1.442695
      %v3889 = vpow.pop %v3888
      %v3890 = vmul.f32 %v3848, 1.442695
      %v3891 = vpow.pop %v3890
      %v3892 = vmul.f32 %v3849, 1.442695
      %v3893 = vpow.pop %v3892
      %v3894 = vmul.f32 %v3850, 1.442695
      %v3895 = vpow.pop %v3894
      %v3896 = vmul.f32 %v3851, 1.442695
      %v3897 = vpow.pop %v3896
      %v3898 = vmul.f32 %v3852, 1.442695
      %v3899 = vpow.pop %v3898
      %v3900 = vmul.f32 %v3853, 1.442695
      %v3901 = vpow.pop %v3900
      %v3902 = vmul.f32 %v3854, 1.442695
      %v3903 = vpow.pop %v3902
      %v3904 = vmul.f32 %v3855, 1.442695
      %v3905 = vpow.pop %v3904
      %v3906 = vmul.f32 %v3856, 1.442695
      %v3907 = vpow.pop %v3906
      %v3908 = vmul.f32 %v3857, 1.442695
      %v3909 = vpow.pop %v3908
      %v3910 = vmul.f32 %v3858, 1.442695
      %v3911 = vpow.pop %v3910
      %v3912 = vmul.f32 %v3859, 1.442695
      %v3913 = vpow.pop %v3912
      %v3914 = vmul.f32 %v3860, 1.442695
      %v3915 = vpow.pop %v3914
      %v3916 = vmul.f32 %v3861, 1.442695
      %v3917 = vpow.pop %v3916
      %v3918 = vmul.f32 %v3862, 1.442695
      %v3919 = vpow.pop %v3918
      %v3920 = vmul.f32 %v3863, 1.442695
      %v3921 = vpow.pop %v3920
      %v3922 = vmul.f32 %v3864, 1.442695
      %v3923 = vpow.pop %v3922
      %v3924 = vmul.f32 %v3865, 1.442695
      %v3925 = vpow.pop %v3924
      %v3926 = vmul.f32 %v3866, 1.442695
      %v3927 = vpow.pop %v3926
      %v3928 = vmul.f32 %v3867, 1.442695
      %v3929 = vpow.pop %v3928
      %v3930 = vmul.f32 %v3868, 1.442695
      %v3931 = vpow.pop %v3930
      %v3932 = vmul.f32 %v3869, 1.442695
      %v3933 = vpow.pop %v3932
      %v3934 = vsub.f32 %v3871, 1.0
      %v3935 = vsub.f32 %v3873, 1.0
      %v3936 = vsub.f32 %v3875, 1.0
      %v3937 = vsub.f32 %v3877, 1.0
      %v3938 = vsub.f32 %v3879, 1.0
      %v3939 = vsub.f32 %v3881, 1.0
      %v3940 = vsub.f32 %v3883, 1.0
      %v3941 = vsub.f32 %v3885, 1.0
      %v3942 = vsub.f32 %v3887, 1.0
      %v3943 = vsub.f32 %v3889, 1.0
      %v3944 = vsub.f32 %v3891, 1.0
      %v3945 = vsub.f32 %v3893, 1.0
      %v3946 = vsub.f32 %v3895, 1.0
      %v3947 = vsub.f32 %v3897, 1.0
      %v3948 = vsub.f32 %v3899, 1.0
      %v3949 = vsub.f32 %v3901, 1.0
      %v3950 = vsub.f32 %v3903, 1.0
      %v3951 = vsub.f32 %v3905, 1.0
      %v3952 = vsub.f32 %v3907, 1.0
      %v3953 = vsub.f32 %v3909, 1.0
      %v3954 = vsub.f32 %v3911, 1.0
      %v3955 = vsub.f32 %v3913, 1.0
      %v3956 = vsub.f32 %v3915, 1.0
      %v3957 = vsub.f32 %v3917, 1.0
      %v3958 = vsub.f32 %v3919, 1.0
      %v3959 = vsub.f32 %v3921, 1.0
      %v3960 = vsub.f32 %v3923, 1.0
      %v3961 = vsub.f32 %v3925, 1.0
      %v3962 = vsub.f32 %v3927, 1.0
      %v3963 = vsub.f32 %v3929, 1.0
      %v3964 = vsub.f32 %v3931, 1.0
      %v3965 = vsub.f32 %v3933, 1.0
      %v3966 = vsel %vm3806, %v3774, %v3934
      %v3967 = vsel %vm3807, %v3775, %v3935
      %v3968 = vsel %vm3808, %v3776, %v3936
      %v3969 = vsel %vm3809, %v3777, %v3937
      %v3970 = vsel %vm3810, %v3778, %v3938
      %v3971 = vsel %vm3811, %v3779, %v3939
      %v3972 = vsel %vm3812, %v3780, %v3940
      %v3973 = vsel %vm3813, %v3781, %v3941
      %v3974 = vsel %vm3814, %v3782, %v3942
      %v3975 = vsel %vm3815, %v3783, %v3943
      %v3976 = vsel %vm3816, %v3784, %v3944
      %v3977 = vsel %vm3817, %v3785, %v3945
      %v3978 = vsel %vm3818, %v3786, %v3946
      %v3979 = vsel %vm3819, %v3787, %v3947
      %v3980 = vsel %vm3820, %v3788, %v3948
      %v3981 = vsel %vm3821, %v3789, %v3949
      %v3982 = vsel %vm3822, %v3790, %v3950
      %v3983 = vsel %vm3823, %v3791, %v3951
      %v3984 = vsel %vm3824, %v3792, %v3952
      %v3985 = vsel %vm3825, %v3793, %v3953
      %v3986 = vsel %vm3826, %v3794, %v3954
      %v3987 = vsel %vm3827, %v3795, %v3955
      %v3988 = vsel %vm3828, %v3796, %v3956
      %v3989 = vsel %vm3829, %v3797, %v3957
      %v3990 = vsel %vm3830, %v3798, %v3958
      %v3991 = vsel %vm3831, %v3799, %v3959
      %v3992 = vsel %vm3832, %v3800, %v3960
      %v3993 = vsel %vm3833, %v3801, %v3961
      %v3994 = vsel %vm3834, %v3802, %v3962
      %v3995 = vsel %vm3835, %v3803, %v3963
      %v3996 = vsel %vm3836, %v3804, %v3964
      %v3997 = vsel %vm3837, %v3805, %v3965
      %3998 = vst.msk [vmem:[#allocation2] sm:$0xff] %vm346, 0.0
      %3999 = vst.msk [vmem:[#allocation2 + $0x8] sm:$0xff] %vm346, 0.0
      %vm4000 = vcmask 25600
      %4001 = vst.msk [vmem:[#allocation2 + $0x10] sm:$0x3] %vm4000, 0.0
      %4002 = vst.msk [vmem:[#allocation2 + $0x18] sm:$0xff] %vm346, 0.0
      %4003 = vst.msk [vmem:[#allocation2 + $0x20] sm:$0xff] %vm346, 0.0
      %4004 = vst.msk [vmem:[#allocation2 + $0x28] sm:$0x3] %vm4000, 0.0
      %4005 = vst.msk [vmem:[#allocation2 + $0x30] sm:$0xff] %vm346, 0.0
      %4006 = vst.msk [vmem:[#allocation2 + $0x38] sm:$0xff] %vm346, 0.0
      %4007 = vst.msk [vmem:[#allocation2 + $0x40] sm:$0x3] %vm4000, 0.0
      %4008 = vst.msk [vmem:[#allocation2 + $0x48] sm:$0xff] %vm346, 0.0
      %4009 = vst.msk [vmem:[#allocation2 + $0x50] sm:$0xff] %vm346, 0.0
      %4010 = vst.msk [vmem:[#allocation2 + $0x58] sm:$0x3] %vm4000, 0.0
      %4011 = vst.msk [vmem:[#allocation2 + $0x60] sm:$0xff] %vm346, 0.0
      %4012 = vst.msk [vmem:[#allocation2 + $0x68] sm:$0xff] %vm346, 0.0
      %4013 = vst.msk [vmem:[#allocation2 + $0x70] sm:$0x3] %vm4000, 0.0
      %4014 = vst.msk [vmem:[#allocation2 + $0x78] sm:$0xff] %vm346, 0.0
      %4015 = vst.msk [vmem:[#allocation2 + $0x80] sm:$0xff] %vm346, 0.0
      %4016 = vst.msk [vmem:[#allocation2 + $0x88] sm:$0x3] %vm4000, 0.0
      %4017 = vst.msk [vmem:[#allocation2 + $0x90] sm:$0xff] %vm346, 0.0
      %4018 = vst.msk [vmem:[#allocation2 + $0x98] sm:$0xff] %vm346, 0.0
      %4019 = vst.msk [vmem:[#allocation2 + $0xa0] sm:$0x3] %vm4000, 0.0
      %4020 = vst.msk [vmem:[#allocation2 + $0xa8] sm:$0xff] %vm346, 0.0
      %4021 = vst.msk [vmem:[#allocation2 + $0xb0] sm:$0xff] %vm346, 0.0
      %4022 = vst.msk [vmem:[#allocation2 + $0xb8] sm:$0x3] %vm4000, 0.0
      %4023 = vst.msk [vmem:[#allocation2 + $0xc0] sm:$0xff] %vm346, 0.0
      %4024 = vst.msk [vmem:[#allocation2 + $0xc8] sm:$0xff] %vm346, 0.0
      %4025 = vst.msk [vmem:[#allocation2 + $0xd0] sm:$0x3] %vm4000, 0.0
      %4026 = vst.msk [vmem:[#allocation2 + $0xd8] sm:$0xff] %vm346, 0.0
      %4027 = vst.msk [vmem:[#allocation2 + $0xe0] sm:$0xff] %vm346, 0.0
      %4028 = vst.msk [vmem:[#allocation2 + $0xe8] sm:$0x3] %vm4000, 0.0
      %4029 = vst.msk [vmem:[#allocation2 + $0xf0] sm:$0xff] %vm346, 0.0
      %4030 = vst.msk [vmem:[#allocation2 + $0xf8] sm:$0xff] %vm346, 0.0
      %4031 = vst.msk [vmem:[#allocation2 + $0x100] sm:$0x3] %vm4000, 0.0
      %4032 = vst.msk [vmem:[#allocation2 + $0x108] sm:$0xff] %vm346, 0.0
      %4033 = vst.msk [vmem:[#allocation2 + $0x110] sm:$0xff] %vm346, 0.0
      %4034 = vst.msk [vmem:[#allocation2 + $0x118] sm:$0x3] %vm4000, 0.0
      %4035 = vst.msk [vmem:[#allocation2 + $0x120] sm:$0xff] %vm346, 0.0
      %4036 = vst.msk [vmem:[#allocation2 + $0x128] sm:$0xff] %vm346, 0.0
      %4037 = vst.msk [vmem:[#allocation2 + $0x130] sm:$0x3] %vm4000, 0.0
      %4038 = vst.msk [vmem:[#allocation2 + $0x138] sm:$0xff] %vm346, 0.0
      %4039 = vst.msk [vmem:[#allocation2 + $0x140] sm:$0xff] %vm346, 0.0
      %4040 = vst.msk [vmem:[#allocation2 + $0x148] sm:$0x3] %vm4000, 0.0
      %4041 = vst.msk [vmem:[#allocation2 + $0x150] sm:$0xff] %vm346, 0.0
      %4042 = vst.msk [vmem:[#allocation2 + $0x158] sm:$0xff] %vm346, 0.0
      %4043 = vst.msk [vmem:[#allocation2 + $0x160] sm:$0x3] %vm4000, 0.0
      %4044 = vst.msk [vmem:[#allocation2 + $0x168] sm:$0xff] %vm346, 0.0
      %4045 = vst.msk [vmem:[#allocation2 + $0x170] sm:$0xff] %vm346, 0.0
      %4046 = vst.msk [vmem:[#allocation2 + $0x178] sm:$0x3] %vm4000, 0.0
      %4047 = vst.msk [vmem:[#allocation2 + $0x180] sm:$0xff] %vm346, 0.0
      %4048 = vst.msk [vmem:[#allocation2 + $0x188] sm:$0xff] %vm346, 0.0
      %4049 = vst.msk [vmem:[#allocation2 + $0x190] sm:$0x3] %vm4000, 0.0
      %4050 = vst.msk [vmem:[#allocation2 + $0x198] sm:$0xff] %vm346, 0.0
      %4051 = vst.msk [vmem:[#allocation2 + $0x1a0] sm:$0xff] %vm346, 0.0
      %4052 = vst.msk [vmem:[#allocation2 + $0x1a8] sm:$0x3] %vm4000, 0.0
      %s4053 = scalar_lea.vmem [#allocation2], 24
      %4054 = vst.msk [vmem:[%s4053 + $0x1] sm:$0xff] %vm346, %v3966
      %4055 = vst.msk [vmem:[%s4053 + $0x9] sm:$0xff] %vm346, %v3967
      %4056 = vst.msk [vmem:[%s4053 + $0x19] sm:$0xff] %vm346, %v3968
      %4057 = vst.msk [vmem:[%s4053 + $0x21] sm:$0xff] %vm346, %v3969
      %4058 = vst.msk [vmem:[%s4053 + $0x31] sm:$0xff] %vm346, %v3970
      %4059 = vst.msk [vmem:[%s4053 + $0x39] sm:$0xff] %vm346, %v3971
      %4060 = vst.msk [vmem:[%s4053 + $0x49] sm:$0xff] %vm346, %v3972
      %4061 = vst.msk [vmem:[%s4053 + $0x51] sm:$0xff] %vm346, %v3973
      %4062 = vst.msk [vmem:[%s4053 + $0x61] sm:$0xff] %vm346, %v3974
      %4063 = vst.msk [vmem:[%s4053 + $0x69] sm:$0xff] %vm346, %v3975
      %4064 = vst.msk [vmem:[%s4053 + $0x79] sm:$0xff] %vm346, %v3976
      %4065 = vst.msk [vmem:[%s4053 + $0x81] sm:$0xff] %vm346, %v3977
      %4066 = vst.msk [vmem:[%s4053 + $0x91] sm:$0xff] %vm346, %v3978
      %4067 = vst.msk [vmem:[%s4053 + $0x99] sm:$0xff] %vm346, %v3979
      %4068 = vst.msk [vmem:[%s4053 + $0xa9] sm:$0xff] %vm346, %v3980
      %4069 = vst.msk [vmem:[%s4053 + $0xb1] sm:$0xff] %vm346, %v3981
      %4070 = vst.msk [vmem:[%s4053 + $0xc1] sm:$0xff] %vm346, %v3982
      %4071 = vst.msk [vmem:[%s4053 + $0xc9] sm:$0xff] %vm346, %v3983
      %4072 = vst.msk [vmem:[%s4053 + $0xd9] sm:$0xff] %vm346, %v3984
      %4073 = vst.msk [vmem:[%s4053 + $0xe1] sm:$0xff] %vm346, %v3985
      %4074 = vst.msk [vmem:[%s4053 + $0xf1] sm:$0xff] %vm346, %v3986
      %4075 = vst.msk [vmem:[%s4053 + $0xf9] sm:$0xff] %vm346, %v3987
      %4076 = vst.msk [vmem:[%s4053 + $0x109] sm:$0xff] %vm346, %v3988
      %4077 = vst.msk [vmem:[%s4053 + $0x111] sm:$0xff] %vm346, %v3989
      %4078 = vst.msk [vmem:[%s4053 + $0x121] sm:$0xff] %vm346, %v3990
      %4079 = vst.msk [vmem:[%s4053 + $0x129] sm:$0xff] %vm346, %v3991
      %4080 = vst.msk [vmem:[%s4053 + $0x139] sm:$0xff] %vm346, %v3992
      %4081 = vst.msk [vmem:[%s4053 + $0x141] sm:$0xff] %vm346, %v3993
      %4082 = vst.msk [vmem:[%s4053 + $0x151] sm:$0xff] %vm346, %v3994
      %4083 = vst.msk [vmem:[%s4053 + $0x159] sm:$0xff] %vm346, %v3995
      %4084 = vst.msk [vmem:[%s4053 + $0x169] sm:$0xff] %vm346, %v3996
      %4085 = vst.msk [vmem:[%s4053 + $0x171] sm:$0xff] %vm346, %v3997
      %v4086 = vld [vmem:[#allocation2] sm:$0xff]
      %v4087 = vld [vmem:[#allocation2 + $0x8] sm:$0xff]
      %v4088 = vld [vmem:[#allocation2 + $0x18] sm:$0xff]
      %v4089 = vld [vmem:[#allocation2 + $0x20] sm:$0xff]
      %v4090 = vld [vmem:[#allocation2 + $0x30] sm:$0xff]
      %v4091 = vld [vmem:[#allocation2 + $0x38] sm:$0xff]
      %v4092 = vld [vmem:[#allocation2 + $0x48] sm:$0xff]
      %v4093 = vld [vmem:[#allocation2 + $0x50] sm:$0xff]
      %v4094 = vld [vmem:[#allocation2 + $0x60] sm:$0xff]
      %v4095 = vld [vmem:[#allocation2 + $0x68] sm:$0xff]
      %v4096 = vld [vmem:[#allocation2 + $0x78] sm:$0xff]
      %v4097 = vld [vmem:[#allocation2 + $0x80] sm:$0xff]
      %v4098 = vld [vmem:[#allocation2 + $0x90] sm:$0xff]
      %v4099 = vld [vmem:[#allocation2 + $0x98] sm:$0xff]
      %v4100 = vld [vmem:[#allocation2 + $0xa8] sm:$0xff]
      %v4101 = vld [vmem:[#allocation2 + $0xb0] sm:$0xff]
      %v4102 = vld [vmem:[#allocation2 + $0xc0] sm:$0xff]
      %v4103 = vld [vmem:[#allocation2 + $0xc8] sm:$0xff]
      %v4104 = vld [vmem:[#allocation2 + $0xd8] sm:$0xff]
      %v4105 = vld [vmem:[#allocation2 + $0xe0] sm:$0xff]
      %v4106 = vld [vmem:[#allocation2 + $0xf0] sm:$0xff]
      %v4107 = vld [vmem:[#allocation2 + $0xf8] sm:$0xff]
      %v4108 = vld [vmem:[#allocation2 + $0x108] sm:$0xff]
      %v4109 = vld [vmem:[#allocation2 + $0x110] sm:$0xff]
      %v4110 = vld [vmem:[#allocation2 + $0x120] sm:$0xff]
      %v4111 = vld [vmem:[#allocation2 + $0x128] sm:$0xff]
      %v4112 = vld [vmem:[#allocation2 + $0x138] sm:$0xff]
      %v4113 = vld [vmem:[#allocation2 + $0x140] sm:$0xff]
      %v4114 = vld [vmem:[#allocation2 + $0x150] sm:$0xff]
      %v4115 = vld [vmem:[#allocation2 + $0x158] sm:$0xff]
      %v4116 = vld [vmem:[#allocation2 + $0x168] sm:$0xff]
      %v4117 = vld [vmem:[#allocation2 + $0x170] sm:$0xff]
      %v4118 = vld [vmem:[%s4] sm:$0xf]
      %v4119 = vld [vmem:[#allocation2 + $0x1] sm:$0xff]
      %v4120 = vld [vmem:[#allocation2 + $0x9] sm:$0xff]
      %v4121 = vld [vmem:[#allocation2 + $0x19] sm:$0xff]
      %v4122 = vld [vmem:[#allocation2 + $0x21] sm:$0xff]
      %v4123 = vld [vmem:[#allocation2 + $0x31] sm:$0xff]
      %v4124 = vld [vmem:[#allocation2 + $0x39] sm:$0xff]
      %v4125 = vld [vmem:[#allocation2 + $0x49] sm:$0xff]
      %v4126 = vld [vmem:[#allocation2 + $0x51] sm:$0xff]
      %v4127 = vld [vmem:[#allocation2 + $0x61] sm:$0xff]
      %v4128 = vld [vmem:[#allocation2 + $0x69] sm:$0xff]
      %v4129 = vld [vmem:[#allocation2 + $0x79] sm:$0xff]
      %v4130 = vld [vmem:[#allocation2 + $0x81] sm:$0xff]
      %v4131 = vld [vmem:[#allocation2 + $0x91] sm:$0xff]
      %v4132 = vld [vmem:[#allocation2 + $0x99] sm:$0xff]
      %v4133 = vld [vmem:[#allocation2 + $0xa9] sm:$0xff]
      %v4134 = vld [vmem:[#allocation2 + $0xb1] sm:$0xff]
      %v4135 = vld [vmem:[#allocation2 + $0xc1] sm:$0xff]
      %v4136 = vld [vmem:[#allocation2 + $0xc9] sm:$0xff]
      %v4137 = vld [vmem:[#allocation2 + $0xd9] sm:$0xff]
      %v4138 = vld [vmem:[#allocation2 + $0xe1] sm:$0xff]
      %v4139 = vld [vmem:[#allocation2 + $0xf1] sm:$0xff]
      %v4140 = vld [vmem:[#allocation2 + $0xf9] sm:$0xff]
      %v4141 = vld [vmem:[#allocation2 + $0x109] sm:$0xff]
      %v4142 = vld [vmem:[#allocation2 + $0x111] sm:$0xff]
      %v4143 = vld [vmem:[#allocation2 + $0x121] sm:$0xff]
      %v4144 = vld [vmem:[#allocation2 + $0x129] sm:$0xff]
      %v4145 = vld [vmem:[#allocation2 + $0x139] sm:$0xff]
      %v4146 = vld [vmem:[#allocation2 + $0x141] sm:$0xff]
      %v4147 = vld [vmem:[#allocation2 + $0x151] sm:$0xff]
      %v4148 = vld [vmem:[#allocation2 + $0x159] sm:$0xff]
      %v4149 = vld [vmem:[#allocation2 + $0x169] sm:$0xff]
      %v4150 = vld [vmem:[#allocation2 + $0x171] sm:$0xff]
      %s4151 = scalar_lea.vmem %s4, 4
      %v4152 = vld [vmem:[%s4151] sm:$0xf]
      %v4154 = vsel %vm346, %v4119, 0
      %v4157 = vsel %vm346, %v4120, 0
      %v4160 = vsel %vm346, %v4121, 0
      %v4163 = vsel %vm346, %v4122, 0
      %v4166 = vsel %vm346, %v4123, 0
      %v4169 = vsel %vm346, %v4124, 0
      %v4172 = vsel %vm346, %v4125, 0
      %v4175 = vsel %vm346, %v4126, 0
      %v4178 = vsel %vm346, %v4127, 0
      %v4181 = vsel %vm346, %v4128, 0
      %v4184 = vsel %vm346, %v4129, 0
      %v4187 = vsel %vm346, %v4130, 0
      %v4190 = vsel %vm346, %v4131, 0
      %v4193 = vsel %vm346, %v4132, 0
      %v4196 = vsel %vm346, %v4133, 0
      %v4199 = vsel %vm346, %v4134, 0
      %v4202 = vsel %vm346, %v4135, 0
      %v4205 = vsel %vm346, %v4136, 0
      %v4208 = vsel %vm346, %v4137, 0
      %v4211 = vsel %vm346, %v4138, 0
      %v4214 = vsel %vm346, %v4139, 0
      %v4217 = vsel %vm346, %v4140, 0
      %v4220 = vsel %vm346, %v4141, 0
      %v4223 = vsel %vm346, %v4142, 0
      %v4226 = vsel %vm346, %v4143, 0
      %v4229 = vsel %vm346, %v4144, 0
      %v4232 = vsel %vm346, %v4145, 0
      %v4235 = vsel %vm346, %v4146, 0
      %v4238 = vsel %vm346, %v4147, 0
      %v4241 = vsel %vm346, %v4148, 0
      %v4244 = vsel %vm346, %v4149, 0
      %v4247 = vsel %vm346, %v4150, 0
      %v4250 = vsel %vm443, %v4152, 0
      %4252 = vmatprep.subr.mxu0 0.0
      %4253 = vmatpush1.msra.mxu0 %v4250
      %4254 = vmatprep.subr.mxu0 0.0
      %4255 = vmatpush1.msra.mxu0 0.0
      %4256 = vmatprep.subr.mxu0 0.0
      %4257 = vmatpush1.msra.mxu0 0.0
      %4258 = vmatprep.subr.mxu0 0.0
      %4259 = vmatpush1.msra.mxu0 0.0
      %4260 = vmatprep.subr.mxu0 0.0
      %4261 = vmatpush1.msra.mxu0 0.0
      %4262 = vmatprep.subr.mxu0 0.0
      %4263 = vmatpush1.msra.mxu0 0.0
      %4264 = vmatprep.subr.mxu0 0.0
      %4265 = vmatpush1.msra.mxu0 0.0
      %4266 = vmatprep.subr.mxu0 0.0
      %4267 = vmatpush1.msra.mxu0 0.0
      %4268 = vmatprep.subr.mxu0 0.0
      %4269 = vmatpush1.msra.mxu0 0.0
      %4270 = vmatprep.subr.mxu0 0.0
      %4271 = vmatpush1.msra.mxu0 0.0
      %4272 = vmatprep.subr.mxu0 0.0
      %4273 = vmatpush1.msra.mxu0 0.0
      %4274 = vmatprep.subr.mxu0 0.0
      %4275 = vmatpush1.msra.mxu0 0.0
      %4276 = vmatprep.subr.mxu0 0.0
      %4277 = vmatpush1.msra.mxu0 0.0
      %4278 = vmatprep.subr.mxu0 0.0
      %4279 = vmatpush1.msra.mxu0 0.0
      %4280 = vmatprep.subr.mxu0 0.0
      %4281 = vmatpush1.msra.mxu0 0.0
      %4282 = vmatprep.subr.mxu0 0.0
      %4283 = vmatpush1.msra.mxu0 0.0
      %4284 = vmatprep.subr.mxu0 0.0
      %4285 = vmatpush1.msra.mxu0 0.0
      %4286 = vmatprep.subr.mxu0 0.0
      %4287 = vmatpush1.msra.mxu0 0.0
      %4288 = vmatprep.subr.mxu0 0.0
      %4289 = vmatpush1.msra.mxu0 0.0
      %4290 = vmatprep.subr.mxu0 0.0
      %4291 = vmatpush1.msra.mxu0 0.0
      %4292 = vmatprep.subr.mxu0 0.0
      %4293 = vmatpush1.msra.mxu0 0.0
      %4294 = vmatprep.subr.mxu0 0.0
      %4295 = vmatpush1.msra.mxu0 0.0
      %4296 = vmatprep.subr.mxu0 0.0
      %4297 = vmatpush1.msra.mxu0 0.0
      %4298 = vmatprep.subr.mxu0 0.0
      %4299 = vmatpush1.msra.mxu0 0.0
      %4300 = vmatprep.subr.mxu0 0.0
      %4301 = vmatpush1.msra.mxu0 0.0
      %4302 = vmatprep.subr.mxu0 0.0
      %4303 = vmatpush1.msra.mxu0 0.0
      %4304 = vmatprep.subr.mxu0 0.0
      %4305 = vmatpush1.msra.mxu0 0.0
      %4306 = vmatprep.subr.mxu0 0.0
      %4307 = vmatpush1.msra.mxu0 0.0
      %4308 = vmatprep.subr.mxu0 0.0
      %4309 = vmatpush1.msra.mxu0 0.0
      %4310 = vmatprep.subr.mxu0 0.0
      %4311 = vmatpush1.msra.mxu0 0.0
      %4312 = vmatprep.subr.mxu0 0.0
      %4313 = vmatpush1.msra.mxu0 0.0
      %4314 = vmatprep.subr.mxu0 0.0
      %4315 = vmatpush1.msra.mxu0 0.0
      %4316 = vmatprep.mubr.f32.mxu0 0.0
      %4317 = vmatmul.mubr.f32.gmra.mrb[0].mxu0 %v4154
      %v4318 = vpop.f32.mrb[0].mxu0
      %v4319 = vadd.f32 0.0, %v4318
      %v4320 = vpop.f32.mrb[0].mxu0
      %4321 = vmatprep.mubr.f32.mxu0 0.0
      %4322 = vmatmul.mubr.f32.gmra.mrb[0].mxu0 %v4157
      %v4323 = vpop.f32.mrb[0].mxu0
      %v4324 = vadd.f32 0.0, %v4323
      %v4325 = vpop.f32.mrb[0].mxu0
      %4326 = vmatprep.mubr.f32.mxu0 0.0
      %4327 = vmatmul.mubr.f32.gmra.mrb[0].mxu0 %v4160
      %v4328 = vpop.f32.mrb[0].mxu0
      %v4329 = vadd.f32 0.0, %v4328
      %v4330 = vpop.f32.mrb[0].mxu0
      %4331 = vmatprep.mubr.f32.mxu0 0.0
      %4332 = vmatmul.mubr.f32.gmra.mrb[0].mxu0 %v4163
      %v4333 = vpop.f32.mrb[0].mxu0
      %v4334 = vadd.f32 0.0, %v4333
      %v4335 = vpop.f32.mrb[0].mxu0
      %4336 = vmatprep.mubr.f32.mxu0 0.0
      %4337 = vmatmul.mubr.f32.gmra.mrb[0].mxu0 %v4166
      %v4338 = vpop.f32.mrb[0].mxu0
      %v4339 = vadd.f32 0.0, %v4338
      %v4340 = vpop.f32.mrb[0].mxu0
      %4341 = vmatprep.mubr.f32.mxu0 0.0
      %4342 = vmatmul.mubr.f32.gmra.mrb[0].mxu0 %v4169
      %v4343 = vpop.f32.mrb[0].mxu0
      %v4344 = vadd.f32 0.0, %v4343
      %v4345 = vpop.f32.mrb[0].mxu0
      %4346 = vmatprep.mubr.f32.mxu0 0.0
      %4347 = vmatmul.mubr.f32.gmra.mrb[0].mxu0 %v4172
      %v4348 = vpop.f32.mrb[0].mxu0
      %v4349 = vadd.f32 0.0, %v4348
      %v4350 = vpop.f32.mrb[0].mxu0
      %4351 = vmatprep.mubr.f32.mxu0 0.0
      %4352 = vmatmul.mubr.f32.gmra.mrb[0].mxu0 %v4175
      %v4353 = vpop.f32.mrb[0].mxu0
      %v4354 = vadd.f32 0.0, %v4353
      %v4355 = vpop.f32.mrb[0].mxu0
      %4356 = vmatprep.mubr.f32.mxu0 0.0
      %4357 = vmatmul.mubr.f32.gmra.mrb[0].mxu0 %v4178
      %v4358 = vpop.f32.mrb[0].mxu0
      %v4359 = vadd.f32 0.0, %v4358
      %v4360 = vpop.f32.mrb[0].mxu0
      %4361 = vmatprep.mubr.f32.mxu0 0.0
      %4362 = vmatmul.mubr.f32.gmra.mrb[0].mxu0 %v4181
      %v4363 = vpop.f32.mrb[0].mxu0
      %v4364 = vadd.f32 0.0, %v4363
      %v4365 = vpop.f32.mrb[0].mxu0
      %4366 = vmatprep.mubr.f32.mxu0 0.0
      %4367 = vmatmul.mubr.f32.gmra.mrb[0].mxu0 %v4184
      %v4368 = vpop.f32.mrb[0].mxu0
      %v4369 = vadd.f32 0.0, %v4368
      %v4370 = vpop.f32.mrb[0].mxu0
      %4371 = vmatprep.mubr.f32.mxu0 0.0
      %4372 = vmatmul.mubr.f32.gmra.mrb[0].mxu0 %v4187
      %v4373 = vpop.f32.mrb[0].mxu0
      %v4374 = vadd.f32 0.0, %v4373
      %v4375 = vpop.f32.mrb[0].mxu0
      %4376 = vmatprep.mubr.f32.mxu0 0.0
      %4377 = vmatmul.mubr.f32.gmra.mrb[0].mxu0 %v4190
      %v4378 = vpop.f32.mrb[0].mxu0
      %v4379 = vadd.f32 0.0, %v4378
      %v4380 = vpop.f32.mrb[0].mxu0
      %4381 = vmatprep.mubr.f32.mxu0 0.0
      %4382 = vmatmul.mubr.f32.gmra.mrb[0].mxu0 %v4193
      %v4383 = vpop.f32.mrb[0].mxu0
      %v4384 = vadd.f32 0.0, %v4383
      %v4385 = vpop.f32.mrb[0].mxu0
      %4386 = vmatprep.mubr.f32.mxu0 0.0
      %4387 = vmatmul.mubr.f32.gmra.mrb[0].mxu0 %v4196
      %v4388 = vpop.f32.mrb[0].mxu0
      %v4389 = vadd.f32 0.0, %v4388
      %v4390 = vpop.f32.mrb[0].mxu0
      %4391 = vmatprep.mubr.f32.mxu0 0.0
      %4392 = vmatmul.mubr.f32.gmra.mrb[0].mxu0 %v4199
      %v4393 = vpop.f32.mrb[0].mxu0
      %v4394 = vadd.f32 0.0, %v4393
      %v4395 = vpop.f32.mrb[0].mxu0
      %4396 = vmatprep.mubr.f32.mxu0 0.0
      %4397 = vmatmul.mubr.f32.gmra.mrb[0].mxu0 %v4202
      %v4398 = vpop.f32.mrb[0].mxu0
      %v4399 = vadd.f32 0.0, %v4398
      %v4400 = vpop.f32.mrb[0].mxu0
      %4401 = vmatprep.mubr.f32.mxu0 0.0
      %4402 = vmatmul.mubr.f32.gmra.mrb[0].mxu0 %v4205
      %v4403 = vpop.f32.mrb[0].mxu0
      %v4404 = vadd.f32 0.0, %v4403
      %v4405 = vpop.f32.mrb[0].mxu0
      %4406 = vmatprep.mubr.f32.mxu0 0.0
      %4407 = vmatmul.mubr.f32.gmra.mrb[0].mxu0 %v4208
      %v4408 = vpop.f32.mrb[0].mxu0
      %v4409 = vadd.f32 0.0, %v4408
      %v4410 = vpop.f32.mrb[0].mxu0
      %4411 = vmatprep.mubr.f32.mxu0 0.0
      %4412 = vmatmul.mubr.f32.gmra.mrb[0].mxu0 %v4211
      %v4413 = vpop.f32.mrb[0].mxu0
      %v4414 = vadd.f32 0.0, %v4413
      %v4415 = vpop.f32.mrb[0].mxu0
      %4416 = vmatprep.mubr.f32.mxu0 0.0
      %4417 = vmatmul.mubr.f32.gmra.mrb[0].mxu0 %v4214
      %v4418 = vpop.f32.mrb[0].mxu0
      %v4419 = vadd.f32 0.0, %v4418
      %v4420 = vpop.f32.mrb[0].mxu0
      %4421 = vmatprep.mubr.f32.mxu0 0.0
      %4422 = vmatmul.mubr.f32.gmra.mrb[0].mxu0 %v4217
      %v4423 = vpop.f32.mrb[0].mxu0
      %v4424 = vadd.f32 0.0, %v4423
      %v4425 = vpop.f32.mrb[0].mxu0
      %4426 = vmatprep.mubr.f32.mxu0 0.0
      %4427 = vmatmul.mubr.f32.gmra.mrb[0].mxu0 %v4220
      %v4428 = vpop.f32.mrb[0].mxu0
      %v4429 = vadd.f32 0.0, %v4428
      %v4430 = vpop.f32.mrb[0].mxu0
      %4431 = vmatprep.mubr.f32.mxu0 0.0
      %4432 = vmatmul.mubr.f32.gmra.mrb[0].mxu0 %v4223
      %v4433 = vpop.f32.mrb[0].mxu0
      %v4434 = vadd.f32 0.0, %v4433
      %v4435 = vpop.f32.mrb[0].mxu0
      %4436 = vmatprep.mubr.f32.mxu0 0.0
      %4437 = vmatmul.mubr.f32.gmra.mrb[0].mxu0 %v4226
      %v4438 = vpop.f32.mrb[0].mxu0
      %v4439 = vadd.f32 0.0, %v4438
      %v4440 = vpop.f32.mrb[0].mxu0
      %4441 = vmatprep.mubr.f32.mxu0 0.0
      %4442 = vmatmul.mubr.f32.gmra.mrb[0].mxu0 %v4229
      %v4443 = vpop.f32.mrb[0].mxu0
      %v4444 = vadd.f32 0.0, %v4443
      %v4445 = vpop.f32.mrb[0].mxu0
      %4446 = vmatprep.mubr.f32.mxu0 0.0
      %4447 = vmatmul.mubr.f32.gmra.mrb[0].mxu0 %v4232
      %v4448 = vpop.f32.mrb[0].mxu0
      %v4449 = vadd.f32 0.0, %v4448
      %v4450 = vpop.f32.mrb[0].mxu0
      %4451 = vmatprep.mubr.f32.mxu0 0.0
      %4452 = vmatmul.mubr.f32.gmra.mrb[0].mxu0 %v4235
      %v4453 = vpop.f32.mrb[0].mxu0
      %v4454 = vadd.f32 0.0, %v4453
      %v4455 = vpop.f32.mrb[0].mxu0
      %4456 = vmatprep.mubr.f32.mxu0 0.0
      %4457 = vmatmul.mubr.f32.gmra.mrb[0].mxu0 %v4238
      %v4458 = vpop.f32.mrb[0].mxu0
      %v4459 = vadd.f32 0.0, %v4458
      %v4460 = vpop.f32.mrb[0].mxu0
      %4461 = vmatprep.mubr.f32.mxu0 0.0
      %4462 = vmatmul.mubr.f32.gmra.mrb[0].mxu0 %v4241
      %v4463 = vpop.f32.mrb[0].mxu0
      %v4464 = vadd.f32 0.0, %v4463
      %v4465 = vpop.f32.mrb[0].mxu0
      %4466 = vmatprep.mubr.f32.mxu0 0.0
      %4467 = vmatmul.mubr.f32.gmra.mrb[0].mxu0 %v4244
      %v4468 = vpop.f32.mrb[0].mxu0
      %v4469 = vadd.f32 0.0, %v4468
      %v4470 = vpop.f32.mrb[0].mxu0
      %4471 = vmatprep.mubr.f32.mxu0 0.0
      %4472 = vmatmul.mubr.f32.gmra.mrb[0].mxu0 %v4247
      %v4473 = vpop.f32.mrb[0].mxu0
      %v4474 = vadd.f32 0.0, %v4473
      %v4475 = vpop.f32.mrb[0].mxu0
      %4476 = vdwg.mxu0
      %v4478 = vsel %vm346, %v4086, 0
      %v4481 = vsel %vm346, %v4087, 0
      %v4484 = vsel %vm346, %v4088, 0
      %v4487 = vsel %vm346, %v4089, 0
      %v4490 = vsel %vm346, %v4090, 0
      %v4493 = vsel %vm346, %v4091, 0
      %v4496 = vsel %vm346, %v4092, 0
      %v4499 = vsel %vm346, %v4093, 0
      %v4502 = vsel %vm346, %v4094, 0
      %v4505 = vsel %vm346, %v4095, 0
      %v4508 = vsel %vm346, %v4096, 0
      %v4511 = vsel %vm346, %v4097, 0
      %v4514 = vsel %vm346, %v4098, 0
      %v4517 = vsel %vm346, %v4099, 0
      %v4520 = vsel %vm346, %v4100, 0
      %v4523 = vsel %vm346, %v4101, 0
      %v4526 = vsel %vm346, %v4102, 0
      %v4529 = vsel %vm346, %v4103, 0
      %v4532 = vsel %vm346, %v4104, 0
      %v4535 = vsel %vm346, %v4105, 0
      %v4538 = vsel %vm346, %v4106, 0
      %v4541 = vsel %vm346, %v4107, 0
      %v4544 = vsel %vm346, %v4108, 0
      %v4547 = vsel %vm346, %v4109, 0
      %v4550 = vsel %vm346, %v4110, 0
      %v4553 = vsel %vm346, %v4111, 0
      %v4556 = vsel %vm346, %v4112, 0
      %v4559 = vsel %vm346, %v4113, 0
      %v4562 = vsel %vm346, %v4114, 0
      %v4565 = vsel %vm346, %v4115, 0
      %v4568 = vsel %vm346, %v4116, 0
      %v4571 = vsel %vm346, %v4117, 0
      %v4574 = vsel %vm443, %v4118, 0
      %4576 = vmatprep.subr.mxu0 0.0
      %4577 = vmatpush1.msra.mxu0 %v4574
      %4578 = vmatprep.subr.mxu0 0.0
      %4579 = vmatpush1.msra.mxu0 0.0
      %4580 = vmatprep.subr.mxu0 0.0
      %4581 = vmatpush1.msra.mxu0 0.0
      %4582 = vmatprep.subr.mxu0 0.0
      %4583 = vmatpush1.msra.mxu0 0.0
      %4584 = vmatprep.subr.mxu0 0.0
      %4585 = vmatpush1.msra.mxu0 0.0
      %4586 = vmatprep.subr.mxu0 0.0
      %4587 = vmatpush1.msra.mxu0 0.0
      %4588 = vmatprep.subr.mxu0 0.0
      %4589 = vmatpush1.msra.mxu0 0.0
      %4590 = vmatprep.subr.mxu0 0.0
      %4591 = vmatpush1.msra.mxu0 0.0
      %4592 = vmatprep.subr.mxu0 0.0
      %4593 = vmatpush1.msra.mxu0 0.0
      %4594 = vmatprep.subr.mxu0 0.0
      %4595 = vmatpush1.msra.mxu0 0.0
      %4596 = vmatprep.subr.mxu0 0.0
      %4597 = vmatpush1.msra.mxu0 0.0
      %4598 = vmatprep.subr.mxu0 0.0
      %4599 = vmatpush1.msra.mxu0 0.0
      %4600 = vmatprep.subr.mxu0 0.0
      %4601 = vmatpush1.msra.mxu0 0.0
      %4602 = vmatprep.subr.mxu0 0.0
      %4603 = vmatpush1.msra.mxu0 0.0
      %4604 = vmatprep.subr.mxu0 0.0
      %4605 = vmatpush1.msra.mxu0 0.0
      %4606 = vmatprep.subr.mxu0 0.0
      %4607 = vmatpush1.msra.mxu0 0.0
      %4608 = vmatprep.subr.mxu0 0.0
      %4609 = vmatpush1.msra.mxu0 0.0
      %4610 = vmatprep.subr.mxu0 0.0
      %4611 = vmatpush1.msra.mxu0 0.0
      %4612 = vmatprep.subr.mxu0 0.0
      %4613 = vmatpush1.msra.mxu0 0.0
      %4614 = vmatprep.subr.mxu0 0.0
      %4615 = vmatpush1.msra.mxu0 0.0
      %4616 = vmatprep.subr.mxu0 0.0
      %4617 = vmatpush1.msra.mxu0 0.0
      %4618 = vmatprep.subr.mxu0 0.0
      %4619 = vmatpush1.msra.mxu0 0.0
      %4620 = vmatprep.subr.mxu0 0.0
      %4621 = vmatpush1.msra.mxu0 0.0
      %4622 = vmatprep.subr.mxu0 0.0
      %4623 = vmatpush1.msra.mxu0 0.0
      %4624 = vmatprep.subr.mxu0 0.0
      %4625 = vmatpush1.msra.mxu0 0.0
      %4626 = vmatprep.subr.mxu0 0.0
      %4627 = vmatpush1.msra.mxu0 0.0
      %4628 = vmatprep.subr.mxu0 0.0
      %4629 = vmatpush1.msra.mxu0 0.0
      %4630 = vmatprep.subr.mxu0 0.0
      %4631 = vmatpush1.msra.mxu0 0.0
      %4632 = vmatprep.subr.mxu0 0.0
      %4633 = vmatpush1.msra.mxu0 0.0
      %4634 = vmatprep.subr.mxu0 0.0
      %4635 = vmatpush1.msra.mxu0 0.0
      %4636 = vmatprep.subr.mxu0 0.0
      %4637 = vmatpush1.msra.mxu0 0.0
      %4638 = vmatprep.subr.mxu0 0.0
      %4639 = vmatpush1.msra.mxu0 0.0
      %4640 = vmatprep.mubr.f32.mxu0 0.0
      %4641 = vmatmul.mubr.f32.gmra.mrb[0].mxu0 %v4478
      %v4642 = vpop.f32.mrb[0].mxu0
      %v4643 = vadd.f32 %v4319, %v4642
      %v4644 = vpop.f32.mrb[0].mxu0
      %4645 = vmatprep.mubr.f32.mxu0 0.0
      %4646 = vmatmul.mubr.f32.gmra.mrb[0].mxu0 %v4481
      %v4647 = vpop.f32.mrb[0].mxu0
      %v4648 = vadd.f32 %v4324, %v4647
      %v4649 = vpop.f32.mrb[0].mxu0
      %4650 = vmatprep.mubr.f32.mxu0 0.0
      %4651 = vmatmul.mubr.f32.gmra.mrb[0].mxu0 %v4484
      %v4652 = vpop.f32.mrb[0].mxu0
      %v4653 = vadd.f32 %v4329, %v4652
      %v4654 = vpop.f32.mrb[0].mxu0
      %4655 = vmatprep.mubr.f32.mxu0 0.0
      %4656 = vmatmul.mubr.f32.gmra.mrb[0].mxu0 %v4487
      %v4657 = vpop.f32.mrb[0].mxu0
      %v4658 = vadd.f32 %v4334, %v4657
      %v4659 = vpop.f32.mrb[0].mxu0
      %4660 = vmatprep.mubr.f32.mxu0 0.0
      %4661 = vmatmul.mubr.f32.gmra.mrb[0].mxu0 %v4490
      %v4662 = vpop.f32.mrb[0].mxu0
      %v4663 = vadd.f32 %v4339, %v4662
      %v4664 = vpop.f32.mrb[0].mxu0
      %4665 = vmatprep.mubr.f32.mxu0 0.0
      %4666 = vmatmul.mubr.f32.gmra.mrb[0].mxu0 %v4493
      %v4667 = vpop.f32.mrb[0].mxu0
      %v4668 = vadd.f32 %v4344, %v4667
      %v4669 = vpop.f32.mrb[0].mxu0
      %4670 = vmatprep.mubr.f32.mxu0 0.0
      %4671 = vmatmul.mubr.f32.gmra.mrb[0].mxu0 %v4496
      %v4672 = vpop.f32.mrb[0].mxu0
      %v4673 = vadd.f32 %v4349, %v4672
      %v4674 = vpop.f32.mrb[0].mxu0
      %4675 = vmatprep.mubr.f32.mxu0 0.0
      %4676 = vmatmul.mubr.f32.gmra.mrb[0].mxu0 %v4499
      %v4677 = vpop.f32.mrb[0].mxu0
      %v4678 = vadd.f32 %v4354, %v4677
      %v4679 = vpop.f32.mrb[0].mxu0
      %4680 = vmatprep.mubr.f32.mxu0 0.0
      %4681 = vmatmul.mubr.f32.gmra.mrb[0].mxu0 %v4502
      %v4682 = vpop.f32.mrb[0].mxu0
      %v4683 = vadd.f32 %v4359, %v4682
      %v4684 = vpop.f32.mrb[0].mxu0
      %4685 = vmatprep.mubr.f32.mxu0 0.0
      %4686 = vmatmul.mubr.f32.gmra.mrb[0].mxu0 %v4505
      %v4687 = vpop.f32.mrb[0].mxu0
      %v4688 = vadd.f32 %v4364, %v4687
      %v4689 = vpop.f32.mrb[0].mxu0
      %4690 = vmatprep.mubr.f32.mxu0 0.0
      %4691 = vmatmul.mubr.f32.gmra.mrb[0].mxu0 %v4508
      %v4692 = vpop.f32.mrb[0].mxu0
      %v4693 = vadd.f32 %v4369, %v4692
      %v4694 = vpop.f32.mrb[0].mxu0
      %4695 = vmatprep.mubr.f32.mxu0 0.0
      %4696 = vmatmul.mubr.f32.gmra.mrb[0].mxu0 %v4511
      %v4697 = vpop.f32.mrb[0].mxu0
      %v4698 = vadd.f32 %v4374, %v4697
      %v4699 = vpop.f32.mrb[0].mxu0
      %4700 = vmatprep.mubr.f32.mxu0 0.0
      %4701 = vmatmul.mubr.f32.gmra.mrb[0].mxu0 %v4514
      %v4702 = vpop.f32.mrb[0].mxu0
      %v4703 = vadd.f32 %v4379, %v4702
      %v4704 = vpop.f32.mrb[0].mxu0
      %4705 = vmatprep.mubr.f32.mxu0 0.0
      %4706 = vmatmul.mubr.f32.gmra.mrb[0].mxu0 %v4517
      %v4707 = vpop.f32.mrb[0].mxu0
      %v4708 = vadd.f32 %v4384, %v4707
      %v4709 = vpop.f32.mrb[0].mxu0
      %4710 = vmatprep.mubr.f32.mxu0 0.0
      %4711 = vmatmul.mubr.f32.gmra.mrb[0].mxu0 %v4520
      %v4712 = vpop.f32.mrb[0].mxu0
      %v4713 = vadd.f32 %v4389, %v4712
      %v4714 = vpop.f32.mrb[0].mxu0
      %4715 = vmatprep.mubr.f32.mxu0 0.0
      %4716 = vmatmul.mubr.f32.gmra.mrb[0].mxu0 %v4523
      %v4717 = vpop.f32.mrb[0].mxu0
      %v4718 = vadd.f32 %v4394, %v4717
      %v4719 = vpop.f32.mrb[0].mxu0
      %4720 = vmatprep.mubr.f32.mxu0 0.0
      %4721 = vmatmul.mubr.f32.gmra.mrb[0].mxu0 %v4526
      %v4722 = vpop.f32.mrb[0].mxu0
      %v4723 = vadd.f32 %v4399, %v4722
      %v4724 = vpop.f32.mrb[0].mxu0
      %4725 = vmatprep.mubr.f32.mxu0 0.0
      %4726 = vmatmul.mubr.f32.gmra.mrb[0].mxu0 %v4529
      %v4727 = vpop.f32.mrb[0].mxu0
      %v4728 = vadd.f32 %v4404, %v4727
      %v4729 = vpop.f32.mrb[0].mxu0
      %4730 = vmatprep.mubr.f32.mxu0 0.0
      %4731 = vmatmul.mubr.f32.gmra.mrb[0].mxu0 %v4532
      %v4732 = vpop.f32.mrb[0].mxu0
      %v4733 = vadd.f32 %v4409, %v4732
      %v4734 = vpop.f32.mrb[0].mxu0
      %4735 = vmatprep.mubr.f32.mxu0 0.0
      %4736 = vmatmul.mubr.f32.gmra.mrb[0].mxu0 %v4535
      %v4737 = vpop.f32.mrb[0].mxu0
      %v4738 = vadd.f32 %v4414, %v4737
      %v4739 = vpop.f32.mrb[0].mxu0
      %4740 = vmatprep.mubr.f32.mxu0 0.0
      %4741 = vmatmul.mubr.f32.gmra.mrb[0].mxu0 %v4538
      %v4742 = vpop.f32.mrb[0].mxu0
      %v4743 = vadd.f32 %v4419, %v4742
      %v4744 = vpop.f32.mrb[0].mxu0
      %4745 = vmatprep.mubr.f32.mxu0 0.0
      %4746 = vmatmul.mubr.f32.gmra.mrb[0].mxu0 %v4541
      %v4747 = vpop.f32.mrb[0].mxu0
      %v4748 = vadd.f32 %v4424, %v4747
      %v4749 = vpop.f32.mrb[0].mxu0
      %4750 = vmatprep.mubr.f32.mxu0 0.0
      %4751 = vmatmul.mubr.f32.gmra.mrb[0].mxu0 %v4544
      %v4752 = vpop.f32.mrb[0].mxu0
      %v4753 = vadd.f32 %v4429, %v4752
      %v4754 = vpop.f32.mrb[0].mxu0
      %4755 = vmatprep.mubr.f32.mxu0 0.0
      %4756 = vmatmul.mubr.f32.gmra.mrb[0].mxu0 %v4547
      %v4757 = vpop.f32.mrb[0].mxu0
      %v4758 = vadd.f32 %v4434, %v4757
      %v4759 = vpop.f32.mrb[0].mxu0
      %4760 = vmatprep.mubr.f32.mxu0 0.0
      %4761 = vmatmul.mubr.f32.gmra.mrb[0].mxu0 %v4550
      %v4762 = vpop.f32.mrb[0].mxu0
      %v4763 = vadd.f32 %v4439, %v4762
      %v4764 = vpop.f32.mrb[0].mxu0
      %4765 = vmatprep.mubr.f32.mxu0 0.0
      %4766 = vmatmul.mubr.f32.gmra.mrb[0].mxu0 %v4553
      %v4767 = vpop.f32.mrb[0].mxu0
      %v4768 = vadd.f32 %v4444, %v4767
      %v4769 = vpop.f32.mrb[0].mxu0
      %4770 = vmatprep.mubr.f32.mxu0 0.0
      %4771 = vmatmul.mubr.f32.gmra.mrb[0].mxu0 %v4556
      %v4772 = vpop.f32.mrb[0].mxu0
      %v4773 = vadd.f32 %v4449, %v4772
      %v4774 = vpop.f32.mrb[0].mxu0
      %4775 = vmatprep.mubr.f32.mxu0 0.0
      %4776 = vmatmul.mubr.f32.gmra.mrb[0].mxu0 %v4559
      %v4777 = vpop.f32.mrb[0].mxu0
      %v4778 = vadd.f32 %v4454, %v4777
      %v4779 = vpop.f32.mrb[0].mxu0
      %4780 = vmatprep.mubr.f32.mxu0 0.0
      %4781 = vmatmul.mubr.f32.gmra.mrb[0].mxu0 %v4562
      %v4782 = vpop.f32.mrb[0].mxu0
      %v4783 = vadd.f32 %v4459, %v4782
      %v4784 = vpop.f32.mrb[0].mxu0
      %4785 = vmatprep.mubr.f32.mxu0 0.0
      %4786 = vmatmul.mubr.f32.gmra.mrb[0].mxu0 %v4565
      %v4787 = vpop.f32.mrb[0].mxu0
      %v4788 = vadd.f32 %v4464, %v4787
      %v4789 = vpop.f32.mrb[0].mxu0
      %4790 = vmatprep.mubr.f32.mxu0 0.0
      %4791 = vmatmul.mubr.f32.gmra.mrb[0].mxu0 %v4568
      %v4792 = vpop.f32.mrb[0].mxu0
      %v4793 = vadd.f32 %v4469, %v4792
      %v4794 = vpop.f32.mrb[0].mxu0
      %4795 = vmatprep.mubr.f32.mxu0 0.0
      %4796 = vmatmul.mubr.f32.gmra.mrb[0].mxu0 %v4571
      %v4797 = vpop.f32.mrb[0].mxu0
      %v4798 = vadd.f32 %v4474, %v4797
      %v4799 = vpop.f32.mrb[0].mxu0
      %4800 = vdwg.mxu0
      %v4801 = vld [vmem:[#allocation2 + $0x2] sm:$0xff]
      %v4802 = vld [vmem:[#allocation2 + $0xa] sm:$0xff]
      %v4803 = vld [vmem:[#allocation2 + $0x1a] sm:$0xff]
      %v4804 = vld [vmem:[#allocation2 + $0x22] sm:$0xff]
      %v4805 = vld [vmem:[#allocation2 + $0x32] sm:$0xff]
      %v4806 = vld [vmem:[#allocation2 + $0x3a] sm:$0xff]
      %v4807 = vld [vmem:[#allocation2 + $0x4a] sm:$0xff]
      %v4808 = vld [vmem:[#allocation2 + $0x52] sm:$0xff]
      %v4809 = vld [vmem:[#allocation2 + $0x62] sm:$0xff]
      %v4810 = vld [vmem:[#allocation2 + $0x6a] sm:$0xff]
      %v4811 = vld [vmem:[#allocation2 + $0x7a] sm:$0xff]
      %v4812 = vld [vmem:[#allocation2 + $0x82] sm:$0xff]
      %v4813 = vld [vmem:[#allocation2 + $0x92] sm:$0xff]
      %v4814 = vld [vmem:[#allocation2 + $0x9a] sm:$0xff]
      %v4815 = vld [vmem:[#allocation2 + $0xaa] sm:$0xff]
      %v4816 = vld [vmem:[#allocation2 + $0xb2] sm:$0xff]
      %v4817 = vld [vmem:[#allocation2 + $0xc2] sm:$0xff]
      %v4818 = vld [vmem:[#allocation2 + $0xca] sm:$0xff]
      %v4819 = vld [vmem:[#allocation2 + $0xda] sm:$0xff]
      %v4820 = vld [vmem:[#allocation2 + $0xe2] sm:$0xff]
      %v4821 = vld [vmem:[#allocation2 + $0xf2] sm:$0xff]
      %v4822 = vld [vmem:[#allocation2 + $0xfa] sm:$0xff]
      %v4823 = vld [vmem:[#allocation2 + $0x10a] sm:$0xff]
      %v4824 = vld [vmem:[#allocation2 + $0x112] sm:$0xff]
      %v4825 = vld [vmem:[#allocation2 + $0x122] sm:$0xff]
      %v4826 = vld [vmem:[#allocation2 + $0x12a] sm:$0xff]
      %v4827 = vld [vmem:[#allocation2 + $0x13a] sm:$0xff]
      %v4828 = vld [vmem:[#allocation2 + $0x142] sm:$0xff]
      %v4829 = vld [vmem:[#allocation2 + $0x152] sm:$0xff]
      %v4830 = vld [vmem:[#allocation2 + $0x15a] sm:$0xff]
      %v4831 = vld [vmem:[#allocation2 + $0x16a] sm:$0xff]
      %v4832 = vld [vmem:[#allocation2 + $0x172] sm:$0xff]
      %s4833 = scalar_lea.vmem %s4, 8
      %v4834 = vld [vmem:[%s4833] sm:$0xf]
      %v4836 = vsel %vm346, %v4801, 0
      %v4839 = vsel %vm346, %v4802, 0
      %v4842 = vsel %vm346, %v4803, 0
      %v4845 = vsel %vm346, %v4804, 0
      %v4848 = vsel %vm346, %v4805, 0
      %v4851 = vsel %vm346, %v4806, 0
      %v4854 = vsel %vm346, %v4807, 0
      %v4857 = vsel %vm346, %v4808, 0
      %v4860 = vsel %vm346, %v4809, 0
      %v4863 = vsel %vm346, %v4810, 0
      %v4866 = vsel %vm346, %v4811, 0
      %v4869 = vsel %vm346, %v4812, 0
      %v4872 = vsel %vm346, %v4813, 0
      %v4875 = vsel %vm346, %v4814, 0
      %v4878 = vsel %vm346, %v4815, 0
      %v4881 = vsel %vm346, %v4816, 0
      %v4884 = vsel %vm346, %v4817, 0
      %v4887 = vsel %vm346, %v4818, 0
      %v4890 = vsel %vm346, %v4819, 0
      %v4893 = vsel %vm346, %v4820, 0
      %v4896 = vsel %vm346, %v4821, 0
      %v4899 = vsel %vm346, %v4822, 0
      %v4902 = vsel %vm346, %v4823, 0
      %v4905 = vsel %vm346, %v4824, 0
      %v4908 = vsel %vm346, %v4825, 0
      %v4911 = vsel %vm346, %v4826, 0
      %v4914 = vsel %vm346, %v4827, 0
      %v4917 = vsel %vm346, %v4828, 0
      %v4920 = vsel %vm346, %v4829, 0
      %v4923 = vsel %vm346, %v4830, 0
      %v4926 = vsel %vm346, %v4831, 0
      %v4929 = vsel %vm346, %v4832, 0
      %v4932 = vsel %vm443, %v4834, 0
      %4934 = vmatprep.subr.mxu0 0.0
      %4935 = vmatpush1.msra.mxu0 %v4932
      %4936 = vmatprep.subr.mxu0 0.0
      %4937 = vmatpush1.msra.mxu0 0.0
      %4938 = vmatprep.subr.mxu0 0.0
      %4939 = vmatpush1.msra.mxu0 0.0
      %4940 = vmatprep.subr.mxu0 0.0
      %4941 = vmatpush1.msra.mxu0 0.0
      %4942 = vmatprep.subr.mxu0 0.0
      %4943 = vmatpush1.msra.mxu0 0.0
      %4944 = vmatprep.subr.mxu0 0.0
      %4945 = vmatpush1.msra.mxu0 0.0
      %4946 = vmatprep.subr.mxu0 0.0
      %4947 = vmatpush1.msra.mxu0 0.0
      %4948 = vmatprep.subr.mxu0 0.0
      %4949 = vmatpush1.msra.mxu0 0.0
      %4950 = vmatprep.subr.mxu0 0.0
      %4951 = vmatpush1.msra.mxu0 0.0
      %4952 = vmatprep.subr.mxu0 0.0
      %4953 = vmatpush1.msra.mxu0 0.0
      %4954 = vmatprep.subr.mxu0 0.0
      %4955 = vmatpush1.msra.mxu0 0.0
      %4956 = vmatprep.subr.mxu0 0.0
      %4957 = vmatpush1.msra.mxu0 0.0
      %4958 = vmatprep.subr.mxu0 0.0
      %4959 = vmatpush1.msra.mxu0 0.0
      %4960 = vmatprep.subr.mxu0 0.0
      %4961 = vmatpush1.msra.mxu0 0.0
      %4962 = vmatprep.subr.mxu0 0.0
      %4963 = vmatpush1.msra.mxu0 0.0
      %4964 = vmatprep.subr.mxu0 0.0
      %4965 = vmatpush1.msra.mxu0 0.0
      %4966 = vmatprep.subr.mxu0 0.0
      %4967 = vmatpush1.msra.mxu0 0.0
      %4968 = vmatprep.subr.mxu0 0.0
      %4969 = vmatpush1.msra.mxu0 0.0
      %4970 = vmatprep.subr.mxu0 0.0
      %4971 = vmatpush1.msra.mxu0 0.0
      %4972 = vmatprep.subr.mxu0 0.0
      %4973 = vmatpush1.msra.mxu0 0.0
      %4974 = vmatprep.subr.mxu0 0.0
      %4975 = vmatpush1.msra.mxu0 0.0
      %4976 = vmatprep.subr.mxu0 0.0
      %4977 = vmatpush1.msra.mxu0 0.0
      %4978 = vmatprep.subr.mxu0 0.0
      %4979 = vmatpush1.msra.mxu0 0.0
      %4980 = vmatprep.subr.mxu0 0.0
      %4981 = vmatpush1.msra.mxu0 0.0
      %4982 = vmatprep.subr.mxu0 0.0
      %4983 = vmatpush1.msra.mxu0 0.0
      %4984 = vmatprep.subr.mxu0 0.0
      %4985 = vmatpush1.msra.mxu0 0.0
      %4986 = vmatprep.subr.mxu0 0.0
      %4987 = vmatpush1.msra.mxu0 0.0
      %4988 = vmatprep.subr.mxu0 0.0
      %4989 = vmatpush1.msra.mxu0 0.0
      %4990 = vmatprep.subr.mxu0 0.0
      %4991 = vmatpush1.msra.mxu0 0.0
      %4992 = vmatprep.subr.mxu0 0.0
      %4993 = vmatpush1.msra.mxu0 0.0
      %4994 = vmatprep.subr.mxu0 0.0
      %4995 = vmatpush1.msra.mxu0 0.0
      %4996 = vmatprep.subr.mxu0 0.0
      %4997 = vmatpush1.msra.mxu0 0.0
      %4998 = vmatprep.mubr.f32.mxu0 0.0
      %4999 = vmatmul.mubr.f32.gmra.mrb[0].mxu0 %v4836
      %v5000 = vpop.f32.mrb[0].mxu0
      %v5001 = vadd.f32 0.0, %v5000
      %v5002 = vpop.f32.mrb[0].mxu0
      %5003 = vmatprep.mubr.f32.mxu0 0.0
      %5004 = vmatmul.mubr.f32.gmra.mrb[0].mxu0 %v4839
      %v5005 = vpop.f32.mrb[0].mxu0
      %v5006 = vadd.f32 0.0, %v5005
      %v5007 = vpop.f32.mrb[0].mxu0
      %5008 = vmatprep.mubr.f32.mxu0 0.0
      %5009 = vmatmul.mubr.f32.gmra.mrb[0].mxu0 %v4842
      %v5010 = vpop.f32.mrb[0].mxu0
      %v5011 = vadd.f32 0.0, %v5010
      %v5012 = vpop.f32.mrb[0].mxu0
      %5013 = vmatprep.mubr.f32.mxu0 0.0
      %5014 = vmatmul.mubr.f32.gmra.mrb[0].mxu0 %v4845
      %v5015 = vpop.f32.mrb[0].mxu0
      %v5016 = vadd.f32 0.0, %v5015
      %v5017 = vpop.f32.mrb[0].mxu0
      %5018 = vmatprep.mubr.f32.mxu0 0.0
      %5019 = vmatmul.mubr.f32.gmra.mrb[0].mxu0 %v4848
      %v5020 = vpop.f32.mrb[0].mxu0
      %v5021 = vadd.f32 0.0, %v5020
      %v5022 = vpop.f32.mrb[0].mxu0
      %5023 = vmatprep.mubr.f32.mxu0 0.0
      %5024 = vmatmul.mubr.f32.gmra.mrb[0].mxu0 %v4851
      %v5025 = vpop.f32.mrb[0].mxu0
      %v5026 = vadd.f32 0.0, %v5025
      %v5027 = vpop.f32.mrb[0].mxu0
      %5028 = vmatprep.mubr.f32.mxu0 0.0
      %5029 = vmatmul.mubr.f32.gmra.mrb[0].mxu0 %v4854
      %v5030 = vpop.f32.mrb[0].mxu0
      %v5031 = vadd.f32 0.0, %v5030
      %v5032 = vpop.f32.mrb[0].mxu0
      %5033 = vmatprep.mubr.f32.mxu0 0.0
      %5034 = vmatmul.mubr.f32.gmra.mrb[0].mxu0 %v4857
      %v5035 = vpop.f32.mrb[0].mxu0
      %v5036 = vadd.f32 0.0, %v5035
      %v5037 = vpop.f32.mrb[0].mxu0
      %5038 = vmatprep.mubr.f32.mxu0 0.0
      %5039 = vmatmul.mubr.f32.gmra.mrb[0].mxu0 %v4860
      %v5040 = vpop.f32.mrb[0].mxu0
      %v5041 = vadd.f32 0.0, %v5040
      %v5042 = vpop.f32.mrb[0].mxu0
      %5043 = vmatprep.mubr.f32.mxu0 0.0
      %5044 = vmatmul.mubr.f32.gmra.mrb[0].mxu0 %v4863
      %v5045 = vpop.f32.mrb[0].mxu0
      %v5046 = vadd.f32 0.0, %v5045
      %v5047 = vpop.f32.mrb[0].mxu0
      %5048 = vmatprep.mubr.f32.mxu0 0.0
      %5049 = vmatmul.mubr.f32.gmra.mrb[0].mxu0 %v4866
      %v5050 = vpop.f32.mrb[0].mxu0
      %v5051 = vadd.f32 0.0, %v5050
      %v5052 = vpop.f32.mrb[0].mxu0
      %5053 = vmatprep.mubr.f32.mxu0 0.0
      %5054 = vmatmul.mubr.f32.gmra.mrb[0].mxu0 %v4869
      %v5055 = vpop.f32.mrb[0].mxu0
      %v5056 = vadd.f32 0.0, %v5055
      %v5057 = vpop.f32.mrb[0].mxu0
      %5058 = vmatprep.mubr.f32.mxu0 0.0
      %5059 = vmatmul.mubr.f32.gmra.mrb[0].mxu0 %v4872
      %v5060 = vpop.f32.mrb[0].mxu0
      %v5061 = vadd.f32 0.0, %v5060
      %v5062 = vpop.f32.mrb[0].mxu0
      %5063 = vmatprep.mubr.f32.mxu0 0.0
      %5064 = vmatmul.mubr.f32.gmra.mrb[0].mxu0 %v4875
      %v5065 = vpop.f32.mrb[0].mxu0
      %v5066 = vadd.f32 0.0, %v5065
      %v5067 = vpop.f32.mrb[0].mxu0
      %5068 = vmatprep.mubr.f32.mxu0 0.0
      %5069 = vmatmul.mubr.f32.gmra.mrb[0].mxu0 %v4878
      %v5070 = vpop.f32.mrb[0].mxu0
      %v5071 = vadd.f32 0.0, %v5070
      %v5072 = vpop.f32.mrb[0].mxu0
      %5073 = vmatprep.mubr.f32.mxu0 0.0
      %5074 = vmatmul.mubr.f32.gmra.mrb[0].mxu0 %v4881
      %v5075 = vpop.f32.mrb[0].mxu0
      %v5076 = vadd.f32 0.0, %v5075
      %v5077 = vpop.f32.mrb[0].mxu0
      %5078 = vmatprep.mubr.f32.mxu0 0.0
      %5079 = vmatmul.mubr.f32.gmra.mrb[0].mxu0 %v4884
      %v5080 = vpop.f32.mrb[0].mxu0
      %v5081 = vadd.f32 0.0, %v5080
      %v5082 = vpop.f32.mrb[0].mxu0
      %5083 = vmatprep.mubr.f32.mxu0 0.0
      %5084 = vmatmul.mubr.f32.gmra.mrb[0].mxu0 %v4887
      %v5085 = vpop.f32.mrb[0].mxu0
      %v5086 = vadd.f32 0.0, %v5085
      %v5087 = vpop.f32.mrb[0].mxu0
      %5088 = vmatprep.mubr.f32.mxu0 0.0
      %5089 = vmatmul.mubr.f32.gmra.mrb[0].mxu0 %v4890
      %v5090 = vpop.f32.mrb[0].mxu0
      %v5091 = vadd.f32 0.0, %v5090
      %v5092 = vpop.f32.mrb[0].mxu0
      %5093 = vmatprep.mubr.f32.mxu0 0.0
      %5094 = vmatmul.mubr.f32.gmra.mrb[0].mxu0 %v4893
      %v5095 = vpop.f32.mrb[0].mxu0
      %v5096 = vadd.f32 0.0, %v5095
      %v5097 = vpop.f32.mrb[0].mxu0
      %5098 = vmatprep.mubr.f32.mxu0 0.0
      %5099 = vmatmul.mubr.f32.gmra.mrb[0].mxu0 %v4896
      %v5100 = vpop.f32.mrb[0].mxu0
      %v5101 = vadd.f32 0.0, %v5100
      %v5102 = vpop.f32.mrb[0].mxu0
      %5103 = vmatprep.mubr.f32.mxu0 0.0
      %5104 = vmatmul.mubr.f32.gmra.mrb[0].mxu0 %v4899
      %v5105 = vpop.f32.mrb[0].mxu0
      %v5106 = vadd.f32 0.0, %v5105
      %v5107 = vpop.f32.mrb[0].mxu0
      %5108 = vmatprep.mubr.f32.mxu0 0.0
      %5109 = vmatmul.mubr.f32.gmra.mrb[0].mxu0 %v4902
      %v5110 = vpop.f32.mrb[0].mxu0
      %v5111 = vadd.f32 0.0, %v5110
      %v5112 = vpop.f32.mrb[0].mxu0
      %5113 = vmatprep.mubr.f32.mxu0 0.0
      %5114 = vmatmul.mubr.f32.gmra.mrb[0].mxu0 %v4905
      %v5115 = vpop.f32.mrb[0].mxu0
      %v5116 = vadd.f32 0.0, %v5115
      %v5117 = vpop.f32.mrb[0].mxu0
      %5118 = vmatprep.mubr.f32.mxu0 0.0
      %5119 = vmatmul.mubr.f32.gmra.mrb[0].mxu0 %v4908
      %v5120 = vpop.f32.mrb[0].mxu0
      %v5121 = vadd.f32 0.0, %v5120
      %v5122 = vpop.f32.mrb[0].mxu0
      %5123 = vmatprep.mubr.f32.mxu0 0.0
      %5124 = vmatmul.mubr.f32.gmra.mrb[0].mxu0 %v4911
      %v5125 = vpop.f32.mrb[0].mxu0
      %v5126 = vadd.f32 0.0, %v5125
      %v5127 = vpop.f32.mrb[0].mxu0
      %5128 = vmatprep.mubr.f32.mxu0 0.0
      %5129 = vmatmul.mubr.f32.gmra.mrb[0].mxu0 %v4914
      %v5130 = vpop.f32.mrb[0].mxu0
      %v5131 = vadd.f32 0.0, %v5130
      %v5132 = vpop.f32.mrb[0].mxu0
      %5133 = vmatprep.mubr.f32.mxu0 0.0
      %5134 = vmatmul.mubr.f32.gmra.mrb[0].mxu0 %v4917
      %v5135 = vpop.f32.mrb[0].mxu0
      %v5136 = vadd.f32 0.0, %v5135
      %v5137 = vpop.f32.mrb[0].mxu0
      %5138 = vmatprep.mubr.f32.mxu0 0.0
      %5139 = vmatmul.mubr.f32.gmra.mrb[0].mxu0 %v4920
      %v5140 = vpop.f32.mrb[0].mxu0
      %v5141 = vadd.f32 0.0, %v5140
      %v5142 = vpop.f32.mrb[0].mxu0
      %5143 = vmatprep.mubr.f32.mxu0 0.0
      %5144 = vmatmul.mubr.f32.gmra.mrb[0].mxu0 %v4923
      %v5145 = vpop.f32.mrb[0].mxu0
      %v5146 = vadd.f32 0.0, %v5145
      %v5147 = vpop.f32.mrb[0].mxu0
      %5148 = vmatprep.mubr.f32.mxu0 0.0
      %5149 = vmatmul.mubr.f32.gmra.mrb[0].mxu0 %v4926
      %v5150 = vpop.f32.mrb[0].mxu0
      %v5151 = vadd.f32 0.0, %v5150
      %v5152 = vpop.f32.mrb[0].mxu0
      %5153 = vmatprep.mubr.f32.mxu0 0.0
      %5154 = vmatmul.mubr.f32.gmra.mrb[0].mxu0 %v4929
      %v5155 = vpop.f32.mrb[0].mxu0
      %v5156 = vadd.f32 0.0, %v5155
      %v5157 = vpop.f32.mrb[0].mxu0
      %5158 = vdwg.mxu0
      %v5159 = vadd.f32 %v4643, %v5001
      %v5160 = vadd.f32 %v4648, %v5006
      %v5161 = vadd.f32 %v4653, %v5011
      %v5162 = vadd.f32 %v4658, %v5016
      %v5163 = vadd.f32 %v4663, %v5021
      %v5164 = vadd.f32 %v4668, %v5026
      %v5165 = vadd.f32 %v4673, %v5031
      %v5166 = vadd.f32 %v4678, %v5036
      %v5167 = vadd.f32 %v4683, %v5041
      %v5168 = vadd.f32 %v4688, %v5046
      %v5169 = vadd.f32 %v4693, %v5051
      %v5170 = vadd.f32 %v4698, %v5056
      %v5171 = vadd.f32 %v4703, %v5061
      %v5172 = vadd.f32 %v4708, %v5066
      %v5173 = vadd.f32 %v4713, %v5071
      %v5174 = vadd.f32 %v4718, %v5076
      %v5175 = vadd.f32 %v4723, %v5081
      %v5176 = vadd.f32 %v4728, %v5086
      %v5177 = vadd.f32 %v4733, %v5091
      %v5178 = vadd.f32 %v4738, %v5096
      %v5179 = vadd.f32 %v4743, %v5101
      %v5180 = vadd.f32 %v4748, %v5106
      %v5181 = vadd.f32 %v4753, %v5111
      %v5182 = vadd.f32 %v4758, %v5116
      %v5183 = vadd.f32 %v4763, %v5121
      %v5184 = vadd.f32 %v4768, %v5126
      %v5185 = vadd.f32 %v4773, %v5131
      %v5186 = vadd.f32 %v4778, %v5136
      %v5187 = vadd.f32 %v4783, %v5141
      %v5188 = vadd.f32 %v4788, %v5146
      %v5189 = vadd.f32 %v4793, %v5151
      %v5190 = vadd.f32 %v4798, %v5156
      %v5191 = vld [vmem:[%s4053] sm:$0xff]
      %v5192 = vld [vmem:[%s4053 + $0x8] sm:$0xff]
      %v5193 = vld [vmem:[%s4053 + $0x18] sm:$0xff]
      %v5194 = vld [vmem:[%s4053 + $0x20] sm:$0xff]
      %v5195 = vld [vmem:[%s4053 + $0x30] sm:$0xff]
      %v5196 = vld [vmem:[%s4053 + $0x38] sm:$0xff]
      %v5197 = vld [vmem:[%s4053 + $0x48] sm:$0xff]
      %v5198 = vld [vmem:[%s4053 + $0x50] sm:$0xff]
      %v5199 = vld [vmem:[%s4053 + $0x60] sm:$0xff]
      %v5200 = vld [vmem:[%s4053 + $0x68] sm:$0xff]
      %v5201 = vld [vmem:[%s4053 + $0x78] sm:$0xff]
      %v5202 = vld [vmem:[%s4053 + $0x80] sm:$0xff]
      %v5203 = vld [vmem:[%s4053 + $0x90] sm:$0xff]
      %v5204 = vld [vmem:[%s4053 + $0x98] sm:$0xff]
      %v5205 = vld [vmem:[%s4053 + $0xa8] sm:$0xff]
      %v5206 = vld [vmem:[%s4053 + $0xb0] sm:$0xff]
      %v5207 = vld [vmem:[%s4053 + $0xc0] sm:$0xff]
      %v5208 = vld [vmem:[%s4053 + $0xc8] sm:$0xff]
      %v5209 = vld [vmem:[%s4053 + $0xd8] sm:$0xff]
      %v5210 = vld [vmem:[%s4053 + $0xe0] sm:$0xff]
      %v5211 = vld [vmem:[%s4053 + $0xf0] sm:$0xff]
      %v5212 = vld [vmem:[%s4053 + $0xf8] sm:$0xff]
      %v5213 = vld [vmem:[%s4053 + $0x108] sm:$0xff]
      %v5214 = vld [vmem:[%s4053 + $0x110] sm:$0xff]
      %v5215 = vld [vmem:[%s4053 + $0x120] sm:$0xff]
      %v5216 = vld [vmem:[%s4053 + $0x128] sm:$0xff]
      %v5217 = vld [vmem:[%s4053 + $0x138] sm:$0xff]
      %v5218 = vld [vmem:[%s4053 + $0x140] sm:$0xff]
      %v5219 = vld [vmem:[%s4053 + $0x150] sm:$0xff]
      %v5220 = vld [vmem:[%s4053 + $0x158] sm:$0xff]
      %v5221 = vld [vmem:[%s4053 + $0x168] sm:$0xff]
      %v5222 = vld [vmem:[%s4053 + $0x170] sm:$0xff]
      %s5223 = scalar_lea.vmem %s4, 12
      %v5224 = vld [vmem:[%s5223] sm:$0xf]
      %v5226 = vsel %vm346, %v5191, 0
      %v5229 = vsel %vm346, %v5192, 0
      %v5232 = vsel %vm346, %v5193, 0
      %v5235 = vsel %vm346, %v5194, 0
      %v5238 = vsel %vm346, %v5195, 0
      %v5241 = vsel %vm346, %v5196, 0
      %v5244 = vsel %vm346, %v5197, 0
      %v5247 = vsel %vm346, %v5198, 0
      %v5250 = vsel %vm346, %v5199, 0
      %v5253 = vsel %vm346, %v5200, 0
      %v5256 = vsel %vm346, %v5201, 0
      %v5259 = vsel %vm346, %v5202, 0
      %v5262 = vsel %vm346, %v5203, 0
      %v5265 = vsel %vm346, %v5204, 0
      %v5268 = vsel %vm346, %v5205, 0
      %v5271 = vsel %vm346, %v5206, 0
      %v5274 = vsel %vm346, %v5207, 0
      %v5277 = vsel %vm346, %v5208, 0
      %v5280 = vsel %vm346, %v5209, 0
      %v5283 = vsel %vm346, %v5210, 0
      %v5286 = vsel %vm346, %v5211, 0
      %v5289 = vsel %vm346, %v5212, 0
      %v5292 = vsel %vm346, %v5213, 0
      %v5295 = vsel %vm346, %v5214, 0
      %v5298 = vsel %vm346, %v5215, 0
      %v5301 = vsel %vm346, %v5216, 0
      %v5304 = vsel %vm346, %v5217, 0
      %v5307 = vsel %vm346, %v5218, 0
      %v5310 = vsel %vm346, %v5219, 0
      %v5313 = vsel %vm346, %v5220, 0
      %v5316 = vsel %vm346, %v5221, 0
      %v5319 = vsel %vm346, %v5222, 0
      %v5322 = vsel %vm443, %v5224, 0
      %5324 = vmatprep.subr.mxu0 0.0
      %5325 = vmatpush1.msra.mxu0 %v5322
      %5326 = vmatprep.subr.mxu0 0.0
      %5327 = vmatpush1.msra.mxu0 0.0
      %5328 = vmatprep.subr.mxu0 0.0
      %5329 = vmatpush1.msra.mxu0 0.0
      %5330 = vmatprep.subr.mxu0 0.0
      %5331 = vmatpush1.msra.mxu0 0.0
      %5332 = vmatprep.subr.mxu0 0.0
      %5333 = vmatpush1.msra.mxu0 0.0
      %5334 = vmatprep.subr.mxu0 0.0
      %5335 = vmatpush1.msra.mxu0 0.0
      %5336 = vmatprep.subr.mxu0 0.0
      %5337 = vmatpush1.msra.mxu0 0.0
      %5338 = vmatprep.subr.mxu0 0.0
      %5339 = vmatpush1.msra.mxu0 0.0
      %5340 = vmatprep.subr.mxu0 0.0
      %5341 = vmatpush1.msra.mxu0 0.0
      %5342 = vmatprep.subr.mxu0 0.0
      %5343 = vmatpush1.msra.mxu0 0.0
      %5344 = vmatprep.subr.mxu0 0.0
      %5345 = vmatpush1.msra.mxu0 0.0
      %5346 = vmatprep.subr.mxu0 0.0
      %5347 = vmatpush1.msra.mxu0 0.0
      %5348 = vmatprep.subr.mxu0 0.0
      %5349 = vmatpush1.msra.mxu0 0.0
      %5350 = vmatprep.subr.mxu0 0.0
      %5351 = vmatpush1.msra.mxu0 0.0
      %5352 = vmatprep.subr.mxu0 0.0
      %5353 = vmatpush1.msra.mxu0 0.0
      %5354 = vmatprep.subr.mxu0 0.0
      %5355 = vmatpush1.msra.mxu0 0.0
      %5356 = vmatprep.subr.mxu0 0.0
      %5357 = vmatpush1.msra.mxu0 0.0
      %5358 = vmatprep.subr.mxu0 0.0
      %5359 = vmatpush1.msra.mxu0 0.0
      %5360 = vmatprep.subr.mxu0 0.0
      %5361 = vmatpush1.msra.mxu0 0.0
      %5362 = vmatprep.subr.mxu0 0.0
      %5363 = vmatpush1.msra.mxu0 0.0
      %5364 = vmatprep.subr.mxu0 0.0
      %5365 = vmatpush1.msra.mxu0 0.0
      %5366 = vmatprep.subr.mxu0 0.0
      %5367 = vmatpush1.msra.mxu0 0.0
      %5368 = vmatprep.subr.mxu0 0.0
      %5369 = vmatpush1.msra.mxu0 0.0
      %5370 = vmatprep.subr.mxu0 0.0
      %5371 = vmatpush1.msra.mxu0 0.0
      %5372 = vmatprep.subr.mxu0 0.0
      %5373 = vmatpush1.msra.mxu0 0.0
      %5374 = vmatprep.subr.mxu0 0.0
      %5375 = vmatpush1.msra.mxu0 0.0
      %5376 = vmatprep.subr.mxu0 0.0
      %5377 = vmatpush1.msra.mxu0 0.0
      %5378 = vmatprep.subr.mxu0 0.0
      %5379 = vmatpush1.msra.mxu0 0.0
      %5380 = vmatprep.subr.mxu0 0.0
      %5381 = vmatpush1.msra.mxu0 0.0
      %5382 = vmatprep.subr.mxu0 0.0
      %5383 = vmatpush1.msra.mxu0 0.0
      %5384 = vmatprep.subr.mxu0 0.0
      %5385 = vmatpush1.msra.mxu0 0.0
      %5386 = vmatprep.subr.mxu0 0.0
      %5387 = vmatpush1.msra.mxu0 0.0
      %5388 = vmatprep.mubr.f32.mxu0 0.0
      %5389 = vmatmul.mubr.f32.gmra.mrb[0].mxu0 %v5226
      %v5390 = vpop.f32.mrb[0].mxu0
      %v5391 = vadd.f32 0.0, %v5390
      %v5392 = vpop.f32.mrb[0].mxu0
      %5393 = vmatprep.mubr.f32.mxu0 0.0
      %5394 = vmatmul.mubr.f32.gmra.mrb[0].mxu0 %v5229
      %v5395 = vpop.f32.mrb[0].mxu0
      %v5396 = vadd.f32 0.0, %v5395
      %v5397 = vpop.f32.mrb[0].mxu0
      %5398 = vmatprep.mubr.f32.mxu0 0.0
      %5399 = vmatmul.mubr.f32.gmra.mrb[0].mxu0 %v5232
      %v5400 = vpop.f32.mrb[0].mxu0
      %v5401 = vadd.f32 0.0, %v5400
      %v5402 = vpop.f32.mrb[0].mxu0
      %5403 = vmatprep.mubr.f32.mxu0 0.0
      %5404 = vmatmul.mubr.f32.gmra.mrb[0].mxu0 %v5235
      %v5405 = vpop.f32.mrb[0].mxu0
      %v5406 = vadd.f32 0.0, %v5405
      %v5407 = vpop.f32.mrb[0].mxu0
      %5408 = vmatprep.mubr.f32.mxu0 0.0
      %5409 = vmatmul.mubr.f32.gmra.mrb[0].mxu0 %v5238
      %v5410 = vpop.f32.mrb[0].mxu0
      %v5411 = vadd.f32 0.0, %v5410
      %v5412 = vpop.f32.mrb[0].mxu0
      %5413 = vmatprep.mubr.f32.mxu0 0.0
      %5414 = vmatmul.mubr.f32.gmra.mrb[0].mxu0 %v5241
      %v5415 = vpop.f32.mrb[0].mxu0
      %v5416 = vadd.f32 0.0, %v5415
      %v5417 = vpop.f32.mrb[0].mxu0
      %5418 = vmatprep.mubr.f32.mxu0 0.0
      %5419 = vmatmul.mubr.f32.gmra.mrb[0].mxu0 %v5244
      %v5420 = vpop.f32.mrb[0].mxu0
      %v5421 = vadd.f32 0.0, %v5420
      %v5422 = vpop.f32.mrb[0].mxu0
      %5423 = vmatprep.mubr.f32.mxu0 0.0
      %5424 = vmatmul.mubr.f32.gmra.mrb[0].mxu0 %v5247
      %v5425 = vpop.f32.mrb[0].mxu0
      %v5426 = vadd.f32 0.0, %v5425
      %v5427 = vpop.f32.mrb[0].mxu0
      %5428 = vmatprep.mubr.f32.mxu0 0.0
      %5429 = vmatmul.mubr.f32.gmra.mrb[0].mxu0 %v5250
      %v5430 = vpop.f32.mrb[0].mxu0
      %v5431 = vadd.f32 0.0, %v5430
      %v5432 = vpop.f32.mrb[0].mxu0
      %5433 = vmatprep.mubr.f32.mxu0 0.0
      %5434 = vmatmul.mubr.f32.gmra.mrb[0].mxu0 %v5253
      %v5435 = vpop.f32.mrb[0].mxu0
      %v5436 = vadd.f32 0.0, %v5435
      %v5437 = vpop.f32.mrb[0].mxu0
      %5438 = vmatprep.mubr.f32.mxu0 0.0
      %5439 = vmatmul.mubr.f32.gmra.mrb[0].mxu0 %v5256
      %v5440 = vpop.f32.mrb[0].mxu0
      %v5441 = vadd.f32 0.0, %v5440
      %v5442 = vpop.f32.mrb[0].mxu0
      %5443 = vmatprep.mubr.f32.mxu0 0.0
      %5444 = vmatmul.mubr.f32.gmra.mrb[0].mxu0 %v5259
      %v5445 = vpop.f32.mrb[0].mxu0
      %v5446 = vadd.f32 0.0, %v5445
      %v5447 = vpop.f32.mrb[0].mxu0
      %5448 = vmatprep.mubr.f32.mxu0 0.0
      %5449 = vmatmul.mubr.f32.gmra.mrb[0].mxu0 %v5262
      %v5450 = vpop.f32.mrb[0].mxu0
      %v5451 = vadd.f32 0.0, %v5450
      %v5452 = vpop.f32.mrb[0].mxu0
      %5453 = vmatprep.mubr.f32.mxu0 0.0
      %5454 = vmatmul.mubr.f32.gmra.mrb[0].mxu0 %v5265
      %v5455 = vpop.f32.mrb[0].mxu0
      %v5456 = vadd.f32 0.0, %v5455
      %v5457 = vpop.f32.mrb[0].mxu0
      %5458 = vmatprep.mubr.f32.mxu0 0.0
      %5459 = vmatmul.mubr.f32.gmra.mrb[0].mxu0 %v5268
      %v5460 = vpop.f32.mrb[0].mxu0
      %v5461 = vadd.f32 0.0, %v5460
      %v5462 = vpop.f32.mrb[0].mxu0
      %5463 = vmatprep.mubr.f32.mxu0 0.0
      %5464 = vmatmul.mubr.f32.gmra.mrb[0].mxu0 %v5271
      %v5465 = vpop.f32.mrb[0].mxu0
      %v5466 = vadd.f32 0.0, %v5465
      %v5467 = vpop.f32.mrb[0].mxu0
      %5468 = vmatprep.mubr.f32.mxu0 0.0
      %5469 = vmatmul.mubr.f32.gmra.mrb[0].mxu0 %v5274
      %v5470 = vpop.f32.mrb[0].mxu0
      %v5471 = vadd.f32 0.0, %v5470
      %v5472 = vpop.f32.mrb[0].mxu0
      %5473 = vmatprep.mubr.f32.mxu0 0.0
      %5474 = vmatmul.mubr.f32.gmra.mrb[0].mxu0 %v5277
      %v5475 = vpop.f32.mrb[0].mxu0
      %v5476 = vadd.f32 0.0, %v5475
      %v5477 = vpop.f32.mrb[0].mxu0
      %5478 = vmatprep.mubr.f32.mxu0 0.0
      %5479 = vmatmul.mubr.f32.gmra.mrb[0].mxu0 %v5280
      %v5480 = vpop.f32.mrb[0].mxu0
      %v5481 = vadd.f32 0.0, %v5480
      %v5482 = vpop.f32.mrb[0].mxu0
      %5483 = vmatprep.mubr.f32.mxu0 0.0
      %5484 = vmatmul.mubr.f32.gmra.mrb[0].mxu0 %v5283
      %v5485 = vpop.f32.mrb[0].mxu0
      %v5486 = vadd.f32 0.0, %v5485
      %v5487 = vpop.f32.mrb[0].mxu0
      %5488 = vmatprep.mubr.f32.mxu0 0.0
      %5489 = vmatmul.mubr.f32.gmra.mrb[0].mxu0 %v5286
      %v5490 = vpop.f32.mrb[0].mxu0
      %v5491 = vadd.f32 0.0, %v5490
      %v5492 = vpop.f32.mrb[0].mxu0
      %5493 = vmatprep.mubr.f32.mxu0 0.0
      %5494 = vmatmul.mubr.f32.gmra.mrb[0].mxu0 %v5289
      %v5495 = vpop.f32.mrb[0].mxu0
      %v5496 = vadd.f32 0.0, %v5495
      %v5497 = vpop.f32.mrb[0].mxu0
      %5498 = vmatprep.mubr.f32.mxu0 0.0
      %5499 = vmatmul.mubr.f32.gmra.mrb[0].mxu0 %v5292
      %v5500 = vpop.f32.mrb[0].mxu0
      %v5501 = vadd.f32 0.0, %v5500
      %v5502 = vpop.f32.mrb[0].mxu0
      %5503 = vmatprep.mubr.f32.mxu0 0.0
      %5504 = vmatmul.mubr.f32.gmra.mrb[0].mxu0 %v5295
      %v5505 = vpop.f32.mrb[0].mxu0
      %v5506 = vadd.f32 0.0, %v5505
      %v5507 = vpop.f32.mrb[0].mxu0
      %5508 = vmatprep.mubr.f32.mxu0 0.0
      %5509 = vmatmul.mubr.f32.gmra.mrb[0].mxu0 %v5298
      %v5510 = vpop.f32.mrb[0].mxu0
      %v5511 = vadd.f32 0.0, %v5510
      %v5512 = vpop.f32.mrb[0].mxu0
      %5513 = vmatprep.mubr.f32.mxu0 0.0
      %5514 = vmatmul.mubr.f32.gmra.mrb[0].mxu0 %v5301
      %v5515 = vpop.f32.mrb[0].mxu0
      %v5516 = vadd.f32 0.0, %v5515
      %v5517 = vpop.f32.mrb[0].mxu0
      %5518 = vmatprep.mubr.f32.mxu0 0.0
      %5519 = vmatmul.mubr.f32.gmra.mrb[0].mxu0 %v5304
      %v5520 = vpop.f32.mrb[0].mxu0
      %v5521 = vadd.f32 0.0, %v5520
      %v5522 = vpop.f32.mrb[0].mxu0
      %5523 = vmatprep.mubr.f32.mxu0 0.0
      %5524 = vmatmul.mubr.f32.gmra.mrb[0].mxu0 %v5307
      %v5525 = vpop.f32.mrb[0].mxu0
      %v5526 = vadd.f32 0.0, %v5525
      %v5527 = vpop.f32.mrb[0].mxu0
      %5528 = vmatprep.mubr.f32.mxu0 0.0
      %5529 = vmatmul.mubr.f32.gmra.mrb[0].mxu0 %v5310
      %v5530 = vpop.f32.mrb[0].mxu0
      %v5531 = vadd.f32 0.0, %v5530
      %v5532 = vpop.f32.mrb[0].mxu0
      %5533 = vmatprep.mubr.f32.mxu0 0.0
      %5534 = vmatmul.mubr.f32.gmra.mrb[0].mxu0 %v5313
      %v5535 = vpop.f32.mrb[0].mxu0
      %v5536 = vadd.f32 0.0, %v5535
      %v5537 = vpop.f32.mrb[0].mxu0
      %5538 = vmatprep.mubr.f32.mxu0 0.0
      %5539 = vmatmul.mubr.f32.gmra.mrb[0].mxu0 %v5316
      %v5540 = vpop.f32.mrb[0].mxu0
      %v5541 = vadd.f32 0.0, %v5540
      %v5542 = vpop.f32.mrb[0].mxu0
      %5543 = vmatprep.mubr.f32.mxu0 0.0
      %5544 = vmatmul.mubr.f32.gmra.mrb[0].mxu0 %v5319
      %v5545 = vpop.f32.mrb[0].mxu0
      %v5546 = vadd.f32 0.0, %v5545
      %v5547 = vpop.f32.mrb[0].mxu0
      %5548 = vdwg.mxu0
      %v5549 = vadd.f32 %v5159, %v5391
      %v5550 = vadd.f32 %v5160, %v5396
      %v5551 = vadd.f32 %v5161, %v5401
      %v5552 = vadd.f32 %v5162, %v5406
      %v5553 = vadd.f32 %v5163, %v5411
      %v5554 = vadd.f32 %v5164, %v5416
      %v5555 = vadd.f32 %v5165, %v5421
      %v5556 = vadd.f32 %v5166, %v5426
      %v5557 = vadd.f32 %v5167, %v5431
      %v5558 = vadd.f32 %v5168, %v5436
      %v5559 = vadd.f32 %v5169, %v5441
      %v5560 = vadd.f32 %v5170, %v5446
      %v5561 = vadd.f32 %v5171, %v5451
      %v5562 = vadd.f32 %v5172, %v5456
      %v5563 = vadd.f32 %v5173, %v5461
      %v5564 = vadd.f32 %v5174, %v5466
      %v5565 = vadd.f32 %v5175, %v5471
      %v5566 = vadd.f32 %v5176, %v5476
      %v5567 = vadd.f32 %v5177, %v5481
      %v5568 = vadd.f32 %v5178, %v5486
      %v5569 = vadd.f32 %v5179, %v5491
      %v5570 = vadd.f32 %v5180, %v5496
      %v5571 = vadd.f32 %v5181, %v5501
      %v5572 = vadd.f32 %v5182, %v5506
      %v5573 = vadd.f32 %v5183, %v5511
      %v5574 = vadd.f32 %v5184, %v5516
      %v5575 = vadd.f32 %v5185, %v5521
      %v5576 = vadd.f32 %v5186, %v5526
      %v5577 = vadd.f32 %v5187, %v5531
      %v5578 = vadd.f32 %v5188, %v5536
      %v5579 = vadd.f32 %v5189, %v5541
      %v5580 = vadd.f32 %v5190, %v5546
      %v5581 = vld [vmem:[%s4053 + $0x1] sm:$0xff]
      %v5582 = vld [vmem:[%s4053 + $0x9] sm:$0xff]
      %v5583 = vld [vmem:[%s4053 + $0x19] sm:$0xff]
      %v5584 = vld [vmem:[%s4053 + $0x21] sm:$0xff]
      %v5585 = vld [vmem:[%s4053 + $0x31] sm:$0xff]
      %v5586 = vld [vmem:[%s4053 + $0x39] sm:$0xff]
      %v5587 = vld [vmem:[%s4053 + $0x49] sm:$0xff]
      %v5588 = vld [vmem:[%s4053 + $0x51] sm:$0xff]
      %v5589 = vld [vmem:[%s4053 + $0x61] sm:$0xff]
      %v5590 = vld [vmem:[%s4053 + $0x69] sm:$0xff]
      %v5591 = vld [vmem:[%s4053 + $0x79] sm:$0xff]
      %v5592 = vld [vmem:[%s4053 + $0x81] sm:$0xff]
      %v5593 = vld [vmem:[%s4053 + $0x91] sm:$0xff]
      %v5594 = vld [vmem:[%s4053 + $0x99] sm:$0xff]
      %v5595 = vld [vmem:[%s4053 + $0xa9] sm:$0xff]
      %v5596 = vld [vmem:[%s4053 + $0xb1] sm:$0xff]
      %v5597 = vld [vmem:[%s4053 + $0xc1] sm:$0xff]
      %v5598 = vld [vmem:[%s4053 + $0xc9] sm:$0xff]
      %v5599 = vld [vmem:[%s4053 + $0xd9] sm:$0xff]
      %v5600 = vld [vmem:[%s4053 + $0xe1] sm:$0xff]
      %v5601 = vld [vmem:[%s4053 + $0xf1] sm:$0xff]
      %v5602 = vld [vmem:[%s4053 + $0xf9] sm:$0xff]
      %v5603 = vld [vmem:[%s4053 + $0x109] sm:$0xff]
      %v5604 = vld [vmem:[%s4053 + $0x111] sm:$0xff]
      %v5605 = vld [vmem:[%s4053 + $0x121] sm:$0xff]
      %v5606 = vld [vmem:[%s4053 + $0x129] sm:$0xff]
      %v5607 = vld [vmem:[%s4053 + $0x139] sm:$0xff]
      %v5608 = vld [vmem:[%s4053 + $0x141] sm:$0xff]
      %v5609 = vld [vmem:[%s4053 + $0x151] sm:$0xff]
      %v5610 = vld [vmem:[%s4053 + $0x159] sm:$0xff]
      %v5611 = vld [vmem:[%s4053 + $0x169] sm:$0xff]
      %v5612 = vld [vmem:[%s4053 + $0x171] sm:$0xff]
      %s5613 = scalar_lea.vmem %s4, 16
      %v5614 = vld [vmem:[%s5613] sm:$0xf]
      %v5616 = vsel %vm346, %v5581, 0
      %v5619 = vsel %vm346, %v5582, 0
      %v5622 = vsel %vm346, %v5583, 0
      %v5625 = vsel %vm346, %v5584, 0
      %v5628 = vsel %vm346, %v5585, 0
      %v5631 = vsel %vm346, %v5586, 0
      %v5634 = vsel %vm346, %v5587, 0
      %v5637 = vsel %vm346, %v5588, 0
      %v5640 = vsel %vm346, %v5589, 0
      %v5643 = vsel %vm346, %v5590, 0
      %v5646 = vsel %vm346, %v5591, 0
      %v5649 = vsel %vm346, %v5592, 0
      %v5652 = vsel %vm346, %v5593, 0
      %v5655 = vsel %vm346, %v5594, 0
      %v5658 = vsel %vm346, %v5595, 0
      %v5661 = vsel %vm346, %v5596, 0
      %v5664 = vsel %vm346, %v5597, 0
      %v5667 = vsel %vm346, %v5598, 0
      %v5670 = vsel %vm346, %v5599, 0
      %v5673 = vsel %vm346, %v5600, 0
      %v5676 = vsel %vm346, %v5601, 0
      %v5679 = vsel %vm346, %v5602, 0
      %v5682 = vsel %vm346, %v5603, 0
      %v5685 = vsel %vm346, %v5604, 0
      %v5688 = vsel %vm346, %v5605, 0
      %v5691 = vsel %vm346, %v5606, 0
      %v5694 = vsel %vm346, %v5607, 0
      %v5697 = vsel %vm346, %v5608, 0
      %v5700 = vsel %vm346, %v5609, 0
      %v5703 = vsel %vm346, %v5610, 0
      %v5706 = vsel %vm346, %v5611, 0
      %v5709 = vsel %vm346, %v5612, 0
      %v5712 = vsel %vm443, %v5614, 0
      %5714 = vmatprep.subr.mxu0 0.0
      %5715 = vmatpush1.msra.mxu0 %v5712
      %5716 = vmatprep.subr.mxu0 0.0
      %5717 = vmatpush1.msra.mxu0 0.0
      %5718 = vmatprep.subr.mxu0 0.0
      %5719 = vmatpush1.msra.mxu0 0.0
      %5720 = vmatprep.subr.mxu0 0.0
      %5721 = vmatpush1.msra.mxu0 0.0
      %5722 = vmatprep.subr.mxu0 0.0
      %5723 = vmatpush1.msra.mxu0 0.0
      %5724 = vmatprep.subr.mxu0 0.0
      %5725 = vmatpush1.msra.mxu0 0.0
      %5726 = vmatprep.subr.mxu0 0.0
      %5727 = vmatpush1.msra.mxu0 0.0
      %5728 = vmatprep.subr.mxu0 0.0
      %5729 = vmatpush1.msra.mxu0 0.0
      %5730 = vmatprep.subr.mxu0 0.0
      %5731 = vmatpush1.msra.mxu0 0.0
      %5732 = vmatprep.subr.mxu0 0.0
      %5733 = vmatpush1.msra.mxu0 0.0
      %5734 = vmatprep.subr.mxu0 0.0
      %5735 = vmatpush1.msra.mxu0 0.0
      %5736 = vmatprep.subr.mxu0 0.0
      %5737 = vmatpush1.msra.mxu0 0.0
      %5738 = vmatprep.subr.mxu0 0.0
      %5739 = vmatpush1.msra.mxu0 0.0
      %5740 = vmatprep.subr.mxu0 0.0
      %5741 = vmatpush1.msra.mxu0 0.0
      %5742 = vmatprep.subr.mxu0 0.0
      %5743 = vmatpush1.msra.mxu0 0.0
      %5744 = vmatprep.subr.mxu0 0.0
      %5745 = vmatpush1.msra.mxu0 0.0
      %5746 = vmatprep.subr.mxu0 0.0
      %5747 = vmatpush1.msra.mxu0 0.0
      %5748 = vmatprep.subr.mxu0 0.0
      %5749 = vmatpush1.msra.mxu0 0.0
      %5750 = vmatprep.subr.mxu0 0.0
      %5751 = vmatpush1.msra.mxu0 0.0
      %5752 = vmatprep.subr.mxu0 0.0
      %5753 = vmatpush1.msra.mxu0 0.0
      %5754 = vmatprep.subr.mxu0 0.0
      %5755 = vmatpush1.msra.mxu0 0.0
      %5756 = vmatprep.subr.mxu0 0.0
      %5757 = vmatpush1.msra.mxu0 0.0
      %5758 = vmatprep.subr.mxu0 0.0
      %5759 = vmatpush1.msra.mxu0 0.0
      %5760 = vmatprep.subr.mxu0 0.0
      %5761 = vmatpush1.msra.mxu0 0.0
      %5762 = vmatprep.subr.mxu0 0.0
      %5763 = vmatpush1.msra.mxu0 0.0
      %5764 = vmatprep.subr.mxu0 0.0
      %5765 = vmatpush1.msra.mxu0 0.0
      %5766 = vmatprep.subr.mxu0 0.0
      %5767 = vmatpush1.msra.mxu0 0.0
      %5768 = vmatprep.subr.mxu0 0.0
      %5769 = vmatpush1.msra.mxu0 0.0
      %5770 = vmatprep.subr.mxu0 0.0
      %5771 = vmatpush1.msra.mxu0 0.0
      %5772 = vmatprep.subr.mxu0 0.0
      %5773 = vmatpush1.msra.mxu0 0.0
      %5774 = vmatprep.subr.mxu0 0.0
      %5775 = vmatpush1.msra.mxu0 0.0
      %5776 = vmatprep.subr.mxu0 0.0
      %5777 = vmatpush1.msra.mxu0 0.0
      %5778 = vmatprep.mubr.f32.mxu0 0.0
      %5779 = vmatmul.mubr.f32.gmra.mrb[0].mxu0 %v5616
      %v5780 = vpop.f32.mrb[0].mxu0
      %v5781 = vadd.f32 0.0, %v5780
      %v5782 = vpop.f32.mrb[0].mxu0
      %5783 = vmatprep.mubr.f32.mxu0 0.0
      %5784 = vmatmul.mubr.f32.gmra.mrb[0].mxu0 %v5619
      %v5785 = vpop.f32.mrb[0].mxu0
      %v5786 = vadd.f32 0.0, %v5785
      %v5787 = vpop.f32.mrb[0].mxu0
      %5788 = vmatprep.mubr.f32.mxu0 0.0
      %5789 = vmatmul.mubr.f32.gmra.mrb[0].mxu0 %v5622
      %v5790 = vpop.f32.mrb[0].mxu0
      %v5791 = vadd.f32 0.0, %v5790
      %v5792 = vpop.f32.mrb[0].mxu0
      %5793 = vmatprep.mubr.f32.mxu0 0.0
      %5794 = vmatmul.mubr.f32.gmra.mrb[0].mxu0 %v5625
      %v5795 = vpop.f32.mrb[0].mxu0
      %v5796 = vadd.f32 0.0, %v5795
      %v5797 = vpop.f32.mrb[0].mxu0
      %5798 = vmatprep.mubr.f32.mxu0 0.0
      %5799 = vmatmul.mubr.f32.gmra.mrb[0].mxu0 %v5628
      %v5800 = vpop.f32.mrb[0].mxu0
      %v5801 = vadd.f32 0.0, %v5800
      %v5802 = vpop.f32.mrb[0].mxu0
      %5803 = vmatprep.mubr.f32.mxu0 0.0
      %5804 = vmatmul.mubr.f32.gmra.mrb[0].mxu0 %v5631
      %v5805 = vpop.f32.mrb[0].mxu0
      %v5806 = vadd.f32 0.0, %v5805
      %v5807 = vpop.f32.mrb[0].mxu0
      %5808 = vmatprep.mubr.f32.mxu0 0.0
      %5809 = vmatmul.mubr.f32.gmra.mrb[0].mxu0 %v5634
      %v5810 = vpop.f32.mrb[0].mxu0
      %v5811 = vadd.f32 0.0, %v5810
      %v5812 = vpop.f32.mrb[0].mxu0
      %5813 = vmatprep.mubr.f32.mxu0 0.0
      %5814 = vmatmul.mubr.f32.gmra.mrb[0].mxu0 %v5637
      %v5815 = vpop.f32.mrb[0].mxu0
      %v5816 = vadd.f32 0.0, %v5815
      %v5817 = vpop.f32.mrb[0].mxu0
      %5818 = vmatprep.mubr.f32.mxu0 0.0
      %5819 = vmatmul.mubr.f32.gmra.mrb[0].mxu0 %v5640
      %v5820 = vpop.f32.mrb[0].mxu0
      %v5821 = vadd.f32 0.0, %v5820
      %v5822 = vpop.f32.mrb[0].mxu0
      %5823 = vmatprep.mubr.f32.mxu0 0.0
      %5824 = vmatmul.mubr.f32.gmra.mrb[0].mxu0 %v5643
      %v5825 = vpop.f32.mrb[0].mxu0
      %v5826 = vadd.f32 0.0, %v5825
      %v5827 = vpop.f32.mrb[0].mxu0
      %5828 = vmatprep.mubr.f32.mxu0 0.0
      %5829 = vmatmul.mubr.f32.gmra.mrb[0].mxu0 %v5646
      %v5830 = vpop.f32.mrb[0].mxu0
      %v5831 = vadd.f32 0.0, %v5830
      %v5832 = vpop.f32.mrb[0].mxu0
      %5833 = vmatprep.mubr.f32.mxu0 0.0
      %5834 = vmatmul.mubr.f32.gmra.mrb[0].mxu0 %v5649
      %v5835 = vpop.f32.mrb[0].mxu0
      %v5836 = vadd.f32 0.0, %v5835
      %v5837 = vpop.f32.mrb[0].mxu0
      %5838 = vmatprep.mubr.f32.mxu0 0.0
      %5839 = vmatmul.mubr.f32.gmra.mrb[0].mxu0 %v5652
      %v5840 = vpop.f32.mrb[0].mxu0
      %v5841 = vadd.f32 0.0, %v5840
      %v5842 = vpop.f32.mrb[0].mxu0
      %5843 = vmatprep.mubr.f32.mxu0 0.0
      %5844 = vmatmul.mubr.f32.gmra.mrb[0].mxu0 %v5655
      %v5845 = vpop.f32.mrb[0].mxu0
      %v5846 = vadd.f32 0.0, %v5845
      %v5847 = vpop.f32.mrb[0].mxu0
      %5848 = vmatprep.mubr.f32.mxu0 0.0
      %5849 = vmatmul.mubr.f32.gmra.mrb[0].mxu0 %v5658
      %v5850 = vpop.f32.mrb[0].mxu0
      %v5851 = vadd.f32 0.0, %v5850
      %v5852 = vpop.f32.mrb[0].mxu0
      %5853 = vmatprep.mubr.f32.mxu0 0.0
      %5854 = vmatmul.mubr.f32.gmra.mrb[0].mxu0 %v5661
      %v5855 = vpop.f32.mrb[0].mxu0
      %v5856 = vadd.f32 0.0, %v5855
      %v5857 = vpop.f32.mrb[0].mxu0
      %5858 = vmatprep.mubr.f32.mxu0 0.0
      %5859 = vmatmul.mubr.f32.gmra.mrb[0].mxu0 %v5664
      %v5860 = vpop.f32.mrb[0].mxu0
      %v5861 = vadd.f32 0.0, %v5860
      %v5862 = vpop.f32.mrb[0].mxu0
      %5863 = vmatprep.mubr.f32.mxu0 0.0
      %5864 = vmatmul.mubr.f32.gmra.mrb[0].mxu0 %v5667
      %v5865 = vpop.f32.mrb[0].mxu0
      %v5866 = vadd.f32 0.0, %v5865
      %v5867 = vpop.f32.mrb[0].mxu0
      %5868 = vmatprep.mubr.f32.mxu0 0.0
      %5869 = vmatmul.mubr.f32.gmra.mrb[0].mxu0 %v5670
      %v5870 = vpop.f32.mrb[0].mxu0
      %v5871 = vadd.f32 0.0, %v5870
      %v5872 = vpop.f32.mrb[0].mxu0
      %5873 = vmatprep.mubr.f32.mxu0 0.0
      %5874 = vmatmul.mubr.f32.gmra.mrb[0].mxu0 %v5673
      %v5875 = vpop.f32.mrb[0].mxu0
      %v5876 = vadd.f32 0.0, %v5875
      %v5877 = vpop.f32.mrb[0].mxu0
      %5878 = vmatprep.mubr.f32.mxu0 0.0
      %5879 = vmatmul.mubr.f32.gmra.mrb[0].mxu0 %v5676
      %v5880 = vpop.f32.mrb[0].mxu0
      %v5881 = vadd.f32 0.0, %v5880
      %v5882 = vpop.f32.mrb[0].mxu0
      %5883 = vmatprep.mubr.f32.mxu0 0.0
      %5884 = vmatmul.mubr.f32.gmra.mrb[0].mxu0 %v5679
      %v5885 = vpop.f32.mrb[0].mxu0
      %v5886 = vadd.f32 0.0, %v5885
      %v5887 = vpop.f32.mrb[0].mxu0
      %5888 = vmatprep.mubr.f32.mxu0 0.0
      %5889 = vmatmul.mubr.f32.gmra.mrb[0].mxu0 %v5682
      %v5890 = vpop.f32.mrb[0].mxu0
      %v5891 = vadd.f32 0.0, %v5890
      %v5892 = vpop.f32.mrb[0].mxu0
      %5893 = vmatprep.mubr.f32.mxu0 0.0
      %5894 = vmatmul.mubr.f32.gmra.mrb[0].mxu0 %v5685
      %v5895 = vpop.f32.mrb[0].mxu0
      %v5896 = vadd.f32 0.0, %v5895
      %v5897 = vpop.f32.mrb[0].mxu0
      %5898 = vmatprep.mubr.f32.mxu0 0.0
      %5899 = vmatmul.mubr.f32.gmra.mrb[0].mxu0 %v5688
      %v5900 = vpop.f32.mrb[0].mxu0
      %v5901 = vadd.f32 0.0, %v5900
      %v5902 = vpop.f32.mrb[0].mxu0
      %5903 = vmatprep.mubr.f32.mxu0 0.0
      %5904 = vmatmul.mubr.f32.gmra.mrb[0].mxu0 %v5691
      %v5905 = vpop.f32.mrb[0].mxu0
      %v5906 = vadd.f32 0.0, %v5905
      %v5907 = vpop.f32.mrb[0].mxu0
      %5908 = vmatprep.mubr.f32.mxu0 0.0
      %5909 = vmatmul.mubr.f32.gmra.mrb[0].mxu0 %v5694
      %v5910 = vpop.f32.mrb[0].mxu0
      %v5911 = vadd.f32 0.0, %v5910
      %v5912 = vpop.f32.mrb[0].mxu0
      %5913 = vmatprep.mubr.f32.mxu0 0.0
      %5914 = vmatmul.mubr.f32.gmra.mrb[0].mxu0 %v5697
      %v5915 = vpop.f32.mrb[0].mxu0
      %v5916 = vadd.f32 0.0, %v5915
      %v5917 = vpop.f32.mrb[0].mxu0
      %5918 = vmatprep.mubr.f32.mxu0 0.0
      %5919 = vmatmul.mubr.f32.gmra.mrb[0].mxu0 %v5700
      %v5920 = vpop.f32.mrb[0].mxu0
      %v5921 = vadd.f32 0.0, %v5920
      %v5922 = vpop.f32.mrb[0].mxu0
      %5923 = vmatprep.mubr.f32.mxu0 0.0
      %5924 = vmatmul.mubr.f32.gmra.mrb[0].mxu0 %v5703
      %v5925 = vpop.f32.mrb[0].mxu0
      %v5926 = vadd.f32 0.0, %v5925
      %v5927 = vpop.f32.mrb[0].mxu0
      %5928 = vmatprep.mubr.f32.mxu0 0.0
      %5929 = vmatmul.mubr.f32.gmra.mrb[0].mxu0 %v5706
      %v5930 = vpop.f32.mrb[0].mxu0
      %v5931 = vadd.f32 0.0, %v5930
      %v5932 = vpop.f32.mrb[0].mxu0
      %5933 = vmatprep.mubr.f32.mxu0 0.0
      %5934 = vmatmul.mubr.f32.gmra.mrb[0].mxu0 %v5709
      %v5935 = vpop.f32.mrb[0].mxu0
      %v5936 = vadd.f32 0.0, %v5935
      %v5937 = vpop.f32.mrb[0].mxu0
      %5938 = vdwg.mxu0
      %v5939 = vadd.f32 %v5549, %v5781
      %v5940 = vadd.f32 %v5550, %v5786
      %v5941 = vadd.f32 %v5551, %v5791
      %v5942 = vadd.f32 %v5552, %v5796
      %v5943 = vadd.f32 %v5553, %v5801
      %v5944 = vadd.f32 %v5554, %v5806
      %v5945 = vadd.f32 %v5555, %v5811
      %v5946 = vadd.f32 %v5556, %v5816
      %v5947 = vadd.f32 %v5557, %v5821
      %v5948 = vadd.f32 %v5558, %v5826
      %v5949 = vadd.f32 %v5559, %v5831
      %v5950 = vadd.f32 %v5560, %v5836
      %v5951 = vadd.f32 %v5561, %v5841
      %v5952 = vadd.f32 %v5562, %v5846
      %v5953 = vadd.f32 %v5563, %v5851
      %v5954 = vadd.f32 %v5564, %v5856
      %v5955 = vadd.f32 %v5565, %v5861
      %v5956 = vadd.f32 %v5566, %v5866
      %v5957 = vadd.f32 %v5567, %v5871
      %v5958 = vadd.f32 %v5568, %v5876
      %v5959 = vadd.f32 %v5569, %v5881
      %v5960 = vadd.f32 %v5570, %v5886
      %v5961 = vadd.f32 %v5571, %v5891
      %v5962 = vadd.f32 %v5572, %v5896
      %v5963 = vadd.f32 %v5573, %v5901
      %v5964 = vadd.f32 %v5574, %v5906
      %v5965 = vadd.f32 %v5575, %v5911
      %v5966 = vadd.f32 %v5576, %v5916
      %v5967 = vadd.f32 %v5577, %v5921
      %v5968 = vadd.f32 %v5578, %v5926
      %v5969 = vadd.f32 %v5579, %v5931
      %v5970 = vadd.f32 %v5580, %v5936
      %v5971 = vld [vmem:[%s4053 + $0x2] sm:$0xff]
      %v5972 = vld [vmem:[%s4053 + $0xa] sm:$0xff]
      %v5973 = vld [vmem:[%s4053 + $0x1a] sm:$0xff]
      %v5974 = vld [vmem:[%s4053 + $0x22] sm:$0xff]
      %v5975 = vld [vmem:[%s4053 + $0x32] sm:$0xff]
      %v5976 = vld [vmem:[%s4053 + $0x3a] sm:$0xff]
      %v5977 = vld [vmem:[%s4053 + $0x4a] sm:$0xff]
      %v5978 = vld [vmem:[%s4053 + $0x52] sm:$0xff]
      %v5979 = vld [vmem:[%s4053 + $0x62] sm:$0xff]
      %v5980 = vld [vmem:[%s4053 + $0x6a] sm:$0xff]
      %v5981 = vld [vmem:[%s4053 + $0x7a] sm:$0xff]
      %v5982 = vld [vmem:[%s4053 + $0x82] sm:$0xff]
      %v5983 = vld [vmem:[%s4053 + $0x92] sm:$0xff]
      %v5984 = vld [vmem:[%s4053 + $0x9a] sm:$0xff]
      %v5985 = vld [vmem:[%s4053 + $0xaa] sm:$0xff]
      %v5986 = vld [vmem:[%s4053 + $0xb2] sm:$0xff]
      %v5987 = vld [vmem:[%s4053 + $0xc2] sm:$0xff]
      %v5988 = vld [vmem:[%s4053 + $0xca] sm:$0xff]
      %v5989 = vld [vmem:[%s4053 + $0xda] sm:$0xff]
      %v5990 = vld [vmem:[%s4053 + $0xe2] sm:$0xff]
      %v5991 = vld [vmem:[%s4053 + $0xf2] sm:$0xff]
      %v5992 = vld [vmem:[%s4053 + $0xfa] sm:$0xff]
      %v5993 = vld [vmem:[%s4053 + $0x10a] sm:$0xff]
      %v5994 = vld [vmem:[%s4053 + $0x112] sm:$0xff]
      %v5995 = vld [vmem:[%s4053 + $0x122] sm:$0xff]
      %v5996 = vld [vmem:[%s4053 + $0x12a] sm:$0xff]
      %v5997 = vld [vmem:[%s4053 + $0x13a] sm:$0xff]
      %v5998 = vld [vmem:[%s4053 + $0x142] sm:$0xff]
      %v5999 = vld [vmem:[%s4053 + $0x152] sm:$0xff]
      %v6000 = vld [vmem:[%s4053 + $0x15a] sm:$0xff]
      %v6001 = vld [vmem:[%s4053 + $0x16a] sm:$0xff]
      %v6002 = vld [vmem:[%s4053 + $0x172] sm:$0xff]
      %s6003 = scalar_lea.vmem %s4, 20
      %v6004 = vld [vmem:[%s6003] sm:$0xf]
      %v6006 = vsel %vm346, %v5971, 0
      %v6009 = vsel %vm346, %v5972, 0
      %v6012 = vsel %vm346, %v5973, 0
      %v6015 = vsel %vm346, %v5974, 0
      %v6018 = vsel %vm346, %v5975, 0
      %v6021 = vsel %vm346, %v5976, 0
      %v6024 = vsel %vm346, %v5977, 0
      %v6027 = vsel %vm346, %v5978, 0
      %v6030 = vsel %vm346, %v5979, 0
      %v6033 = vsel %vm346, %v5980, 0
      %v6036 = vsel %vm346, %v5981, 0
      %v6039 = vsel %vm346, %v5982, 0
      %v6042 = vsel %vm346, %v5983, 0
      %v6045 = vsel %vm346, %v5984, 0
      %v6048 = vsel %vm346, %v5985, 0
      %v6051 = vsel %vm346, %v5986, 0
      %v6054 = vsel %vm346, %v5987, 0
      %v6057 = vsel %vm346, %v5988, 0
      %v6060 = vsel %vm346, %v5989, 0
      %v6063 = vsel %vm346, %v5990, 0
      %v6066 = vsel %vm346, %v5991, 0
      %v6069 = vsel %vm346, %v5992, 0
      %v6072 = vsel %vm346, %v5993, 0
      %v6075 = vsel %vm346, %v5994, 0
      %v6078 = vsel %vm346, %v5995, 0
      %v6081 = vsel %vm346, %v5996, 0
      %v6084 = vsel %vm346, %v5997, 0
      %v6087 = vsel %vm346, %v5998, 0
      %v6090 = vsel %vm346, %v5999, 0
      %v6093 = vsel %vm346, %v6000, 0
      %v6096 = vsel %vm346, %v6001, 0
      %v6099 = vsel %vm346, %v6002, 0
      %v6102 = vsel %vm443, %v6004, 0
      %6104 = vmatprep.subr.mxu0 0.0
      %6105 = vmatpush1.msra.mxu0 %v6102
      %6106 = vmatprep.subr.mxu0 0.0
      %6107 = vmatpush1.msra.mxu0 0.0
      %6108 = vmatprep.subr.mxu0 0.0
      %6109 = vmatpush1.msra.mxu0 0.0
      %6110 = vmatprep.subr.mxu0 0.0
      %6111 = vmatpush1.msra.mxu0 0.0
      %6112 = vmatprep.subr.mxu0 0.0
      %6113 = vmatpush1.msra.mxu0 0.0
      %6114 = vmatprep.subr.mxu0 0.0
      %6115 = vmatpush1.msra.mxu0 0.0
      %6116 = vmatprep.subr.mxu0 0.0
      %6117 = vmatpush1.msra.mxu0 0.0
      %6118 = vmatprep.subr.mxu0 0.0
      %6119 = vmatpush1.msra.mxu0 0.0
      %6120 = vmatprep.subr.mxu0 0.0
      %6121 = vmatpush1.msra.mxu0 0.0
      %6122 = vmatprep.subr.mxu0 0.0
      %6123 = vmatpush1.msra.mxu0 0.0
      %6124 = vmatprep.subr.mxu0 0.0
      %6125 = vmatpush1.msra.mxu0 0.0
      %6126 = vmatprep.subr.mxu0 0.0
      %6127 = vmatpush1.msra.mxu0 0.0
      %6128 = vmatprep.subr.mxu0 0.0
      %6129 = vmatpush1.msra.mxu0 0.0
      %6130 = vmatprep.subr.mxu0 0.0
      %6131 = vmatpush1.msra.mxu0 0.0
      %6132 = vmatprep.subr.mxu0 0.0
      %6133 = vmatpush1.msra.mxu0 0.0
      %6134 = vmatprep.subr.mxu0 0.0
      %6135 = vmatpush1.msra.mxu0 0.0
      %6136 = vmatprep.subr.mxu0 0.0
      %6137 = vmatpush1.msra.mxu0 0.0
      %6138 = vmatprep.subr.mxu0 0.0
      %6139 = vmatpush1.msra.mxu0 0.0
      %6140 = vmatprep.subr.mxu0 0.0
      %6141 = vmatpush1.msra.mxu0 0.0
      %6142 = vmatprep.subr.mxu0 0.0
      %6143 = vmatpush1.msra.mxu0 0.0
      %6144 = vmatprep.subr.mxu0 0.0
      %6145 = vmatpush1.msra.mxu0 0.0
      %6146 = vmatprep.subr.mxu0 0.0
      %6147 = vmatpush1.msra.mxu0 0.0
      %6148 = vmatprep.subr.mxu0 0.0
      %6149 = vmatpush1.msra.mxu0 0.0
      %6150 = vmatprep.subr.mxu0 0.0
      %6151 = vmatpush1.msra.mxu0 0.0
      %6152 = vmatprep.subr.mxu0 0.0
      %6153 = vmatpush1.msra.mxu0 0.0
      %6154 = vmatprep.subr.mxu0 0.0
      %6155 = vmatpush1.msra.mxu0 0.0
      %6156 = vmatprep.subr.mxu0 0.0
      %6157 = vmatpush1.msra.mxu0 0.0
      %6158 = vmatprep.subr.mxu0 0.0
      %6159 = vmatpush1.msra.mxu0 0.0
      %6160 = vmatprep.subr.mxu0 0.0
      %6161 = vmatpush1.msra.mxu0 0.0
      %6162 = vmatprep.subr.mxu0 0.0
      %6163 = vmatpush1.msra.mxu0 0.0
      %6164 = vmatprep.subr.mxu0 0.0
      %6165 = vmatpush1.msra.mxu0 0.0
      %6166 = vmatprep.subr.mxu0 0.0
      %6167 = vmatpush1.msra.mxu0 0.0
      %6168 = vmatprep.mubr.f32.mxu0 0.0
      %6169 = vmatmul.mubr.f32.gmra.mrb[0].mxu0 %v6006
      %v6170 = vpop.f32.mrb[0].mxu0
      %v6171 = vadd.f32 0.0, %v6170
      %v6172 = vpop.f32.mrb[0].mxu0
      %6173 = vmatprep.mubr.f32.mxu0 0.0
      %6174 = vmatmul.mubr.f32.gmra.mrb[0].mxu0 %v6009
      %v6175 = vpop.f32.mrb[0].mxu0
      %v6176 = vadd.f32 0.0, %v6175
      %v6177 = vpop.f32.mrb[0].mxu0
      %6178 = vmatprep.mubr.f32.mxu0 0.0
      %6179 = vmatmul.mubr.f32.gmra.mrb[0].mxu0 %v6012
      %v6180 = vpop.f32.mrb[0].mxu0
      %v6181 = vadd.f32 0.0, %v6180
      %v6182 = vpop.f32.mrb[0].mxu0
      %6183 = vmatprep.mubr.f32.mxu0 0.0
      %6184 = vmatmul.mubr.f32.gmra.mrb[0].mxu0 %v6015
      %v6185 = vpop.f32.mrb[0].mxu0
      %v6186 = vadd.f32 0.0, %v6185
      %v6187 = vpop.f32.mrb[0].mxu0
      %6188 = vmatprep.mubr.f32.mxu0 0.0
      %6189 = vmatmul.mubr.f32.gmra.mrb[0].mxu0 %v6018
      %v6190 = vpop.f32.mrb[0].mxu0
      %v6191 = vadd.f32 0.0, %v6190
      %v6192 = vpop.f32.mrb[0].mxu0
      %6193 = vmatprep.mubr.f32.mxu0 0.0
      %6194 = vmatmul.mubr.f32.gmra.mrb[0].mxu0 %v6021
      %v6195 = vpop.f32.mrb[0].mxu0
      %v6196 = vadd.f32 0.0, %v6195
      %v6197 = vpop.f32.mrb[0].mxu0
      %6198 = vmatprep.mubr.f32.mxu0 0.0
      %6199 = vmatmul.mubr.f32.gmra.mrb[0].mxu0 %v6024
      %v6200 = vpop.f32.mrb[0].mxu0
      %v6201 = vadd.f32 0.0, %v6200
      %v6202 = vpop.f32.mrb[0].mxu0
      %6203 = vmatprep.mubr.f32.mxu0 0.0
      %6204 = vmatmul.mubr.f32.gmra.mrb[0].mxu0 %v6027
      %v6205 = vpop.f32.mrb[0].mxu0
      %v6206 = vadd.f32 0.0, %v6205
      %v6207 = vpop.f32.mrb[0].mxu0
      %6208 = vmatprep.mubr.f32.mxu0 0.0
      %6209 = vmatmul.mubr.f32.gmra.mrb[0].mxu0 %v6030
      %v6210 = vpop.f32.mrb[0].mxu0
      %v6211 = vadd.f32 0.0, %v6210
      %v6212 = vpop.f32.mrb[0].mxu0
      %6213 = vmatprep.mubr.f32.mxu0 0.0
      %6214 = vmatmul.mubr.f32.gmra.mrb[0].mxu0 %v6033
      %v6215 = vpop.f32.mrb[0].mxu0
      %v6216 = vadd.f32 0.0, %v6215
      %v6217 = vpop.f32.mrb[0].mxu0
      %6218 = vmatprep.mubr.f32.mxu0 0.0
      %6219 = vmatmul.mubr.f32.gmra.mrb[0].mxu0 %v6036
      %v6220 = vpop.f32.mrb[0].mxu0
      %v6221 = vadd.f32 0.0, %v6220
      %v6222 = vpop.f32.mrb[0].mxu0
      %6223 = vmatprep.mubr.f32.mxu0 0.0
      %6224 = vmatmul.mubr.f32.gmra.mrb[0].mxu0 %v6039
      %v6225 = vpop.f32.mrb[0].mxu0
      %v6226 = vadd.f32 0.0, %v6225
      %v6227 = vpop.f32.mrb[0].mxu0
      %6228 = vmatprep.mubr.f32.mxu0 0.0
      %6229 = vmatmul.mubr.f32.gmra.mrb[0].mxu0 %v6042
      %v6230 = vpop.f32.mrb[0].mxu0
      %v6231 = vadd.f32 0.0, %v6230
      %v6232 = vpop.f32.mrb[0].mxu0
      %6233 = vmatprep.mubr.f32.mxu0 0.0
      %6234 = vmatmul.mubr.f32.gmra.mrb[0].mxu0 %v6045
      %v6235 = vpop.f32.mrb[0].mxu0
      %v6236 = vadd.f32 0.0, %v6235
      %v6237 = vpop.f32.mrb[0].mxu0
      %6238 = vmatprep.mubr.f32.mxu0 0.0
      %6239 = vmatmul.mubr.f32.gmra.mrb[0].mxu0 %v6048
      %v6240 = vpop.f32.mrb[0].mxu0
      %v6241 = vadd.f32 0.0, %v6240
      %v6242 = vpop.f32.mrb[0].mxu0
      %6243 = vmatprep.mubr.f32.mxu0 0.0
      %6244 = vmatmul.mubr.f32.gmra.mrb[0].mxu0 %v6051
      %v6245 = vpop.f32.mrb[0].mxu0
      %v6246 = vadd.f32 0.0, %v6245
      %v6247 = vpop.f32.mrb[0].mxu0
      %6248 = vmatprep.mubr.f32.mxu0 0.0
      %6249 = vmatmul.mubr.f32.gmra.mrb[0].mxu0 %v6054
      %v6250 = vpop.f32.mrb[0].mxu0
      %v6251 = vadd.f32 0.0, %v6250
      %v6252 = vpop.f32.mrb[0].mxu0
      %6253 = vmatprep.mubr.f32.mxu0 0.0
      %6254 = vmatmul.mubr.f32.gmra.mrb[0].mxu0 %v6057
      %v6255 = vpop.f32.mrb[0].mxu0
      %v6256 = vadd.f32 0.0, %v6255
      %v6257 = vpop.f32.mrb[0].mxu0
      %6258 = vmatprep.mubr.f32.mxu0 0.0
      %6259 = vmatmul.mubr.f32.gmra.mrb[0].mxu0 %v6060
      %v6260 = vpop.f32.mrb[0].mxu0
      %v6261 = vadd.f32 0.0, %v6260
      %v6262 = vpop.f32.mrb[0].mxu0
      %6263 = vmatprep.mubr.f32.mxu0 0.0
      %6264 = vmatmul.mubr.f32.gmra.mrb[0].mxu0 %v6063
      %v6265 = vpop.f32.mrb[0].mxu0
      %v6266 = vadd.f32 0.0, %v6265
      %v6267 = vpop.f32.mrb[0].mxu0
      %6268 = vmatprep.mubr.f32.mxu0 0.0
      %6269 = vmatmul.mubr.f32.gmra.mrb[0].mxu0 %v6066
      %v6270 = vpop.f32.mrb[0].mxu0
      %v6271 = vadd.f32 0.0, %v6270
      %v6272 = vpop.f32.mrb[0].mxu0
      %6273 = vmatprep.mubr.f32.mxu0 0.0
      %6274 = vmatmul.mubr.f32.gmra.mrb[0].mxu0 %v6069
      %v6275 = vpop.f32.mrb[0].mxu0
      %v6276 = vadd.f32 0.0, %v6275
      %v6277 = vpop.f32.mrb[0].mxu0
      %6278 = vmatprep.mubr.f32.mxu0 0.0
      %6279 = vmatmul.mubr.f32.gmra.mrb[0].mxu0 %v6072
      %v6280 = vpop.f32.mrb[0].mxu0
      %v6281 = vadd.f32 0.0, %v6280
      %v6282 = vpop.f32.mrb[0].mxu0
      %6283 = vmatprep.mubr.f32.mxu0 0.0
      %6284 = vmatmul.mubr.f32.gmra.mrb[0].mxu0 %v6075
      %v6285 = vpop.f32.mrb[0].mxu0
      %v6286 = vadd.f32 0.0, %v6285
      %v6287 = vpop.f32.mrb[0].mxu0
      %6288 = vmatprep.mubr.f32.mxu0 0.0
      %6289 = vmatmul.mubr.f32.gmra.mrb[0].mxu0 %v6078
      %v6290 = vpop.f32.mrb[0].mxu0
      %v6291 = vadd.f32 0.0, %v6290
      %v6292 = vpop.f32.mrb[0].mxu0
      %6293 = vmatprep.mubr.f32.mxu0 0.0
      %6294 = vmatmul.mubr.f32.gmra.mrb[0].mxu0 %v6081
      %v6295 = vpop.f32.mrb[0].mxu0
      %v6296 = vadd.f32 0.0, %v6295
      %v6297 = vpop.f32.mrb[0].mxu0
      %6298 = vmatprep.mubr.f32.mxu0 0.0
      %6299 = vmatmul.mubr.f32.gmra.mrb[0].mxu0 %v6084
      %v6300 = vpop.f32.mrb[0].mxu0
      %v6301 = vadd.f32 0.0, %v6300
      %v6302 = vpop.f32.mrb[0].mxu0
      %6303 = vmatprep.mubr.f32.mxu0 0.0
      %6304 = vmatmul.mubr.f32.gmra.mrb[0].mxu0 %v6087
      %v6305 = vpop.f32.mrb[0].mxu0
      %v6306 = vadd.f32 0.0, %v6305
      %v6307 = vpop.f32.mrb[0].mxu0
      %6308 = vmatprep.mubr.f32.mxu0 0.0
      %6309 = vmatmul.mubr.f32.gmra.mrb[0].mxu0 %v6090
      %v6310 = vpop.f32.mrb[0].mxu0
      %v6311 = vadd.f32 0.0, %v6310
      %v6312 = vpop.f32.mrb[0].mxu0
      %6313 = vmatprep.mubr.f32.mxu0 0.0
      %6314 = vmatmul.mubr.f32.gmra.mrb[0].mxu0 %v6093
      %v6315 = vpop.f32.mrb[0].mxu0
      %v6316 = vadd.f32 0.0, %v6315
      %v6317 = vpop.f32.mrb[0].mxu0
      %6318 = vmatprep.mubr.f32.mxu0 0.0
      %6319 = vmatmul.mubr.f32.gmra.mrb[0].mxu0 %v6096
      %v6320 = vpop.f32.mrb[0].mxu0
      %v6321 = vadd.f32 0.0, %v6320
      %v6322 = vpop.f32.mrb[0].mxu0
      %6323 = vmatprep.mubr.f32.mxu0 0.0
      %6324 = vmatmul.mubr.f32.gmra.mrb[0].mxu0 %v6099
      %v6325 = vpop.f32.mrb[0].mxu0
      %v6326 = vadd.f32 0.0, %v6325
      %v6327 = vpop.f32.mrb[0].mxu0
      %6328 = vdwg.mxu0
      %v6329 = vadd.f32 %v5939, %v6171
      %v6330 = vadd.f32 %v5940, %v6176
      %v6331 = vadd.f32 %v5941, %v6181
      %v6332 = vadd.f32 %v5942, %v6186
      %v6333 = vadd.f32 %v5943, %v6191
      %v6334 = vadd.f32 %v5944, %v6196
      %v6335 = vadd.f32 %v5945, %v6201
      %v6336 = vadd.f32 %v5946, %v6206
      %v6337 = vadd.f32 %v5947, %v6211
      %v6338 = vadd.f32 %v5948, %v6216
      %v6339 = vadd.f32 %v5949, %v6221
      %v6340 = vadd.f32 %v5950, %v6226
      %v6341 = vadd.f32 %v5951, %v6231
      %v6342 = vadd.f32 %v5952, %v6236
      %v6343 = vadd.f32 %v5953, %v6241
      %v6344 = vadd.f32 %v5954, %v6246
      %v6345 = vadd.f32 %v5955, %v6251
      %v6346 = vadd.f32 %v5956, %v6256
      %v6347 = vadd.f32 %v5957, %v6261
      %v6348 = vadd.f32 %v5958, %v6266
      %v6349 = vadd.f32 %v5959, %v6271
      %v6350 = vadd.f32 %v5960, %v6276
      %v6351 = vadd.f32 %v5961, %v6281
      %v6352 = vadd.f32 %v5962, %v6286
      %v6353 = vadd.f32 %v5963, %v6291
      %v6354 = vadd.f32 %v5964, %v6296
      %v6355 = vadd.f32 %v5965, %v6301
      %v6356 = vadd.f32 %v5966, %v6306
      %v6357 = vadd.f32 %v5967, %v6311
      %v6358 = vadd.f32 %v5968, %v6316
      %v6359 = vadd.f32 %v5969, %v6321
      %v6360 = vadd.f32 %v5970, %v6326
      %s6361 = scalar_lea.vmem [#allocation2], 48
      %v6362 = vld [vmem:[%s6361] sm:$0xff]
      %v6363 = vld [vmem:[%s6361 + $0x8] sm:$0xff]
      %v6364 = vld [vmem:[%s6361 + $0x18] sm:$0xff]
      %v6365 = vld [vmem:[%s6361 + $0x20] sm:$0xff]
      %v6366 = vld [vmem:[%s6361 + $0x30] sm:$0xff]
      %v6367 = vld [vmem:[%s6361 + $0x38] sm:$0xff]
      %v6368 = vld [vmem:[%s6361 + $0x48] sm:$0xff]
      %v6369 = vld [vmem:[%s6361 + $0x50] sm:$0xff]
      %v6370 = vld [vmem:[%s6361 + $0x60] sm:$0xff]
      %v6371 = vld [vmem:[%s6361 + $0x68] sm:$0xff]
      %v6372 = vld [vmem:[%s6361 + $0x78] sm:$0xff]
      %v6373 = vld [vmem:[%s6361 + $0x80] sm:$0xff]
      %v6374 = vld [vmem:[%s6361 + $0x90] sm:$0xff]
      %v6375 = vld [vmem:[%s6361 + $0x98] sm:$0xff]
      %v6376 = vld [vmem:[%s6361 + $0xa8] sm:$0xff]
      %v6377 = vld [vmem:[%s6361 + $0xb0] sm:$0xff]
      %v6378 = vld [vmem:[%s6361 + $0xc0] sm:$0xff]
      %v6379 = vld [vmem:[%s6361 + $0xc8] sm:$0xff]
      %v6380 = vld [vmem:[%s6361 + $0xd8] sm:$0xff]
      %v6381 = vld [vmem:[%s6361 + $0xe0] sm:$0xff]
      %v6382 = vld [vmem:[%s6361 + $0xf0] sm:$0xff]
      %v6383 = vld [vmem:[%s6361 + $0xf8] sm:$0xff]
      %v6384 = vld [vmem:[%s6361 + $0x108] sm:$0xff]
      %v6385 = vld [vmem:[%s6361 + $0x110] sm:$0xff]
      %v6386 = vld [vmem:[%s6361 + $0x120] sm:$0xff]
      %v6387 = vld [vmem:[%s6361 + $0x128] sm:$0xff]
      %v6388 = vld [vmem:[%s6361 + $0x138] sm:$0xff]
      %v6389 = vld [vmem:[%s6361 + $0x140] sm:$0xff]
      %v6390 = vld [vmem:[%s6361 + $0x150] sm:$0xff]
      %v6391 = vld [vmem:[%s6361 + $0x158] sm:$0xff]
      %v6392 = vld [vmem:[%s6361 + $0x168] sm:$0xff]
      %v6393 = vld [vmem:[%s6361 + $0x170] sm:$0xff]
      %s6394 = scalar_lea.vmem %s4, 24
      %v6395 = vld [vmem:[%s6394] sm:$0xf]
      %v6397 = vsel %vm346, %v6362, 0
      %v6400 = vsel %vm346, %v6363, 0
      %v6403 = vsel %vm346, %v6364, 0
      %v6406 = vsel %vm346, %v6365, 0
      %v6409 = vsel %vm346, %v6366, 0
      %v6412 = vsel %vm346, %v6367, 0
      %v6415 = vsel %vm346, %v6368, 0
      %v6418 = vsel %vm346, %v6369, 0
      %v6421 = vsel %vm346, %v6370, 0
      %v6424 = vsel %vm346, %v6371, 0
      %v6427 = vsel %vm346, %v6372, 0
      %v6430 = vsel %vm346, %v6373, 0
      %v6433 = vsel %vm346, %v6374, 0
      %v6436 = vsel %vm346, %v6375, 0
      %v6439 = vsel %vm346, %v6376, 0
      %v6442 = vsel %vm346, %v6377, 0
      %v6445 = vsel %vm346, %v6378, 0
      %v6448 = vsel %vm346, %v6379, 0
      %v6451 = vsel %vm346, %v6380, 0
      %v6454 = vsel %vm346, %v6381, 0
      %v6457 = vsel %vm346, %v6382, 0
      %v6460 = vsel %vm346, %v6383, 0
      %v6463 = vsel %vm346, %v6384, 0
      %v6466 = vsel %vm346, %v6385, 0
      %v6469 = vsel %vm346, %v6386, 0
      %v6472 = vsel %vm346, %v6387, 0
      %v6475 = vsel %vm346, %v6388, 0
      %v6478 = vsel %vm346, %v6389, 0
      %v6481 = vsel %vm346, %v6390, 0
      %v6484 = vsel %vm346, %v6391, 0
      %v6487 = vsel %vm346, %v6392, 0
      %v6490 = vsel %vm346, %v6393, 0
      %v6493 = vsel %vm443, %v6395, 0
      %6495 = vmatprep.subr.mxu0 0.0
      %6496 = vmatpush1.msra.mxu0 %v6493
      %6497 = vmatprep.subr.mxu0 0.0
      %6498 = vmatpush1.msra.mxu0 0.0
      %6499 = vmatprep.subr.mxu0 0.0
      %6500 = vmatpush1.msra.mxu0 0.0
      %6501 = vmatprep.subr.mxu0 0.0
      %6502 = vmatpush1.msra.mxu0 0.0
      %6503 = vmatprep.subr.mxu0 0.0
      %6504 = vmatpush1.msra.mxu0 0.0
      %6505 = vmatprep.subr.mxu0 0.0
      %6506 = vmatpush1.msra.mxu0 0.0
      %6507 = vmatprep.subr.mxu0 0.0
      %6508 = vmatpush1.msra.mxu0 0.0
      %6509 = vmatprep.subr.mxu0 0.0
      %6510 = vmatpush1.msra.mxu0 0.0
      %6511 = vmatprep.subr.mxu0 0.0
      %6512 = vmatpush1.msra.mxu0 0.0
      %6513 = vmatprep.subr.mxu0 0.0
      %6514 = vmatpush1.msra.mxu0 0.0
      %6515 = vmatprep.subr.mxu0 0.0
      %6516 = vmatpush1.msra.mxu0 0.0
      %6517 = vmatprep.subr.mxu0 0.0
      %6518 = vmatpush1.msra.mxu0 0.0
      %6519 = vmatprep.subr.mxu0 0.0
      %6520 = vmatpush1.msra.mxu0 0.0
      %6521 = vmatprep.subr.mxu0 0.0
      %6522 = vmatpush1.msra.mxu0 0.0
      %6523 = vmatprep.subr.mxu0 0.0
      %6524 = vmatpush1.msra.mxu0 0.0
      %6525 = vmatprep.subr.mxu0 0.0
      %6526 = vmatpush1.msra.mxu0 0.0
      %6527 = vmatprep.subr.mxu0 0.0
      %6528 = vmatpush1.msra.mxu0 0.0
      %6529 = vmatprep.subr.mxu0 0.0
      %6530 = vmatpush1.msra.mxu0 0.0
      %6531 = vmatprep.subr.mxu0 0.0
      %6532 = vmatpush1.msra.mxu0 0.0
      %6533 = vmatprep.subr.mxu0 0.0
      %6534 = vmatpush1.msra.mxu0 0.0
      %6535 = vmatprep.subr.mxu0 0.0
      %6536 = vmatpush1.msra.mxu0 0.0
      %6537 = vmatprep.subr.mxu0 0.0
      %6538 = vmatpush1.msra.mxu0 0.0
      %6539 = vmatprep.subr.mxu0 0.0
      %6540 = vmatpush1.msra.mxu0 0.0
      %6541 = vmatprep.subr.mxu0 0.0
      %6542 = vmatpush1.msra.mxu0 0.0
      %6543 = vmatprep.subr.mxu0 0.0
      %6544 = vmatpush1.msra.mxu0 0.0
      %6545 = vmatprep.subr.mxu0 0.0
      %6546 = vmatpush1.msra.mxu0 0.0
      %6547 = vmatprep.subr.mxu0 0.0
      %6548 = vmatpush1.msra.mxu0 0.0
      %6549 = vmatprep.subr.mxu0 0.0
      %6550 = vmatpush1.msra.mxu0 0.0
      %6551 = vmatprep.subr.mxu0 0.0
      %6552 = vmatpush1.msra.mxu0 0.0
      %6553 = vmatprep.subr.mxu0 0.0
      %6554 = vmatpush1.msra.mxu0 0.0
      %6555 = vmatprep.subr.mxu0 0.0
      %6556 = vmatpush1.msra.mxu0 0.0
      %6557 = vmatprep.subr.mxu0 0.0
      %6558 = vmatpush1.msra.mxu0 0.0
      %6559 = vmatprep.mubr.f32.mxu0 0.0
      %6560 = vmatmul.mubr.f32.gmra.mrb[0].mxu0 %v6397
      %v6561 = vpop.f32.mrb[0].mxu0
      %v6562 = vadd.f32 0.0, %v6561
      %v6563 = vpop.f32.mrb[0].mxu0
      %6564 = vmatprep.mubr.f32.mxu0 0.0
      %6565 = vmatmul.mubr.f32.gmra.mrb[0].mxu0 %v6400
      %v6566 = vpop.f32.mrb[0].mxu0
      %v6567 = vadd.f32 0.0, %v6566
      %v6568 = vpop.f32.mrb[0].mxu0
      %6569 = vmatprep.mubr.f32.mxu0 0.0
      %6570 = vmatmul.mubr.f32.gmra.mrb[0].mxu0 %v6403
      %v6571 = vpop.f32.mrb[0].mxu0
      %v6572 = vadd.f32 0.0, %v6571
      %v6573 = vpop.f32.mrb[0].mxu0
      %6574 = vmatprep.mubr.f32.mxu0 0.0
      %6575 = vmatmul.mubr.f32.gmra.mrb[0].mxu0 %v6406
      %v6576 = vpop.f32.mrb[0].mxu0
      %v6577 = vadd.f32 0.0, %v6576
      %v6578 = vpop.f32.mrb[0].mxu0
      %6579 = vmatprep.mubr.f32.mxu0 0.0
      %6580 = vmatmul.mubr.f32.gmra.mrb[0].mxu0 %v6409
      %v6581 = vpop.f32.mrb[0].mxu0
      %v6582 = vadd.f32 0.0, %v6581
      %v6583 = vpop.f32.mrb[0].mxu0
      %6584 = vmatprep.mubr.f32.mxu0 0.0
      %6585 = vmatmul.mubr.f32.gmra.mrb[0].mxu0 %v6412
      %v6586 = vpop.f32.mrb[0].mxu0
      %v6587 = vadd.f32 0.0, %v6586
      %v6588 = vpop.f32.mrb[0].mxu0
      %6589 = vmatprep.mubr.f32.mxu0 0.0
      %6590 = vmatmul.mubr.f32.gmra.mrb[0].mxu0 %v6415
      %v6591 = vpop.f32.mrb[0].mxu0
      %v6592 = vadd.f32 0.0, %v6591
      %v6593 = vpop.f32.mrb[0].mxu0
      %6594 = vmatprep.mubr.f32.mxu0 0.0
      %6595 = vmatmul.mubr.f32.gmra.mrb[0].mxu0 %v6418
      %v6596 = vpop.f32.mrb[0].mxu0
      %v6597 = vadd.f32 0.0, %v6596
      %v6598 = vpop.f32.mrb[0].mxu0
      %6599 = vmatprep.mubr.f32.mxu0 0.0
      %6600 = vmatmul.mubr.f32.gmra.mrb[0].mxu0 %v6421
      %v6601 = vpop.f32.mrb[0].mxu0
      %v6602 = vadd.f32 0.0, %v6601
      %v6603 = vpop.f32.mrb[0].mxu0
      %6604 = vmatprep.mubr.f32.mxu0 0.0
      %6605 = vmatmul.mubr.f32.gmra.mrb[0].mxu0 %v6424
      %v6606 = vpop.f32.mrb[0].mxu0
      %v6607 = vadd.f32 0.0, %v6606
      %v6608 = vpop.f32.mrb[0].mxu0
      %6609 = vmatprep.mubr.f32.mxu0 0.0
      %6610 = vmatmul.mubr.f32.gmra.mrb[0].mxu0 %v6427
      %v6611 = vpop.f32.mrb[0].mxu0
      %v6612 = vadd.f32 0.0, %v6611
      %v6613 = vpop.f32.mrb[0].mxu0
      %6614 = vmatprep.mubr.f32.mxu0 0.0
      %6615 = vmatmul.mubr.f32.gmra.mrb[0].mxu0 %v6430
      %v6616 = vpop.f32.mrb[0].mxu0
      %v6617 = vadd.f32 0.0, %v6616
      %v6618 = vpop.f32.mrb[0].mxu0
      %6619 = vmatprep.mubr.f32.mxu0 0.0
      %6620 = vmatmul.mubr.f32.gmra.mrb[0].mxu0 %v6433
      %v6621 = vpop.f32.mrb[0].mxu0
      %v6622 = vadd.f32 0.0, %v6621
      %v6623 = vpop.f32.mrb[0].mxu0
      %6624 = vmatprep.mubr.f32.mxu0 0.0
      %6625 = vmatmul.mubr.f32.gmra.mrb[0].mxu0 %v6436
      %v6626 = vpop.f32.mrb[0].mxu0
      %v6627 = vadd.f32 0.0, %v6626
      %v6628 = vpop.f32.mrb[0].mxu0
      %6629 = vmatprep.mubr.f32.mxu0 0.0
      %6630 = vmatmul.mubr.f32.gmra.mrb[0].mxu0 %v6439
      %v6631 = vpop.f32.mrb[0].mxu0
      %v6632 = vadd.f32 0.0, %v6631
      %v6633 = vpop.f32.mrb[0].mxu0
      %6634 = vmatprep.mubr.f32.mxu0 0.0
      %6635 = vmatmul.mubr.f32.gmra.mrb[0].mxu0 %v6442
      %v6636 = vpop.f32.mrb[0].mxu0
      %v6637 = vadd.f32 0.0, %v6636
      %v6638 = vpop.f32.mrb[0].mxu0
      %6639 = vmatprep.mubr.f32.mxu0 0.0
      %6640 = vmatmul.mubr.f32.gmra.mrb[0].mxu0 %v6445
      %v6641 = vpop.f32.mrb[0].mxu0
      %v6642 = vadd.f32 0.0, %v6641
      %v6643 = vpop.f32.mrb[0].mxu0
      %6644 = vmatprep.mubr.f32.mxu0 0.0
      %6645 = vmatmul.mubr.f32.gmra.mrb[0].mxu0 %v6448
      %v6646 = vpop.f32.mrb[0].mxu0
      %v6647 = vadd.f32 0.0, %v6646
      %v6648 = vpop.f32.mrb[0].mxu0
      %6649 = vmatprep.mubr.f32.mxu0 0.0
      %6650 = vmatmul.mubr.f32.gmra.mrb[0].mxu0 %v6451
      %v6651 = vpop.f32.mrb[0].mxu0
      %v6652 = vadd.f32 0.0, %v6651
      %v6653 = vpop.f32.mrb[0].mxu0
      %6654 = vmatprep.mubr.f32.mxu0 0.0
      %6655 = vmatmul.mubr.f32.gmra.mrb[0].mxu0 %v6454
      %v6656 = vpop.f32.mrb[0].mxu0
      %v6657 = vadd.f32 0.0, %v6656
      %v6658 = vpop.f32.mrb[0].mxu0
      %6659 = vmatprep.mubr.f32.mxu0 0.0
      %6660 = vmatmul.mubr.f32.gmra.mrb[0].mxu0 %v6457
      %v6661 = vpop.f32.mrb[0].mxu0
      %v6662 = vadd.f32 0.0, %v6661
      %v6663 = vpop.f32.mrb[0].mxu0
      %6664 = vmatprep.mubr.f32.mxu0 0.0
      %6665 = vmatmul.mubr.f32.gmra.mrb[0].mxu0 %v6460
      %v6666 = vpop.f32.mrb[0].mxu0
      %v6667 = vadd.f32 0.0, %v6666
      %v6668 = vpop.f32.mrb[0].mxu0
      %6669 = vmatprep.mubr.f32.mxu0 0.0
      %6670 = vmatmul.mubr.f32.gmra.mrb[0].mxu0 %v6463
      %v6671 = vpop.f32.mrb[0].mxu0
      %v6672 = vadd.f32 0.0, %v6671
      %v6673 = vpop.f32.mrb[0].mxu0
      %6674 = vmatprep.mubr.f32.mxu0 0.0
      %6675 = vmatmul.mubr.f32.gmra.mrb[0].mxu0 %v6466
      %v6676 = vpop.f32.mrb[0].mxu0
      %v6677 = vadd.f32 0.0, %v6676
      %v6678 = vpop.f32.mrb[0].mxu0
      %6679 = vmatprep.mubr.f32.mxu0 0.0
      %6680 = vmatmul.mubr.f32.gmra.mrb[0].mxu0 %v6469
      %v6681 = vpop.f32.mrb[0].mxu0
      %v6682 = vadd.f32 0.0, %v6681
      %v6683 = vpop.f32.mrb[0].mxu0
      %6684 = vmatprep.mubr.f32.mxu0 0.0
      %6685 = vmatmul.mubr.f32.gmra.mrb[0].mxu0 %v6472
      %v6686 = vpop.f32.mrb[0].mxu0
      %v6687 = vadd.f32 0.0, %v6686
      %v6688 = vpop.f32.mrb[0].mxu0
      %6689 = vmatprep.mubr.f32.mxu0 0.0
      %6690 = vmatmul.mubr.f32.gmra.mrb[0].mxu0 %v6475
      %v6691 = vpop.f32.mrb[0].mxu0
      %v6692 = vadd.f32 0.0, %v6691
      %v6693 = vpop.f32.mrb[0].mxu0
      %6694 = vmatprep.mubr.f32.mxu0 0.0
      %6695 = vmatmul.mubr.f32.gmra.mrb[0].mxu0 %v6478
      %v6696 = vpop.f32.mrb[0].mxu0
      %v6697 = vadd.f32 0.0, %v6696
      %v6698 = vpop.f32.mrb[0].mxu0
      %6699 = vmatprep.mubr.f32.mxu0 0.0
      %6700 = vmatmul.mubr.f32.gmra.mrb[0].mxu0 %v6481
      %v6701 = vpop.f32.mrb[0].mxu0
      %v6702 = vadd.f32 0.0, %v6701
      %v6703 = vpop.f32.mrb[0].mxu0
      %6704 = vmatprep.mubr.f32.mxu0 0.0
      %6705 = vmatmul.mubr.f32.gmra.mrb[0].mxu0 %v6484
      %v6706 = vpop.f32.mrb[0].mxu0
      %v6707 = vadd.f32 0.0, %v6706
      %v6708 = vpop.f32.mrb[0].mxu0
      %6709 = vmatprep.mubr.f32.mxu0 0.0
      %6710 = vmatmul.mubr.f32.gmra.mrb[0].mxu0 %v6487
      %v6711 = vpop.f32.mrb[0].mxu0
      %v6712 = vadd.f32 0.0, %v6711
      %v6713 = vpop.f32.mrb[0].mxu0
      %6714 = vmatprep.mubr.f32.mxu0 0.0
      %6715 = vmatmul.mubr.f32.gmra.mrb[0].mxu0 %v6490
      %v6716 = vpop.f32.mrb[0].mxu0
      %v6717 = vadd.f32 0.0, %v6716
      %v6718 = vpop.f32.mrb[0].mxu0
      %6719 = vdwg.mxu0
      %v6720 = vadd.f32 %v6329, %v6562
      %v6721 = vadd.f32 %v6330, %v6567
      %v6722 = vadd.f32 %v6331, %v6572
      %v6723 = vadd.f32 %v6332, %v6577
      %v6724 = vadd.f32 %v6333, %v6582
      %v6725 = vadd.f32 %v6334, %v6587
      %v6726 = vadd.f32 %v6335, %v6592
      %v6727 = vadd.f32 %v6336, %v6597
      %v6728 = vadd.f32 %v6337, %v6602
      %v6729 = vadd.f32 %v6338, %v6607
      %v6730 = vadd.f32 %v6339, %v6612
      %v6731 = vadd.f32 %v6340, %v6617
      %v6732 = vadd.f32 %v6341, %v6622
      %v6733 = vadd.f32 %v6342, %v6627
      %v6734 = vadd.f32 %v6343, %v6632
      %v6735 = vadd.f32 %v6344, %v6637
      %v6736 = vadd.f32 %v6345, %v6642
      %v6737 = vadd.f32 %v6346, %v6647
      %v6738 = vadd.f32 %v6347, %v6652
      %v6739 = vadd.f32 %v6348, %v6657
      %v6740 = vadd.f32 %v6349, %v6662
      %v6741 = vadd.f32 %v6350, %v6667
      %v6742 = vadd.f32 %v6351, %v6672
      %v6743 = vadd.f32 %v6352, %v6677
      %v6744 = vadd.f32 %v6353, %v6682
      %v6745 = vadd.f32 %v6354, %v6687
      %v6746 = vadd.f32 %v6355, %v6692
      %v6747 = vadd.f32 %v6356, %v6697
      %v6748 = vadd.f32 %v6357, %v6702
      %v6749 = vadd.f32 %v6358, %v6707
      %v6750 = vadd.f32 %v6359, %v6712
      %v6751 = vadd.f32 %v6360, %v6717
      %v6752 = vld [vmem:[%s6361 + $0x1] sm:$0xff]
      %v6753 = vld [vmem:[%s6361 + $0x9] sm:$0xff]
      %v6754 = vld [vmem:[%s6361 + $0x19] sm:$0xff]
      %v6755 = vld [vmem:[%s6361 + $0x21] sm:$0xff]
      %v6756 = vld [vmem:[%s6361 + $0x31] sm:$0xff]
      %v6757 = vld [vmem:[%s6361 + $0x39] sm:$0xff]
      %v6758 = vld [vmem:[%s6361 + $0x49] sm:$0xff]
      %v6759 = vld [vmem:[%s6361 + $0x51] sm:$0xff]
      %v6760 = vld [vmem:[%s6361 + $0x61] sm:$0xff]
      %v6761 = vld [vmem:[%s6361 + $0x69] sm:$0xff]
      %v6762 = vld [vmem:[%s6361 + $0x79] sm:$0xff]
      %v6763 = vld [vmem:[%s6361 + $0x81] sm:$0xff]
      %v6764 = vld [vmem:[%s6361 + $0x91] sm:$0xff]
      %v6765 = vld [vmem:[%s6361 + $0x99] sm:$0xff]
      %v6766 = vld [vmem:[%s6361 + $0xa9] sm:$0xff]
      %v6767 = vld [vmem:[%s6361 + $0xb1] sm:$0xff]
      %v6768 = vld [vmem:[%s6361 + $0xc1] sm:$0xff]
      %v6769 = vld [vmem:[%s6361 + $0xc9] sm:$0xff]
      %v6770 = vld [vmem:[%s6361 + $0xd9] sm:$0xff]
      %v6771 = vld [vmem:[%s6361 + $0xe1] sm:$0xff]
      %v6772 = vld [vmem:[%s6361 + $0xf1] sm:$0xff]
      %v6773 = vld [vmem:[%s6361 + $0xf9] sm:$0xff]
      %v6774 = vld [vmem:[%s6361 + $0x109] sm:$0xff]
      %v6775 = vld [vmem:[%s6361 + $0x111] sm:$0xff]
      %v6776 = vld [vmem:[%s6361 + $0x121] sm:$0xff]
      %v6777 = vld [vmem:[%s6361 + $0x129] sm:$0xff]
      %v6778 = vld [vmem:[%s6361 + $0x139] sm:$0xff]
      %v6779 = vld [vmem:[%s6361 + $0x141] sm:$0xff]
      %v6780 = vld [vmem:[%s6361 + $0x151] sm:$0xff]
      %v6781 = vld [vmem:[%s6361 + $0x159] sm:$0xff]
      %v6782 = vld [vmem:[%s6361 + $0x169] sm:$0xff]
      %v6783 = vld [vmem:[%s6361 + $0x171] sm:$0xff]
      %s6784 = scalar_lea.vmem %s4, 28
      %v6785 = vld [vmem:[%s6784] sm:$0xf]
      %v6787 = vsel %vm346, %v6752, 0
      %v6790 = vsel %vm346, %v6753, 0
      %v6793 = vsel %vm346, %v6754, 0
      %v6796 = vsel %vm346, %v6755, 0
      %v6799 = vsel %vm346, %v6756, 0
      %v6802 = vsel %vm346, %v6757, 0
      %v6805 = vsel %vm346, %v6758, 0
      %v6808 = vsel %vm346, %v6759, 0
      %v6811 = vsel %vm346, %v6760, 0
      %v6814 = vsel %vm346, %v6761, 0
      %v6817 = vsel %vm346, %v6762, 0
      %v6820 = vsel %vm346, %v6763, 0
      %v6823 = vsel %vm346, %v6764, 0
      %v6826 = vsel %vm346, %v6765, 0
      %v6829 = vsel %vm346, %v6766, 0
      %v6832 = vsel %vm346, %v6767, 0
      %v6835 = vsel %vm346, %v6768, 0
      %v6838 = vsel %vm346, %v6769, 0
      %v6841 = vsel %vm346, %v6770, 0
      %v6844 = vsel %vm346, %v6771, 0
      %v6847 = vsel %vm346, %v6772, 0
      %v6850 = vsel %vm346, %v6773, 0
      %v6853 = vsel %vm346, %v6774, 0
      %v6856 = vsel %vm346, %v6775, 0
      %v6859 = vsel %vm346, %v6776, 0
      %v6862 = vsel %vm346, %v6777, 0
      %v6865 = vsel %vm346, %v6778, 0
      %v6868 = vsel %vm346, %v6779, 0
      %v6871 = vsel %vm346, %v6780, 0
      %v6874 = vsel %vm346, %v6781, 0
      %v6877 = vsel %vm346, %v6782, 0
      %v6880 = vsel %vm346, %v6783, 0
      %v6883 = vsel %vm443, %v6785, 0
      %6885 = vmatprep.subr.mxu0 0.0
      %6886 = vmatpush1.msra.mxu0 %v6883
      %6887 = vmatprep.subr.mxu0 0.0
      %6888 = vmatpush1.msra.mxu0 0.0
      %6889 = vmatprep.subr.mxu0 0.0
      %6890 = vmatpush1.msra.mxu0 0.0
      %6891 = vmatprep.subr.mxu0 0.0
      %6892 = vmatpush1.msra.mxu0 0.0
      %6893 = vmatprep.subr.mxu0 0.0
      %6894 = vmatpush1.msra.mxu0 0.0
      %6895 = vmatprep.subr.mxu0 0.0
      %6896 = vmatpush1.msra.mxu0 0.0
      %6897 = vmatprep.subr.mxu0 0.0
      %6898 = vmatpush1.msra.mxu0 0.0
      %6899 = vmatprep.subr.mxu0 0.0
      %6900 = vmatpush1.msra.mxu0 0.0
      %6901 = vmatprep.subr.mxu0 0.0
      %6902 = vmatpush1.msra.mxu0 0.0
      %6903 = vmatprep.subr.mxu0 0.0
      %6904 = vmatpush1.msra.mxu0 0.0
      %6905 = vmatprep.subr.mxu0 0.0
      %6906 = vmatpush1.msra.mxu0 0.0
      %6907 = vmatprep.subr.mxu0 0.0
      %6908 = vmatpush1.msra.mxu0 0.0
      %6909 = vmatprep.subr.mxu0 0.0
      %6910 = vmatpush1.msra.mxu0 0.0
      %6911 = vmatprep.subr.mxu0 0.0
      %6912 = vmatpush1.msra.mxu0 0.0
      %6913 = vmatprep.subr.mxu0 0.0
      %6914 = vmatpush1.msra.mxu0 0.0
      %6915 = vmatprep.subr.mxu0 0.0
      %6916 = vmatpush1.msra.mxu0 0.0
      %6917 = vmatprep.subr.mxu0 0.0
      %6918 = vmatpush1.msra.mxu0 0.0
      %6919 = vmatprep.subr.mxu0 0.0
      %6920 = vmatpush1.msra.mxu0 0.0
      %6921 = vmatprep.subr.mxu0 0.0
      %6922 = vmatpush1.msra.mxu0 0.0
      %6923 = vmatprep.subr.mxu0 0.0
      %6924 = vmatpush1.msra.mxu0 0.0
      %6925 = vmatprep.subr.mxu0 0.0
      %6926 = vmatpush1.msra.mxu0 0.0
      %6927 = vmatprep.subr.mxu0 0.0
      %6928 = vmatpush1.msra.mxu0 0.0
      %6929 = vmatprep.subr.mxu0 0.0
      %6930 = vmatpush1.msra.mxu0 0.0
      %6931 = vmatprep.subr.mxu0 0.0
      %6932 = vmatpush1.msra.mxu0 0.0
      %6933 = vmatprep.subr.mxu0 0.0
      %6934 = vmatpush1.msra.mxu0 0.0
      %6935 = vmatprep.subr.mxu0 0.0
      %6936 = vmatpush1.msra.mxu0 0.0
      %6937 = vmatprep.subr.mxu0 0.0
      %6938 = vmatpush1.msra.mxu0 0.0
      %6939 = vmatprep.subr.mxu0 0.0
      %6940 = vmatpush1.msra.mxu0 0.0
      %6941 = vmatprep.subr.mxu0 0.0
      %6942 = vmatpush1.msra.mxu0 0.0
      %6943 = vmatprep.subr.mxu0 0.0
      %6944 = vmatpush1.msra.mxu0 0.0
      %6945 = vmatprep.subr.mxu0 0.0
      %6946 = vmatpush1.msra.mxu0 0.0
      %6947 = vmatprep.subr.mxu0 0.0
      %6948 = vmatpush1.msra.mxu0 0.0
      %6949 = vmatprep.mubr.f32.mxu0 0.0
      %6950 = vmatmul.mubr.f32.gmra.mrb[0].mxu0 %v6787
      %v6951 = vpop.f32.mrb[0].mxu0
      %v6952 = vadd.f32 0.0, %v6951
      %v6953 = vpop.f32.mrb[0].mxu0
      %6954 = vmatprep.mubr.f32.mxu0 0.0
      %6955 = vmatmul.mubr.f32.gmra.mrb[0].mxu0 %v6790
      %v6956 = vpop.f32.mrb[0].mxu0
      %v6957 = vadd.f32 0.0, %v6956
      %v6958 = vpop.f32.mrb[0].mxu0
      %6959 = vmatprep.mubr.f32.mxu0 0.0
      %6960 = vmatmul.mubr.f32.gmra.mrb[0].mxu0 %v6793
      %v6961 = vpop.f32.mrb[0].mxu0
      %v6962 = vadd.f32 0.0, %v6961
      %v6963 = vpop.f32.mrb[0].mxu0
      %6964 = vmatprep.mubr.f32.mxu0 0.0
      %6965 = vmatmul.mubr.f32.gmra.mrb[0].mxu0 %v6796
      %v6966 = vpop.f32.mrb[0].mxu0
      %v6967 = vadd.f32 0.0, %v6966
      %v6968 = vpop.f32.mrb[0].mxu0
      %6969 = vmatprep.mubr.f32.mxu0 0.0
      %6970 = vmatmul.mubr.f32.gmra.mrb[0].mxu0 %v6799
      %v6971 = vpop.f32.mrb[0].mxu0
      %v6972 = vadd.f32 0.0, %v6971
      %v6973 = vpop.f32.mrb[0].mxu0
      %6974 = vmatprep.mubr.f32.mxu0 0.0
      %6975 = vmatmul.mubr.f32.gmra.mrb[0].mxu0 %v6802
      %v6976 = vpop.f32.mrb[0].mxu0
      %v6977 = vadd.f32 0.0, %v6976
      %v6978 = vpop.f32.mrb[0].mxu0
      %6979 = vmatprep.mubr.f32.mxu0 0.0
      %6980 = vmatmul.mubr.f32.gmra.mrb[0].mxu0 %v6805
      %v6981 = vpop.f32.mrb[0].mxu0
      %v6982 = vadd.f32 0.0, %v6981
      %v6983 = vpop.f32.mrb[0].mxu0
      %6984 = vmatprep.mubr.f32.mxu0 0.0
      %6985 = vmatmul.mubr.f32.gmra.mrb[0].mxu0 %v6808
      %v6986 = vpop.f32.mrb[0].mxu0
      %v6987 = vadd.f32 0.0, %v6986
      %v6988 = vpop.f32.mrb[0].mxu0
      %6989 = vmatprep.mubr.f32.mxu0 0.0
      %6990 = vmatmul.mubr.f32.gmra.mrb[0].mxu0 %v6811
      %v6991 = vpop.f32.mrb[0].mxu0
      %v6992 = vadd.f32 0.0, %v6991
      %v6993 = vpop.f32.mrb[0].mxu0
      %6994 = vmatprep.mubr.f32.mxu0 0.0
      %6995 = vmatmul.mubr.f32.gmra.mrb[0].mxu0 %v6814
      %v6996 = vpop.f32.mrb[0].mxu0
      %v6997 = vadd.f32 0.0, %v6996
      %v6998 = vpop.f32.mrb[0].mxu0
      %6999 = vmatprep.mubr.f32.mxu0 0.0
      %7000 = vmatmul.mubr.f32.gmra.mrb[0].mxu0 %v6817
      %v7001 = vpop.f32.mrb[0].mxu0
      %v7002 = vadd.f32 0.0, %v7001
      %v7003 = vpop.f32.mrb[0].mxu0
      %7004 = vmatprep.mubr.f32.mxu0 0.0
      %7005 = vmatmul.mubr.f32.gmra.mrb[0].mxu0 %v6820
      %v7006 = vpop.f32.mrb[0].mxu0
      %v7007 = vadd.f32 0.0, %v7006
      %v7008 = vpop.f32.mrb[0].mxu0
      %7009 = vmatprep.mubr.f32.mxu0 0.0
      %7010 = vmatmul.mubr.f32.gmra.mrb[0].mxu0 %v6823
      %v7011 = vpop.f32.mrb[0].mxu0
      %v7012 = vadd.f32 0.0, %v7011
      %v7013 = vpop.f32.mrb[0].mxu0
      %7014 = vmatprep.mubr.f32.mxu0 0.0
      %7015 = vmatmul.mubr.f32.gmra.mrb[0].mxu0 %v6826
      %v7016 = vpop.f32.mrb[0].mxu0
      %v7017 = vadd.f32 0.0, %v7016
      %v7018 = vpop.f32.mrb[0].mxu0
      %7019 = vmatprep.mubr.f32.mxu0 0.0
      %7020 = vmatmul.mubr.f32.gmra.mrb[0].mxu0 %v6829
      %v7021 = vpop.f32.mrb[0].mxu0
      %v7022 = vadd.f32 0.0, %v7021
      %v7023 = vpop.f32.mrb[0].mxu0
      %7024 = vmatprep.mubr.f32.mxu0 0.0
      %7025 = vmatmul.mubr.f32.gmra.mrb[0].mxu0 %v6832
      %v7026 = vpop.f32.mrb[0].mxu0
      %v7027 = vadd.f32 0.0, %v7026
      %v7028 = vpop.f32.mrb[0].mxu0
      %7029 = vmatprep.mubr.f32.mxu0 0.0
      %7030 = vmatmul.mubr.f32.gmra.mrb[0].mxu0 %v6835
      %v7031 = vpop.f32.mrb[0].mxu0
      %v7032 = vadd.f32 0.0, %v7031
      %v7033 = vpop.f32.mrb[0].mxu0
      %7034 = vmatprep.mubr.f32.mxu0 0.0
      %7035 = vmatmul.mubr.f32.gmra.mrb[0].mxu0 %v6838
      %v7036 = vpop.f32.mrb[0].mxu0
      %v7037 = vadd.f32 0.0, %v7036
      %v7038 = vpop.f32.mrb[0].mxu0
      %7039 = vmatprep.mubr.f32.mxu0 0.0
      %7040 = vmatmul.mubr.f32.gmra.mrb[0].mxu0 %v6841
      %v7041 = vpop.f32.mrb[0].mxu0
      %v7042 = vadd.f32 0.0, %v7041
      %v7043 = vpop.f32.mrb[0].mxu0
      %7044 = vmatprep.mubr.f32.mxu0 0.0
      %7045 = vmatmul.mubr.f32.gmra.mrb[0].mxu0 %v6844
      %v7046 = vpop.f32.mrb[0].mxu0
      %v7047 = vadd.f32 0.0, %v7046
      %v7048 = vpop.f32.mrb[0].mxu0
      %7049 = vmatprep.mubr.f32.mxu0 0.0
      %7050 = vmatmul.mubr.f32.gmra.mrb[0].mxu0 %v6847
      %v7051 = vpop.f32.mrb[0].mxu0
      %v7052 = vadd.f32 0.0, %v7051
      %v7053 = vpop.f32.mrb[0].mxu0
      %7054 = vmatprep.mubr.f32.mxu0 0.0
      %7055 = vmatmul.mubr.f32.gmra.mrb[0].mxu0 %v6850
      %v7056 = vpop.f32.mrb[0].mxu0
      %v7057 = vadd.f32 0.0, %v7056
      %v7058 = vpop.f32.mrb[0].mxu0
      %7059 = vmatprep.mubr.f32.mxu0 0.0
      %7060 = vmatmul.mubr.f32.gmra.mrb[0].mxu0 %v6853
      %v7061 = vpop.f32.mrb[0].mxu0
      %v7062 = vadd.f32 0.0, %v7061
      %v7063 = vpop.f32.mrb[0].mxu0
      %7064 = vmatprep.mubr.f32.mxu0 0.0
      %7065 = vmatmul.mubr.f32.gmra.mrb[0].mxu0 %v6856
      %v7066 = vpop.f32.mrb[0].mxu0
      %v7067 = vadd.f32 0.0, %v7066
      %v7068 = vpop.f32.mrb[0].mxu0
      %7069 = vmatprep.mubr.f32.mxu0 0.0
      %7070 = vmatmul.mubr.f32.gmra.mrb[0].mxu0 %v6859
      %v7071 = vpop.f32.mrb[0].mxu0
      %v7072 = vadd.f32 0.0, %v7071
      %v7073 = vpop.f32.mrb[0].mxu0
      %7074 = vmatprep.mubr.f32.mxu0 0.0
      %7075 = vmatmul.mubr.f32.gmra.mrb[0].mxu0 %v6862
      %v7076 = vpop.f32.mrb[0].mxu0
      %v7077 = vadd.f32 0.0, %v7076
      %v7078 = vpop.f32.mrb[0].mxu0
      %7079 = vmatprep.mubr.f32.mxu0 0.0
      %7080 = vmatmul.mubr.f32.gmra.mrb[0].mxu0 %v6865
      %v7081 = vpop.f32.mrb[0].mxu0
      %v7082 = vadd.f32 0.0, %v7081
      %v7083 = vpop.f32.mrb[0].mxu0
      %7084 = vmatprep.mubr.f32.mxu0 0.0
      %7085 = vmatmul.mubr.f32.gmra.mrb[0].mxu0 %v6868
      %v7086 = vpop.f32.mrb[0].mxu0
      %v7087 = vadd.f32 0.0, %v7086
      %v7088 = vpop.f32.mrb[0].mxu0
      %7089 = vmatprep.mubr.f32.mxu0 0.0
      %7090 = vmatmul.mubr.f32.gmra.mrb[0].mxu0 %v6871
      %v7091 = vpop.f32.mrb[0].mxu0
      %v7092 = vadd.f32 0.0, %v7091
      %v7093 = vpop.f32.mrb[0].mxu0
      %7094 = vmatprep.mubr.f32.mxu0 0.0
      %7095 = vmatmul.mubr.f32.gmra.mrb[0].mxu0 %v6874
      %v7096 = vpop.f32.mrb[0].mxu0
      %v7097 = vadd.f32 0.0, %v7096
      %v7098 = vpop.f32.mrb[0].mxu0
      %7099 = vmatprep.mubr.f32.mxu0 0.0
      %7100 = vmatmul.mubr.f32.gmra.mrb[0].mxu0 %v6877
      %v7101 = vpop.f32.mrb[0].mxu0
      %v7102 = vadd.f32 0.0, %v7101
      %v7103 = vpop.f32.mrb[0].mxu0
      %7104 = vmatprep.mubr.f32.mxu0 0.0
      %7105 = vmatmul.mubr.f32.gmra.mrb[0].mxu0 %v6880
      %v7106 = vpop.f32.mrb[0].mxu0
      %v7107 = vadd.f32 0.0, %v7106
      %v7108 = vpop.f32.mrb[0].mxu0
      %7109 = vdwg.mxu0
      %v7110 = vadd.f32 %v6720, %v6952
      %v7111 = vadd.f32 %v6721, %v6957
      %v7112 = vadd.f32 %v6722, %v6962
      %v7113 = vadd.f32 %v6723, %v6967
      %v7114 = vadd.f32 %v6724, %v6972
      %v7115 = vadd.f32 %v6725, %v6977
      %v7116 = vadd.f32 %v6726, %v6982
      %v7117 = vadd.f32 %v6727, %v6987
      %v7118 = vadd.f32 %v6728, %v6992
      %v7119 = vadd.f32 %v6729, %v6997
      %v7120 = vadd.f32 %v6730, %v7002
      %v7121 = vadd.f32 %v6731, %v7007
      %v7122 = vadd.f32 %v6732, %v7012
      %v7123 = vadd.f32 %v6733, %v7017
      %v7124 = vadd.f32 %v6734, %v7022
      %v7125 = vadd.f32 %v6735, %v7027
      %v7126 = vadd.f32 %v6736, %v7032
      %v7127 = vadd.f32 %v6737, %v7037
      %v7128 = vadd.f32 %v6738, %v7042
      %v7129 = vadd.f32 %v6739, %v7047
      %v7130 = vadd.f32 %v6740, %v7052
      %v7131 = vadd.f32 %v6741, %v7057
      %v7132 = vadd.f32 %v6742, %v7062
      %v7133 = vadd.f32 %v6743, %v7067
      %v7134 = vadd.f32 %v6744, %v7072
      %v7135 = vadd.f32 %v6745, %v7077
      %v7136 = vadd.f32 %v6746, %v7082
      %v7137 = vadd.f32 %v6747, %v7087
      %v7138 = vadd.f32 %v6748, %v7092
      %v7139 = vadd.f32 %v6749, %v7097
      %v7140 = vadd.f32 %v6750, %v7102
      %v7141 = vadd.f32 %v6751, %v7107
      %v7142 = vld [vmem:[%s6361 + $0x2] sm:$0xff]
      %v7143 = vld [vmem:[%s6361 + $0xa] sm:$0xff]
      %v7144 = vld [vmem:[%s6361 + $0x1a] sm:$0xff]
      %v7145 = vld [vmem:[%s6361 + $0x22] sm:$0xff]
      %v7146 = vld [vmem:[%s6361 + $0x32] sm:$0xff]
      %v7147 = vld [vmem:[%s6361 + $0x3a] sm:$0xff]
      %v7148 = vld [vmem:[%s6361 + $0x4a] sm:$0xff]
      %v7149 = vld [vmem:[%s6361 + $0x52] sm:$0xff]
      %v7150 = vld [vmem:[%s6361 + $0x62] sm:$0xff]
      %v7151 = vld [vmem:[%s6361 + $0x6a] sm:$0xff]
      %v7152 = vld [vmem:[%s6361 + $0x7a] sm:$0xff]
      %v7153 = vld [vmem:[%s6361 + $0x82] sm:$0xff]
      %v7154 = vld [vmem:[%s6361 + $0x92] sm:$0xff]
      %v7155 = vld [vmem:[%s6361 + $0x9a] sm:$0xff]
      %v7156 = vld [vmem:[%s6361 + $0xaa] sm:$0xff]
      %v7157 = vld [vmem:[%s6361 + $0xb2] sm:$0xff]
      %v7158 = vld [vmem:[%s6361 + $0xc2] sm:$0xff]
      %v7159 = vld [vmem:[%s6361 + $0xca] sm:$0xff]
      %v7160 = vld [vmem:[%s6361 + $0xda] sm:$0xff]
      %v7161 = vld [vmem:[%s6361 + $0xe2] sm:$0xff]
      %v7162 = vld [vmem:[%s6361 + $0xf2] sm:$0xff]
      %v7163 = vld [vmem:[%s6361 + $0xfa] sm:$0xff]
      %v7164 = vld [vmem:[%s6361 + $0x10a] sm:$0xff]
      %v7165 = vld [vmem:[%s6361 + $0x112] sm:$0xff]
      %v7166 = vld [vmem:[%s6361 + $0x122] sm:$0xff]
      %v7167 = vld [vmem:[%s6361 + $0x12a] sm:$0xff]
      %v7168 = vld [vmem:[%s6361 + $0x13a] sm:$0xff]
      %v7169 = vld [vmem:[%s6361 + $0x142] sm:$0xff]
      %v7170 = vld [vmem:[%s6361 + $0x152] sm:$0xff]
      %v7171 = vld [vmem:[%s6361 + $0x15a] sm:$0xff]
      %v7172 = vld [vmem:[%s6361 + $0x16a] sm:$0xff]
      %v7173 = vld [vmem:[%s6361 + $0x172] sm:$0xff]
      %s7174 = scalar_lea.vmem %s4, 32
      %v7175 = vld [vmem:[%s7174] sm:$0xf]
      %v7177 = vsel %vm346, %v7142, 0
      %v7180 = vsel %vm346, %v7143, 0
      %v7183 = vsel %vm346, %v7144, 0
      %v7186 = vsel %vm346, %v7145, 0
      %v7189 = vsel %vm346, %v7146, 0
      %v7192 = vsel %vm346, %v7147, 0
      %v7195 = vsel %vm346, %v7148, 0
      %v7198 = vsel %vm346, %v7149, 0
      %v7201 = vsel %vm346, %v7150, 0
      %v7204 = vsel %vm346, %v7151, 0
      %v7207 = vsel %vm346, %v7152, 0
      %v7210 = vsel %vm346, %v7153, 0
      %v7213 = vsel %vm346, %v7154, 0
      %v7216 = vsel %vm346, %v7155, 0
      %v7219 = vsel %vm346, %v7156, 0
      %v7222 = vsel %vm346, %v7157, 0
      %v7225 = vsel %vm346, %v7158, 0
      %v7228 = vsel %vm346, %v7159, 0
      %v7231 = vsel %vm346, %v7160, 0
      %v7234 = vsel %vm346, %v7161, 0
      %v7237 = vsel %vm346, %v7162, 0
      %v7240 = vsel %vm346, %v7163, 0
      %v7243 = vsel %vm346, %v7164, 0
      %v7246 = vsel %vm346, %v7165, 0
      %v7249 = vsel %vm346, %v7166, 0
      %v7252 = vsel %vm346, %v7167, 0
      %v7255 = vsel %vm346, %v7168, 0
      %v7258 = vsel %vm346, %v7169, 0
      %v7261 = vsel %vm346, %v7170, 0
      %v7264 = vsel %vm346, %v7171, 0
      %v7267 = vsel %vm346, %v7172, 0
      %v7270 = vsel %vm346, %v7173, 0
      %v7273 = vsel %vm443, %v7175, 0
      %7275 = vmatprep.subr.mxu0 0.0
      %7276 = vmatpush1.msra.mxu0 %v7273
      %7277 = vmatprep.subr.mxu0 0.0
      %7278 = vmatpush1.msra.mxu0 0.0
      %7279 = vmatprep.subr.mxu0 0.0
      %7280 = vmatpush1.msra.mxu0 0.0
      %7281 = vmatprep.subr.mxu0 0.0
      %7282 = vmatpush1.msra.mxu0 0.0
      %7283 = vmatprep.subr.mxu0 0.0
      %7284 = vmatpush1.msra.mxu0 0.0
      %7285 = vmatprep.subr.mxu0 0.0
      %7286 = vmatpush1.msra.mxu0 0.0
      %7287 = vmatprep.subr.mxu0 0.0
      %7288 = vmatpush1.msra.mxu0 0.0
      %7289 = vmatprep.subr.mxu0 0.0
      %7290 = vmatpush1.msra.mxu0 0.0
      %7291 = vmatprep.subr.mxu0 0.0
      %7292 = vmatpush1.msra.mxu0 0.0
      %7293 = vmatprep.subr.mxu0 0.0
      %7294 = vmatpush1.msra.mxu0 0.0
      %7295 = vmatprep.subr.mxu0 0.0
      %7296 = vmatpush1.msra.mxu0 0.0
      %7297 = vmatprep.subr.mxu0 0.0
      %7298 = vmatpush1.msra.mxu0 0.0
      %7299 = vmatprep.subr.mxu0 0.0
      %7300 = vmatpush1.msra.mxu0 0.0
      %7301 = vmatprep.subr.mxu0 0.0
      %7302 = vmatpush1.msra.mxu0 0.0
      %7303 = vmatprep.subr.mxu0 0.0
      %7304 = vmatpush1.msra.mxu0 0.0
      %7305 = vmatprep.subr.mxu0 0.0
      %7306 = vmatpush1.msra.mxu0 0.0
      %7307 = vmatprep.subr.mxu0 0.0
      %7308 = vmatpush1.msra.mxu0 0.0
      %7309 = vmatprep.subr.mxu0 0.0
      %7310 = vmatpush1.msra.mxu0 0.0
      %7311 = vmatprep.subr.mxu0 0.0
      %7312 = vmatpush1.msra.mxu0 0.0
      %7313 = vmatprep.subr.mxu0 0.0
      %7314 = vmatpush1.msra.mxu0 0.0
      %7315 = vmatprep.subr.mxu0 0.0
      %7316 = vmatpush1.msra.mxu0 0.0
      %7317 = vmatprep.subr.mxu0 0.0
      %7318 = vmatpush1.msra.mxu0 0.0
      %7319 = vmatprep.subr.mxu0 0.0
      %7320 = vmatpush1.msra.mxu0 0.0
      %7321 = vmatprep.subr.mxu0 0.0
      %7322 = vmatpush1.msra.mxu0 0.0
      %7323 = vmatprep.subr.mxu0 0.0
      %7324 = vmatpush1.msra.mxu0 0.0
      %7325 = vmatprep.subr.mxu0 0.0
      %7326 = vmatpush1.msra.mxu0 0.0
      %7327 = vmatprep.subr.mxu0 0.0
      %7328 = vmatpush1.msra.mxu0 0.0
      %7329 = vmatprep.subr.mxu0 0.0
      %7330 = vmatpush1.msra.mxu0 0.0
      %7331 = vmatprep.subr.mxu0 0.0
      %7332 = vmatpush1.msra.mxu0 0.0
      %7333 = vmatprep.subr.mxu0 0.0
      %7334 = vmatpush1.msra.mxu0 0.0
      %7335 = vmatprep.subr.mxu0 0.0
      %7336 = vmatpush1.msra.mxu0 0.0
      %7337 = vmatprep.subr.mxu0 0.0
      %7338 = vmatpush1.msra.mxu0 0.0
      %7339 = vmatprep.mubr.f32.mxu0 0.0
      %7340 = vmatmul.mubr.f32.gmra.mrb[0].mxu0 %v7177
      %v7341 = vpop.f32.mrb[0].mxu0
      %v7342 = vadd.f32 0.0, %v7341
      %v7343 = vpop.f32.mrb[0].mxu0
      %7344 = vmatprep.mubr.f32.mxu0 0.0
      %7345 = vmatmul.mubr.f32.gmra.mrb[0].mxu0 %v7180
      %v7346 = vpop.f32.mrb[0].mxu0
      %v7347 = vadd.f32 0.0, %v7346
      %v7348 = vpop.f32.mrb[0].mxu0
      %7349 = vmatprep.mubr.f32.mxu0 0.0
      %7350 = vmatmul.mubr.f32.gmra.mrb[0].mxu0 %v7183
      %v7351 = vpop.f32.mrb[0].mxu0
      %v7352 = vadd.f32 0.0, %v7351
      %v7353 = vpop.f32.mrb[0].mxu0
      %7354 = vmatprep.mubr.f32.mxu0 0.0
      %7355 = vmatmul.mubr.f32.gmra.mrb[0].mxu0 %v7186
      %v7356 = vpop.f32.mrb[0].mxu0
      %v7357 = vadd.f32 0.0, %v7356
      %v7358 = vpop.f32.mrb[0].mxu0
      %7359 = vmatprep.mubr.f32.mxu0 0.0
      %7360 = vmatmul.mubr.f32.gmra.mrb[0].mxu0 %v7189
      %v7361 = vpop.f32.mrb[0].mxu0
      %v7362 = vadd.f32 0.0, %v7361
      %v7363 = vpop.f32.mrb[0].mxu0
      %7364 = vmatprep.mubr.f32.mxu0 0.0
      %7365 = vmatmul.mubr.f32.gmra.mrb[0].mxu0 %v7192
      %v7366 = vpop.f32.mrb[0].mxu0
      %v7367 = vadd.f32 0.0, %v7366
      %v7368 = vpop.f32.mrb[0].mxu0
      %7369 = vmatprep.mubr.f32.mxu0 0.0
      %7370 = vmatmul.mubr.f32.gmra.mrb[0].mxu0 %v7195
      %v7371 = vpop.f32.mrb[0].mxu0
      %v7372 = vadd.f32 0.0, %v7371
      %v7373 = vpop.f32.mrb[0].mxu0
      %7374 = vmatprep.mubr.f32.mxu0 0.0
      %7375 = vmatmul.mubr.f32.gmra.mrb[0].mxu0 %v7198
      %v7376 = vpop.f32.mrb[0].mxu0
      %v7377 = vadd.f32 0.0, %v7376
      %v7378 = vpop.f32.mrb[0].mxu0
      %7379 = vmatprep.mubr.f32.mxu0 0.0
      %7380 = vmatmul.mubr.f32.gmra.mrb[0].mxu0 %v7201
      %v7381 = vpop.f32.mrb[0].mxu0
      %v7382 = vadd.f32 0.0, %v7381
      %v7383 = vpop.f32.mrb[0].mxu0
      %7384 = vmatprep.mubr.f32.mxu0 0.0
      %7385 = vmatmul.mubr.f32.gmra.mrb[0].mxu0 %v7204
      %v7386 = vpop.f32.mrb[0].mxu0
      %v7387 = vadd.f32 0.0, %v7386
      %v7388 = vpop.f32.mrb[0].mxu0
      %7389 = vmatprep.mubr.f32.mxu0 0.0
      %7390 = vmatmul.mubr.f32.gmra.mrb[0].mxu0 %v7207
      %v7391 = vpop.f32.mrb[0].mxu0
      %v7392 = vadd.f32 0.0, %v7391
      %v7393 = vpop.f32.mrb[0].mxu0
      %7394 = vmatprep.mubr.f32.mxu0 0.0
      %7395 = vmatmul.mubr.f32.gmra.mrb[0].mxu0 %v7210
      %v7396 = vpop.f32.mrb[0].mxu0
      %v7397 = vadd.f32 0.0, %v7396
      %v7398 = vpop.f32.mrb[0].mxu0
      %7399 = vmatprep.mubr.f32.mxu0 0.0
      %7400 = vmatmul.mubr.f32.gmra.mrb[0].mxu0 %v7213
      %v7401 = vpop.f32.mrb[0].mxu0
      %v7402 = vadd.f32 0.0, %v7401
      %v7403 = vpop.f32.mrb[0].mxu0
      %7404 = vmatprep.mubr.f32.mxu0 0.0
      %7405 = vmatmul.mubr.f32.gmra.mrb[0].mxu0 %v7216
      %v7406 = vpop.f32.mrb[0].mxu0
      %v7407 = vadd.f32 0.0, %v7406
      %v7408 = vpop.f32.mrb[0].mxu0
      %7409 = vmatprep.mubr.f32.mxu0 0.0
      %7410 = vmatmul.mubr.f32.gmra.mrb[0].mxu0 %v7219
      %v7411 = vpop.f32.mrb[0].mxu0
      %v7412 = vadd.f32 0.0, %v7411
      %v7413 = vpop.f32.mrb[0].mxu0
      %7414 = vmatprep.mubr.f32.mxu0 0.0
      %7415 = vmatmul.mubr.f32.gmra.mrb[0].mxu0 %v7222
      %v7416 = vpop.f32.mrb[0].mxu0
      %v7417 = vadd.f32 0.0, %v7416
      %v7418 = vpop.f32.mrb[0].mxu0
      %7419 = vmatprep.mubr.f32.mxu0 0.0
      %7420 = vmatmul.mubr.f32.gmra.mrb[0].mxu0 %v7225
      %v7421 = vpop.f32.mrb[0].mxu0
      %v7422 = vadd.f32 0.0, %v7421
      %v7423 = vpop.f32.mrb[0].mxu0
      %7424 = vmatprep.mubr.f32.mxu0 0.0
      %7425 = vmatmul.mubr.f32.gmra.mrb[0].mxu0 %v7228
      %v7426 = vpop.f32.mrb[0].mxu0
      %v7427 = vadd.f32 0.0, %v7426
      %v7428 = vpop.f32.mrb[0].mxu0
      %7429 = vmatprep.mubr.f32.mxu0 0.0
      %7430 = vmatmul.mubr.f32.gmra.mrb[0].mxu0 %v7231
      %v7431 = vpop.f32.mrb[0].mxu0
      %v7432 = vadd.f32 0.0, %v7431
      %v7433 = vpop.f32.mrb[0].mxu0
      %7434 = vmatprep.mubr.f32.mxu0 0.0
      %7435 = vmatmul.mubr.f32.gmra.mrb[0].mxu0 %v7234
      %v7436 = vpop.f32.mrb[0].mxu0
      %v7437 = vadd.f32 0.0, %v7436
      %v7438 = vpop.f32.mrb[0].mxu0
      %7439 = vmatprep.mubr.f32.mxu0 0.0
      %7440 = vmatmul.mubr.f32.gmra.mrb[0].mxu0 %v7237
      %v7441 = vpop.f32.mrb[0].mxu0
      %v7442 = vadd.f32 0.0, %v7441
      %v7443 = vpop.f32.mrb[0].mxu0
      %7444 = vmatprep.mubr.f32.mxu0 0.0
      %7445 = vmatmul.mubr.f32.gmra.mrb[0].mxu0 %v7240
      %v7446 = vpop.f32.mrb[0].mxu0
      %v7447 = vadd.f32 0.0, %v7446
      %v7448 = vpop.f32.mrb[0].mxu0
      %7449 = vmatprep.mubr.f32.mxu0 0.0
      %7450 = vmatmul.mubr.f32.gmra.mrb[0].mxu0 %v7243
      %v7451 = vpop.f32.mrb[0].mxu0
      %v7452 = vadd.f32 0.0, %v7451
      %v7453 = vpop.f32.mrb[0].mxu0
      %7454 = vmatprep.mubr.f32.mxu0 0.0
      %7455 = vmatmul.mubr.f32.gmra.mrb[0].mxu0 %v7246
      %v7456 = vpop.f32.mrb[0].mxu0
      %v7457 = vadd.f32 0.0, %v7456
      %v7458 = vpop.f32.mrb[0].mxu0
      %7459 = vmatprep.mubr.f32.mxu0 0.0
      %7460 = vmatmul.mubr.f32.gmra.mrb[0].mxu0 %v7249
      %v7461 = vpop.f32.mrb[0].mxu0
      %v7462 = vadd.f32 0.0, %v7461
      %v7463 = vpop.f32.mrb[0].mxu0
      %7464 = vmatprep.mubr.f32.mxu0 0.0
      %7465 = vmatmul.mubr.f32.gmra.mrb[0].mxu0 %v7252
      %v7466 = vpop.f32.mrb[0].mxu0
      %v7467 = vadd.f32 0.0, %v7466
      %v7468 = vpop.f32.mrb[0].mxu0
      %7469 = vmatprep.mubr.f32.mxu0 0.0
      %7470 = vmatmul.mubr.f32.gmra.mrb[0].mxu0 %v7255
      %v7471 = vpop.f32.mrb[0].mxu0
      %v7472 = vadd.f32 0.0, %v7471
      %v7473 = vpop.f32.mrb[0].mxu0
      %7474 = vmatprep.mubr.f32.mxu0 0.0
      %7475 = vmatmul.mubr.f32.gmra.mrb[0].mxu0 %v7258
      %v7476 = vpop.f32.mrb[0].mxu0
      %v7477 = vadd.f32 0.0, %v7476
      %v7478 = vpop.f32.mrb[0].mxu0
      %7479 = vmatprep.mubr.f32.mxu0 0.0
      %7480 = vmatmul.mubr.f32.gmra.mrb[0].mxu0 %v7261
      %v7481 = vpop.f32.mrb[0].mxu0
      %v7482 = vadd.f32 0.0, %v7481
      %v7483 = vpop.f32.mrb[0].mxu0
      %7484 = vmatprep.mubr.f32.mxu0 0.0
      %7485 = vmatmul.mubr.f32.gmra.mrb[0].mxu0 %v7264
      %v7486 = vpop.f32.mrb[0].mxu0
      %v7487 = vadd.f32 0.0, %v7486
      %v7488 = vpop.f32.mrb[0].mxu0
      %7489 = vmatprep.mubr.f32.mxu0 0.0
      %7490 = vmatmul.mubr.f32.gmra.mrb[0].mxu0 %v7267
      %v7491 = vpop.f32.mrb[0].mxu0
      %v7492 = vadd.f32 0.0, %v7491
      %v7493 = vpop.f32.mrb[0].mxu0
      %7494 = vmatprep.mubr.f32.mxu0 0.0
      %7495 = vmatmul.mubr.f32.gmra.mrb[0].mxu0 %v7270
      %v7496 = vpop.f32.mrb[0].mxu0
      %v7497 = vadd.f32 0.0, %v7496
      %v7498 = vpop.f32.mrb[0].mxu0
      %7499 = vdwg.mxu0
      %v7500 = vadd.f32 %v7110, %v7342
      %v7501 = vadd.f32 %v7111, %v7347
      %v7502 = vadd.f32 %v7112, %v7352
      %v7503 = vadd.f32 %v7113, %v7357
      %v7504 = vadd.f32 %v7114, %v7362
      %v7505 = vadd.f32 %v7115, %v7367
      %v7506 = vadd.f32 %v7116, %v7372
      %v7507 = vadd.f32 %v7117, %v7377
      %v7508 = vadd.f32 %v7118, %v7382
      %v7509 = vadd.f32 %v7119, %v7387
      %v7510 = vadd.f32 %v7120, %v7392
      %v7511 = vadd.f32 %v7121, %v7397
      %v7512 = vadd.f32 %v7122, %v7402
      %v7513 = vadd.f32 %v7123, %v7407
      %v7514 = vadd.f32 %v7124, %v7412
      %v7515 = vadd.f32 %v7125, %v7417
      %v7516 = vadd.f32 %v7126, %v7422
      %v7517 = vadd.f32 %v7127, %v7427
      %v7518 = vadd.f32 %v7128, %v7432
      %v7519 = vadd.f32 %v7129, %v7437
      %v7520 = vadd.f32 %v7130, %v7442
      %v7521 = vadd.f32 %v7131, %v7447
      %v7522 = vadd.f32 %v7132, %v7452
      %v7523 = vadd.f32 %v7133, %v7457
      %v7524 = vadd.f32 %v7134, %v7462
      %v7525 = vadd.f32 %v7135, %v7467
      %v7526 = vadd.f32 %v7136, %v7472
      %v7527 = vadd.f32 %v7137, %v7477
      %v7528 = vadd.f32 %v7138, %v7482
      %v7529 = vadd.f32 %v7139, %v7487
      %v7530 = vadd.f32 %v7140, %v7492
      %v7531 = vadd.f32 %v7141, %v7497
      %v7532 = vld [vmem:[%s1386 + $0x1] sm:$0xff]
      %v7533 = vld [vmem:[%s1386 + $0x9] sm:$0xff]
      %v7534 = vld [vmem:[%s1386 + $0x19] sm:$0xff]
      %v7535 = vld [vmem:[%s1386 + $0x21] sm:$0xff]
      %v7536 = vld [vmem:[%s1386 + $0x31] sm:$0xff]
      %v7537 = vld [vmem:[%s1386 + $0x39] sm:$0xff]
      %v7538 = vld [vmem:[%s1386 + $0x49] sm:$0xff]
      %v7539 = vld [vmem:[%s1386 + $0x51] sm:$0xff]
      %v7540 = vld [vmem:[%s1386 + $0x61] sm:$0xff]
      %v7541 = vld [vmem:[%s1386 + $0x69] sm:$0xff]
      %v7542 = vld [vmem:[%s1386 + $0x79] sm:$0xff]
      %v7543 = vld [vmem:[%s1386 + $0x81] sm:$0xff]
      %v7544 = vld [vmem:[%s1386 + $0x91] sm:$0xff]
      %v7545 = vld [vmem:[%s1386 + $0x99] sm:$0xff]
      %v7546 = vld [vmem:[%s1386 + $0xa9] sm:$0xff]
      %v7547 = vld [vmem:[%s1386 + $0xb1] sm:$0xff]
      %v7548 = vld [vmem:[%s1386 + $0xc1] sm:$0xff]
      %v7549 = vld [vmem:[%s1386 + $0xc9] sm:$0xff]
      %v7550 = vld [vmem:[%s1386 + $0xd9] sm:$0xff]
      %v7551 = vld [vmem:[%s1386 + $0xe1] sm:$0xff]
      %v7552 = vld [vmem:[%s1386 + $0xf1] sm:$0xff]
      %v7553 = vld [vmem:[%s1386 + $0xf9] sm:$0xff]
      %v7554 = vld [vmem:[%s1386 + $0x109] sm:$0xff]
      %v7555 = vld [vmem:[%s1386 + $0x111] sm:$0xff]
      %v7556 = vld [vmem:[%s1386 + $0x121] sm:$0xff]
      %v7557 = vld [vmem:[%s1386 + $0x129] sm:$0xff]
      %v7558 = vld [vmem:[%s1386 + $0x139] sm:$0xff]
      %v7559 = vld [vmem:[%s1386 + $0x141] sm:$0xff]
      %v7560 = vld [vmem:[%s1386 + $0x151] sm:$0xff]
      %v7561 = vld [vmem:[%s1386 + $0x159] sm:$0xff]
      %v7562 = vld [vmem:[%s1386 + $0x169] sm:$0xff]
      %v7563 = vld [vmem:[%s1386 + $0x171] sm:$0xff]
      %v7564 = vld [vmem:[%s5] sm:$0x1]
      %v7566 = vlaneseq
      %v7567 = vshrl.u32 %v7566, 7
      %v7568 = vsub.s32 0, %v7567
      %v7569 = vrot.slane %v7564, %v7568
      %v7571 = vmul.f32 %v7500, %v7569
      %v7572 = vmul.f32 %v7501, %v7569
      %v7573 = vmul.f32 %v7502, %v7569
      %v7574 = vmul.f32 %v7503, %v7569
      %v7575 = vmul.f32 %v7504, %v7569
      %v7576 = vmul.f32 %v7505, %v7569
      %v7577 = vmul.f32 %v7506, %v7569
      %v7578 = vmul.f32 %v7507, %v7569
      %v7579 = vmul.f32 %v7508, %v7569
      %v7580 = vmul.f32 %v7509, %v7569
      %v7581 = vmul.f32 %v7510, %v7569
      %v7582 = vmul.f32 %v7511, %v7569
      %v7583 = vmul.f32 %v7512, %v7569
      %v7584 = vmul.f32 %v7513, %v7569
      %v7585 = vmul.f32 %v7514, %v7569
      %v7586 = vmul.f32 %v7515, %v7569
      %v7587 = vmul.f32 %v7516, %v7569
      %v7588 = vmul.f32 %v7517, %v7569
      %v7589 = vmul.f32 %v7518, %v7569
      %v7590 = vmul.f32 %v7519, %v7569
      %v7591 = vmul.f32 %v7520, %v7569
      %v7592 = vmul.f32 %v7521, %v7569
      %v7593 = vmul.f32 %v7522, %v7569
      %v7594 = vmul.f32 %v7523, %v7569
      %v7595 = vmul.f32 %v7524, %v7569
      %v7596 = vmul.f32 %v7525, %v7569
      %v7597 = vmul.f32 %v7526, %v7569
      %v7598 = vmul.f32 %v7527, %v7569
      %v7599 = vmul.f32 %v7528, %v7569
      %v7600 = vmul.f32 %v7529, %v7569
      %v7601 = vmul.f32 %v7530, %v7569
      %v7602 = vmul.f32 %v7531, %v7569
      %v7603 = vld [vmem:[%s6] sm:$0x1]
      %v7605 = vlaneseq
      %v7606 = vshrl.u32 %v7605, 7
      %v7607 = vsub.s32 0, %v7606
      %v7608 = vrot.slane %v7603, %v7607
      %v7610 = vadd.f32 %v7571, %v7608
      %v7611 = vadd.f32 %v7572, %v7608
      %v7612 = vadd.f32 %v7573, %v7608
      %v7613 = vadd.f32 %v7574, %v7608
      %v7614 = vadd.f32 %v7575, %v7608
      %v7615 = vadd.f32 %v7576, %v7608
      %v7616 = vadd.f32 %v7577, %v7608
      %v7617 = vadd.f32 %v7578, %v7608
      %v7618 = vadd.f32 %v7579, %v7608
      %v7619 = vadd.f32 %v7580, %v7608
      %v7620 = vadd.f32 %v7581, %v7608
      %v7621 = vadd.f32 %v7582, %v7608
      %v7622 = vadd.f32 %v7583, %v7608
      %v7623 = vadd.f32 %v7584, %v7608
      %v7624 = vadd.f32 %v7585, %v7608
      %v7625 = vadd.f32 %v7586, %v7608
      %v7626 = vadd.f32 %v7587, %v7608
      %v7627 = vadd.f32 %v7588, %v7608
      %v7628 = vadd.f32 %v7589, %v7608
      %v7629 = vadd.f32 %v7590, %v7608
      %v7630 = vadd.f32 %v7591, %v7608
      %v7631 = vadd.f32 %v7592, %v7608
      %v7632 = vadd.f32 %v7593, %v7608
      %v7633 = vadd.f32 %v7594, %v7608
      %v7634 = vadd.f32 %v7595, %v7608
      %v7635 = vadd.f32 %v7596, %v7608
      %v7636 = vadd.f32 %v7597, %v7608
      %v7637 = vadd.f32 %v7598, %v7608
      %v7638 = vadd.f32 %v7599, %v7608
      %v7639 = vadd.f32 %v7600, %v7608
      %v7640 = vadd.f32 %v7601, %v7608
      %v7641 = vadd.f32 %v7602, %v7608
      %v7642 = vadd.f32 %v7610, %v7532
      %v7643 = vadd.f32 %v7611, %v7533
      %v7644 = vadd.f32 %v7612, %v7534
      %v7645 = vadd.f32 %v7613, %v7535
      %v7646 = vadd.f32 %v7614, %v7536
      %v7647 = vadd.f32 %v7615, %v7537
      %v7648 = vadd.f32 %v7616, %v7538
      %v7649 = vadd.f32 %v7617, %v7539
      %v7650 = vadd.f32 %v7618, %v7540
      %v7651 = vadd.f32 %v7619, %v7541
      %v7652 = vadd.f32 %v7620, %v7542
      %v7653 = vadd.f32 %v7621, %v7543
      %v7654 = vadd.f32 %v7622, %v7544
      %v7655 = vadd.f32 %v7623, %v7545
      %v7656 = vadd.f32 %v7624, %v7546
      %v7657 = vadd.f32 %v7625, %v7547
      %v7658 = vadd.f32 %v7626, %v7548
      %v7659 = vadd.f32 %v7627, %v7549
      %v7660 = vadd.f32 %v7628, %v7550
      %v7661 = vadd.f32 %v7629, %v7551
      %v7662 = vadd.f32 %v7630, %v7552
      %v7663 = vadd.f32 %v7631, %v7553
      %v7664 = vadd.f32 %v7632, %v7554
      %v7665 = vadd.f32 %v7633, %v7555
      %v7666 = vadd.f32 %v7634, %v7556
      %v7667 = vadd.f32 %v7635, %v7557
      %v7668 = vadd.f32 %v7636, %v7558
      %v7669 = vadd.f32 %v7637, %v7559
      %v7670 = vadd.f32 %v7638, %v7560
      %v7671 = vadd.f32 %v7639, %v7561
      %v7672 = vadd.f32 %v7640, %v7562
      %v7673 = vadd.f32 %v7641, %v7563
      %vm7674 = vcmp.gt.f32.partialorder %v7642, 0.0
      %vm7675 = vcmp.gt.f32.partialorder %v7643, 0.0
      %vm7676 = vcmp.gt.f32.partialorder %v7644, 0.0
      %vm7677 = vcmp.gt.f32.partialorder %v7645, 0.0
      %vm7678 = vcmp.gt.f32.partialorder %v7646, 0.0
      %vm7679 = vcmp.gt.f32.partialorder %v7647, 0.0
      %vm7680 = vcmp.gt.f32.partialorder %v7648, 0.0
      %vm7681 = vcmp.gt.f32.partialorder %v7649, 0.0
      %vm7682 = vcmp.gt.f32.partialorder %v7650, 0.0
      %vm7683 = vcmp.gt.f32.partialorder %v7651, 0.0
      %vm7684 = vcmp.gt.f32.partialorder %v7652, 0.0
      %vm7685 = vcmp.gt.f32.partialorder %v7653, 0.0
      %vm7686 = vcmp.gt.f32.partialorder %v7654, 0.0
      %vm7687 = vcmp.gt.f32.partialorder %v7655, 0.0
      %vm7688 = vcmp.gt.f32.partialorder %v7656, 0.0
      %vm7689 = vcmp.gt.f32.partialorder %v7657, 0.0
      %vm7690 = vcmp.gt.f32.partialorder %v7658, 0.0
      %vm7691 = vcmp.gt.f32.partialorder %v7659, 0.0
      %vm7692 = vcmp.gt.f32.partialorder %v7660, 0.0
      %vm7693 = vcmp.gt.f32.partialorder %v7661, 0.0
      %vm7694 = vcmp.gt.f32.partialorder %v7662, 0.0
      %vm7695 = vcmp.gt.f32.partialorder %v7663, 0.0
      %vm7696 = vcmp.gt.f32.partialorder %v7664, 0.0
      %vm7697 = vcmp.gt.f32.partialorder %v7665, 0.0
      %vm7698 = vcmp.gt.f32.partialorder %v7666, 0.0
      %vm7699 = vcmp.gt.f32.partialorder %v7667, 0.0
      %vm7700 = vcmp.gt.f32.partialorder %v7668, 0.0
      %vm7701 = vcmp.gt.f32.partialorder %v7669, 0.0
      %vm7702 = vcmp.gt.f32.partialorder %v7670, 0.0
      %vm7703 = vcmp.gt.f32.partialorder %v7671, 0.0
      %vm7704 = vcmp.gt.f32.partialorder %v7672, 0.0
      %vm7705 = vcmp.gt.f32.partialorder %v7673, 0.0
      %v7706 = vmin.f32 %v7642, 0.0
      %v7707 = vmin.f32 %v7643, 0.0
      %v7708 = vmin.f32 %v7644, 0.0
      %v7709 = vmin.f32 %v7645, 0.0
      %v7710 = vmin.f32 %v7646, 0.0
      %v7711 = vmin.f32 %v7647, 0.0
      %v7712 = vmin.f32 %v7648, 0.0
      %v7713 = vmin.f32 %v7649, 0.0
      %v7714 = vmin.f32 %v7650, 0.0
      %v7715 = vmin.f32 %v7651, 0.0
      %v7716 = vmin.f32 %v7652, 0.0
      %v7717 = vmin.f32 %v7653, 0.0
      %v7718 = vmin.f32 %v7654, 0.0
      %v7719 = vmin.f32 %v7655, 0.0
      %v7720 = vmin.f32 %v7656, 0.0
      %v7721 = vmin.f32 %v7657, 0.0
      %v7722 = vmin.f32 %v7658, 0.0
      %v7723 = vmin.f32 %v7659, 0.0
      %v7724 = vmin.f32 %v7660, 0.0
      %v7725 = vmin.f32 %v7661, 0.0
      %v7726 = vmin.f32 %v7662, 0.0
      %v7727 = vmin.f32 %v7663, 0.0
      %v7728 = vmin.f32 %v7664, 0.0
      %v7729 = vmin.f32 %v7665, 0.0
      %v7730 = vmin.f32 %v7666, 0.0
      %v7731 = vmin.f32 %v7667, 0.0
      %v7732 = vmin.f32 %v7668, 0.0
      %v7733 = vmin.f32 %v7669, 0.0
      %v7734 = vmin.f32 %v7670, 0.0
      %v7735 = vmin.f32 %v7671, 0.0
      %v7736 = vmin.f32 %v7672, 0.0
      %v7737 = vmin.f32 %v7673, 0.0
      %v7738 = vmul.f32 %v7706, 1.442695
      %v7739 = vpow.pop %v7738
      %v7740 = vmul.f32 %v7707, 1.442695
      %v7741 = vpow.pop %v7740
      %v7742 = vmul.f32 %v7708, 1.442695
      %v7743 = vpow.pop %v7742
      %v7744 = vmul.f32 %v7709, 1.442695
      %v7745 = vpow.pop %v7744
      %v7746 = vmul.f32 %v7710, 1.442695
      %v7747 = vpow.pop %v7746
      %v7748 = vmul.f32 %v7711, 1.442695
      %v7749 = vpow.pop %v7748
      %v7750 = vmul.f32 %v7712, 1.442695
      %v7751 = vpow.pop %v7750
      %v7752 = vmul.f32 %v7713, 1.442695
      %v7753 = vpow.pop %v7752
      %v7754 = vmul.f32 %v7714, 1.442695
      %v7755 = vpow.pop %v7754
      %v7756 = vmul.f32 %v7715, 1.442695
      %v7757 = vpow.pop %v7756
      %v7758 = vmul.f32 %v7716, 1.442695
      %v7759 = vpow.pop %v7758
      %v7760 = vmul.f32 %v7717, 1.442695
      %v7761 = vpow.pop %v7760
      %v7762 = vmul.f32 %v7718, 1.442695
      %v7763 = vpow.pop %v7762
      %v7764 = vmul.f32 %v7719, 1.442695
      %v7765 = vpow.pop %v7764
      %v7766 = vmul.f32 %v7720, 1.442695
      %v7767 = vpow.pop %v7766
      %v7768 = vmul.f32 %v7721, 1.442695
      %v7769 = vpow.pop %v7768
      %v7770 = vmul.f32 %v7722, 1.442695
      %v7771 = vpow.pop %v7770
      %v7772 = vmul.f32 %v7723, 1.442695
      %v7773 = vpow.pop %v7772
      %v7774 = vmul.f32 %v7724, 1.442695
      %v7775 = vpow.pop %v7774
      %v7776 = vmul.f32 %v7725, 1.442695
      %v7777 = vpow.pop %v7776
      %v7778 = vmul.f32 %v7726, 1.442695
      %v7779 = vpow.pop %v7778
      %v7780 = vmul.f32 %v7727, 1.442695
      %v7781 = vpow.pop %v7780
      %v7782 = vmul.f32 %v7728, 1.442695
      %v7783 = vpow.pop %v7782
      %v7784 = vmul.f32 %v7729, 1.442695
      %v7785 = vpow.pop %v7784
      %v7786 = vmul.f32 %v7730, 1.442695
      %v7787 = vpow.pop %v7786
      %v7788 = vmul.f32 %v7731, 1.442695
      %v7789 = vpow.pop %v7788
      %v7790 = vmul.f32 %v7732, 1.442695
      %v7791 = vpow.pop %v7790
      %v7792 = vmul.f32 %v7733, 1.442695
      %v7793 = vpow.pop %v7792
      %v7794 = vmul.f32 %v7734, 1.442695
      %v7795 = vpow.pop %v7794
      %v7796 = vmul.f32 %v7735, 1.442695
      %v7797 = vpow.pop %v7796
      %v7798 = vmul.f32 %v7736, 1.442695
      %v7799 = vpow.pop %v7798
      %v7800 = vmul.f32 %v7737, 1.442695
      %v7801 = vpow.pop %v7800
      %v7802 = vsub.f32 %v7739, 1.0
      %v7803 = vsub.f32 %v7741, 1.0
      %v7804 = vsub.f32 %v7743, 1.0
      %v7805 = vsub.f32 %v7745, 1.0
      %v7806 = vsub.f32 %v7747, 1.0
      %v7807 = vsub.f32 %v7749, 1.0
      %v7808 = vsub.f32 %v7751, 1.0
      %v7809 = vsub.f32 %v7753, 1.0
      %v7810 = vsub.f32 %v7755, 1.0
      %v7811 = vsub.f32 %v7757, 1.0
      %v7812 = vsub.f32 %v7759, 1.0
      %v7813 = vsub.f32 %v7761, 1.0
      %v7814 = vsub.f32 %v7763, 1.0
      %v7815 = vsub.f32 %v7765, 1.0
      %v7816 = vsub.f32 %v7767, 1.0
      %v7817 = vsub.f32 %v7769, 1.0
      %v7818 = vsub.f32 %v7771, 1.0
      %v7819 = vsub.f32 %v7773, 1.0
      %v7820 = vsub.f32 %v7775, 1.0
      %v7821 = vsub.f32 %v7777, 1.0
      %v7822 = vsub.f32 %v7779, 1.0
      %v7823 = vsub.f32 %v7781, 1.0
      %v7824 = vsub.f32 %v7783, 1.0
      %v7825 = vsub.f32 %v7785, 1.0
      %v7826 = vsub.f32 %v7787, 1.0
      %v7827 = vsub.f32 %v7789, 1.0
      %v7828 = vsub.f32 %v7791, 1.0
      %v7829 = vsub.f32 %v7793, 1.0
      %v7830 = vsub.f32 %v7795, 1.0
      %v7831 = vsub.f32 %v7797, 1.0
      %v7832 = vsub.f32 %v7799, 1.0
      %v7833 = vsub.f32 %v7801, 1.0
      %v7834 = vsel %vm7674, %v7642, %v7802
      %v7835 = vsel %vm7675, %v7643, %v7803
      %v7836 = vsel %vm7676, %v7644, %v7804
      %v7837 = vsel %vm7677, %v7645, %v7805
      %v7838 = vsel %vm7678, %v7646, %v7806
      %v7839 = vsel %vm7679, %v7647, %v7807
      %v7840 = vsel %vm7680, %v7648, %v7808
      %v7841 = vsel %vm7681, %v7649, %v7809
      %v7842 = vsel %vm7682, %v7650, %v7810
      %v7843 = vsel %vm7683, %v7651, %v7811
      %v7844 = vsel %vm7684, %v7652, %v7812
      %v7845 = vsel %vm7685, %v7653, %v7813
      %v7846 = vsel %vm7686, %v7654, %v7814
      %v7847 = vsel %vm7687, %v7655, %v7815
      %v7848 = vsel %vm7688, %v7656, %v7816
      %v7849 = vsel %vm7689, %v7657, %v7817
      %v7850 = vsel %vm7690, %v7658, %v7818
      %v7851 = vsel %vm7691, %v7659, %v7819
      %v7852 = vsel %vm7692, %v7660, %v7820
      %v7853 = vsel %vm7693, %v7661, %v7821
      %v7854 = vsel %vm7694, %v7662, %v7822
      %v7855 = vsel %vm7695, %v7663, %v7823
      %v7856 = vsel %vm7696, %v7664, %v7824
      %v7857 = vsel %vm7697, %v7665, %v7825
      %v7858 = vsel %vm7698, %v7666, %v7826
      %v7859 = vsel %vm7699, %v7667, %v7827
      %v7860 = vsel %vm7700, %v7668, %v7828
      %v7861 = vsel %vm7701, %v7669, %v7829
      %v7862 = vsel %vm7702, %v7670, %v7830
      %v7863 = vsel %vm7703, %v7671, %v7831
      %v7864 = vsel %vm7704, %v7672, %v7832
      %v7865 = vsel %vm7705, %v7673, %v7833
      %7866 = vst.msk [vmem:[%s278] sm:$0xff] %vm346, %v7834
      %7867 = vst.msk [vmem:[%s278 + $0x8] sm:$0xff] %vm346, %v7835
      %7868 = vst.msk [vmem:[%s278 + $0x10] sm:$0xff] %vm346, %v7836
      %7869 = vst.msk [vmem:[%s278 + $0x18] sm:$0xff] %vm346, %v7837
      %7870 = vst.msk [vmem:[%s278 + $0x20] sm:$0xff] %vm346, %v7838
      %7871 = vst.msk [vmem:[%s278 + $0x28] sm:$0xff] %vm346, %v7839
      %7872 = vst.msk [vmem:[%s278 + $0x30] sm:$0xff] %vm346, %v7840
      %7873 = vst.msk [vmem:[%s278 + $0x38] sm:$0xff] %vm346, %v7841
      %7874 = vst.msk [vmem:[%s278 + $0x40] sm:$0xff] %vm346, %v7842
      %7875 = vst.msk [vmem:[%s278 + $0x48] sm:$0xff] %vm346, %v7843
      %7876 = vst.msk [vmem:[%s278 + $0x50] sm:$0xff] %vm346, %v7844
      %7877 = vst.msk [vmem:[%s278 + $0x58] sm:$0xff] %vm346, %v7845
      %7878 = vst.msk [vmem:[%s278 + $0x60] sm:$0xff] %vm346, %v7846
      %7879 = vst.msk [vmem:[%s278 + $0x68] sm:$0xff] %vm346, %v7847
      %7880 = vst.msk [vmem:[%s278 + $0x70] sm:$0xff] %vm346, %v7848
      %7881 = vst.msk [vmem:[%s278 + $0x78] sm:$0xff] %vm346, %v7849
      %7882 = vst.msk [vmem:[%s278 + $0x80] sm:$0xff] %vm346, %v7850
      %7883 = vst.msk [vmem:[%s278 + $0x88] sm:$0xff] %vm346, %v7851
      %7884 = vst.msk [vmem:[%s278 + $0x90] sm:$0xff] %vm346, %v7852
      %7885 = vst.msk [vmem:[%s278 + $0x98] sm:$0xff] %vm346, %v7853
      %7886 = vst.msk [vmem:[%s278 + $0xa0] sm:$0xff] %vm346, %v7854
      %7887 = vst.msk [vmem:[%s278 + $0xa8] sm:$0xff] %vm346, %v7855
      %7888 = vst.msk [vmem:[%s278 + $0xb0] sm:$0xff] %vm346, %v7856
      %7889 = vst.msk [vmem:[%s278 + $0xb8] sm:$0xff] %vm346, %v7857
      %7890 = vst.msk [vmem:[%s278 + $0xc0] sm:$0xff] %vm346, %v7858
      %7891 = vst.msk [vmem:[%s278 + $0xc8] sm:$0xff] %vm346, %v7859
      %7892 = vst.msk [vmem:[%s278 + $0xd0] sm:$0xff] %vm346, %v7860
      %7893 = vst.msk [vmem:[%s278 + $0xd8] sm:$0xff] %vm346, %v7861
      %7894 = vst.msk [vmem:[%s278 + $0xe0] sm:$0xff] %vm346, %v7862
      %7895 = vst.msk [vmem:[%s278 + $0xe8] sm:$0xff] %vm346, %v7863
      %7896 = vst.msk [vmem:[%s278 + $0xf0] sm:$0xff] %vm346, %v7864
      %7897 = vst.msk [vmem:[%s278 + $0xf8] sm:$0xff] %vm346, %v7865
      %p7898 = scmp.lt.s32.totalorder %s18, 1
      %s7899 = scalar_select %p7898, %s18, 1
      %s7900 = smul.addr %s7899, 32
      %s7901 = smul.addr %s7900, 8
      %s7902 = scalar_lea.vmem %s7, %s7901
      // Predicated region
      $region49: #{resnet_block_forward.1} parent=47 // pred_check
        %p7903 = pneg %p188
      $region50: #{resnet_block_forward.1} parent=47 // pred_check_branch
        %7905 = sbr.rel (%p7903) target = $region52
      $region51: #{resnet_block_forward.1} parent=47 // pred_region
        _
      $region52: #{resnet_block_forward.1} parent=47 // pred_fallthru
        _
    $region48: #{resnet_block_forward.1} parent=5 // pred_fallthru
      _
    %p7906 = scmp.le.s32.totalorder 2, %s13
    // Predicated region
    $region53: #{resnet_block_forward.1} parent=5 // pred_check
      %p7907 = pneg %p7906
    $region54: #{resnet_block_forward.1} parent=5 // pred_check_branch
      %7909 = sbr.rel (%p7907) target = $region56
    $region55: #{resnet_block_forward.1} parent=5 // pred_region
      %s7910 = ssub.s32 %s13, 2
      // Predicated region
      $region57: #{resnet_block_forward.1} parent=55 // pred_check
        %p7911 = pneg %p194
      $region58: #{resnet_block_forward.1} parent=55 // pred_check_branch
        %7913 = sbr.rel (%p7911) target = $region60
      $region59: #{resnet_block_forward.1} parent=55 // pred_region
        %p7914 = scmp.lt.s32.totalorder %s19, 1
        %s7915 = scalar_select %p7914, %s19, 1
        %s7916 = smul.addr %s7915, 32
        %s7917 = smul.addr %s7916, 8
        %s7918 = scalar_lea.vmem %s7, %s7917
      $region60: #{resnet_block_forward.1} parent=55 // pred_fallthru
        _
    $region56: #{resnet_block_forward.1} parent=5 // pred_fallthru
      _
  $region6: #{resnet_block_forward.1} parent=0 // loop_footer
    %s17 = sadd.s32 1, %s13
  $region7: #{resnet_block_forward.1} parent=0 // loop_footer_branch
    %12 = sbr.rel target = $region3
  $region8: #{resnet_block_forward.1} parent=0 // loop_exit
    _

</llo_original>
